<compile_context>
chip_gen: v7x
topology: tpu7x:2x2x1
jax: 0.10.0
libtpu: 0.0.40
codegen_flags: <defaults>
</compile_context>

<pallas_src>
import functools

import jax
import jax.numpy as jnp
from jax.experimental import pallas as pl
from jax.experimental.pallas import tpu as pltpu

MU_PAD = 128  # pad the mu head to one full lane register -> unmasked store


# ----------------------------- Pallas kernels ------------------------------ #

def _wx_bias_relu_kernel(w_ref, x_ref, b_ref, o_ref):
    """o[N, M] = relu(W[N, K] @ X[K, M] + b[N, 1]).  bf16 MXU, f32 epilogue."""
    acc = jnp.dot(w_ref[...], x_ref[...], preferred_element_type=jnp.float32)
    o_ref[...] = jnp.maximum(acc + b_ref[...], 0.0).astype(o_ref.dtype)


def _conv123_kernel(p1_ref, w1_ref, b1_ref, w2_ref, b2_ref, g2_ref,
                    w3_ref, b3_ref, g3_ref, o_ref):
    """conv1+conv2+conv3 (all 3x3, stride 2, pad 1) for ONE sample.

    conv1 uses a pre-built patch matrix.  conv2/conv3 are computed as:
      z = W_all_taps @ a            (one channel-contraction matmul, 9*Cout rows)
      out = sum_tap z[tap] @ G_tap  (one-hot spatial selection per tap; G also
                                     implements the zero padding)
    so the stride-2 im2col never leaves VMEM and uses only plain 2-D dots.
    """
    # ---- conv1: (64, 288) @ (288, 576) ----
    a1 = jnp.dot(w1_ref[...], p1_ref[0], preferred_element_type=jnp.float32)
    a1 = jnp.maximum(a1 + b1_ref[...], 0.0).astype(jnp.bfloat16)      # (64, 576)

    # ---- conv2: 24x24 -> 12x12 ----
    z2 = jnp.dot(w2_ref[...], a1, preferred_element_type=jnp.float32)  # (288, 576)
    z2 = z2.astype(jnp.bfloat16)
    acc2 = jnp.dot(z2[0:32, :], g2_ref[0], preferred_element_type=jnp.float32)
    for t in range(1, 9):
        acc2 = acc2 + jnp.dot(z2[t * 32:(t + 1) * 32, :], g2_ref[t],
                              preferred_element_type=jnp.float32)
    a2 = jnp.maximum(acc2 + b2_ref[...], 0.0).astype(jnp.bfloat16)     # (32, 144)

    # ---- conv3: 12x12 -> 6x6 ----
    z3 = jnp.dot(w3_ref[...], a2, preferred_element_type=jnp.float32)  # (144, 144)
    z3 = z3.astype(jnp.bfloat16)
    acc3 = jnp.dot(z3[0:16, :], g3_ref[0], preferred_element_type=jnp.float32)
    for t in range(1, 9):
        acc3 = acc3 + jnp.dot(z3[t * 16:(t + 1) * 16, :], g3_ref[t],
                              preferred_element_type=jnp.float32)
    a3 = jnp.maximum(acc3 + b3_ref[...], 0.0)                          # (16, 36)
    o_ref[0] = a3.astype(o_ref.dtype)


def _fused_fc_kernel(x_ref, w1_ref, b1_ref, w2_ref, b2_ref, o_ref):
    """mu = tanh(relu(x @ W1 + b1) @ W2 + b2); hidden h never touches HBM."""
    h = jnp.dot(x_ref[...], w1_ref[...], preferred_element_type=jnp.float32)
    h = jnp.maximum(h + b1_ref[...], 0.0)                               # f32
    mu = jnp.dot(h.astype(jnp.bfloat16), w2_ref[...],
                 preferred_element_type=jnp.float32)
    o_ref[...] = jnp.tanh(mu + b2_ref[...]).astype(o_ref.dtype)


# ------------------------------ wrappers ------------------------------------ #

def conv0(p0, w, b):
    """relu(W0 @ P0 + b0) as one single-step pallas_call (full-M block)."""
    n, k = w.shape
    m = p0.shape[1]
    return pl.pallas_call(
        _wx_bias_relu_kernel,
        out_shape=jax.ShapeDtypeStruct((n, m), jnp.bfloat16),
        grid=(1,),
        in_specs=[pl.BlockSpec((n, k), lambda i: (0, 0)),
                  pl.BlockSpec((k, m), lambda i: (0, 0)),
                  pl.BlockSpec((n, 1), lambda i: (0, 0))],
        out_specs=pl.BlockSpec((n, m), lambda i: (0, 0)),
        compiler_params=pltpu.CompilerParams(
            dimension_semantics=("arbitrary",)),
    )(w, p0, b)


def fused_conv123(p1, params):
    """conv1+conv2+conv3 fused; grid over batch, weights resident across steps."""
    bsz = p1.shape[0]
    return pl.pallas_call(
        _conv123_kernel,
        out_shape=jax.ShapeDtypeStruct((bsz, 16, 36), jnp.bfloat16),
        grid=(bsz,),
        in_specs=[
            pl.BlockSpec((1, 288, 576), lambda b: (b, 0, 0)),   # conv1 patches
            pl.BlockSpec((64, 288), lambda b: (0, 0)),          # conv1 W
            pl.BlockSpec((64, 1), lambda b: (0, 0)),            # conv1 b
            pl.BlockSpec((288, 64), lambda b: (0, 0)),          # conv2 W (taps)
            pl.BlockSpec((32, 1), lambda b: (0, 0)),            # conv2 b
            pl.BlockSpec((9, 576, 144), lambda b: (0, 0, 0)),   # conv2 G taps
            pl.BlockSpec((144, 32), lambda b: (0, 0)),          # conv3 W (taps)
            pl.BlockSpec((16, 1), lambda b: (0, 0)),            # conv3 b
            pl.BlockSpec((9, 144, 36), lambda b: (0, 0, 0)),    # conv3 G taps
        ],
        out_specs=pl.BlockSpec((1, 16, 36), lambda b: (b, 0, 0)),
        compiler_params=pltpu.CompilerParams(
            dimension_semantics=("arbitrary",)),
    )(p1, params["conv1_w"], params["conv1_b"], params["conv2_w"],
      params["conv2_b"], params["g2"], params["conv3_w"], params["conv3_b"],
      params["g3"])


def fused_fc(flat, w1, b1, w2, b2):
    """Fused Linear(576,256)+ReLU -> Linear(256, MU_PAD)+tanh in one call."""
    bsz, k1 = flat.shape
    h = w1.shape[1]
    n = w2.shape[1]
    return pl.pallas_call(
        _fused_fc_kernel,
        out_shape=jax.ShapeDtypeStruct((bsz, n), jnp.float32),
        grid=(1,),
        in_specs=[
            pl.BlockSpec((bsz, k1), lambda i: (0, 0)),
            pl.BlockSpec((k1, h), lambda i: (0, 0)),
            pl.BlockSpec((1, h), lambda i: (0, 0)),
            pl.BlockSpec((h, n), lambda i: (0, 0)),
            pl.BlockSpec((1, n), lambda i: (0, 0)),
        ],
        out_specs=pl.BlockSpec((bsz, n), lambda i: (0, 0)),
        compiler_params=pltpu.CompilerParams(
            dimension_semantics=("arbitrary",)),
    )(flat, w1, b1, w2, b2)


# ------------------------------ XLA glue ------------------------------------ #

def _im2col_patches(x_cbhw, k=3, stride=2, pad=1):
    """Patches (C, k*k, B, Ho, Wo); tap/row ordering matches torch reshape."""
    c, b, hh, ww = x_cbhw.shape
    xp = jnp.pad(x_cbhw, ((0, 0), (0, 0), (pad, pad), (pad, pad)))
    ho = (hh + 2 * pad - k) // stride + 1
    wo = (ww + 2 * pad - k) // stride + 1
    cols = []
    for di in range(k):
        for dj in range(k):
            cols.append(xp[:, :, di:di + stride * ho:stride,
                           dj:dj + stride * wo:stride])
    return jnp.stack(cols, axis=1), ho, wo


def im2col_flat(x_cbhw):
    """(Cin*9, B*Ho*Wo), rows (cin, di, dj), cols (b, ho, wo)."""
    p, ho, wo = _im2col_patches(x_cbhw)
    c, _, b, _, _ = p.shape
    return p.reshape(c * 9, b * ho * wo)


def im2col_per_sample(x_cbhw):
    """(B, Cin*9, Ho*Wo): per-sample patch matrices for the fused conv call."""
    p, ho, wo = _im2col_patches(x_cbhw)
    c, _, b, _, _ = p.shape
    return jnp.transpose(p, (2, 0, 1, 3, 4)).reshape(b, c * 9, ho * wo)


# --------------------------- parameter creation ------------------------------ #

def _uniform(key, shape, bound):
    return jax.random.uniform(key, shape, jnp.float32, -bound, bound)


def _make_tap_selectors(hin, win, hout, wout, k=3, stride=2, pad=1,
                        dtype=jnp.bfloat16):
    """One-hot G[tap, h*win+w, ho*wout+wo] = 1 iff (h,w)==(s*ho+di-p, s*wo+dj-p).

    Out-of-range source positions simply have no 1 -> implements zero padding.
    """
    h = jnp.arange(hin)
    w = jnp.arange(win)
    ho = jnp.arange(hout)
    wo = jnp.arange(wout)
    taps = []
    for di in range(k):
        for dj in range(k):
            mh = h[:, None] == (stride * ho + di - pad)[None, :]   # (hin, hout)
            mw = w[:, None] == (stride * wo + dj - pad)[None, :]   # (win, wout)
            g = mh[:, None, :, None] & mw[None, :, None, :]
            taps.append(g.reshape(hin * win, hout * wout))
    return jnp.stack(taps, axis=0).astype(dtype)


def init_params(key, n_actions=2, fc_dims=256):
    """PyTorch-default-style init (uniform +-1/sqrt(fan_in)), stored already
    reshaped / transposed / cast to the exact form the kernels consume."""
    assert n_actions <= MU_PAD, "mu head padding assumes n_actions <= 128"
    keys = jax.random.split(key, 12)
    p = {}

    def conv_init(kw, kb, shape):
        cout, cin, k, _ = shape
        bound = 1.0 / float(cin * k * k) ** 0.5
        return _uniform(kw, shape, bound), _uniform(kb, (cout,), bound)

    # conv0: consumed as W[Cout, Cin*9] against the patch matrix.
    w0, b0 = conv_init(keys[0], keys[1], (32, 4, 3, 3))
    p["conv0_w"] = w0.reshape(32, 36).astype(jnp.bfloat16)
    p["conv0_b"] = b0.reshape(32, 1)

    # conv1: same orientation (patches built outside the fused call).
    w1, b1 = conv_init(keys[2], keys[3], (64, 32, 3, 3))
    p["conv1_w"] = w1.reshape(64, 288).astype(jnp.bfloat16)
    p["conv1_b"] = b1.reshape(64, 1)

    # conv2 / conv3: channel-contraction-first form, rows ordered (tap, cout).
    w2, b2 = conv_init(keys[4], keys[5], (32, 64, 3, 3))
    p["conv2_w"] = jnp.transpose(w2, (2, 3, 0, 1)).reshape(288, 64).astype(jnp.bfloat16)
    p["conv2_b"] = b2.reshape(32, 1)

    w3, b3 = conv_init(keys[6], keys[7], (16, 32, 3, 3))
    p["conv3_w"] = jnp.transpose(w3, (2, 3, 0, 1)).reshape(144, 32).astype(jnp.bfloat16)
    p["conv3_b"] = b3.reshape(16, 1)

    # fc: Linear(576, fc_dims) -> store W^T (576, fc_dims) bf16.
    bound = 1.0 / 576.0 ** 0.5
    wfc = _uniform(keys[8], (fc_dims, 576), bound)
    bfc = _uniform(keys[9], (fc_dims,), bound)
    p["fc_w"] = wfc.T.astype(jnp.bfloat16)
    p["fc_b"] = bfc.reshape(1, fc_dims)

    # mu: Linear(fc_dims, n_actions) -> W^T zero-padded to MU_PAD lanes.
    bound = 1.0 / float(fc_dims) ** 0.5
    wmu = _uniform(keys[10], (n_actions, fc_dims), bound)
    bmu = _uniform(keys[11], (n_actions,), bound)
    wpad = jnp.zeros((fc_dims, MU_PAD), jnp.float32).at[:, :n_actions].set(wmu.T)
    bpad = jnp.zeros((1, MU_PAD), jnp.float32).at[0, :n_actions].set(bmu)
    p["mu_w"] = wpad.astype(jnp.bfloat16)
    p["mu_b"] = bpad

    # In-kernel stride-2 im2col selection matrices for conv2 / conv3.
    p["g2"] = _make_tap_selectors(24, 24, 12, 12)   # (9, 576, 144)
    p["g3"] = _make_tap_selectors(12, 12, 6, 6)     # (9, 144, 36)
    return p


# ------------------------------- forward ------------------------------------- #

def actor_forward(params, state_nchw, n_actions):
    b = state_nchw.shape[0]
    # conv0 patches from the raw NCHW input (one XLA fusion: transpose+cast+gather)
    x = jnp.transpose(state_nchw, (1, 0, 2, 3)).astype(jnp.bfloat16)  # (4,B,96,96)
    p0 = im2col_flat(x)                                               # (36, B*2304)
    out0 = conv0(p0, params["conv0_w"], params["conv0_b"])            # (32, B*2304)

    x1 = out0.reshape(32, b, 48, 48)
    p1 = im2col_per_sample(x1)                                        # (B, 288, 576)
    a3 = fused_conv123(p1, params)                                    # (B, 16, 36)

    # (B, 16, 6*6) row-major == PyTorch's Flatten(start_dim=1) order (c, h, w):
    # free metadata reshape, no relayout kernel.
    flat = a3.reshape(b, 576)
    mu_pad = fused_fc(flat, params["fc_w"], params["fc_b"],
                      params["mu_w"], params["mu_b"])                 # (B, 128)
    return mu_pad[:, :n_actions]


# --------------------------------- main --------------------------------------- #

if __name__ == "__main__":
    key = jax.random.PRNGKey(0)
    k_param, k_in = jax.random.split(key)

    n_actions = 2
    params = init_params(k_param, n_actions=n_actions, fc_dims=256)

    # Spatial size must be 96 so the 4 stride-2 convs give 16*6*6 = 576 fc inputs.
    state = jax.random.normal(k_in, (2, 4, 96, 96), dtype=jnp.float32)

    fwd = jax.jit(functools.partial(actor_forward, n_actions=n_actions))
    out = jax.block_until_ready(fwd(params, state))

    assert out.shape == (2, n_actions), out.shape
    assert bool(jnp.all(jnp.isfinite(out)))
    assert bool(jnp.all(jnp.abs(out) <= 1.0))  # tanh output range
    print("KERNEL_OK")
</pallas_src>

<mosaic_0001>
module attributes {stable_mosaic.version = 11 : i64} {
  func.func @_wx_bias_relu_kernel(%arg0: i32, %arg1: memref<32x36xbf16, #tpu.memory_space<vmem>>, %arg2: memref<36x4608xbf16, #tpu.memory_space<vmem>>, %arg3: memref<32x1xf32, #tpu.memory_space<vmem>>, %arg4: memref<32x4608xbf16, #tpu.memory_space<vmem>>) attributes {dimension_semantics = [#tpu.dimension_semantics<arbitrary>], iteration_bounds = array<i64: 1>, scalar_prefetch = 0 : i64, scratch_operands = 0 : i64, tpu.core_type = #tpu.core_type<tc>, window_params = [{pipeline_mode = #tpu.pipeline_mode<synchronous>, transform_indices = @transform_0, window_bounds = array<i64: 32, 36>}, {pipeline_mode = #tpu.pipeline_mode<synchronous>, transform_indices = @transform_1, window_bounds = array<i64: 36, 4608>}, {pipeline_mode = #tpu.pipeline_mode<synchronous>, transform_indices = @transform_2, window_bounds = array<i64: 32, 1>}, {pipeline_mode = #tpu.pipeline_mode<synchronous>, transform_indices = @transform_3, window_bounds = array<i64: 32, 4608>}]} {
    %c0 = arith.constant 0 : index
    %c0_0 = arith.constant 0 : index
    %0 = vector.load %arg1[%c0, %c0_0] : memref<32x36xbf16, #tpu.memory_space<vmem>>, vector<32x36xbf16>
    %c0_1 = arith.constant 0 : index
    %c0_2 = arith.constant 0 : index
    %1 = vector.load %arg2[%c0_1, %c0_2] : memref<36x4608xbf16, #tpu.memory_space<vmem>>, vector<36x4608xbf16>
    %cst = arith.constant dense<0.000000e+00> : vector<32x4608xf32>
    %2 = tpu.matmul %0, %1, %cst {dimension_numbers = #tpu.dot_dimension_numbers<[1], [0], [0], [1], [0, 0, 1, 1], [], []>} : vector<32x36xbf16>, vector<36x4608xbf16>, vector<32x4608xf32> -> vector<32x4608xf32>
    %c0_3 = arith.constant 0 : index
    %c0_4 = arith.constant 0 : index
    %3 = vector.load %arg3[%c0_3, %c0_4] : memref<32x1xf32, #tpu.memory_space<vmem>>, vector<32x1xf32>
    %4 = vector.broadcast %3 : vector<32x1xf32> to vector<32x4608xf32>
    %5 = arith.addf %2, %4 : vector<32x4608xf32>
    %cst_5 = arith.constant 0.000000e+00 : f32
    %6 = vector.broadcast %cst_5 : f32 to vector<32x4608xf32>
    %7 = arith.maximumf %5, %6 : vector<32x4608xf32>
    %8 = arith.truncf %7 : vector<32x4608xf32> to vector<32x4608xbf16>
    %c0_6 = arith.constant 0 : index
    %c0_7 = arith.constant 0 : index
    %9 = vector.load %arg4[%c0_6, %c0_7] : memref<32x4608xbf16, #tpu.memory_space<vmem>>, vector<32x4608xbf16>
    tpu.vector_store %arg4[%c0_6, %c0_7], %8 {strides = array<i32>} : memref<32x4608xbf16, #tpu.memory_space<vmem>>, vector<32x4608xbf16>,
    return
  }
  func.func @transform_0(%arg0: i32) -> (i32, i32) {
    %c0_i32 = arith.constant 0 : i32
    %c0_i32_0 = arith.constant 0 : i32
    %c0_i32_1 = arith.constant 0 : i32
    return %c0_i32, %c0_i32_0 : i32, i32
  }
  func.func @transform_1(%arg0: i32) -> (i32, i32) {
    %c0_i32 = arith.constant 0 : i32
    %c0_i32_0 = arith.constant 0 : i32
    %c0_i32_1 = arith.constant 0 : i32
    return %c0_i32, %c0_i32_0 : i32, i32
  }
  func.func @transform_2(%arg0: i32) -> (i32, i32) {
    %c0_i32 = arith.constant 0 : i32
    %c0_i32_0 = arith.constant 0 : i32
    %c0_i32_1 = arith.constant 0 : i32
    return %c0_i32, %c0_i32_0 : i32, i32
  }
  func.func @transform_3(%arg0: i32) -> (i32, i32) {
    %c0_i32 = arith.constant 0 : i32
    %c0_i32_0 = arith.constant 0 : i32
    %c0_i32_1 = arith.constant 0 : i32
    return %c0_i32, %c0_i32_0 : i32, i32
  }
}

module attributes {stable_mosaic.version = 11 : i64} {
  func.func @_conv123_kernel(%arg0: i32, %arg1: memref<1x288x576xbf16, #tpu.memory_space<vmem>>, %arg2: memref<64x288xbf16, #tpu.memory_space<vmem>>, %arg3: memref<64x1xf32, #tpu.memory_space<vmem>>, %arg4: memref<288x64xbf16, #tpu.memory_space<vmem>>, %arg5: memref<32x1xf32, #tpu.memory_space<vmem>>, %arg6: memref<9x576x144xbf16, #tpu.memory_space<vmem>>, %arg7: memref<144x32xbf16, #tpu.memory_space<vmem>>, %arg8: memref<16x1xf32, #tpu.memory_space<vmem>>, %arg9: memref<9x144x36xbf16, #tpu.memory_space<vmem>>, %arg10: memref<1x16x36xbf16, #tpu.memory_space<vmem>>) attributes {dimension_semantics = [#tpu.dimension_semantics<arbitrary>], iteration_bounds = array<i64: 2>, scalar_prefetch = 0 : i64, scratch_operands = 0 : i64, tpu.core_type = #tpu.core_type<tc>, window_params = [{transform_indices = @transform_0, window_bounds = array<i64: 1, 288, 576>}, {pipeline_mode = #tpu.pipeline_mode<synchronous>, transform_indices = @transform_1, window_bounds = array<i64: 64, 288>}, {pipeline_mode = #tpu.pipeline_mode<synchronous>, transform_indices = @transform_2, window_bounds = array<i64: 64, 1>}, {pipeline_mode = #tpu.pipeline_mode<synchronous>, transform_indices = @transform_3, window_bounds = array<i64: 288, 64>}, {pipeline_mode = #tpu.pipeline_mode<synchronous>, transform_indices = @transform_4, window_bounds = array<i64: 32, 1>}, {pipeline_mode = #tpu.pipeline_mode<synchronous>, transform_indices = @transform_5, window_bounds = array<i64: 9, 576, 144>}, {pipeline_mode = #tpu.pipeline_mode<synchronous>, transform_indices = @transform_6, window_bounds = array<i64: 144, 32>}, {pipeline_mode = #tpu.pipeline_mode<synchronous>, transform_indices = @transform_7, window_bounds = array<i64: 16, 1>}, {pipeline_mode = #tpu.pipeline_mode<synchronous>, transform_indices = @transform_8, window_bounds = array<i64: 9, 144, 36>}, {transform_indices = @transform_9, window_bounds = array<i64: 1, 16, 36>}]} {
    %c0 = arith.constant 0 : index
    %c0_0 = arith.constant 0 : index
    %0 = vector.load %arg2[%c0, %c0_0] : memref<64x288xbf16, #tpu.memory_space<vmem>>, vector<64x288xbf16>
    %c0_1 = arith.constant 0 : index
    %c0_2 = arith.constant 0 : index
    %c0_3 = arith.constant 0 : index
    %1 = vector.load %arg1[%c0_1, %c0_2, %c0_3] : memref<1x288x576xbf16, #tpu.memory_space<vmem>>, vector<1x288x576xbf16>
    %2 = vector.shape_cast %1 : vector<1x288x576xbf16> to vector<288x576xbf16>
    %cst = arith.constant dense<0.000000e+00> : vector<64x576xf32>
    %3 = tpu.matmul %0, %2, %cst {dimension_numbers = #tpu.dot_dimension_numbers<[1], [0], [0], [1], [0, 0, 1, 1], [], []>} : vector<64x288xbf16>, vector<288x576xbf16>, vector<64x576xf32> -> vector<64x576xf32>
    %c0_4 = arith.constant 0 : index
    %c0_5 = arith.constant 0 : index
    %4 = vector.load %arg3[%c0_4, %c0_5] : memref<64x1xf32, #tpu.memory_space<vmem>>, vector<64x1xf32>
    %5 = vector.broadcast %4 : vector<64x1xf32> to vector<64x576xf32>
    %6 = arith.addf %3, %5 : vector<64x576xf32>
    %cst_6 = arith.constant 0.000000e+00 : f32
    %7 = vector.broadcast %cst_6 : f32 to vector<64x576xf32>
    %8 = arith.maximumf %6, %7 : vector<64x576xf32>
    %9 = arith.truncf %8 : vector<64x576xf32> to vector<64x576xbf16>
    %c0_7 = arith.constant 0 : index
    %c0_8 = arith.constant 0 : index
    %10 = vector.load %arg4[%c0_7, %c0_8] : memref<288x64xbf16, #tpu.memory_space<vmem>>, vector<288x64xbf16>
    %cst_9 = arith.constant dense<0.000000e+00> : vector<288x576xf32>
    %11 = tpu.matmul %10, %9, %cst_9 {dimension_numbers = #tpu.dot_dimension_numbers<[1], [0], [0], [1], [0, 0, 1, 1], [], []>} : vector<288x64xbf16>, vector<64x576xbf16>, vector<288x576xf32> -> vector<288x576xf32>
    %12 = arith.truncf %11 : vector<288x576xf32> to vector<288x576xbf16>
    %13 = vector.extract_strided_slice %12 {offsets = [0, 0], sizes = [32, 576], strides = [1, 1]} : vector<288x576xbf16> to vector<32x576xbf16>
    %c0_10 = arith.constant 0 : index
    %c0_11 = arith.constant 0 : index
    %c0_12 = arith.constant 0 : index
    %14 = vector.load %arg6[%c0_10, %c0_11, %c0_12] : memref<9x576x144xbf16, #tpu.memory_space<vmem>>, vector<1x576x144xbf16>
    %15 = vector.shape_cast %14 : vector<1x576x144xbf16> to vector<576x144xbf16>
    %cst_13 = arith.constant dense<0.000000e+00> : vector<32x144xf32>
    %16 = tpu.matmul %13, %15, %cst_13 {dimension_numbers = #tpu.dot_dimension_numbers<[1], [0], [0], [1], [0, 0, 1, 1], [], []>} : vector<32x576xbf16>, vector<576x144xbf16>, vector<32x144xf32> -> vector<32x144xf32>
    %17 = vector.extract_strided_slice %12 {offsets = [32, 0], sizes = [32, 576], strides = [1, 1]} : vector<288x576xbf16> to vector<32x576xbf16>
    %c1 = arith.constant 1 : index
    %c0_14 = arith.constant 0 : index
    %c0_15 = arith.constant 0 : index
    %18 = vector.load %arg6[%c1, %c0_14, %c0_15] : memref<9x576x144xbf16, #tpu.memory_space<vmem>>, vector<1x576x144xbf16>
    %19 = vector.shape_cast %18 : vector<1x576x144xbf16> to vector<576x144xbf16>
    %cst_16 = arith.constant dense<0.000000e+00> : vector<32x144xf32>
    %20 = tpu.matmul %17, %19, %cst_16 {dimension_numbers = #tpu.dot_dimension_numbers<[1], [0], [0], [1], [0, 0, 1, 1], [], []>} : vector<32x576xbf16>, vector<576x144xbf16>, vector<32x144xf32> -> vector<32x144xf32>
    %21 = arith.addf %16, %20 : vector<32x144xf32>
    %22 = vector.extract_strided_slice %12 {offsets = [64, 0], sizes = [32, 576], strides = [1, 1]} : vector<288x576xbf16> to vector<32x576xbf16>
    %c2 = arith.constant 2 : index
    %c0_17 = arith.constant 0 : index
    %c0_18 = arith.constant 0 : index
    %23 = vector.load %arg6[%c2, %c0_17, %c0_18] : memref<9x576x144xbf16, #tpu.memory_space<vmem>>, vector<1x576x144xbf16>
    %24 = vector.shape_cast %23 : vector<1x576x144xbf16> to vector<576x144xbf16>
    %cst_19 = arith.constant dense<0.000000e+00> : vector<32x144xf32>
    %25 = tpu.matmul %22, %24, %cst_19 {dimension_numbers = #tpu.dot_dimension_numbers<[1], [0], [0], [1], [0, 0, 1, 1], [], []>} : vector<32x576xbf16>, vector<576x144xbf16>, vector<32x144xf32> -> vector<32x144xf32>
    %26 = arith.addf %21, %25 : vector<32x144xf32>
    %27 = vector.extract_strided_slice %12 {offsets = [96, 0], sizes = [32, 576], strides = [1, 1]} : vector<288x576xbf16> to vector<32x576xbf16>
    %c3 = arith.constant 3 : index
    %c0_20 = arith.constant 0 : index
    %c0_21 = arith.constant 0 : index
    %28 = vector.load %arg6[%c3, %c0_20, %c0_21] : memref<9x576x144xbf16, #tpu.memory_space<vmem>>, vector<1x576x144xbf16>
    %29 = vector.shape_cast %28 : vector<1x576x144xbf16> to vector<576x144xbf16>
    %cst_22 = arith.constant dense<0.000000e+00> : vector<32x144xf32>
    %30 = tpu.matmul %27, %29, %cst_22 {dimension_numbers = #tpu.dot_dimension_numbers<[1], [0], [0], [1], [0, 0, 1, 1], [], []>} : vector<32x576xbf16>, vector<576x144xbf16>, vector<32x144xf32> -> vector<32x144xf32>
    %31 = arith.addf %26, %30 : vector<32x144xf32>
    %32 = vector.extract_strided_slice %12 {offsets = [128, 0], sizes = [32, 576], strides = [1, 1]} : vector<288x576xbf16> to vector<32x576xbf16>
    %c4 = arith.constant 4 : index
    %c0_23 = arith.constant 0 : index
    %c0_24 = arith.constant 0 : index
    %33 = vector.load %arg6[%c4, %c0_23, %c0_24] : memref<9x576x144xbf16, #tpu.memory_space<vmem>>, vector<1x576x144xbf16>
    %34 = vector.shape_cast %33 : vector<1x576x144xbf16> to vector<576x144xbf16>
    %cst_25 = arith.constant dense<0.000000e+00> : vector<32x144xf32>
    %35 = tpu.matmul %32, %34, %cst_25 {dimension_numbers = #tpu.dot_dimension_numbers<[1], [0], [0], [1], [0, 0, 1, 1], [], []>} : vector<32x576xbf16>, vector<576x144xbf16>, vector<32x144xf32> -> vector<32x144xf32>
    %36 = arith.addf %31, %35 : vector<32x144xf32>
    %37 = vector.extract_strided_slice %12 {offsets = [160, 0], sizes = [32, 576], strides = [1, 1]} : vector<288x576xbf16> to vector<32x576xbf16>
    %c5 = arith.constant 5 : index
    %c0_26 = arith.constant 0 : index
    %c0_27 = arith.constant 0 : index
    %38 = vector.load %arg6[%c5, %c0_26, %c0_27] : memref<9x576x144xbf16, #tpu.memory_space<vmem>>, vector<1x576x144xbf16>
    %39 = vector.shape_cast %38 : vector<1x576x144xbf16> to vector<576x144xbf16>
    %cst_28 = arith.constant dense<0.000000e+00> : vector<32x144xf32>
    %40 = tpu.matmul %37, %39, %cst_28 {dimension_numbers = #tpu.dot_dimension_numbers<[1], [0], [0], [1], [0, 0, 1, 1], [], []>} : vector<32x576xbf16>, vector<576x144xbf16>, vector<32x144xf32> -> vector<32x144xf32>
    %41 = arith.addf %36, %40 : vector<32x144xf32>
    %42 = vector.extract_strided_slice %12 {offsets = [192, 0], sizes = [32, 576], strides = [1, 1]} : vector<288x576xbf16> to vector<32x576xbf16>
    %c6 = arith.constant 6 : index
    %c0_29 = arith.constant 0 : index
    %c0_30 = arith.constant 0 : index
    %43 = vector.load %arg6[%c6, %c0_29, %c0_30] : memref<9x576x144xbf16, #tpu.memory_space<vmem>>, vector<1x576x144xbf16>
    %44 = vector.shape_cast %43 : vector<1x576x144xbf16> to vector<576x144xbf16>
    %cst_31 = arith.constant dense<0.000000e+00> : vector<32x144xf32>
    %45 = tpu.matmul %42, %44, %cst_31 {dimension_numbers = #tpu.dot_dimension_numbers<[1], [0], [0], [1], [0, 0, 1, 1], [], []>} : vector<32x576xbf16>, vector<576x144xbf16>, vector<32x144xf32> -> vector<32x144xf32>
    %46 = arith.addf %41, %45 : vector<32x144xf32>
    %47 = vector.extract_strided_slice %12 {offsets = [224, 0], sizes = [32, 576], strides = [1, 1]} : vector<288x576xbf16> to vector<32x576xbf16>
    %c7 = arith.constant 7 : index
    %c0_32 = arith.constant 0 : index
    %c0_33 = arith.constant 0 : index
    %48 = vector.load %arg6[%c7, %c0_32, %c0_33] : memref<9x576x144xbf16, #tpu.memory_space<vmem>>, vector<1x576x144xbf16>
    %49 = vector.shape_cast %48 : vector<1x576x144xbf16> to vector<576x144xbf16>
    %cst_34 = arith.constant dense<0.000000e+00> : vector<32x144xf32>
    %50 = tpu.matmul %47, %49, %cst_34 {dimension_numbers = #tpu.dot_dimension_numbers<[1], [0], [0], [1], [0, 0, 1, 1], [], []>} : vector<32x576xbf16>, vector<576x144xbf16>, vector<32x144xf32> -> vector<32x144xf32>
    %51 = arith.addf %46, %50 : vector<32x144xf32>
    %52 = vector.extract_strided_slice %12 {offsets = [256, 0], sizes = [32, 576], strides = [1, 1]} : vector<288x576xbf16> to vector<32x576xbf16>
    %c8 = arith.constant 8 : index
    %c0_35 = arith.constant 0 : index
    %c0_36 = arith.constant 0 : index
    %53 = vector.load %arg6[%c8, %c0_35, %c0_36] : memref<9x576x144xbf16, #tpu.memory_space<vmem>>, vector<1x576x144xbf16>
    %54 = vector.shape_cast %53 : vector<1x576x144xbf16> to vector<576x144xbf16>
    %cst_37 = arith.constant dense<0.000000e+00> : vector<32x144xf32>
    %55 = tpu.matmul %52, %54, %cst_37 {dimension_numbers = #tpu.dot_dimension_numbers<[1], [0], [0], [1], [0, 0, 1, 1], [], []>} : vector<32x576xbf16>, vector<576x144xbf16>, vector<32x144xf32> -> vector<32x144xf32>
    %56 = arith.addf %51, %55 : vector<32x144xf32>
    %c0_38 = arith.constant 0 : index
    %c0_39 = arith.constant 0 : index
    %57 = vector.load %arg5[%c0_38, %c0_39] : memref<32x1xf32, #tpu.memory_space<vmem>>, vector<32x1xf32>
    %58 = vector.broadcast %57 : vector<32x1xf32> to vector<32x144xf32>
    %59 = arith.addf %56, %58 : vector<32x144xf32>
    %cst_40 = arith.constant 0.000000e+00 : f32
    %60 = vector.broadcast %cst_40 : f32 to vector<32x144xf32>
    %61 = arith.maximumf %59, %60 : vector<32x144xf32>
    %62 = arith.truncf %61 : vector<32x144xf32> to vector<32x144xbf16>
    %c0_41 = arith.constant 0 : index
    %c0_42 = arith.constant 0 : index
    %63 = vector.load %arg7[%c0_41, %c0_42] : memref<144x32xbf16, #tpu.memory_space<vmem>>, vector<144x32xbf16>
    %cst_43 = arith.constant dense<0.000000e+00> : vector<144x144xf32>
    %64 = tpu.matmul %63, %62, %cst_43 {dimension_numbers = #tpu.dot_dimension_numbers<[1], [0], [0], [1], [0, 0, 1, 1], [], []>} : vector<144x32xbf16>, vector<32x144xbf16>, vector<144x144xf32> -> vector<144x144xf32>
    %65 = arith.truncf %64 : vector<144x144xf32> to vector<144x144xbf16>
    %66 = vector.extract_strided_slice %65 {offsets = [0, 0], sizes = [16, 144], strides = [1, 1]} : vector<144x144xbf16> to vector<16x144xbf16>
    %c0_44 = arith.constant 0 : index
    %c0_45 = arith.constant 0 : index
    %c0_46 = arith.constant 0 : index
    %67 = vector.load %arg9[%c0_44, %c0_45, %c0_46] : memref<9x144x36xbf16, #tpu.memory_space<vmem>>, vector<1x144x36xbf16>
    %68 = vector.shape_cast %67 : vector<1x144x36xbf16> to vector<144x36xbf16>
    %cst_47 = arith.constant dense<0.000000e+00> : vector<16x36xf32>
    %69 = tpu.matmul %66, %68, %cst_47 {dimension_numbers = #tpu.dot_dimension_numbers<[1], [0], [0], [1], [0, 0, 1, 1], [], []>} : vector<16x144xbf16>, vector<144x36xbf16>, vector<16x36xf32> -> vector<16x36xf32>
    %70 = vector.extract_strided_slice %65 {offsets = [16, 0], sizes = [16, 144], strides = [1, 1]} : vector<144x144xbf16> to vector<16x144xbf16>
    %c1_48 = arith.constant 1 : index
    %c0_49 = arith.constant 0 : index
    %c0_50 = arith.constant 0 : index
    %71 = vector.load %arg9[%c1_48, %c0_49, %c0_50] : memref<9x144x36xbf16, #tpu.memory_space<vmem>>, vector<1x144x36xbf16>
    %72 = vector.shape_cast %71 : vector<1x144x36xbf16> to vector<144x36xbf16>
    %cst_51 = arith.constant dense<0.000000e+00> : vector<16x36xf32>
    %73 = tpu.matmul %70, %72, %cst_51 {dimension_numbers = #tpu.dot_dimension_numbers<[1], [0], [0], [1], [0, 0, 1, 1], [], []>} : vector<16x144xbf16>, vector<144x36xbf16>, vector<16x36xf32> -> vector<16x36xf32>
    %74 = arith.addf %69, %73 : vector<16x36xf32>
    %75 = vector.extract_strided_slice %65 {offsets = [32, 0], sizes = [16, 144], strides = [1, 1]} : vector<144x144xbf16> to vector<16x144xbf16>
    %c2_52 = arith.constant 2 : index
    %c0_53 = arith.constant 0 : index
    %c0_54 = arith.constant 0 : index
    %76 = vector.load %arg9[%c2_52, %c0_53, %c0_54] : memref<9x144x36xbf16, #tpu.memory_space<vmem>>, vector<1x144x36xbf16>
    %77 = vector.shape_cast %76 : vector<1x144x36xbf16> to vector<144x36xbf16>
    %cst_55 = arith.constant dense<0.000000e+00> : vector<16x36xf32>
    %78 = tpu.matmul %75, %77, %cst_55 {dimension_numbers = #tpu.dot_dimension_numbers<[1], [0], [0], [1], [0, 0, 1, 1], [], []>} : vector<16x144xbf16>, vector<144x36xbf16>, vector<16x36xf32> -> vector<16x36xf32>
    %79 = arith.addf %74, %78 : vector<16x36xf32>
    %80 = vector.extract_strided_slice %65 {offsets = [48, 0], sizes = [16, 144], strides = [1, 1]} : vector<144x144xbf16> to vector<16x144xbf16>
    %c3_56 = arith.constant 3 : index
    %c0_57 = arith.constant 0 : index
    %c0_58 = arith.constant 0 : index
    %81 = vector.load %arg9[%c3_56, %c0_57, %c0_58] : memref<9x144x36xbf16, #tpu.memory_space<vmem>>, vector<1x144x36xbf16>
    %82 = vector.shape_cast %81 : vector<1x144x36xbf16> to vector<144x36xbf16>
    %cst_59 = arith.constant dense<0.000000e+00> : vector<16x36xf32>
    %83 = tpu.matmul %80, %82, %cst_59 {dimension_numbers = #tpu.dot_dimension_numbers<[1], [0], [0], [1], [0, 0, 1, 1], [], []>} : vector<16x144xbf16>, vector<144x36xbf16>, vector<16x36xf32> -> vector<16x36xf32>
    %84 = arith.addf %79, %83 : vector<16x36xf32>
    %85 = vector.extract_strided_slice %65 {offsets = [64, 0], sizes = [16, 144], strides = [1, 1]} : vector<144x144xbf16> to vector<16x144xbf16>
    %c4_60 = arith.constant 4 : index
    %c0_61 = arith.constant 0 : index
    %c0_62 = arith.constant 0 : index
    %86 = vector.load %arg9[%c4_60, %c0_61, %c0_62] : memref<9x144x36xbf16, #tpu.memory_space<vmem>>, vector<1x144x36xbf16>
    %87 = vector.shape_cast %86 : vector<1x144x36xbf16> to vector<144x36xbf16>
    %cst_63 = arith.constant dense<0.000000e+00> : vector<16x36xf32>
    %88 = tpu.matmul %85, %87, %cst_63 {dimension_numbers = #tpu.dot_dimension_numbers<[1], [0], [0], [1], [0, 0, 1, 1], [], []>} : vector<16x144xbf16>, vector<144x36xbf16>, vector<16x36xf32> -> vector<16x36xf32>
    %89 = arith.addf %84, %88 : vector<16x36xf32>
    %90 = vector.extract_strided_slice %65 {offsets = [80, 0], sizes = [16, 144], strides = [1, 1]} : vector<144x144xbf16> to vector<16x144xbf16>
    %c5_64 = arith.constant 5 : index
    %c0_65 = arith.constant 0 : index
    %c0_66 = arith.constant 0 : index
    %91 = vector.load %arg9[%c5_64, %c0_65, %c0_66] : memref<9x144x36xbf16, #tpu.memory_space<vmem>>, vector<1x144x36xbf16>
    %92 = vector.shape_cast %91 : vector<1x144x36xbf16> to vector<144x36xbf16>
    %cst_67 = arith.constant dense<0.000000e+00> : vector<16x36xf32>
    %93 = tpu.matmul %90, %92, %cst_67 {dimension_numbers = #tpu.dot_dimension_numbers<[1], [0], [0], [1], [0, 0, 1, 1], [], []>} : vector<16x144xbf16>, vector<144x36xbf16>, vector<16x36xf32> -> vector<16x36xf32>
    %94 = arith.addf %89, %93 : vector<16x36xf32>
    %95 = vector.extract_strided_slice %65 {offsets = [96, 0], sizes = [16, 144], strides = [1, 1]} : vector<144x144xbf16> to vector<16x144xbf16>
    %c6_68 = arith.constant 6 : index
    %c0_69 = arith.constant 0 : index
    %c0_70 = arith.constant 0 : index
    %96 = vector.load %arg9[%c6_68, %c0_69, %c0_70] : memref<9x144x36xbf16, #tpu.memory_space<vmem>>, vector<1x144x36xbf16>
    %97 = vector.shape_cast %96 : vector<1x144x36xbf16> to vector<144x36xbf16>
    %cst_71 = arith.constant dense<0.000000e+00> : vector<16x36xf32>
    %98 = tpu.matmul %95, %97, %cst_71 {dimension_numbers = #tpu.dot_dimension_numbers<[1], [0], [0], [1], [0, 0, 1, 1], [], []>} : vector<16x144xbf16>, vector<144x36xbf16>, vector<16x36xf32> -> vector<16x36xf32>
    %99 = arith.addf %94, %98 : vector<16x36xf32>
    %100 = vector.extract_strided_slice %65 {offsets = [112, 0], sizes = [16, 144], strides = [1, 1]} : vector<144x144xbf16> to vector<16x144xbf16>
    %c7_72 = arith.constant 7 : index
    %c0_73 = arith.constant 0 : index
    %c0_74 = arith.constant 0 : index
    %101 = vector.load %arg9[%c7_72, %c0_73, %c0_74] : memref<9x144x36xbf16, #tpu.memory_space<vmem>>, vector<1x144x36xbf16>
    %102 = vector.shape_cast %101 : vector<1x144x36xbf16> to vector<144x36xbf16>
    %cst_75 = arith.constant dense<0.000000e+00> : vector<16x36xf32>
    %103 = tpu.matmul %100, %102, %cst_75 {dimension_numbers = #tpu.dot_dimension_numbers<[1], [0], [0], [1], [0, 0, 1, 1], [], []>} : vector<16x144xbf16>, vector<144x36xbf16>, vector<16x36xf32> -> vector<16x36xf32>
    %104 = arith.addf %99, %103 : vector<16x36xf32>
    %105 = vector.extract_strided_slice %65 {offsets = [128, 0], sizes = [16, 144], strides = [1, 1]} : vector<144x144xbf16> to vector<16x144xbf16>
    %c8_76 = arith.constant 8 : index
    %c0_77 = arith.constant 0 : index
    %c0_78 = arith.constant 0 : index
    %106 = vector.load %arg9[%c8_76, %c0_77, %c0_78] : memref<9x144x36xbf16, #tpu.memory_space<vmem>>, vector<1x144x36xbf16>
    %107 = vector.shape_cast %106 : vector<1x144x36xbf16> to vector<144x36xbf16>
    %cst_79 = arith.constant dense<0.000000e+00> : vector<16x36xf32>
    %108 = tpu.matmul %105, %107, %cst_79 {dimension_numbers = #tpu.dot_dimension_numbers<[1], [0], [0], [1], [0, 0, 1, 1], [], []>} : vector<16x144xbf16>, vector<144x36xbf16>, vector<16x36xf32> -> vector<16x36xf32>
    %109 = arith.addf %104, %108 : vector<16x36xf32>
    %c0_80 = arith.constant 0 : index
    %c0_81 = arith.constant 0 : index
    %110 = vector.load %arg8[%c0_80, %c0_81] : memref<16x1xf32, #tpu.memory_space<vmem>>, vector<16x1xf32>
    %111 = vector.broadcast %110 : vector<16x1xf32> to vector<16x36xf32>
    %112 = arith.addf %109, %111 : vector<16x36xf32>
    %cst_82 = arith.constant 0.000000e+00 : f32
    %113 = vector.broadcast %cst_82 : f32 to vector<16x36xf32>
    %114 = arith.maximumf %112, %113 : vector<16x36xf32>
    %115 = arith.truncf %114 : vector<16x36xf32> to vector<16x36xbf16>
    %c0_83 = arith.constant 0 : index
    %c0_84 = arith.constant 0 : index
    %c0_85 = arith.constant 0 : index
    %116 = vector.load %arg10[%c0_83, %c0_84, %c0_85] : memref<1x16x36xbf16, #tpu.memory_space<vmem>>, vector<1x16x36xbf16>
    %117 = vector.shape_cast %116 : vector<1x16x36xbf16> to vector<16x36xbf16>
    %118 = vector.shape_cast %115 : vector<16x36xbf16> to vector<1x16x36xbf16>
    tpu.vector_store %arg10[%c0_83, %c0_84, %c0_85], %118 {strides = array<i32>} : memref<1x16x36xbf16, #tpu.memory_space<vmem>>, vector<1x16x36xbf16>,
    return
  }
  func.func @transform_0(%arg0: i32) -> (i32, i32, i32) {
    %c0_i32 = arith.constant 0 : i32
    %c0_i32_0 = arith.constant 0 : i32
    %c0_i32_1 = arith.constant 0 : i32
    return %arg0, %c0_i32, %c0_i32_0 : i32, i32, i32
  }
  func.func @transform_1(%arg0: i32) -> (i32, i32) {
    %c0_i32 = arith.constant 0 : i32
    %c0_i32_0 = arith.constant 0 : i32
    %c0_i32_1 = arith.constant 0 : i32
    return %c0_i32, %c0_i32_0 : i32, i32
  }
  func.func @transform_2(%arg0: i32) -> (i32, i32) {
    %c0_i32 = arith.constant 0 : i32
    %c0_i32_0 = arith.constant 0 : i32
    %c0_i32_1 = arith.constant 0 : i32
    return %c0_i32, %c0_i32_0 : i32, i32
  }
  func.func @transform_3(%arg0: i32) -> (i32, i32) {
    %c0_i32 = arith.constant 0 : i32
    %c0_i32_0 = arith.constant 0 : i32
    %c0_i32_1 = arith.constant 0 : i32
    return %c0_i32, %c0_i32_0 : i32, i32
  }
  func.func @transform_4(%arg0: i32) -> (i32, i32) {
    %c0_i32 = arith.constant 0 : i32
    %c0_i32_0 = arith.constant 0 : i32
    %c0_i32_1 = arith.constant 0 : i32
    return %c0_i32, %c0_i32_0 : i32, i32
  }
  func.func @transform_5(%arg0: i32) -> (i32, i32, i32) {
    %c0_i32 = arith.constant 0 : i32
    %c0_i32_0 = arith.constant 0 : i32
    %c0_i32_1 = arith.constant 0 : i32
    %c0_i32_2 = arith.constant 0 : i32
    return %c0_i32, %c0_i32_0, %c0_i32_1 : i32, i32, i32
  }
  func.func @transform_6(%arg0: i32) -> (i32, i32) {
    %c0_i32 = arith.constant 0 : i32
    %c0_i32_0 = arith.constant 0 : i32
    %c0_i32_1 = arith.constant 0 : i32
    return %c0_i32, %c0_i32_0 : i32, i32
  }
  func.func @transform_7(%arg0: i32) -> (i32, i32) {
    %c0_i32 = arith.constant 0 : i32
    %c0_i32_0 = arith.constant 0 : i32
    %c0_i32_1 = arith.constant 0 : i32
    return %c0_i32, %c0_i32_0 : i32, i32
  }
  func.func @transform_8(%arg0: i32) -> (i32, i32, i32) {
    %c0_i32 = arith.constant 0 : i32
    %c0_i32_0 = arith.constant 0 : i32
    %c0_i32_1 = arith.constant 0 : i32
    %c0_i32_2 = arith.constant 0 : i32
    return %c0_i32, %c0_i32_0, %c0_i32_1 : i32, i32, i32
  }
  func.func @transform_9(%arg0: i32) -> (i32, i32, i32) {
    %c0_i32 = arith.constant 0 : i32
    %c0_i32_0 = arith.constant 0 : i32
    %c0_i32_1 = arith.constant 0 : i32
    return %arg0, %c0_i32, %c0_i32_0 : i32, i32, i32
  }
}

module attributes {stable_mosaic.version = 11 : i64} {
  func.func @_fused_fc_kernel(%arg0: i32, %arg1: memref<2x576xbf16, #tpu.memory_space<vmem>>, %arg2: memref<576x256xbf16, #tpu.memory_space<vmem>>, %arg3: memref<1x256xf32, #tpu.memory_space<vmem>>, %arg4: memref<256x128xbf16, #tpu.memory_space<vmem>>, %arg5: memref<1x128xf32, #tpu.memory_space<vmem>>, %arg6: memref<2x128xf32, #tpu.memory_space<vmem>>) attributes {dimension_semantics = [#tpu.dimension_semantics<arbitrary>], iteration_bounds = array<i64: 1>, scalar_prefetch = 0 : i64, scratch_operands = 0 : i64, tpu.core_type = #tpu.core_type<tc>, window_params = [{pipeline_mode = #tpu.pipeline_mode<synchronous>, transform_indices = @transform_0, window_bounds = array<i64: 2, 576>}, {pipeline_mode = #tpu.pipeline_mode<synchronous>, transform_indices = @transform_1, window_bounds = array<i64: 576, 256>}, {pipeline_mode = #tpu.pipeline_mode<synchronous>, transform_indices = @transform_2, window_bounds = array<i64: 1, 256>}, {pipeline_mode = #tpu.pipeline_mode<synchronous>, transform_indices = @transform_3, window_bounds = array<i64: 256, 128>}, {pipeline_mode = #tpu.pipeline_mode<synchronous>, transform_indices = @transform_4, window_bounds = array<i64: 1, 128>}, {pipeline_mode = #tpu.pipeline_mode<synchronous>, transform_indices = @transform_5, window_bounds = array<i64: 2, 128>}]} {
    %c0 = arith.constant 0 : index
    %c0_0 = arith.constant 0 : index
    %0 = vector.load %arg1[%c0, %c0_0] : memref<2x576xbf16, #tpu.memory_space<vmem>>, vector<2x576xbf16>
    %c0_1 = arith.constant 0 : index
    %c0_2 = arith.constant 0 : index
    %1 = vector.load %arg2[%c0_1, %c0_2] : memref<576x256xbf16, #tpu.memory_space<vmem>>, vector<576x256xbf16>
    %cst = arith.constant dense<0.000000e+00> : vector<2x256xf32>
    %2 = tpu.matmul %0, %1, %cst {dimension_numbers = #tpu.dot_dimension_numbers<[1], [0], [0], [1], [0, 0, 1, 1], [], []>} : vector<2x576xbf16>, vector<576x256xbf16>, vector<2x256xf32> -> vector<2x256xf32>
    %c0_3 = arith.constant 0 : index
    %c0_4 = arith.constant 0 : index
    %3 = vector.load %arg3[%c0_3, %c0_4] : memref<1x256xf32, #tpu.memory_space<vmem>>, vector<1x256xf32>
    %4 = vector.broadcast %3 : vector<1x256xf32> to vector<2x256xf32>
    %5 = arith.addf %2, %4 : vector<2x256xf32>
    %cst_5 = arith.constant 0.000000e+00 : f32
    %6 = vector.broadcast %cst_5 : f32 to vector<2x256xf32>
    %7 = arith.maximumf %5, %6 : vector<2x256xf32>
    %8 = arith.truncf %7 : vector<2x256xf32> to vector<2x256xbf16>
    %c0_6 = arith.constant 0 : index
    %c0_7 = arith.constant 0 : index
    %9 = vector.load %arg4[%c0_6, %c0_7] : memref<256x128xbf16, #tpu.memory_space<vmem>>, vector<256x128xbf16>
    %cst_8 = arith.constant dense<0.000000e+00> : vector<2x128xf32>
    %10 = tpu.matmul %8, %9, %cst_8 {dimension_numbers = #tpu.dot_dimension_numbers<[1], [0], [0], [1], [0, 0, 1, 1], [], []>} : vector<2x256xbf16>, vector<256x128xbf16>, vector<2x128xf32> -> vector<2x128xf32>
    %c0_9 = arith.constant 0 : index
    %c0_10 = arith.constant 0 : index
    %11 = vector.load %arg5[%c0_9, %c0_10] : memref<1x128xf32, #tpu.memory_space<vmem>>, vector<1x128xf32>
    %12 = vector.broadcast %11 : vector<1x128xf32> to vector<2x128xf32>
    %13 = arith.addf %10, %12 : vector<2x128xf32>
    %14 = math.tanh %13 : vector<2x128xf32>
    %c0_11 = arith.constant 0 : index
    %c0_12 = arith.constant 0 : index
    %15 = vector.load %arg6[%c0_11, %c0_12] : memref<2x128xf32, #tpu.memory_space<vmem>>, vector<2x128xf32>
    tpu.vector_store %arg6[%c0_11, %c0_12], %14 {strides = array<i32>} : memref<2x128xf32, #tpu.memory_space<vmem>>, vector<2x128xf32>,
    return
  }
  func.func @transform_0(%arg0: i32) -> (i32, i32) {
    %c0_i32 = arith.constant 0 : i32
    %c0_i32_0 = arith.constant 0 : i32
    %c0_i32_1 = arith.constant 0 : i32
    return %c0_i32, %c0_i32_0 : i32, i32
  }
  func.func @transform_1(%arg0: i32) -> (i32, i32) {
    %c0_i32 = arith.constant 0 : i32
    %c0_i32_0 = arith.constant 0 : i32
    %c0_i32_1 = arith.constant 0 : i32
    return %c0_i32, %c0_i32_0 : i32, i32
  }
  func.func @transform_2(%arg0: i32) -> (i32, i32) {
    %c0_i32 = arith.constant 0 : i32
    %c0_i32_0 = arith.constant 0 : i32
    %c0_i32_1 = arith.constant 0 : i32
    return %c0_i32, %c0_i32_0 : i32, i32
  }
  func.func @transform_3(%arg0: i32) -> (i32, i32) {
    %c0_i32 = arith.constant 0 : i32
    %c0_i32_0 = arith.constant 0 : i32
    %c0_i32_1 = arith.constant 0 : i32
    return %c0_i32, %c0_i32_0 : i32, i32
  }
  func.func @transform_4(%arg0: i32) -> (i32, i32) {
    %c0_i32 = arith.constant 0 : i32
    %c0_i32_0 = arith.constant 0 : i32
    %c0_i32_1 = arith.constant 0 : i32
    return %c0_i32, %c0_i32_0 : i32, i32
  }
  func.func @transform_5(%arg0: i32) -> (i32, i32) {
    %c0_i32 = arith.constant 0 : i32
    %c0_i32_0 = arith.constant 0 : i32
    %c0_i32_1 = arith.constant 0 : i32
    return %c0_i32, %c0_i32_0 : i32, i32
  }
}

</mosaic_0001>

<llo_original>
// kernel: actor_forward.3
$region0: #{actor_forward.3}
  #allocation0 [shape = 'u32[]', space=smem, size = 0x4, offset = 0x4, fixed_abs, tag = 'smem constant byte address 0x4 - core index']
  #allocation1 [shape = 'u32[144,128]{1,0:T(1,128)}', space=vmem, size = 0x12000, scoped, tag = 'internal scratch']
  %s0 = inlined_call_operand.vmem [shape: bf16[32,36], index: 0, kind: input, shape index: {}]
  %s1 = inlined_call_operand.vmem [shape: bf16[36,4608], index: 1, kind: input, shape index: {}]
  %s2 = inlined_call_operand.vmem [shape: f32[32,1], index: 2, kind: input, shape index: {}]
  %s3 = inlined_call_operand.vmem [shape: bf16[32,4608], index: 3, kind: output, shape index: {}]
  %s4 = sld [smem:[#allocation0]]
  $region22: #{actor_forward.3} parent=0
    _
  %s6 = ssub.s32 1, %s4
  %s7 = scalar_select 0, %s6, %s4
  // Predicated region
  $region2: #{actor_forward.3} parent=0 // pred_check
    _
  $region3: #{actor_forward.3} parent=0 // pred_check_branch
    %9 = sbr.rel (0) target = $region5
  $region4: #{actor_forward.3} parent=0 // pred_region
    _
  $region5: #{actor_forward.3} parent=0 // pred_fallthru
    _
  // Predicated region
  $region6: #{actor_forward.3} parent=0 // pred_check
    _
  $region7: #{actor_forward.3} parent=0 // pred_check_branch
    %11 = sbr.rel (0) target = $region9
  $region8: #{actor_forward.3} parent=0 // pred_region
    _
  $region9: #{actor_forward.3} parent=0 // pred_fallthru
    _
  // Predicated region
  $region10: #{actor_forward.3} parent=0 // pred_check
    _
  $region11: #{actor_forward.3} parent=0 // pred_check_branch
    %13 = sbr.rel (0) target = $region13
  $region12: #{actor_forward.3} parent=0 // pred_region
    _
  $region13: #{actor_forward.3} parent=0 // pred_fallthru
    _
  %v15 = vld [vmem:[%s0] sm:$0xf]
  %v16 = vld [vmem:[%s0 + $0x4] sm:$0xf]
  %v17 = vld [vmem:[%s0 + $0x8] sm:$0xf]
  %v18 = vld [vmem:[%s0 + $0xc] sm:$0xf]
  %v19 = vld [vmem:[%s1] sm:$0xff]
  %v20 = vld [vmem:[%s1 + $0x8] sm:$0xff]
  %v21 = vld [vmem:[%s1 + $0x10] sm:$0xff]
  %v22 = vld [vmem:[%s1 + $0x18] sm:$0xff]
  %v23 = vld [vmem:[%s1 + $0x20] sm:$0xff]
  %v24 = vld [vmem:[%s1 + $0x28] sm:$0xff]
  %v25 = vld [vmem:[%s1 + $0x30] sm:$0xff]
  %v26 = vld [vmem:[%s1 + $0x38] sm:$0xff]
  %v27 = vld [vmem:[%s1 + $0x40] sm:$0xff]
  %v28 = vld [vmem:[%s1 + $0x48] sm:$0xff]
  %v29 = vld [vmem:[%s1 + $0x50] sm:$0xff]
  %v30 = vld [vmem:[%s1 + $0x58] sm:$0xff]
  %v31 = vld [vmem:[%s1 + $0x60] sm:$0xff]
  %v32 = vld [vmem:[%s1 + $0x68] sm:$0xff]
  %v33 = vld [vmem:[%s1 + $0x70] sm:$0xff]
  %v34 = vld [vmem:[%s1 + $0x78] sm:$0xff]
  %v35 = vld [vmem:[%s1 + $0x80] sm:$0xff]
  %v36 = vld [vmem:[%s1 + $0x88] sm:$0xff]
  %v37 = vld [vmem:[%s1 + $0x90] sm:$0xff]
  %v38 = vld [vmem:[%s1 + $0x98] sm:$0xff]
  %v39 = vld [vmem:[%s1 + $0xa0] sm:$0xff]
  %v40 = vld [vmem:[%s1 + $0xa8] sm:$0xff]
  %v41 = vld [vmem:[%s1 + $0xb0] sm:$0xff]
  %v42 = vld [vmem:[%s1 + $0xb8] sm:$0xff]
  %v43 = vld [vmem:[%s1 + $0xc0] sm:$0xff]
  %v44 = vld [vmem:[%s1 + $0xc8] sm:$0xff]
  %v45 = vld [vmem:[%s1 + $0xd0] sm:$0xff]
  %v46 = vld [vmem:[%s1 + $0xd8] sm:$0xff]
  %v47 = vld [vmem:[%s1 + $0xe0] sm:$0xff]
  %v48 = vld [vmem:[%s1 + $0xe8] sm:$0xff]
  %v49 = vld [vmem:[%s1 + $0xf0] sm:$0xff]
  %v50 = vld [vmem:[%s1 + $0xf8] sm:$0xff]
  %v51 = vld [vmem:[%s1 + $0x100] sm:$0xff]
  %v52 = vld [vmem:[%s1 + $0x108] sm:$0xff]
  %v53 = vld [vmem:[%s1 + $0x110] sm:$0xff]
  %v54 = vld [vmem:[%s1 + $0x118] sm:$0xff]
  %v55 = vld [vmem:[%s1 + $0x120] sm:$0xff]
  %v56 = vld [vmem:[%s1 + $0x128] sm:$0xff]
  %v57 = vld [vmem:[%s1 + $0x130] sm:$0xff]
  %v58 = vld [vmem:[%s1 + $0x138] sm:$0xff]
  %v59 = vld [vmem:[%s1 + $0x140] sm:$0xff]
  %v60 = vld [vmem:[%s1 + $0x148] sm:$0xff]
  %v61 = vld [vmem:[%s1 + $0x150] sm:$0xff]
  %v62 = vld [vmem:[%s1 + $0x158] sm:$0xff]
  %v63 = vld [vmem:[%s1 + $0x160] sm:$0xff]
  %v64 = vld [vmem:[%s1 + $0x168] sm:$0xff]
  %v65 = vld [vmem:[%s1 + $0x170] sm:$0xff]
  %v66 = vld [vmem:[%s1 + $0x178] sm:$0xff]
  %v67 = vld [vmem:[%s1 + $0x180] sm:$0xff]
  %v68 = vld [vmem:[%s1 + $0x188] sm:$0xff]
  %v69 = vld [vmem:[%s1 + $0x190] sm:$0xff]
  %v70 = vld [vmem:[%s1 + $0x198] sm:$0xff]
  %v71 = vld [vmem:[%s1 + $0x1a0] sm:$0xff]
  %v72 = vld [vmem:[%s1 + $0x1a8] sm:$0xff]
  %v73 = vld [vmem:[%s1 + $0x1b0] sm:$0xff]
  %v74 = vld [vmem:[%s1 + $0x1b8] sm:$0xff]
  %v75 = vld [vmem:[%s1 + $0x1c0] sm:$0xff]
  %v76 = vld [vmem:[%s1 + $0x1c8] sm:$0xff]
  %v77 = vld [vmem:[%s1 + $0x1d0] sm:$0xff]
  %v78 = vld [vmem:[%s1 + $0x1d8] sm:$0xff]
  %v79 = vld [vmem:[%s1 + $0x1e0] sm:$0xff]
  %v80 = vld [vmem:[%s1 + $0x1e8] sm:$0xff]
  %v81 = vld [vmem:[%s1 + $0x1f0] sm:$0xff]
  %v82 = vld [vmem:[%s1 + $0x1f8] sm:$0xff]
  %v83 = vld [vmem:[%s1 + $0x200] sm:$0xff]
  %v84 = vld [vmem:[%s1 + $0x208] sm:$0xff]
  %v85 = vld [vmem:[%s1 + $0x210] sm:$0xff]
  %v86 = vld [vmem:[%s1 + $0x218] sm:$0xff]
  %v87 = vld [vmem:[%s1 + $0x220] sm:$0xff]
  %v88 = vld [vmem:[%s1 + $0x228] sm:$0xff]
  %v89 = vld [vmem:[%s1 + $0x230] sm:$0xff]
  %v90 = vld [vmem:[%s1 + $0x238] sm:$0xff]
  %v91 = vld [vmem:[%s1 + $0x240] sm:$0x33]
  %v92 = vld [vmem:[%s1 + $0x248] sm:$0x33]
  %v93 = vld [vmem:[%s1 + $0x250] sm:$0x33]
  %v94 = vld [vmem:[%s1 + $0x258] sm:$0x33]
  %v95 = vld [vmem:[%s1 + $0x260] sm:$0x33]
  %v96 = vld [vmem:[%s1 + $0x268] sm:$0x33]
  %v97 = vld [vmem:[%s1 + $0x270] sm:$0x33]
  %v98 = vld [vmem:[%s1 + $0x278] sm:$0x33]
  %v99 = vld [vmem:[%s1 + $0x280] sm:$0x33]
  %v100 = vld [vmem:[%s1 + $0x288] sm:$0x33]
  %v101 = vld [vmem:[%s1 + $0x290] sm:$0x33]
  %v102 = vld [vmem:[%s1 + $0x298] sm:$0x33]
  %v103 = vld [vmem:[%s1 + $0x2a0] sm:$0x33]
  %v104 = vld [vmem:[%s1 + $0x2a8] sm:$0x33]
  %v105 = vld [vmem:[%s1 + $0x2b0] sm:$0x33]
  %v106 = vld [vmem:[%s1 + $0x2b8] sm:$0x33]
  %v107 = vld [vmem:[%s1 + $0x2c0] sm:$0x33]
  %v108 = vld [vmem:[%s1 + $0x2c8] sm:$0x33]
  %v109 = vld [vmem:[%s2] sm:$0xff]
  %v110 = vld [vmem:[%s2 + $0x8] sm:$0xff]
  %v111 = vld [vmem:[%s2 + $0x10] sm:$0xff]
  %v112 = vld [vmem:[%s2 + $0x18] sm:$0xff]
  %114 = vset.pattern.permute.xlu0 0
  %115 = vperm.xlu0 %114, %v109
  %v116 = vpop.permute.xlu0 %115
  %119 = vset.pattern.permute.xlu0 0
  %120 = vperm.xlu0 %119, %v110
  %v121 = vpop.permute.xlu0 %120
  %124 = vset.pattern.permute.xlu0 0
  %125 = vperm.xlu0 %124, %v111
  %v126 = vpop.permute.xlu0 %125
  %129 = vset.pattern.permute.xlu0 0
  %130 = vperm.xlu0 %129, %v112
  %v131 = vpop.permute.xlu0 %130
  %v137 = vunpack.c.l.b16 %v15
  %v138 = vunpack.c.l.b16 %v16
  %v139 = vunpack.c.l.b16 %v17
  %v140 = vunpack.c.l.b16 %v18
  %v141 = vpack.c.b16 %v138, %v137
  %v142 = vpack.c.b16 %v140, %v139
  %v233 = vunpack.c.l.b16 %v19
  %v234 = vunpack.c.h.b16 %v19
  %v235 = vunpack.c.l.b16 %v20
  %v236 = vunpack.c.h.b16 %v20
  %v237 = vunpack.c.l.b16 %v21
  %v238 = vunpack.c.h.b16 %v21
  %v239 = vunpack.c.l.b16 %v22
  %v240 = vunpack.c.h.b16 %v22
  %v241 = vunpack.c.l.b16 %v23
  %v242 = vunpack.c.h.b16 %v23
  %v243 = vunpack.c.l.b16 %v24
  %v244 = vunpack.c.h.b16 %v24
  %v245 = vunpack.c.l.b16 %v25
  %v246 = vunpack.c.h.b16 %v25
  %v247 = vunpack.c.l.b16 %v26
  %v248 = vunpack.c.h.b16 %v26
  %v249 = vunpack.c.l.b16 %v27
  %v250 = vunpack.c.h.b16 %v27
  %v251 = vunpack.c.l.b16 %v28
  %v252 = vunpack.c.h.b16 %v28
  %v253 = vunpack.c.l.b16 %v29
  %v254 = vunpack.c.h.b16 %v29
  %v255 = vunpack.c.l.b16 %v30
  %v256 = vunpack.c.h.b16 %v30
  %v257 = vunpack.c.l.b16 %v31
  %v258 = vunpack.c.h.b16 %v31
  %v259 = vunpack.c.l.b16 %v32
  %v260 = vunpack.c.h.b16 %v32
  %v261 = vunpack.c.l.b16 %v33
  %v262 = vunpack.c.h.b16 %v33
  %v263 = vunpack.c.l.b16 %v34
  %v264 = vunpack.c.h.b16 %v34
  %v265 = vunpack.c.l.b16 %v35
  %v266 = vunpack.c.h.b16 %v35
  %v267 = vunpack.c.l.b16 %v36
  %v268 = vunpack.c.h.b16 %v36
  %v269 = vunpack.c.l.b16 %v37
  %v270 = vunpack.c.h.b16 %v37
  %v271 = vunpack.c.l.b16 %v38
  %v272 = vunpack.c.h.b16 %v38
  %v273 = vunpack.c.l.b16 %v39
  %v274 = vunpack.c.h.b16 %v39
  %v275 = vunpack.c.l.b16 %v40
  %v276 = vunpack.c.h.b16 %v40
  %v277 = vunpack.c.l.b16 %v41
  %v278 = vunpack.c.h.b16 %v41
  %v279 = vunpack.c.l.b16 %v42
  %v280 = vunpack.c.h.b16 %v42
  %v281 = vunpack.c.l.b16 %v43
  %v282 = vunpack.c.h.b16 %v43
  %v283 = vunpack.c.l.b16 %v44
  %v284 = vunpack.c.h.b16 %v44
  %v285 = vunpack.c.l.b16 %v45
  %v286 = vunpack.c.h.b16 %v45
  %v287 = vunpack.c.l.b16 %v46
  %v288 = vunpack.c.h.b16 %v46
  %v289 = vunpack.c.l.b16 %v47
  %v290 = vunpack.c.h.b16 %v47
  %v291 = vunpack.c.l.b16 %v48
  %v292 = vunpack.c.h.b16 %v48
  %v293 = vunpack.c.l.b16 %v49
  %v294 = vunpack.c.h.b16 %v49
  %v295 = vunpack.c.l.b16 %v50
  %v296 = vunpack.c.h.b16 %v50
  %v297 = vunpack.c.l.b16 %v51
  %v298 = vunpack.c.h.b16 %v51
  %v299 = vunpack.c.l.b16 %v52
  %v300 = vunpack.c.h.b16 %v52
  %v301 = vunpack.c.l.b16 %v53
  %v302 = vunpack.c.h.b16 %v53
  %v303 = vunpack.c.l.b16 %v54
  %v304 = vunpack.c.h.b16 %v54
  %v305 = vunpack.c.l.b16 %v55
  %v306 = vunpack.c.h.b16 %v55
  %v307 = vunpack.c.l.b16 %v56
  %v308 = vunpack.c.h.b16 %v56
  %v309 = vunpack.c.l.b16 %v57
  %v310 = vunpack.c.h.b16 %v57
  %v311 = vunpack.c.l.b16 %v58
  %v312 = vunpack.c.h.b16 %v58
  %v313 = vunpack.c.l.b16 %v59
  %v314 = vunpack.c.h.b16 %v59
  %v315 = vunpack.c.l.b16 %v60
  %v316 = vunpack.c.h.b16 %v60
  %v317 = vunpack.c.l.b16 %v61
  %v318 = vunpack.c.h.b16 %v61
  %v319 = vunpack.c.l.b16 %v62
  %v320 = vunpack.c.h.b16 %v62
  %v321 = vunpack.c.l.b16 %v63
  %v322 = vunpack.c.h.b16 %v63
  %v323 = vunpack.c.l.b16 %v64
  %v324 = vunpack.c.h.b16 %v64
  %v325 = vunpack.c.l.b16 %v65
  %v326 = vunpack.c.h.b16 %v65
  %v327 = vunpack.c.l.b16 %v66
  %v328 = vunpack.c.h.b16 %v66
  %v329 = vunpack.c.l.b16 %v67
  %v330 = vunpack.c.h.b16 %v67
  %v331 = vunpack.c.l.b16 %v68
  %v332 = vunpack.c.h.b16 %v68
  %v333 = vunpack.c.l.b16 %v69
  %v334 = vunpack.c.h.b16 %v69
  %v335 = vunpack.c.l.b16 %v70
  %v336 = vunpack.c.h.b16 %v70
  %v337 = vunpack.c.l.b16 %v71
  %v338 = vunpack.c.h.b16 %v71
  %v339 = vunpack.c.l.b16 %v72
  %v340 = vunpack.c.h.b16 %v72
  %v341 = vunpack.c.l.b16 %v73
  %v342 = vunpack.c.h.b16 %v73
  %v343 = vunpack.c.l.b16 %v74
  %v344 = vunpack.c.h.b16 %v74
  %v345 = vunpack.c.l.b16 %v75
  %v346 = vunpack.c.h.b16 %v75
  %v347 = vunpack.c.l.b16 %v76
  %v348 = vunpack.c.h.b16 %v76
  %v349 = vunpack.c.l.b16 %v77
  %v350 = vunpack.c.h.b16 %v77
  %v351 = vunpack.c.l.b16 %v78
  %v352 = vunpack.c.h.b16 %v78
  %v353 = vunpack.c.l.b16 %v79
  %v354 = vunpack.c.h.b16 %v79
  %v355 = vunpack.c.l.b16 %v80
  %v356 = vunpack.c.h.b16 %v80
  %v357 = vunpack.c.l.b16 %v81
  %v358 = vunpack.c.h.b16 %v81
  %v359 = vunpack.c.l.b16 %v82
  %v360 = vunpack.c.h.b16 %v82
  %v361 = vunpack.c.l.b16 %v83
  %v362 = vunpack.c.h.b16 %v83
  %v363 = vunpack.c.l.b16 %v84
  %v364 = vunpack.c.h.b16 %v84
  %v365 = vunpack.c.l.b16 %v85
  %v366 = vunpack.c.h.b16 %v85
  %v367 = vunpack.c.l.b16 %v86
  %v368 = vunpack.c.h.b16 %v86
  %v369 = vunpack.c.l.b16 %v87
  %v370 = vunpack.c.h.b16 %v87
  %v371 = vunpack.c.l.b16 %v88
  %v372 = vunpack.c.h.b16 %v88
  %v373 = vunpack.c.l.b16 %v89
  %v374 = vunpack.c.h.b16 %v89
  %v375 = vunpack.c.l.b16 %v90
  %v376 = vunpack.c.h.b16 %v90
  %v377 = vunpack.c.l.b16 %v91
  %v378 = vunpack.c.h.b16 %v91
  %v379 = vunpack.c.l.b16 %v92
  %v380 = vunpack.c.h.b16 %v92
  %v381 = vunpack.c.l.b16 %v93
  %v382 = vunpack.c.h.b16 %v93
  %v383 = vunpack.c.l.b16 %v94
  %v384 = vunpack.c.h.b16 %v94
  %v385 = vunpack.c.l.b16 %v95
  %v386 = vunpack.c.h.b16 %v95
  %v387 = vunpack.c.l.b16 %v96
  %v388 = vunpack.c.h.b16 %v96
  %v389 = vunpack.c.l.b16 %v97
  %v390 = vunpack.c.h.b16 %v97
  %v391 = vunpack.c.l.b16 %v98
  %v392 = vunpack.c.h.b16 %v98
  %v393 = vunpack.c.l.b16 %v99
  %v394 = vunpack.c.h.b16 %v99
  %v395 = vunpack.c.l.b16 %v100
  %v396 = vunpack.c.h.b16 %v100
  %v397 = vunpack.c.l.b16 %v101
  %v398 = vunpack.c.h.b16 %v101
  %v399 = vunpack.c.l.b16 %v102
  %v400 = vunpack.c.h.b16 %v102
  %v401 = vunpack.c.l.b16 %v103
  %v402 = vunpack.c.h.b16 %v103
  %v403 = vunpack.c.l.b16 %v104
  %v404 = vunpack.c.h.b16 %v104
  %v405 = vunpack.c.l.b16 %v105
  %v406 = vunpack.c.h.b16 %v105
  %v407 = vunpack.c.l.b16 %v106
  %v408 = vunpack.c.h.b16 %v106
  %v409 = vunpack.c.l.b16 %v107
  %v410 = vunpack.c.h.b16 %v107
  %v411 = vunpack.c.l.b16 %v108
  %v412 = vunpack.c.h.b16 %v108
  %v413 = vpack.c.b16 %v269, %v233
  %v414 = vpack.c.b16 %v270, %v234
  %v415 = vpack.c.b16 %v271, %v235
  %v416 = vpack.c.b16 %v272, %v236
  %v417 = vpack.c.b16 %v273, %v237
  %v418 = vpack.c.b16 %v274, %v238
  %v419 = vpack.c.b16 %v275, %v239
  %v420 = vpack.c.b16 %v276, %v240
  %v421 = vpack.c.b16 %v277, %v241
  %v422 = vpack.c.b16 %v278, %v242
  %v423 = vpack.c.b16 %v279, %v243
  %v424 = vpack.c.b16 %v280, %v244
  %v425 = vpack.c.b16 %v281, %v245
  %v426 = vpack.c.b16 %v282, %v246
  %v427 = vpack.c.b16 %v283, %v247
  %v428 = vpack.c.b16 %v284, %v248
  %v429 = vpack.c.b16 %v285, %v249
  %v430 = vpack.c.b16 %v286, %v250
  %v431 = vpack.c.b16 %v287, %v251
  %v432 = vpack.c.b16 %v288, %v252
  %v433 = vpack.c.b16 %v289, %v253
  %v434 = vpack.c.b16 %v290, %v254
  %v435 = vpack.c.b16 %v291, %v255
  %v436 = vpack.c.b16 %v292, %v256
  %v437 = vpack.c.b16 %v293, %v257
  %v438 = vpack.c.b16 %v294, %v258
  %v439 = vpack.c.b16 %v295, %v259
  %v440 = vpack.c.b16 %v296, %v260
  %v441 = vpack.c.b16 %v297, %v261
  %v442 = vpack.c.b16 %v298, %v262
  %v443 = vpack.c.b16 %v299, %v263
  %v444 = vpack.c.b16 %v300, %v264
  %v445 = vpack.c.b16 %v301, %v265
  %v446 = vpack.c.b16 %v302, %v266
  %v447 = vpack.c.b16 %v303, %v267
  %v448 = vpack.c.b16 %v304, %v268
  %v449 = vpack.c.b16 %v341, %v305
  %v450 = vpack.c.b16 %v342, %v306
  %v451 = vpack.c.b16 %v343, %v307
  %v452 = vpack.c.b16 %v344, %v308
  %v453 = vpack.c.b16 %v345, %v309
  %v454 = vpack.c.b16 %v346, %v310
  %v455 = vpack.c.b16 %v347, %v311
  %v456 = vpack.c.b16 %v348, %v312
  %v457 = vpack.c.b16 %v349, %v313
  %v458 = vpack.c.b16 %v350, %v314
  %v459 = vpack.c.b16 %v351, %v315
  %v460 = vpack.c.b16 %v352, %v316
  %v461 = vpack.c.b16 %v353, %v317
  %v462 = vpack.c.b16 %v354, %v318
  %v463 = vpack.c.b16 %v355, %v319
  %v464 = vpack.c.b16 %v356, %v320
  %v465 = vpack.c.b16 %v357, %v321
  %v466 = vpack.c.b16 %v358, %v322
  %v467 = vpack.c.b16 %v359, %v323
  %v468 = vpack.c.b16 %v360, %v324
  %v469 = vpack.c.b16 %v361, %v325
  %v470 = vpack.c.b16 %v362, %v326
  %v471 = vpack.c.b16 %v363, %v327
  %v472 = vpack.c.b16 %v364, %v328
  %v473 = vpack.c.b16 %v365, %v329
  %v474 = vpack.c.b16 %v366, %v330
  %v475 = vpack.c.b16 %v367, %v331
  %v476 = vpack.c.b16 %v368, %v332
  %v477 = vpack.c.b16 %v369, %v333
  %v478 = vpack.c.b16 %v370, %v334
  %v479 = vpack.c.b16 %v371, %v335
  %v480 = vpack.c.b16 %v372, %v336
  %v481 = vpack.c.b16 %v373, %v337
  %v482 = vpack.c.b16 %v374, %v338
  %v483 = vpack.c.b16 %v375, %v339
  %v484 = vpack.c.b16 %v376, %v340
  %v485 = vpack.c.b16 %v377, %v377
  %v486 = vpack.c.b16 %v378, %v378
  %v487 = vpack.c.b16 %v379, %v379
  %v488 = vpack.c.b16 %v380, %v380
  %v489 = vpack.c.b16 %v381, %v381
  %v490 = vpack.c.b16 %v382, %v382
  %v491 = vpack.c.b16 %v383, %v383
  %v492 = vpack.c.b16 %v384, %v384
  %v493 = vpack.c.b16 %v385, %v385
  %v494 = vpack.c.b16 %v386, %v386
  %v495 = vpack.c.b16 %v387, %v387
  %v496 = vpack.c.b16 %v388, %v388
  %v497 = vpack.c.b16 %v389, %v389
  %v498 = vpack.c.b16 %v390, %v390
  %v499 = vpack.c.b16 %v391, %v391
  %v500 = vpack.c.b16 %v392, %v392
  %v501 = vpack.c.b16 %v393, %v393
  %v502 = vpack.c.b16 %v394, %v394
  %v503 = vpack.c.b16 %v395, %v395
  %v504 = vpack.c.b16 %v396, %v396
  %v505 = vpack.c.b16 %v397, %v397
  %v506 = vpack.c.b16 %v398, %v398
  %v507 = vpack.c.b16 %v399, %v399
  %v508 = vpack.c.b16 %v400, %v400
  %v509 = vpack.c.b16 %v401, %v401
  %v510 = vpack.c.b16 %v402, %v402
  %v511 = vpack.c.b16 %v403, %v403
  %v512 = vpack.c.b16 %v404, %v404
  %v513 = vpack.c.b16 %v405, %v405
  %v514 = vpack.c.b16 %v406, %v406
  %v515 = vpack.c.b16 %v407, %v407
  %v516 = vpack.c.b16 %v408, %v408
  %v517 = vpack.c.b16 %v409, %v409
  %v518 = vpack.c.b16 %v410, %v410
  %v519 = vpack.c.b16 %v411, %v411
  %v520 = vpack.c.b16 %v412, %v412
  %vm593 = vcmask 293888
  %v595 = vsel %vm593, %v141, 0
  %v598 = vsel %vm593, %v142, 0
  %vm600 = vcmask 1041408
  %v602 = vsel %vm600, %v485, 0
  %v605 = vsel %vm600, %v486, 0
  %v608 = vsel %vm600, %v487, 0
  %v611 = vsel %vm600, %v488, 0
  %v614 = vsel %vm600, %v489, 0
  %v617 = vsel %vm600, %v490, 0
  %v620 = vsel %vm600, %v491, 0
  %v623 = vsel %vm600, %v492, 0
  %v626 = vsel %vm600, %v493, 0
  %v629 = vsel %vm600, %v494, 0
  %v632 = vsel %vm600, %v495, 0
  %v635 = vsel %vm600, %v496, 0
  %v638 = vsel %vm600, %v497, 0
  %v641 = vsel %vm600, %v498, 0
  %v644 = vsel %vm600, %v499, 0
  %v647 = vsel %vm600, %v500, 0
  %v650 = vsel %vm600, %v501, 0
  %v653 = vsel %vm600, %v502, 0
  %v656 = vsel %vm600, %v503, 0
  %v659 = vsel %vm600, %v504, 0
  %v662 = vsel %vm600, %v505, 0
  %v665 = vsel %vm600, %v506, 0
  %v668 = vsel %vm600, %v507, 0
  %v671 = vsel %vm600, %v508, 0
  %v674 = vsel %vm600, %v509, 0
  %v677 = vsel %vm600, %v510, 0
  %v680 = vsel %vm600, %v511, 0
  %v683 = vsel %vm600, %v512, 0
  %v686 = vsel %vm600, %v513, 0
  %v689 = vsel %vm600, %v514, 0
  %v692 = vsel %vm600, %v515, 0
  %v695 = vsel %vm600, %v516, 0
  %v698 = vsel %vm600, %v517, 0
  %v701 = vsel %vm600, %v518, 0
  %v704 = vsel %vm600, %v519, 0
  %v707 = vsel %vm600, %v520, 0
  %709 = vmatprep.subr.bf16.mxu0 %v414
  %710 = vmatpush1.bf16.msra.mxu0 %v413
  %711 = vmatprep.subr.bf16.mxu0 %v450
  %712 = vmatpush1.bf16.msra.mxu0 %v449
  %713 = vmatprep.subr.bf16.mxu0 %v605
  %714 = vmatpush1.bf16.msra.mxu0 %v602
  %715 = vmatprep.subr.bf16.mxu0 0
  %716 = vmatpush1.bf16.msra.mxu0 0
  %717 = vmatprep.subr.bf16.mxu0 0
  %718 = vmatpush1.bf16.msra.mxu0 0
  %719 = vmatprep.subr.bf16.mxu0 0
  %720 = vmatpush1.bf16.msra.mxu0 0
  %721 = vmatprep.subr.bf16.mxu0 0
  %722 = vmatpush1.bf16.msra.mxu0 0
  %723 = vmatprep.subr.bf16.mxu0 0
  %724 = vmatpush1.bf16.msra.mxu0 0
  %725 = vmatprep.subr.bf16.mxu0 0
  %726 = vmatpush1.bf16.msra.mxu0 0
  %727 = vmatprep.subr.bf16.mxu0 0
  %728 = vmatpush1.bf16.msra.mxu0 0
  %729 = vmatprep.subr.bf16.mxu0 0
  %730 = vmatpush1.bf16.msra.mxu0 0
  %731 = vmatprep.subr.bf16.mxu0 0
  %732 = vmatpush1.bf16.msra.mxu0 0
  %733 = vmatprep.subr.bf16.mxu0 0
  %734 = vmatpush1.bf16.msra.mxu0 0
  %735 = vmatprep.subr.bf16.mxu0 0
  %736 = vmatpush1.bf16.msra.mxu0 0
  %737 = vmatprep.subr.bf16.mxu0 0
  %738 = vmatpush1.bf16.msra.mxu0 0
  %739 = vmatprep.subr.bf16.mxu0 0
  %740 = vmatpush1.bf16.msra.mxu0 0
  %741 = vmatprep.mubr.bf16.mxu0 0
  %742 = vmatmul.mubr.bf16.gmra.mrb[0].mxu0 %v595
  %v743 = vpop.f32.mrb[0].mxu0
  %v744 = vadd.f32 %v116, %v743
  %v745 = vpop.f32.mrb[0].mxu0
  %v746 = vadd.f32 %v116, %v745
  %v747 = vpop.f32.mrb[0].mxu0
  %v748 = vadd.f32 %v121, %v747
  %v749 = vpop.f32.mrb[0].mxu0
  %v750 = vadd.f32 %v121, %v749
  %751 = vmatprep.mubr.bf16.mxu0 0
  %752 = vmatmul.mubr.bf16.gmra.mrb[0].mxu0 %v598
  %v753 = vpop.f32.mrb[0].mxu0
  %v754 = vadd.f32 %v126, %v753
  %v755 = vpop.f32.mrb[0].mxu0
  %v756 = vadd.f32 %v126, %v755
  %v757 = vpop.f32.mrb[0].mxu0
  %v758 = vadd.f32 %v131, %v757
  %v759 = vpop.f32.mrb[0].mxu0
  %v760 = vadd.f32 %v131, %v759
  %761 = vdwg.mxu0
  %762 = vmatprep.subr.bf16.mxu0 %v416
  %763 = vmatpush1.bf16.msra.mxu0 %v415
  %764 = vmatprep.subr.bf16.mxu0 %v452
  %765 = vmatpush1.bf16.msra.mxu0 %v451
  %766 = vmatprep.subr.bf16.mxu0 %v611
  %767 = vmatpush1.bf16.msra.mxu0 %v608
  %768 = vmatprep.subr.bf16.mxu0 0
  %769 = vmatpush1.bf16.msra.mxu0 0
  %770 = vmatprep.subr.bf16.mxu0 0
  %771 = vmatpush1.bf16.msra.mxu0 0
  %772 = vmatprep.subr.bf16.mxu0 0
  %773 = vmatpush1.bf16.msra.mxu0 0
  %774 = vmatprep.subr.bf16.mxu0 0
  %775 = vmatpush1.bf16.msra.mxu0 0
  %776 = vmatprep.subr.bf16.mxu0 0
  %777 = vmatpush1.bf16.msra.mxu0 0
  %778 = vmatprep.subr.bf16.mxu0 0
  %779 = vmatpush1.bf16.msra.mxu0 0
  %780 = vmatprep.subr.bf16.mxu0 0
  %781 = vmatpush1.bf16.msra.mxu0 0
  %782 = vmatprep.subr.bf16.mxu0 0
  %783 = vmatpush1.bf16.msra.mxu0 0
  %784 = vmatprep.subr.bf16.mxu0 0
  %785 = vmatpush1.bf16.msra.mxu0 0
  %786 = vmatprep.subr.bf16.mxu0 0
  %787 = vmatpush1.bf16.msra.mxu0 0
  %788 = vmatprep.subr.bf16.mxu0 0
  %789 = vmatpush1.bf16.msra.mxu0 0
  %790 = vmatprep.subr.bf16.mxu0 0
  %791 = vmatpush1.bf16.msra.mxu0 0
  %792 = vmatprep.subr.bf16.mxu0 0
  %793 = vmatpush1.bf16.msra.mxu0 0
  %794 = vmatprep.mubr.bf16.mxu0 0
  %795 = vmatmul.mubr.bf16.gmra.mrb[0].mxu0 %v595
  %v796 = vpop.f32.mrb[0].mxu0
  %v797 = vadd.f32 %v116, %v796
  %v798 = vpop.f32.mrb[0].mxu0
  %v799 = vadd.f32 %v116, %v798
  %v800 = vpop.f32.mrb[0].mxu0
  %v801 = vadd.f32 %v121, %v800
  %v802 = vpop.f32.mrb[0].mxu0
  %v803 = vadd.f32 %v121, %v802
  %804 = vmatprep.mubr.bf16.mxu0 0
  %805 = vmatmul.mubr.bf16.gmra.mrb[0].mxu0 %v598
  %v806 = vpop.f32.mrb[0].mxu0
  %v807 = vadd.f32 %v126, %v806
  %v808 = vpop.f32.mrb[0].mxu0
  %v809 = vadd.f32 %v126, %v808
  %v810 = vpop.f32.mrb[0].mxu0
  %v811 = vadd.f32 %v131, %v810
  %v812 = vpop.f32.mrb[0].mxu0
  %v813 = vadd.f32 %v131, %v812
  %814 = vdwg.mxu0
  %815 = vmatprep.subr.bf16.mxu0 %v418
  %816 = vmatpush1.bf16.msra.mxu0 %v417
  %817 = vmatprep.subr.bf16.mxu0 %v454
  %818 = vmatpush1.bf16.msra.mxu0 %v453
  %819 = vmatprep.subr.bf16.mxu0 %v617
  %820 = vmatpush1.bf16.msra.mxu0 %v614
  %821 = vmatprep.subr.bf16.mxu0 0
  %822 = vmatpush1.bf16.msra.mxu0 0
  %823 = vmatprep.subr.bf16.mxu0 0
  %824 = vmatpush1.bf16.msra.mxu0 0
  %825 = vmatprep.subr.bf16.mxu0 0
  %826 = vmatpush1.bf16.msra.mxu0 0
  %827 = vmatprep.subr.bf16.mxu0 0
  %828 = vmatpush1.bf16.msra.mxu0 0
  %829 = vmatprep.subr.bf16.mxu0 0
  %830 = vmatpush1.bf16.msra.mxu0 0
  %831 = vmatprep.subr.bf16.mxu0 0
  %832 = vmatpush1.bf16.msra.mxu0 0
  %833 = vmatprep.subr.bf16.mxu0 0
  %834 = vmatpush1.bf16.msra.mxu0 0
  %835 = vmatprep.subr.bf16.mxu0 0
  %836 = vmatpush1.bf16.msra.mxu0 0
  %837 = vmatprep.subr.bf16.mxu0 0
  %838 = vmatpush1.bf16.msra.mxu0 0
  %839 = vmatprep.subr.bf16.mxu0 0
  %840 = vmatpush1.bf16.msra.mxu0 0
  %841 = vmatprep.subr.bf16.mxu0 0
  %842 = vmatpush1.bf16.msra.mxu0 0
  %843 = vmatprep.subr.bf16.mxu0 0
  %844 = vmatpush1.bf16.msra.mxu0 0
  %845 = vmatprep.subr.bf16.mxu0 0
  %846 = vmatpush1.bf16.msra.mxu0 0
  %847 = vmatprep.mubr.bf16.mxu0 0
  %848 = vmatmul.mubr.bf16.gmra.mrb[0].mxu0 %v595
  %v849 = vpop.f32.mrb[0].mxu0
  %v850 = vadd.f32 %v116, %v849
  %v851 = vpop.f32.mrb[0].mxu0
  %v852 = vadd.f32 %v116, %v851
  %v853 = vpop.f32.mrb[0].mxu0
  %v854 = vadd.f32 %v121, %v853
  %v855 = vpop.f32.mrb[0].mxu0
  %v856 = vadd.f32 %v121, %v855
  %857 = vmatprep.mubr.bf16.mxu0 0
  %858 = vmatmul.mubr.bf16.gmra.mrb[0].mxu0 %v598
  %v859 = vpop.f32.mrb[0].mxu0
  %v860 = vadd.f32 %v126, %v859
  %v861 = vpop.f32.mrb[0].mxu0
  %v862 = vadd.f32 %v126, %v861
  %v863 = vpop.f32.mrb[0].mxu0
  %v864 = vadd.f32 %v131, %v863
  %v865 = vpop.f32.mrb[0].mxu0
  %v866 = vadd.f32 %v131, %v865
  %867 = vdwg.mxu0
  %868 = vmatprep.subr.bf16.mxu0 %v420
  %869 = vmatpush1.bf16.msra.mxu0 %v419
  %870 = vmatprep.subr.bf16.mxu0 %v456
  %871 = vmatpush1.bf16.msra.mxu0 %v455
  %872 = vmatprep.subr.bf16.mxu0 %v623
  %873 = vmatpush1.bf16.msra.mxu0 %v620
  %874 = vmatprep.subr.bf16.mxu0 0
  %875 = vmatpush1.bf16.msra.mxu0 0
  %876 = vmatprep.subr.bf16.mxu0 0
  %877 = vmatpush1.bf16.msra.mxu0 0
  %878 = vmatprep.subr.bf16.mxu0 0
  %879 = vmatpush1.bf16.msra.mxu0 0
  %880 = vmatprep.subr.bf16.mxu0 0
  %881 = vmatpush1.bf16.msra.mxu0 0
  %882 = vmatprep.subr.bf16.mxu0 0
  %883 = vmatpush1.bf16.msra.mxu0 0
  %884 = vmatprep.subr.bf16.mxu0 0
  %885 = vmatpush1.bf16.msra.mxu0 0
  %886 = vmatprep.subr.bf16.mxu0 0
  %887 = vmatpush1.bf16.msra.mxu0 0
  %888 = vmatprep.subr.bf16.mxu0 0
  %889 = vmatpush1.bf16.msra.mxu0 0
  %890 = vmatprep.subr.bf16.mxu0 0
  %891 = vmatpush1.bf16.msra.mxu0 0
  %892 = vmatprep.subr.bf16.mxu0 0
  %893 = vmatpush1.bf16.msra.mxu0 0
  %894 = vmatprep.subr.bf16.mxu0 0
  %895 = vmatpush1.bf16.msra.mxu0 0
  %896 = vmatprep.subr.bf16.mxu0 0
  %897 = vmatpush1.bf16.msra.mxu0 0
  %898 = vmatprep.subr.bf16.mxu0 0
  %899 = vmatpush1.bf16.msra.mxu0 0
  %900 = vmatprep.mubr.bf16.mxu0 0
  %901 = vmatmul.mubr.bf16.gmra.mrb[0].mxu0 %v595
  %v902 = vpop.f32.mrb[0].mxu0
  %v903 = vadd.f32 %v116, %v902
  %v904 = vpop.f32.mrb[0].mxu0
  %v905 = vadd.f32 %v116, %v904
  %v906 = vpop.f32.mrb[0].mxu0
  %v907 = vadd.f32 %v121, %v906
  %v908 = vpop.f32.mrb[0].mxu0
  %v909 = vadd.f32 %v121, %v908
  %910 = vmatprep.mubr.bf16.mxu0 0
  %911 = vmatmul.mubr.bf16.gmra.mrb[0].mxu0 %v598
  %v912 = vpop.f32.mrb[0].mxu0
  %v913 = vadd.f32 %v126, %v912
  %v914 = vpop.f32.mrb[0].mxu0
  %v915 = vadd.f32 %v126, %v914
  %v916 = vpop.f32.mrb[0].mxu0
  %v917 = vadd.f32 %v131, %v916
  %v918 = vpop.f32.mrb[0].mxu0
  %v919 = vadd.f32 %v131, %v918
  %920 = vdwg.mxu0
  %921 = vmatprep.subr.bf16.mxu0 %v422
  %922 = vmatpush1.bf16.msra.mxu0 %v421
  %923 = vmatprep.subr.bf16.mxu0 %v458
  %924 = vmatpush1.bf16.msra.mxu0 %v457
  %925 = vmatprep.subr.bf16.mxu0 %v629
  %926 = vmatpush1.bf16.msra.mxu0 %v626
  %927 = vmatprep.subr.bf16.mxu0 0
  %928 = vmatpush1.bf16.msra.mxu0 0
  %929 = vmatprep.subr.bf16.mxu0 0
  %930 = vmatpush1.bf16.msra.mxu0 0
  %931 = vmatprep.subr.bf16.mxu0 0
  %932 = vmatpush1.bf16.msra.mxu0 0
  %933 = vmatprep.subr.bf16.mxu0 0
  %934 = vmatpush1.bf16.msra.mxu0 0
  %935 = vmatprep.subr.bf16.mxu0 0
  %936 = vmatpush1.bf16.msra.mxu0 0
  %937 = vmatprep.subr.bf16.mxu0 0
  %938 = vmatpush1.bf16.msra.mxu0 0
  %939 = vmatprep.subr.bf16.mxu0 0
  %940 = vmatpush1.bf16.msra.mxu0 0
  %941 = vmatprep.subr.bf16.mxu0 0
  %942 = vmatpush1.bf16.msra.mxu0 0
  %943 = vmatprep.subr.bf16.mxu0 0
  %944 = vmatpush1.bf16.msra.mxu0 0
  %945 = vmatprep.subr.bf16.mxu0 0
  %946 = vmatpush1.bf16.msra.mxu0 0
  %947 = vmatprep.subr.bf16.mxu0 0
  %948 = vmatpush1.bf16.msra.mxu0 0
  %949 = vmatprep.subr.bf16.mxu0 0
  %950 = vmatpush1.bf16.msra.mxu0 0
  %951 = vmatprep.subr.bf16.mxu0 0
  %952 = vmatpush1.bf16.msra.mxu0 0
  %953 = vmatprep.mubr.bf16.mxu0 0
  %954 = vmatmul.mubr.bf16.gmra.mrb[0].mxu0 %v595
  %v955 = vpop.f32.mrb[0].mxu0
  %v956 = vadd.f32 %v116, %v955
  %v957 = vpop.f32.mrb[0].mxu0
  %v958 = vadd.f32 %v116, %v957
  %v959 = vpop.f32.mrb[0].mxu0
  %v960 = vadd.f32 %v121, %v959
  %v961 = vpop.f32.mrb[0].mxu0
  %v962 = vadd.f32 %v121, %v961
  %963 = vmatprep.mubr.bf16.mxu0 0
  %964 = vmatmul.mubr.bf16.gmra.mrb[0].mxu0 %v598
  %v965 = vpop.f32.mrb[0].mxu0
  %v966 = vadd.f32 %v126, %v965
  %v967 = vpop.f32.mrb[0].mxu0
  %v968 = vadd.f32 %v126, %v967
  %v969 = vpop.f32.mrb[0].mxu0
  %v970 = vadd.f32 %v131, %v969
  %v971 = vpop.f32.mrb[0].mxu0
  %v972 = vadd.f32 %v131, %v971
  %973 = vdwg.mxu0
  %974 = vmatprep.subr.bf16.mxu0 %v424
  %975 = vmatpush1.bf16.msra.mxu0 %v423
  %976 = vmatprep.subr.bf16.mxu0 %v460
  %977 = vmatpush1.bf16.msra.mxu0 %v459
  %978 = vmatprep.subr.bf16.mxu0 %v635
  %979 = vmatpush1.bf16.msra.mxu0 %v632
  %980 = vmatprep.subr.bf16.mxu0 0
  %981 = vmatpush1.bf16.msra.mxu0 0
  %982 = vmatprep.subr.bf16.mxu0 0
  %983 = vmatpush1.bf16.msra.mxu0 0
  %984 = vmatprep.subr.bf16.mxu0 0
  %985 = vmatpush1.bf16.msra.mxu0 0
  %986 = vmatprep.subr.bf16.mxu0 0
  %987 = vmatpush1.bf16.msra.mxu0 0
  %988 = vmatprep.subr.bf16.mxu0 0
  %989 = vmatpush1.bf16.msra.mxu0 0
  %990 = vmatprep.subr.bf16.mxu0 0
  %991 = vmatpush1.bf16.msra.mxu0 0
  %992 = vmatprep.subr.bf16.mxu0 0
  %993 = vmatpush1.bf16.msra.mxu0 0
  %994 = vmatprep.subr.bf16.mxu0 0
  %995 = vmatpush1.bf16.msra.mxu0 0
  %996 = vmatprep.subr.bf16.mxu0 0
  %997 = vmatpush1.bf16.msra.mxu0 0
  %998 = vmatprep.subr.bf16.mxu0 0
  %999 = vmatpush1.bf16.msra.mxu0 0
  %1000 = vmatprep.subr.bf16.mxu0 0
  %1001 = vmatpush1.bf16.msra.mxu0 0
  %1002 = vmatprep.subr.bf16.mxu0 0
  %1003 = vmatpush1.bf16.msra.mxu0 0
  %1004 = vmatprep.subr.bf16.mxu0 0
  %1005 = vmatpush1.bf16.msra.mxu0 0
  %1006 = vmatprep.mubr.bf16.mxu0 0
  %1007 = vmatmul.mubr.bf16.gmra.mrb[0].mxu0 %v595
  %v1008 = vpop.f32.mrb[0].mxu0
  %v1009 = vadd.f32 %v116, %v1008
  %v1010 = vpop.f32.mrb[0].mxu0
  %v1011 = vadd.f32 %v116, %v1010
  %v1012 = vpop.f32.mrb[0].mxu0
  %v1013 = vadd.f32 %v121, %v1012
  %v1014 = vpop.f32.mrb[0].mxu0
  %v1015 = vadd.f32 %v121, %v1014
  %1016 = vmatprep.mubr.bf16.mxu0 0
  %1017 = vmatmul.mubr.bf16.gmra.mrb[0].mxu0 %v598
  %v1018 = vpop.f32.mrb[0].mxu0
  %v1019 = vadd.f32 %v126, %v1018
  %v1020 = vpop.f32.mrb[0].mxu0
  %v1021 = vadd.f32 %v126, %v1020
  %v1022 = vpop.f32.mrb[0].mxu0
  %v1023 = vadd.f32 %v131, %v1022
  %v1024 = vpop.f32.mrb[0].mxu0
  %v1025 = vadd.f32 %v131, %v1024
  %1026 = vdwg.mxu0
  %1027 = vmatprep.subr.bf16.mxu0 %v426
  %1028 = vmatpush1.bf16.msra.mxu0 %v425
  %1029 = vmatprep.subr.bf16.mxu0 %v462
  %1030 = vmatpush1.bf16.msra.mxu0 %v461
  %1031 = vmatprep.subr.bf16.mxu0 %v641
  %1032 = vmatpush1.bf16.msra.mxu0 %v638
  %1033 = vmatprep.subr.bf16.mxu0 0
  %1034 = vmatpush1.bf16.msra.mxu0 0
  %1035 = vmatprep.subr.bf16.mxu0 0
  %1036 = vmatpush1.bf16.msra.mxu0 0
  %1037 = vmatprep.subr.bf16.mxu0 0
  %1038 = vmatpush1.bf16.msra.mxu0 0
  %1039 = vmatprep.subr.bf16.mxu0 0
  %1040 = vmatpush1.bf16.msra.mxu0 0
  %1041 = vmatprep.subr.bf16.mxu0 0
  %1042 = vmatpush1.bf16.msra.mxu0 0
  %1043 = vmatprep.subr.bf16.mxu0 0
  %1044 = vmatpush1.bf16.msra.mxu0 0
  %1045 = vmatprep.subr.bf16.mxu0 0
  %1046 = vmatpush1.bf16.msra.mxu0 0
  %1047 = vmatprep.subr.bf16.mxu0 0
  %1048 = vmatpush1.bf16.msra.mxu0 0
  %1049 = vmatprep.subr.bf16.mxu0 0
  %1050 = vmatpush1.bf16.msra.mxu0 0
  %1051 = vmatprep.subr.bf16.mxu0 0
  %1052 = vmatpush1.bf16.msra.mxu0 0
  %1053 = vmatprep.subr.bf16.mxu0 0
  %1054 = vmatpush1.bf16.msra.mxu0 0
  %1055 = vmatprep.subr.bf16.mxu0 0
  %1056 = vmatpush1.bf16.msra.mxu0 0
  %1057 = vmatprep.subr.bf16.mxu0 0
  %1058 = vmatpush1.bf16.msra.mxu0 0
  %1059 = vmatprep.mubr.bf16.mxu0 0
  %1060 = vmatmul.mubr.bf16.gmra.mrb[0].mxu0 %v595
  %v1061 = vpop.f32.mrb[0].mxu0
  %v1062 = vadd.f32 %v116, %v1061
  %v1063 = vpop.f32.mrb[0].mxu0
  %v1064 = vadd.f32 %v116, %v1063
  %v1065 = vpop.f32.mrb[0].mxu0
  %v1066 = vadd.f32 %v121, %v1065
  %v1067 = vpop.f32.mrb[0].mxu0
  %v1068 = vadd.f32 %v121, %v1067
  %1069 = vmatprep.mubr.bf16.mxu0 0
  %1070 = vmatmul.mubr.bf16.gmra.mrb[0].mxu0 %v598
  %v1071 = vpop.f32.mrb[0].mxu0
  %v1072 = vadd.f32 %v126, %v1071
  %v1073 = vpop.f32.mrb[0].mxu0
  %v1074 = vadd.f32 %v126, %v1073
  %v1075 = vpop.f32.mrb[0].mxu0
  %v1076 = vadd.f32 %v131, %v1075
  %v1077 = vpop.f32.mrb[0].mxu0
  %v1078 = vadd.f32 %v131, %v1077
  %1079 = vdwg.mxu0
  %1080 = vmatprep.subr.bf16.mxu0 %v428
  %1081 = vmatpush1.bf16.msra.mxu0 %v427
  %1082 = vmatprep.subr.bf16.mxu0 %v464
  %1083 = vmatpush1.bf16.msra.mxu0 %v463
  %1084 = vmatprep.subr.bf16.mxu0 %v647
  %1085 = vmatpush1.bf16.msra.mxu0 %v644
  %1086 = vmatprep.subr.bf16.mxu0 0
  %1087 = vmatpush1.bf16.msra.mxu0 0
  %1088 = vmatprep.subr.bf16.mxu0 0
  %1089 = vmatpush1.bf16.msra.mxu0 0
  %1090 = vmatprep.subr.bf16.mxu0 0
  %1091 = vmatpush1.bf16.msra.mxu0 0
  %1092 = vmatprep.subr.bf16.mxu0 0
  %1093 = vmatpush1.bf16.msra.mxu0 0
  %1094 = vmatprep.subr.bf16.mxu0 0
  %1095 = vmatpush1.bf16.msra.mxu0 0
  %1096 = vmatprep.subr.bf16.mxu0 0
  %1097 = vmatpush1.bf16.msra.mxu0 0
  %1098 = vmatprep.subr.bf16.mxu0 0
  %1099 = vmatpush1.bf16.msra.mxu0 0
  %1100 = vmatprep.subr.bf16.mxu0 0
  %1101 = vmatpush1.bf16.msra.mxu0 0
  %1102 = vmatprep.subr.bf16.mxu0 0
  %1103 = vmatpush1.bf16.msra.mxu0 0
  %1104 = vmatprep.subr.bf16.mxu0 0
  %1105 = vmatpush1.bf16.msra.mxu0 0
  %1106 = vmatprep.subr.bf16.mxu0 0
  %1107 = vmatpush1.bf16.msra.mxu0 0
  %1108 = vmatprep.subr.bf16.mxu0 0
  %1109 = vmatpush1.bf16.msra.mxu0 0
  %1110 = vmatprep.subr.bf16.mxu0 0
  %1111 = vmatpush1.bf16.msra.mxu0 0
  %1112 = vmatprep.mubr.bf16.mxu0 0
  %1113 = vmatmul.mubr.bf16.gmra.mrb[0].mxu0 %v595
  %v1114 = vpop.f32.mrb[0].mxu0
  %v1115 = vadd.f32 %v116, %v1114
  %v1116 = vpop.f32.mrb[0].mxu0
  %v1117 = vadd.f32 %v116, %v1116
  %v1118 = vpop.f32.mrb[0].mxu0
  %v1119 = vadd.f32 %v121, %v1118
  %v1120 = vpop.f32.mrb[0].mxu0
  %v1121 = vadd.f32 %v121, %v1120
  %1122 = vmatprep.mubr.bf16.mxu0 0
  %1123 = vmatmul.mubr.bf16.gmra.mrb[0].mxu0 %v598
  %v1124 = vpop.f32.mrb[0].mxu0
  %v1125 = vadd.f32 %v126, %v1124
  %v1126 = vpop.f32.mrb[0].mxu0
  %v1127 = vadd.f32 %v126, %v1126
  %v1128 = vpop.f32.mrb[0].mxu0
  %v1129 = vadd.f32 %v131, %v1128
  %v1130 = vpop.f32.mrb[0].mxu0
  %v1131 = vadd.f32 %v131, %v1130
  %1132 = vdwg.mxu0
  %1133 = vmatprep.subr.bf16.mxu0 %v430
  %1134 = vmatpush1.bf16.msra.mxu0 %v429
  %1135 = vmatprep.subr.bf16.mxu0 %v466
  %1136 = vmatpush1.bf16.msra.mxu0 %v465
  %1137 = vmatprep.subr.bf16.mxu0 %v653
  %1138 = vmatpush1.bf16.msra.mxu0 %v650
  %1139 = vmatprep.subr.bf16.mxu0 0
  %1140 = vmatpush1.bf16.msra.mxu0 0
  %1141 = vmatprep.subr.bf16.mxu0 0
  %1142 = vmatpush1.bf16.msra.mxu0 0
  %1143 = vmatprep.subr.bf16.mxu0 0
  %1144 = vmatpush1.bf16.msra.mxu0 0
  %1145 = vmatprep.subr.bf16.mxu0 0
  %1146 = vmatpush1.bf16.msra.mxu0 0
  %1147 = vmatprep.subr.bf16.mxu0 0
  %1148 = vmatpush1.bf16.msra.mxu0 0
  %1149 = vmatprep.subr.bf16.mxu0 0
  %1150 = vmatpush1.bf16.msra.mxu0 0
  %1151 = vmatprep.subr.bf16.mxu0 0
  %1152 = vmatpush1.bf16.msra.mxu0 0
  %1153 = vmatprep.subr.bf16.mxu0 0
  %1154 = vmatpush1.bf16.msra.mxu0 0
  %1155 = vmatprep.subr.bf16.mxu0 0
  %1156 = vmatpush1.bf16.msra.mxu0 0
  %1157 = vmatprep.subr.bf16.mxu0 0
  %1158 = vmatpush1.bf16.msra.mxu0 0
  %1159 = vmatprep.subr.bf16.mxu0 0
  %1160 = vmatpush1.bf16.msra.mxu0 0
  %1161 = vmatprep.subr.bf16.mxu0 0
  %1162 = vmatpush1.bf16.msra.mxu0 0
  %1163 = vmatprep.subr.bf16.mxu0 0
  %1164 = vmatpush1.bf16.msra.mxu0 0
  %1165 = vmatprep.mubr.bf16.mxu0 0
  %1166 = vmatmul.mubr.bf16.gmra.mrb[0].mxu0 %v595
  %v1167 = vpop.f32.mrb[0].mxu0
  %v1168 = vadd.f32 %v116, %v1167
  %v1169 = vpop.f32.mrb[0].mxu0
  %v1170 = vadd.f32 %v116, %v1169
  %v1171 = vpop.f32.mrb[0].mxu0
  %v1172 = vadd.f32 %v121, %v1171
  %v1173 = vpop.f32.mrb[0].mxu0
  %v1174 = vadd.f32 %v121, %v1173
  %1175 = vmatprep.mubr.bf16.mxu0 0
  %1176 = vmatmul.mubr.bf16.gmra.mrb[0].mxu0 %v598
  %v1177 = vpop.f32.mrb[0].mxu0
  %v1178 = vadd.f32 %v126, %v1177
  %v1179 = vpop.f32.mrb[0].mxu0
  %v1180 = vadd.f32 %v126, %v1179
  %v1181 = vpop.f32.mrb[0].mxu0
  %v1182 = vadd.f32 %v131, %v1181
  %v1183 = vpop.f32.mrb[0].mxu0
  %v1184 = vadd.f32 %v131, %v1183
  %1185 = vdwg.mxu0
  %1186 = vmatprep.subr.bf16.mxu0 %v432
  %1187 = vmatpush1.bf16.msra.mxu0 %v431
  %1188 = vmatprep.subr.bf16.mxu0 %v468
  %1189 = vmatpush1.bf16.msra.mxu0 %v467
  %1190 = vmatprep.subr.bf16.mxu0 %v659
  %1191 = vmatpush1.bf16.msra.mxu0 %v656
  %1192 = vmatprep.subr.bf16.mxu0 0
  %1193 = vmatpush1.bf16.msra.mxu0 0
  %1194 = vmatprep.subr.bf16.mxu0 0
  %1195 = vmatpush1.bf16.msra.mxu0 0
  %1196 = vmatprep.subr.bf16.mxu0 0
  %1197 = vmatpush1.bf16.msra.mxu0 0
  %1198 = vmatprep.subr.bf16.mxu0 0
  %1199 = vmatpush1.bf16.msra.mxu0 0
  %1200 = vmatprep.subr.bf16.mxu0 0
  %1201 = vmatpush1.bf16.msra.mxu0 0
  %1202 = vmatprep.subr.bf16.mxu0 0
  %1203 = vmatpush1.bf16.msra.mxu0 0
  %1204 = vmatprep.subr.bf16.mxu0 0
  %1205 = vmatpush1.bf16.msra.mxu0 0
  %1206 = vmatprep.subr.bf16.mxu0 0
  %1207 = vmatpush1.bf16.msra.mxu0 0
  %1208 = vmatprep.subr.bf16.mxu0 0
  %1209 = vmatpush1.bf16.msra.mxu0 0
  %1210 = vmatprep.subr.bf16.mxu0 0
  %1211 = vmatpush1.bf16.msra.mxu0 0
  %1212 = vmatprep.subr.bf16.mxu0 0
  %1213 = vmatpush1.bf16.msra.mxu0 0
  %1214 = vmatprep.subr.bf16.mxu0 0
  %1215 = vmatpush1.bf16.msra.mxu0 0
  %1216 = vmatprep.subr.bf16.mxu0 0
  %1217 = vmatpush1.bf16.msra.mxu0 0
  %1218 = vmatprep.mubr.bf16.mxu0 0
  %1219 = vmatmul.mubr.bf16.gmra.mrb[0].mxu0 %v595
  %v1220 = vpop.f32.mrb[0].mxu0
  %v1221 = vadd.f32 %v116, %v1220
  %v1222 = vpop.f32.mrb[0].mxu0
  %v1223 = vadd.f32 %v116, %v1222
  %v1224 = vpop.f32.mrb[0].mxu0
  %v1225 = vadd.f32 %v121, %v1224
  %v1226 = vpop.f32.mrb[0].mxu0
  %v1227 = vadd.f32 %v121, %v1226
  %1228 = vmatprep.mubr.bf16.mxu0 0
  %1229 = vmatmul.mubr.bf16.gmra.mrb[0].mxu0 %v598
  %v1230 = vpop.f32.mrb[0].mxu0
  %v1231 = vadd.f32 %v126, %v1230
  %v1232 = vpop.f32.mrb[0].mxu0
  %v1233 = vadd.f32 %v126, %v1232
  %v1234 = vpop.f32.mrb[0].mxu0
  %v1235 = vadd.f32 %v131, %v1234
  %v1236 = vpop.f32.mrb[0].mxu0
  %v1237 = vadd.f32 %v131, %v1236
  %1238 = vdwg.mxu0
  %1239 = vmatprep.subr.bf16.mxu0 %v434
  %1240 = vmatpush1.bf16.msra.mxu0 %v433
  %1241 = vmatprep.subr.bf16.mxu0 %v470
  %1242 = vmatpush1.bf16.msra.mxu0 %v469
  %1243 = vmatprep.subr.bf16.mxu0 %v665
  %1244 = vmatpush1.bf16.msra.mxu0 %v662
  %1245 = vmatprep.subr.bf16.mxu0 0
  %1246 = vmatpush1.bf16.msra.mxu0 0
  %1247 = vmatprep.subr.bf16.mxu0 0
  %1248 = vmatpush1.bf16.msra.mxu0 0
  %1249 = vmatprep.subr.bf16.mxu0 0
  %1250 = vmatpush1.bf16.msra.mxu0 0
  %1251 = vmatprep.subr.bf16.mxu0 0
  %1252 = vmatpush1.bf16.msra.mxu0 0
  %1253 = vmatprep.subr.bf16.mxu0 0
  %1254 = vmatpush1.bf16.msra.mxu0 0
  %1255 = vmatprep.subr.bf16.mxu0 0
  %1256 = vmatpush1.bf16.msra.mxu0 0
  %1257 = vmatprep.subr.bf16.mxu0 0
  %1258 = vmatpush1.bf16.msra.mxu0 0
  %1259 = vmatprep.subr.bf16.mxu0 0
  %1260 = vmatpush1.bf16.msra.mxu0 0
  %1261 = vmatprep.subr.bf16.mxu0 0
  %1262 = vmatpush1.bf16.msra.mxu0 0
  %1263 = vmatprep.subr.bf16.mxu0 0
  %1264 = vmatpush1.bf16.msra.mxu0 0
  %1265 = vmatprep.subr.bf16.mxu0 0
  %1266 = vmatpush1.bf16.msra.mxu0 0
  %1267 = vmatprep.subr.bf16.mxu0 0
  %1268 = vmatpush1.bf16.msra.mxu0 0
  %1269 = vmatprep.subr.bf16.mxu0 0
  %1270 = vmatpush1.bf16.msra.mxu0 0
  %1271 = vmatprep.mubr.bf16.mxu0 0
  %1272 = vmatmul.mubr.bf16.gmra.mrb[0].mxu0 %v595
  %v1273 = vpop.f32.mrb[0].mxu0
  %v1274 = vadd.f32 %v116, %v1273
  %v1275 = vpop.f32.mrb[0].mxu0
  %v1276 = vadd.f32 %v116, %v1275
  %v1277 = vpop.f32.mrb[0].mxu0
  %v1278 = vadd.f32 %v121, %v1277
  %v1279 = vpop.f32.mrb[0].mxu0
  %v1280 = vadd.f32 %v121, %v1279
  %1281 = vmatprep.mubr.bf16.mxu0 0
  %1282 = vmatmul.mubr.bf16.gmra.mrb[0].mxu0 %v598
  %v1283 = vpop.f32.mrb[0].mxu0
  %v1284 = vadd.f32 %v126, %v1283
  %v1285 = vpop.f32.mrb[0].mxu0
  %v1286 = vadd.f32 %v126, %v1285
  %v1287 = vpop.f32.mrb[0].mxu0
  %v1288 = vadd.f32 %v131, %v1287
  %v1289 = vpop.f32.mrb[0].mxu0
  %v1290 = vadd.f32 %v131, %v1289
  %1291 = vdwg.mxu0
  %1292 = vmatprep.subr.bf16.mxu0 %v436
  %1293 = vmatpush1.bf16.msra.mxu0 %v435
  %1294 = vmatprep.subr.bf16.mxu0 %v472
  %1295 = vmatpush1.bf16.msra.mxu0 %v471
  %1296 = vmatprep.subr.bf16.mxu0 %v671
  %1297 = vmatpush1.bf16.msra.mxu0 %v668
  %1298 = vmatprep.subr.bf16.mxu0 0
  %1299 = vmatpush1.bf16.msra.mxu0 0
  %1300 = vmatprep.subr.bf16.mxu0 0
  %1301 = vmatpush1.bf16.msra.mxu0 0
  %1302 = vmatprep.subr.bf16.mxu0 0
  %1303 = vmatpush1.bf16.msra.mxu0 0
  %1304 = vmatprep.subr.bf16.mxu0 0
  %1305 = vmatpush1.bf16.msra.mxu0 0
  %1306 = vmatprep.subr.bf16.mxu0 0
  %1307 = vmatpush1.bf16.msra.mxu0 0
  %1308 = vmatprep.subr.bf16.mxu0 0
  %1309 = vmatpush1.bf16.msra.mxu0 0
  %1310 = vmatprep.subr.bf16.mxu0 0
  %1311 = vmatpush1.bf16.msra.mxu0 0
  %1312 = vmatprep.subr.bf16.mxu0 0
  %1313 = vmatpush1.bf16.msra.mxu0 0
  %1314 = vmatprep.subr.bf16.mxu0 0
  %1315 = vmatpush1.bf16.msra.mxu0 0
  %1316 = vmatprep.subr.bf16.mxu0 0
  %1317 = vmatpush1.bf16.msra.mxu0 0
  %1318 = vmatprep.subr.bf16.mxu0 0
  %1319 = vmatpush1.bf16.msra.mxu0 0
  %1320 = vmatprep.subr.bf16.mxu0 0
  %1321 = vmatpush1.bf16.msra.mxu0 0
  %1322 = vmatprep.subr.bf16.mxu0 0
  %1323 = vmatpush1.bf16.msra.mxu0 0
  %1324 = vmatprep.mubr.bf16.mxu0 0
  %1325 = vmatmul.mubr.bf16.gmra.mrb[0].mxu0 %v595
  %v1326 = vpop.f32.mrb[0].mxu0
  %v1327 = vadd.f32 %v116, %v1326
  %v1328 = vpop.f32.mrb[0].mxu0
  %v1329 = vadd.f32 %v116, %v1328
  %v1330 = vpop.f32.mrb[0].mxu0
  %v1331 = vadd.f32 %v121, %v1330
  %v1332 = vpop.f32.mrb[0].mxu0
  %v1333 = vadd.f32 %v121, %v1332
  %1334 = vmatprep.mubr.bf16.mxu0 0
  %1335 = vmatmul.mubr.bf16.gmra.mrb[0].mxu0 %v598
  %v1336 = vpop.f32.mrb[0].mxu0
  %v1337 = vadd.f32 %v126, %v1336
  %v1338 = vpop.f32.mrb[0].mxu0
  %v1339 = vadd.f32 %v126, %v1338
  %v1340 = vpop.f32.mrb[0].mxu0
  %v1341 = vadd.f32 %v131, %v1340
  %v1342 = vpop.f32.mrb[0].mxu0
  %v1343 = vadd.f32 %v131, %v1342
  %1344 = vdwg.mxu0
  %1345 = vmatprep.subr.bf16.mxu0 %v438
  %1346 = vmatpush1.bf16.msra.mxu0 %v437
  %1347 = vmatprep.subr.bf16.mxu0 %v474
  %1348 = vmatpush1.bf16.msra.mxu0 %v473
  %1349 = vmatprep.subr.bf16.mxu0 %v677
  %1350 = vmatpush1.bf16.msra.mxu0 %v674
  %1351 = vmatprep.subr.bf16.mxu0 0
  %1352 = vmatpush1.bf16.msra.mxu0 0
  %1353 = vmatprep.subr.bf16.mxu0 0
  %1354 = vmatpush1.bf16.msra.mxu0 0
  %1355 = vmatprep.subr.bf16.mxu0 0
  %1356 = vmatpush1.bf16.msra.mxu0 0
  %1357 = vmatprep.subr.bf16.mxu0 0
  %1358 = vmatpush1.bf16.msra.mxu0 0
  %1359 = vmatprep.subr.bf16.mxu0 0
  %1360 = vmatpush1.bf16.msra.mxu0 0
  %1361 = vmatprep.subr.bf16.mxu0 0
  %1362 = vmatpush1.bf16.msra.mxu0 0
  %1363 = vmatprep.subr.bf16.mxu0 0
  %1364 = vmatpush1.bf16.msra.mxu0 0
  %1365 = vmatprep.subr.bf16.mxu0 0
  %1366 = vmatpush1.bf16.msra.mxu0 0
  %1367 = vmatprep.subr.bf16.mxu0 0
  %1368 = vmatpush1.bf16.msra.mxu0 0
  %1369 = vmatprep.subr.bf16.mxu0 0
  %1370 = vmatpush1.bf16.msra.mxu0 0
  %1371 = vmatprep.subr.bf16.mxu0 0
  %1372 = vmatpush1.bf16.msra.mxu0 0
  %1373 = vmatprep.subr.bf16.mxu0 0
  %1374 = vmatpush1.bf16.msra.mxu0 0
  %1375 = vmatprep.subr.bf16.mxu0 0
  %1376 = vmatpush1.bf16.msra.mxu0 0
  %1377 = vmatprep.mubr.bf16.mxu0 0
  %1378 = vmatmul.mubr.bf16.gmra.mrb[0].mxu0 %v595
  %v1379 = vpop.f32.mrb[0].mxu0
  %v1380 = vadd.f32 %v116, %v1379
  %v1381 = vpop.f32.mrb[0].mxu0
  %v1382 = vadd.f32 %v116, %v1381
  %v1383 = vpop.f32.mrb[0].mxu0
  %v1384 = vadd.f32 %v121, %v1383
  %v1385 = vpop.f32.mrb[0].mxu0
  %v1386 = vadd.f32 %v121, %v1385
  %1387 = vmatprep.mubr.bf16.mxu0 0
  %1388 = vmatmul.mubr.bf16.gmra.mrb[0].mxu0 %v598
  %v1389 = vpop.f32.mrb[0].mxu0
  %v1390 = vadd.f32 %v126, %v1389
  %v1391 = vpop.f32.mrb[0].mxu0
  %v1392 = vadd.f32 %v126, %v1391
  %v1393 = vpop.f32.mrb[0].mxu0
  %v1394 = vadd.f32 %v131, %v1393
  %v1395 = vpop.f32.mrb[0].mxu0
  %v1396 = vadd.f32 %v131, %v1395
  %1397 = vdwg.mxu0
  %1398 = vmatprep.subr.bf16.mxu0 %v440
  %1399 = vmatpush1.bf16.msra.mxu0 %v439
  %1400 = vmatprep.subr.bf16.mxu0 %v476
  %1401 = vmatpush1.bf16.msra.mxu0 %v475
  %1402 = vmatprep.subr.bf16.mxu0 %v683
  %1403 = vmatpush1.bf16.msra.mxu0 %v680
  %1404 = vmatprep.subr.bf16.mxu0 0
  %1405 = vmatpush1.bf16.msra.mxu0 0
  %1406 = vmatprep.subr.bf16.mxu0 0
  %1407 = vmatpush1.bf16.msra.mxu0 0
  %1408 = vmatprep.subr.bf16.mxu0 0
  %1409 = vmatpush1.bf16.msra.mxu0 0
  %1410 = vmatprep.subr.bf16.mxu0 0
  %1411 = vmatpush1.bf16.msra.mxu0 0
  %1412 = vmatprep.subr.bf16.mxu0 0
  %1413 = vmatpush1.bf16.msra.mxu0 0
  %1414 = vmatprep.subr.bf16.mxu0 0
  %1415 = vmatpush1.bf16.msra.mxu0 0
  %1416 = vmatprep.subr.bf16.mxu0 0
  %1417 = vmatpush1.bf16.msra.mxu0 0
  %1418 = vmatprep.subr.bf16.mxu0 0
  %1419 = vmatpush1.bf16.msra.mxu0 0
  %1420 = vmatprep.subr.bf16.mxu0 0
  %1421 = vmatpush1.bf16.msra.mxu0 0
  %1422 = vmatprep.subr.bf16.mxu0 0
  %1423 = vmatpush1.bf16.msra.mxu0 0
  %1424 = vmatprep.subr.bf16.mxu0 0
  %1425 = vmatpush1.bf16.msra.mxu0 0
  %1426 = vmatprep.subr.bf16.mxu0 0
  %1427 = vmatpush1.bf16.msra.mxu0 0
  %1428 = vmatprep.subr.bf16.mxu0 0
  %1429 = vmatpush1.bf16.msra.mxu0 0
  %1430 = vmatprep.mubr.bf16.mxu0 0
  %1431 = vmatmul.mubr.bf16.gmra.mrb[0].mxu0 %v595
  %v1432 = vpop.f32.mrb[0].mxu0
  %v1433 = vadd.f32 %v116, %v1432
  %v1434 = vpop.f32.mrb[0].mxu0
  %v1435 = vadd.f32 %v116, %v1434
  %v1436 = vpop.f32.mrb[0].mxu0
  %v1437 = vadd.f32 %v121, %v1436
  %v1438 = vpop.f32.mrb[0].mxu0
  %v1439 = vadd.f32 %v121, %v1438
  %1440 = vmatprep.mubr.bf16.mxu0 0
  %1441 = vmatmul.mubr.bf16.gmra.mrb[0].mxu0 %v598
  %v1442 = vpop.f32.mrb[0].mxu0
  %v1443 = vadd.f32 %v126, %v1442
  %v1444 = vpop.f32.mrb[0].mxu0
  %v1445 = vadd.f32 %v126, %v1444
  %v1446 = vpop.f32.mrb[0].mxu0
  %v1447 = vadd.f32 %v131, %v1446
  %v1448 = vpop.f32.mrb[0].mxu0
  %v1449 = vadd.f32 %v131, %v1448
  %1450 = vdwg.mxu0
  %1451 = vmatprep.subr.bf16.mxu0 %v442
  %1452 = vmatpush1.bf16.msra.mxu0 %v441
  %1453 = vmatprep.subr.bf16.mxu0 %v478
  %1454 = vmatpush1.bf16.msra.mxu0 %v477
  %1455 = vmatprep.subr.bf16.mxu0 %v689
  %1456 = vmatpush1.bf16.msra.mxu0 %v686
  %1457 = vmatprep.subr.bf16.mxu0 0
  %1458 = vmatpush1.bf16.msra.mxu0 0
  %1459 = vmatprep.subr.bf16.mxu0 0
  %1460 = vmatpush1.bf16.msra.mxu0 0
  %1461 = vmatprep.subr.bf16.mxu0 0
  %1462 = vmatpush1.bf16.msra.mxu0 0
  %1463 = vmatprep.subr.bf16.mxu0 0
  %1464 = vmatpush1.bf16.msra.mxu0 0
  %1465 = vmatprep.subr.bf16.mxu0 0
  %1466 = vmatpush1.bf16.msra.mxu0 0
  %1467 = vmatprep.subr.bf16.mxu0 0
  %1468 = vmatpush1.bf16.msra.mxu0 0
  %1469 = vmatprep.subr.bf16.mxu0 0
  %1470 = vmatpush1.bf16.msra.mxu0 0
  %1471 = vmatprep.subr.bf16.mxu0 0
  %1472 = vmatpush1.bf16.msra.mxu0 0
  %1473 = vmatprep.subr.bf16.mxu0 0
  %1474 = vmatpush1.bf16.msra.mxu0 0
  %1475 = vmatprep.subr.bf16.mxu0 0
  %1476 = vmatpush1.bf16.msra.mxu0 0
  %1477 = vmatprep.subr.bf16.mxu0 0
  %1478 = vmatpush1.bf16.msra.mxu0 0
  %1479 = vmatprep.subr.bf16.mxu0 0
  %1480 = vmatpush1.bf16.msra.mxu0 0
  %1481 = vmatprep.subr.bf16.mxu0 0
  %1482 = vmatpush1.bf16.msra.mxu0 0
  %1483 = vmatprep.mubr.bf16.mxu0 0
  %1484 = vmatmul.mubr.bf16.gmra.mrb[0].mxu0 %v595
  %v1485 = vpop.f32.mrb[0].mxu0
  %v1486 = vadd.f32 %v116, %v1485
  %v1487 = vpop.f32.mrb[0].mxu0
  %v1488 = vadd.f32 %v116, %v1487
  %v1489 = vpop.f32.mrb[0].mxu0
  %v1490 = vadd.f32 %v121, %v1489
  %v1491 = vpop.f32.mrb[0].mxu0
  %v1492 = vadd.f32 %v121, %v1491
  %1493 = vmatprep.mubr.bf16.mxu0 0
  %1494 = vmatmul.mubr.bf16.gmra.mrb[0].mxu0 %v598
  %v1495 = vpop.f32.mrb[0].mxu0
  %v1496 = vadd.f32 %v126, %v1495
  %v1497 = vpop.f32.mrb[0].mxu0
  %v1498 = vadd.f32 %v126, %v1497
  %v1499 = vpop.f32.mrb[0].mxu0
  %v1500 = vadd.f32 %v131, %v1499
  %v1501 = vpop.f32.mrb[0].mxu0
  %v1502 = vadd.f32 %v131, %v1501
  %1503 = vdwg.mxu0
  %1504 = vmatprep.subr.bf16.mxu0 %v444
  %1505 = vmatpush1.bf16.msra.mxu0 %v443
  %1506 = vmatprep.subr.bf16.mxu0 %v480
  %1507 = vmatpush1.bf16.msra.mxu0 %v479
  %1508 = vmatprep.subr.bf16.mxu0 %v695
  %1509 = vmatpush1.bf16.msra.mxu0 %v692
  %1510 = vmatprep.subr.bf16.mxu0 0
  %1511 = vmatpush1.bf16.msra.mxu0 0
  %1512 = vmatprep.subr.bf16.mxu0 0
  %1513 = vmatpush1.bf16.msra.mxu0 0
  %1514 = vmatprep.subr.bf16.mxu0 0
  %1515 = vmatpush1.bf16.msra.mxu0 0
  %1516 = vmatprep.subr.bf16.mxu0 0
  %1517 = vmatpush1.bf16.msra.mxu0 0
  %1518 = vmatprep.subr.bf16.mxu0 0
  %1519 = vmatpush1.bf16.msra.mxu0 0
  %1520 = vmatprep.subr.bf16.mxu0 0
  %1521 = vmatpush1.bf16.msra.mxu0 0
  %1522 = vmatprep.subr.bf16.mxu0 0
  %1523 = vmatpush1.bf16.msra.mxu0 0
  %1524 = vmatprep.subr.bf16.mxu0 0
  %1525 = vmatpush1.bf16.msra.mxu0 0
  %1526 = vmatprep.subr.bf16.mxu0 0
  %1527 = vmatpush1.bf16.msra.mxu0 0
  %1528 = vmatprep.subr.bf16.mxu0 0
  %1529 = vmatpush1.bf16.msra.mxu0 0
  %1530 = vmatprep.subr.bf16.mxu0 0
  %1531 = vmatpush1.bf16.msra.mxu0 0
  %1532 = vmatprep.subr.bf16.mxu0 0
  %1533 = vmatpush1.bf16.msra.mxu0 0
  %1534 = vmatprep.subr.bf16.mxu0 0
  %1535 = vmatpush1.bf16.msra.mxu0 0
  %1536 = vmatprep.mubr.bf16.mxu0 0
  %1537 = vmatmul.mubr.bf16.gmra.mrb[0].mxu0 %v595
  %v1538 = vpop.f32.mrb[0].mxu0
  %v1539 = vadd.f32 %v116, %v1538
  %v1540 = vpop.f32.mrb[0].mxu0
  %v1541 = vadd.f32 %v116, %v1540
  %v1542 = vpop.f32.mrb[0].mxu0
  %v1543 = vadd.f32 %v121, %v1542
  %v1544 = vpop.f32.mrb[0].mxu0
  %v1545 = vadd.f32 %v121, %v1544
  %1546 = vmatprep.mubr.bf16.mxu0 0
  %1547 = vmatmul.mubr.bf16.gmra.mrb[0].mxu0 %v598
  %v1548 = vpop.f32.mrb[0].mxu0
  %v1549 = vadd.f32 %v126, %v1548
  %v1550 = vpop.f32.mrb[0].mxu0
  %v1551 = vadd.f32 %v126, %v1550
  %v1552 = vpop.f32.mrb[0].mxu0
  %v1553 = vadd.f32 %v131, %v1552
  %v1554 = vpop.f32.mrb[0].mxu0
  %v1555 = vadd.f32 %v131, %v1554
  %1556 = vdwg.mxu0
  %1557 = vmatprep.subr.bf16.mxu0 %v446
  %1558 = vmatpush1.bf16.msra.mxu0 %v445
  %1559 = vmatprep.subr.bf16.mxu0 %v482
  %1560 = vmatpush1.bf16.msra.mxu0 %v481
  %1561 = vmatprep.subr.bf16.mxu0 %v701
  %1562 = vmatpush1.bf16.msra.mxu0 %v698
  %1563 = vmatprep.subr.bf16.mxu0 0
  %1564 = vmatpush1.bf16.msra.mxu0 0
  %1565 = vmatprep.subr.bf16.mxu0 0
  %1566 = vmatpush1.bf16.msra.mxu0 0
  %1567 = vmatprep.subr.bf16.mxu0 0
  %1568 = vmatpush1.bf16.msra.mxu0 0
  %1569 = vmatprep.subr.bf16.mxu0 0
  %1570 = vmatpush1.bf16.msra.mxu0 0
  %1571 = vmatprep.subr.bf16.mxu0 0
  %1572 = vmatpush1.bf16.msra.mxu0 0
  %1573 = vmatprep.subr.bf16.mxu0 0
  %1574 = vmatpush1.bf16.msra.mxu0 0
  %1575 = vmatprep.subr.bf16.mxu0 0
  %1576 = vmatpush1.bf16.msra.mxu0 0
  %1577 = vmatprep.subr.bf16.mxu0 0
  %1578 = vmatpush1.bf16.msra.mxu0 0
  %1579 = vmatprep.subr.bf16.mxu0 0
  %1580 = vmatpush1.bf16.msra.mxu0 0
  %1581 = vmatprep.subr.bf16.mxu0 0
  %1582 = vmatpush1.bf16.msra.mxu0 0
  %1583 = vmatprep.subr.bf16.mxu0 0
  %1584 = vmatpush1.bf16.msra.mxu0 0
  %1585 = vmatprep.subr.bf16.mxu0 0
  %1586 = vmatpush1.bf16.msra.mxu0 0
  %1587 = vmatprep.subr.bf16.mxu0 0
  %1588 = vmatpush1.bf16.msra.mxu0 0
  %1589 = vmatprep.mubr.bf16.mxu0 0
  %1590 = vmatmul.mubr.bf16.gmra.mrb[0].mxu0 %v595
  %v1591 = vpop.f32.mrb[0].mxu0
  %v1592 = vadd.f32 %v116, %v1591
  %v1593 = vpop.f32.mrb[0].mxu0
  %v1594 = vadd.f32 %v116, %v1593
  %v1595 = vpop.f32.mrb[0].mxu0
  %v1596 = vadd.f32 %v121, %v1595
  %v1597 = vpop.f32.mrb[0].mxu0
  %v1598 = vadd.f32 %v121, %v1597
  %1599 = vmatprep.mubr.bf16.mxu0 0
  %1600 = vmatmul.mubr.bf16.gmra.mrb[0].mxu0 %v598
  %v1601 = vpop.f32.mrb[0].mxu0
  %v1602 = vadd.f32 %v126, %v1601
  %v1603 = vpop.f32.mrb[0].mxu0
  %v1604 = vadd.f32 %v126, %v1603
  %v1605 = vpop.f32.mrb[0].mxu0
  %v1606 = vadd.f32 %v131, %v1605
  %v1607 = vpop.f32.mrb[0].mxu0
  %v1608 = vadd.f32 %v131, %v1607
  %1609 = vdwg.mxu0
  %1610 = vmatprep.subr.bf16.mxu0 %v448
  %1611 = vmatpush1.bf16.msra.mxu0 %v447
  %1612 = vmatprep.subr.bf16.mxu0 %v484
  %1613 = vmatpush1.bf16.msra.mxu0 %v483
  %1614 = vmatprep.subr.bf16.mxu0 %v707
  %1615 = vmatpush1.bf16.msra.mxu0 %v704
  %1616 = vmatprep.subr.bf16.mxu0 0
  %1617 = vmatpush1.bf16.msra.mxu0 0
  %1618 = vmatprep.subr.bf16.mxu0 0
  %1619 = vmatpush1.bf16.msra.mxu0 0
  %1620 = vmatprep.subr.bf16.mxu0 0
  %1621 = vmatpush1.bf16.msra.mxu0 0
  %1622 = vmatprep.subr.bf16.mxu0 0
  %1623 = vmatpush1.bf16.msra.mxu0 0
  %1624 = vmatprep.subr.bf16.mxu0 0
  %1625 = vmatpush1.bf16.msra.mxu0 0
  %1626 = vmatprep.subr.bf16.mxu0 0
  %1627 = vmatpush1.bf16.msra.mxu0 0
  %1628 = vmatprep.subr.bf16.mxu0 0
  %1629 = vmatpush1.bf16.msra.mxu0 0
  %1630 = vmatprep.subr.bf16.mxu0 0
  %1631 = vmatpush1.bf16.msra.mxu0 0
  %1632 = vmatprep.subr.bf16.mxu0 0
  %1633 = vmatpush1.bf16.msra.mxu0 0
  %1634 = vmatprep.subr.bf16.mxu0 0
  %1635 = vmatpush1.bf16.msra.mxu0 0
  %1636 = vmatprep.subr.bf16.mxu0 0
  %1637 = vmatpush1.bf16.msra.mxu0 0
  %1638 = vmatprep.subr.bf16.mxu0 0
  %1639 = vmatpush1.bf16.msra.mxu0 0
  %1640 = vmatprep.subr.bf16.mxu0 0
  %1641 = vmatpush1.bf16.msra.mxu0 0
  %1642 = vmatprep.mubr.bf16.mxu0 0
  %1643 = vmatmul.mubr.bf16.gmra.mrb[0].mxu0 %v595
  %v1644 = vpop.f32.mrb[0].mxu0
  %v1645 = vadd.f32 %v116, %v1644
  %v1646 = vpop.f32.mrb[0].mxu0
  %v1647 = vadd.f32 %v116, %v1646
  %v1648 = vpop.f32.mrb[0].mxu0
  %v1649 = vadd.f32 %v121, %v1648
  %v1650 = vpop.f32.mrb[0].mxu0
  %v1651 = vadd.f32 %v121, %v1650
  %1652 = vmatprep.mubr.bf16.mxu0 0
  %1653 = vmatmul.mubr.bf16.gmra.mrb[0].mxu0 %v598
  %v1654 = vpop.f32.mrb[0].mxu0
  %v1655 = vadd.f32 %v126, %v1654
  %v1656 = vpop.f32.mrb[0].mxu0
  %v1657 = vadd.f32 %v126, %v1656
  %v1658 = vpop.f32.mrb[0].mxu0
  %v1659 = vadd.f32 %v131, %v1658
  %v1660 = vpop.f32.mrb[0].mxu0
  %v1661 = vadd.f32 %v131, %v1660
  %1662 = vdwg.mxu0
  %v1663 = vmax.f32 %v744, 0.0
  %v1664 = vmax.f32 %v746, 0.0
  %v1665 = vmax.f32 %v797, 0.0
  %v1666 = vmax.f32 %v799, 0.0
  %v1667 = vmax.f32 %v850, 0.0
  %v1668 = vmax.f32 %v852, 0.0
  %v1669 = vmax.f32 %v903, 0.0
  %v1670 = vmax.f32 %v905, 0.0
  %v1671 = vmax.f32 %v956, 0.0
  %v1672 = vmax.f32 %v958, 0.0
  %v1673 = vmax.f32 %v1009, 0.0
  %v1674 = vmax.f32 %v1011, 0.0
  %v1675 = vmax.f32 %v1062, 0.0
  %v1676 = vmax.f32 %v1064, 0.0
  %v1677 = vmax.f32 %v1115, 0.0
  %v1678 = vmax.f32 %v1117, 0.0
  %v1679 = vmax.f32 %v1168, 0.0
  %v1680 = vmax.f32 %v1170, 0.0
  %v1681 = vmax.f32 %v1221, 0.0
  %v1682 = vmax.f32 %v1223, 0.0
  %v1683 = vmax.f32 %v1274, 0.0
  %v1684 = vmax.f32 %v1276, 0.0
  %v1685 = vmax.f32 %v1327, 0.0
  %v1686 = vmax.f32 %v1329, 0.0
  %v1687 = vmax.f32 %v1380, 0.0
  %v1688 = vmax.f32 %v1382, 0.0
  %v1689 = vmax.f32 %v1433, 0.0
  %v1690 = vmax.f32 %v1435, 0.0
  %v1691 = vmax.f32 %v1486, 0.0
  %v1692 = vmax.f32 %v1488, 0.0
  %v1693 = vmax.f32 %v1539, 0.0
  %v1694 = vmax.f32 %v1541, 0.0
  %v1695 = vmax.f32 %v1592, 0.0
  %v1696 = vmax.f32 %v1594, 0.0
  %v1697 = vmax.f32 %v1645, 0.0
  %v1698 = vmax.f32 %v1647, 0.0
  %v1699 = vmax.f32 %v748, 0.0
  %v1700 = vmax.f32 %v750, 0.0
  %v1701 = vmax.f32 %v801, 0.0
  %v1702 = vmax.f32 %v803, 0.0
  %v1703 = vmax.f32 %v854, 0.0
  %v1704 = vmax.f32 %v856, 0.0
  %v1705 = vmax.f32 %v907, 0.0
  %v1706 = vmax.f32 %v909, 0.0
  %v1707 = vmax.f32 %v960, 0.0
  %v1708 = vmax.f32 %v962, 0.0
  %v1709 = vmax.f32 %v1013, 0.0
  %v1710 = vmax.f32 %v1015, 0.0
  %v1711 = vmax.f32 %v1066, 0.0
  %v1712 = vmax.f32 %v1068, 0.0
  %v1713 = vmax.f32 %v1119, 0.0
  %v1714 = vmax.f32 %v1121, 0.0
  %v1715 = vmax.f32 %v1172, 0.0
  %v1716 = vmax.f32 %v1174, 0.0
  %v1717 = vmax.f32 %v1225, 0.0
  %v1718 = vmax.f32 %v1227, 0.0
  %v1719 = vmax.f32 %v1278, 0.0
  %v1720 = vmax.f32 %v1280, 0.0
  %v1721 = vmax.f32 %v1331, 0.0
  %v1722 = vmax.f32 %v1333, 0.0
  %v1723 = vmax.f32 %v1384, 0.0
  %v1724 = vmax.f32 %v1386, 0.0
  %v1725 = vmax.f32 %v1437, 0.0
  %v1726 = vmax.f32 %v1439, 0.0
  %v1727 = vmax.f32 %v1490, 0.0
  %v1728 = vmax.f32 %v1492, 0.0
  %v1729 = vmax.f32 %v1543, 0.0
  %v1730 = vmax.f32 %v1545, 0.0
  %v1731 = vmax.f32 %v1596, 0.0
  %v1732 = vmax.f32 %v1598, 0.0
  %v1733 = vmax.f32 %v1649, 0.0
  %v1734 = vmax.f32 %v1651, 0.0
  %v1735 = vmax.f32 %v754, 0.0
  %v1736 = vmax.f32 %v756, 0.0
  %v1737 = vmax.f32 %v807, 0.0
  %v1738 = vmax.f32 %v809, 0.0
  %v1739 = vmax.f32 %v860, 0.0
  %v1740 = vmax.f32 %v862, 0.0
  %v1741 = vmax.f32 %v913, 0.0
  %v1742 = vmax.f32 %v915, 0.0
  %v1743 = vmax.f32 %v966, 0.0
  %v1744 = vmax.f32 %v968, 0.0
  %v1745 = vmax.f32 %v1019, 0.0
  %v1746 = vmax.f32 %v1021, 0.0
  %v1747 = vmax.f32 %v1072, 0.0
  %v1748 = vmax.f32 %v1074, 0.0
  %v1749 = vmax.f32 %v1125, 0.0
  %v1750 = vmax.f32 %v1127, 0.0
  %v1751 = vmax.f32 %v1178, 0.0
  %v1752 = vmax.f32 %v1180, 0.0
  %v1753 = vmax.f32 %v1231, 0.0
  %v1754 = vmax.f32 %v1233, 0.0
  %v1755 = vmax.f32 %v1284, 0.0
  %v1756 = vmax.f32 %v1286, 0.0
  %v1757 = vmax.f32 %v1337, 0.0
  %v1758 = vmax.f32 %v1339, 0.0
  %v1759 = vmax.f32 %v1390, 0.0
  %v1760 = vmax.f32 %v1392, 0.0
  %v1761 = vmax.f32 %v1443, 0.0
  %v1762 = vmax.f32 %v1445, 0.0
  %v1763 = vmax.f32 %v1496, 0.0
  %v1764 = vmax.f32 %v1498, 0.0
  %v1765 = vmax.f32 %v1549, 0.0
  %v1766 = vmax.f32 %v1551, 0.0
  %v1767 = vmax.f32 %v1602, 0.0
  %v1768 = vmax.f32 %v1604, 0.0
  %v1769 = vmax.f32 %v1655, 0.0
  %v1770 = vmax.f32 %v1657, 0.0
  %v1771 = vmax.f32 %v758, 0.0
  %v1772 = vmax.f32 %v760, 0.0
  %v1773 = vmax.f32 %v811, 0.0
  %v1774 = vmax.f32 %v813, 0.0
  %v1775 = vmax.f32 %v864, 0.0
  %v1776 = vmax.f32 %v866, 0.0
  %v1777 = vmax.f32 %v917, 0.0
  %v1778 = vmax.f32 %v919, 0.0
  %v1779 = vmax.f32 %v970, 0.0
  %v1780 = vmax.f32 %v972, 0.0
  %v1781 = vmax.f32 %v1023, 0.0
  %v1782 = vmax.f32 %v1025, 0.0
  %v1783 = vmax.f32 %v1076, 0.0
  %v1784 = vmax.f32 %v1078, 0.0
  %v1785 = vmax.f32 %v1129, 0.0
  %v1786 = vmax.f32 %v1131, 0.0
  %v1787 = vmax.f32 %v1182, 0.0
  %v1788 = vmax.f32 %v1184, 0.0
  %v1789 = vmax.f32 %v1235, 0.0
  %v1790 = vmax.f32 %v1237, 0.0
  %v1791 = vmax.f32 %v1288, 0.0
  %v1792 = vmax.f32 %v1290, 0.0
  %v1793 = vmax.f32 %v1341, 0.0
  %v1794 = vmax.f32 %v1343, 0.0
  %v1795 = vmax.f32 %v1394, 0.0
  %v1796 = vmax.f32 %v1396, 0.0
  %v1797 = vmax.f32 %v1447, 0.0
  %v1798 = vmax.f32 %v1449, 0.0
  %v1799 = vmax.f32 %v1500, 0.0
  %v1800 = vmax.f32 %v1502, 0.0
  %v1801 = vmax.f32 %v1553, 0.0
  %v1802 = vmax.f32 %v1555, 0.0
  %v1803 = vmax.f32 %v1606, 0.0
  %v1804 = vmax.f32 %v1608, 0.0
  %v1805 = vmax.f32 %v1659, 0.0
  %v1806 = vmax.f32 %v1661, 0.0
  %v1807 = vpack.c.bf16 %v1699, %v1663
  %v1808 = vpack.c.bf16 %v1700, %v1664
  %v1809 = vpack.c.bf16 %v1701, %v1665
  %v1810 = vpack.c.bf16 %v1702, %v1666
  %v1811 = vpack.c.bf16 %v1703, %v1667
  %v1812 = vpack.c.bf16 %v1704, %v1668
  %v1813 = vpack.c.bf16 %v1705, %v1669
  %v1814 = vpack.c.bf16 %v1706, %v1670
  %v1815 = vpack.c.bf16 %v1707, %v1671
  %v1816 = vpack.c.bf16 %v1708, %v1672
  %v1817 = vpack.c.bf16 %v1709, %v1673
  %v1818 = vpack.c.bf16 %v1710, %v1674
  %v1819 = vpack.c.bf16 %v1711, %v1675
  %v1820 = vpack.c.bf16 %v1712, %v1676
  %v1821 = vpack.c.bf16 %v1713, %v1677
  %v1822 = vpack.c.bf16 %v1714, %v1678
  %v1823 = vpack.c.bf16 %v1715, %v1679
  %v1824 = vpack.c.bf16 %v1716, %v1680
  %v1825 = vpack.c.bf16 %v1717, %v1681
  %v1826 = vpack.c.bf16 %v1718, %v1682
  %v1827 = vpack.c.bf16 %v1719, %v1683
  %v1828 = vpack.c.bf16 %v1720, %v1684
  %v1829 = vpack.c.bf16 %v1721, %v1685
  %v1830 = vpack.c.bf16 %v1722, %v1686
  %v1831 = vpack.c.bf16 %v1723, %v1687
  %v1832 = vpack.c.bf16 %v1724, %v1688
  %v1833 = vpack.c.bf16 %v1725, %v1689
  %v1834 = vpack.c.bf16 %v1726, %v1690
  %v1835 = vpack.c.bf16 %v1727, %v1691
  %v1836 = vpack.c.bf16 %v1728, %v1692
  %v1837 = vpack.c.bf16 %v1729, %v1693
  %v1838 = vpack.c.bf16 %v1730, %v1694
  %v1839 = vpack.c.bf16 %v1731, %v1695
  %v1840 = vpack.c.bf16 %v1732, %v1696
  %v1841 = vpack.c.bf16 %v1733, %v1697
  %v1842 = vpack.c.bf16 %v1734, %v1698
  %v1843 = vpack.c.bf16 %v1771, %v1735
  %v1844 = vpack.c.bf16 %v1772, %v1736
  %v1845 = vpack.c.bf16 %v1773, %v1737
  %v1846 = vpack.c.bf16 %v1774, %v1738
  %v1847 = vpack.c.bf16 %v1775, %v1739
  %v1848 = vpack.c.bf16 %v1776, %v1740
  %v1849 = vpack.c.bf16 %v1777, %v1741
  %v1850 = vpack.c.bf16 %v1778, %v1742
  %v1851 = vpack.c.bf16 %v1779, %v1743
  %v1852 = vpack.c.bf16 %v1780, %v1744
  %v1853 = vpack.c.bf16 %v1781, %v1745
  %v1854 = vpack.c.bf16 %v1782, %v1746
  %v1855 = vpack.c.bf16 %v1783, %v1747
  %v1856 = vpack.c.bf16 %v1784, %v1748
  %v1857 = vpack.c.bf16 %v1785, %v1749
  %v1858 = vpack.c.bf16 %v1786, %v1750
  %v1859 = vpack.c.bf16 %v1787, %v1751
  %v1860 = vpack.c.bf16 %v1788, %v1752
  %v1861 = vpack.c.bf16 %v1789, %v1753
  %v1862 = vpack.c.bf16 %v1790, %v1754
  %v1863 = vpack.c.bf16 %v1791, %v1755
  %v1864 = vpack.c.bf16 %v1792, %v1756
  %v1865 = vpack.c.bf16 %v1793, %v1757
  %v1866 = vpack.c.bf16 %v1794, %v1758
  %v1867 = vpack.c.bf16 %v1795, %v1759
  %v1868 = vpack.c.bf16 %v1796, %v1760
  %v1869 = vpack.c.bf16 %v1797, %v1761
  %v1870 = vpack.c.bf16 %v1798, %v1762
  %v1871 = vpack.c.bf16 %v1799, %v1763
  %v1872 = vpack.c.bf16 %v1800, %v1764
  %v1873 = vpack.c.bf16 %v1801, %v1765
  %v1874 = vpack.c.bf16 %v1802, %v1766
  %v1875 = vpack.c.bf16 %v1803, %v1767
  %v1876 = vpack.c.bf16 %v1804, %v1768
  %v1877 = vpack.c.bf16 %v1805, %v1769
  %v1878 = vpack.c.bf16 %v1806, %v1770
  %v1951 = vunpack.c.l.b16 %v1807
  %v1952 = vunpack.c.l.b16 %v1808
  %v1953 = vunpack.c.l.b16 %v1809
  %v1954 = vunpack.c.l.b16 %v1810
  %v1955 = vunpack.c.l.b16 %v1811
  %v1956 = vunpack.c.l.b16 %v1812
  %v1957 = vunpack.c.l.b16 %v1813
  %v1958 = vunpack.c.l.b16 %v1814
  %v1959 = vunpack.c.l.b16 %v1815
  %v1960 = vunpack.c.l.b16 %v1816
  %v1961 = vunpack.c.l.b16 %v1817
  %v1962 = vunpack.c.l.b16 %v1818
  %v1963 = vunpack.c.l.b16 %v1819
  %v1964 = vunpack.c.l.b16 %v1820
  %v1965 = vunpack.c.l.b16 %v1821
  %v1966 = vunpack.c.l.b16 %v1822
  %v1967 = vunpack.c.l.b16 %v1823
  %v1968 = vunpack.c.l.b16 %v1824
  %v1969 = vunpack.c.l.b16 %v1825
  %v1970 = vunpack.c.l.b16 %v1826
  %v1971 = vunpack.c.l.b16 %v1827
  %v1972 = vunpack.c.l.b16 %v1828
  %v1973 = vunpack.c.l.b16 %v1829
  %v1974 = vunpack.c.l.b16 %v1830
  %v1975 = vunpack.c.l.b16 %v1831
  %v1976 = vunpack.c.l.b16 %v1832
  %v1977 = vunpack.c.l.b16 %v1833
  %v1978 = vunpack.c.l.b16 %v1834
  %v1979 = vunpack.c.l.b16 %v1835
  %v1980 = vunpack.c.l.b16 %v1836
  %v1981 = vunpack.c.l.b16 %v1837
  %v1982 = vunpack.c.l.b16 %v1838
  %v1983 = vunpack.c.l.b16 %v1839
  %v1984 = vunpack.c.l.b16 %v1840
  %v1985 = vunpack.c.l.b16 %v1841
  %v1986 = vunpack.c.l.b16 %v1842
  %v1987 = vunpack.c.h.b16 %v1807
  %v1988 = vunpack.c.h.b16 %v1808
  %v1989 = vunpack.c.h.b16 %v1809
  %v1990 = vunpack.c.h.b16 %v1810
  %v1991 = vunpack.c.h.b16 %v1811
  %v1992 = vunpack.c.h.b16 %v1812
  %v1993 = vunpack.c.h.b16 %v1813
  %v1994 = vunpack.c.h.b16 %v1814
  %v1995 = vunpack.c.h.b16 %v1815
  %v1996 = vunpack.c.h.b16 %v1816
  %v1997 = vunpack.c.h.b16 %v1817
  %v1998 = vunpack.c.h.b16 %v1818
  %v1999 = vunpack.c.h.b16 %v1819
  %v2000 = vunpack.c.h.b16 %v1820
  %v2001 = vunpack.c.h.b16 %v1821
  %v2002 = vunpack.c.h.b16 %v1822
  %v2003 = vunpack.c.h.b16 %v1823
  %v2004 = vunpack.c.h.b16 %v1824
  %v2005 = vunpack.c.h.b16 %v1825
  %v2006 = vunpack.c.h.b16 %v1826
  %v2007 = vunpack.c.h.b16 %v1827
  %v2008 = vunpack.c.h.b16 %v1828
  %v2009 = vunpack.c.h.b16 %v1829
  %v2010 = vunpack.c.h.b16 %v1830
  %v2011 = vunpack.c.h.b16 %v1831
  %v2012 = vunpack.c.h.b16 %v1832
  %v2013 = vunpack.c.h.b16 %v1833
  %v2014 = vunpack.c.h.b16 %v1834
  %v2015 = vunpack.c.h.b16 %v1835
  %v2016 = vunpack.c.h.b16 %v1836
  %v2017 = vunpack.c.h.b16 %v1837
  %v2018 = vunpack.c.h.b16 %v1838
  %v2019 = vunpack.c.h.b16 %v1839
  %v2020 = vunpack.c.h.b16 %v1840
  %v2021 = vunpack.c.h.b16 %v1841
  %v2022 = vunpack.c.h.b16 %v1842
  %v2023 = vunpack.c.l.b16 %v1843
  %v2024 = vunpack.c.l.b16 %v1844
  %v2025 = vunpack.c.l.b16 %v1845
  %v2026 = vunpack.c.l.b16 %v1846
  %v2027 = vunpack.c.l.b16 %v1847
  %v2028 = vunpack.c.l.b16 %v1848
  %v2029 = vunpack.c.l.b16 %v1849
  %v2030 = vunpack.c.l.b16 %v1850
  %v2031 = vunpack.c.l.b16 %v1851
  %v2032 = vunpack.c.l.b16 %v1852
  %v2033 = vunpack.c.l.b16 %v1853
  %v2034 = vunpack.c.l.b16 %v1854
  %v2035 = vunpack.c.l.b16 %v1855
  %v2036 = vunpack.c.l.b16 %v1856
  %v2037 = vunpack.c.l.b16 %v1857
  %v2038 = vunpack.c.l.b16 %v1858
  %v2039 = vunpack.c.l.b16 %v1859
  %v2040 = vunpack.c.l.b16 %v1860
  %v2041 = vunpack.c.l.b16 %v1861
  %v2042 = vunpack.c.l.b16 %v1862
  %v2043 = vunpack.c.l.b16 %v1863
  %v2044 = vunpack.c.l.b16 %v1864
  %v2045 = vunpack.c.l.b16 %v1865
  %v2046 = vunpack.c.l.b16 %v1866
  %v2047 = vunpack.c.l.b16 %v1867
  %v2048 = vunpack.c.l.b16 %v1868
  %v2049 = vunpack.c.l.b16 %v1869
  %v2050 = vunpack.c.l.b16 %v1870
  %v2051 = vunpack.c.l.b16 %v1871
  %v2052 = vunpack.c.l.b16 %v1872
  %v2053 = vunpack.c.l.b16 %v1873
  %v2054 = vunpack.c.l.b16 %v1874
  %v2055 = vunpack.c.l.b16 %v1875
  %v2056 = vunpack.c.l.b16 %v1876
  %v2057 = vunpack.c.l.b16 %v1877
  %v2058 = vunpack.c.l.b16 %v1878
  %v2059 = vunpack.c.h.b16 %v1843
  %v2060 = vunpack.c.h.b16 %v1844
  %v2061 = vunpack.c.h.b16 %v1845
  %v2062 = vunpack.c.h.b16 %v1846
  %v2063 = vunpack.c.h.b16 %v1847
  %v2064 = vunpack.c.h.b16 %v1848
  %v2065 = vunpack.c.h.b16 %v1849
  %v2066 = vunpack.c.h.b16 %v1850
  %v2067 = vunpack.c.h.b16 %v1851
  %v2068 = vunpack.c.h.b16 %v1852
  %v2069 = vunpack.c.h.b16 %v1853
  %v2070 = vunpack.c.h.b16 %v1854
  %v2071 = vunpack.c.h.b16 %v1855
  %v2072 = vunpack.c.h.b16 %v1856
  %v2073 = vunpack.c.h.b16 %v1857
  %v2074 = vunpack.c.h.b16 %v1858
  %v2075 = vunpack.c.h.b16 %v1859
  %v2076 = vunpack.c.h.b16 %v1860
  %v2077 = vunpack.c.h.b16 %v1861
  %v2078 = vunpack.c.h.b16 %v1862
  %v2079 = vunpack.c.h.b16 %v1863
  %v2080 = vunpack.c.h.b16 %v1864
  %v2081 = vunpack.c.h.b16 %v1865
  %v2082 = vunpack.c.h.b16 %v1866
  %v2083 = vunpack.c.h.b16 %v1867
  %v2084 = vunpack.c.h.b16 %v1868
  %v2085 = vunpack.c.h.b16 %v1869
  %v2086 = vunpack.c.h.b16 %v1870
  %v2087 = vunpack.c.h.b16 %v1871
  %v2088 = vunpack.c.h.b16 %v1872
  %v2089 = vunpack.c.h.b16 %v1873
  %v2090 = vunpack.c.h.b16 %v1874
  %v2091 = vunpack.c.h.b16 %v1875
  %v2092 = vunpack.c.h.b16 %v1876
  %v2093 = vunpack.c.h.b16 %v1877
  %v2094 = vunpack.c.h.b16 %v1878
  %v2095 = vpack.c.b16 %v1952, %v1951
  %v2096 = vpack.c.b16 %v1954, %v1953
  %v2097 = vpack.c.b16 %v1956, %v1955
  %v2098 = vpack.c.b16 %v1958, %v1957
  %v2099 = vpack.c.b16 %v1960, %v1959
  %v2100 = vpack.c.b16 %v1962, %v1961
  %v2101 = vpack.c.b16 %v1964, %v1963
  %v2102 = vpack.c.b16 %v1966, %v1965
  %v2103 = vpack.c.b16 %v1968, %v1967
  %v2104 = vpack.c.b16 %v1970, %v1969
  %v2105 = vpack.c.b16 %v1972, %v1971
  %v2106 = vpack.c.b16 %v1974, %v1973
  %v2107 = vpack.c.b16 %v1976, %v1975
  %v2108 = vpack.c.b16 %v1978, %v1977
  %v2109 = vpack.c.b16 %v1980, %v1979
  %v2110 = vpack.c.b16 %v1982, %v1981
  %v2111 = vpack.c.b16 %v1984, %v1983
  %v2112 = vpack.c.b16 %v1986, %v1985
  %v2113 = vpack.c.b16 %v1988, %v1987
  %v2114 = vpack.c.b16 %v1990, %v1989
  %v2115 = vpack.c.b16 %v1992, %v1991
  %v2116 = vpack.c.b16 %v1994, %v1993
  %v2117 = vpack.c.b16 %v1996, %v1995
  %v2118 = vpack.c.b16 %v1998, %v1997
  %v2119 = vpack.c.b16 %v2000, %v1999
  %v2120 = vpack.c.b16 %v2002, %v2001
  %v2121 = vpack.c.b16 %v2004, %v2003
  %v2122 = vpack.c.b16 %v2006, %v2005
  %v2123 = vpack.c.b16 %v2008, %v2007
  %v2124 = vpack.c.b16 %v2010, %v2009
  %v2125 = vpack.c.b16 %v2012, %v2011
  %v2126 = vpack.c.b16 %v2014, %v2013
  %v2127 = vpack.c.b16 %v2016, %v2015
  %v2128 = vpack.c.b16 %v2018, %v2017
  %v2129 = vpack.c.b16 %v2020, %v2019
  %v2130 = vpack.c.b16 %v2022, %v2021
  %v2131 = vpack.c.b16 %v2024, %v2023
  %v2132 = vpack.c.b16 %v2026, %v2025
  %v2133 = vpack.c.b16 %v2028, %v2027
  %v2134 = vpack.c.b16 %v2030, %v2029
  %v2135 = vpack.c.b16 %v2032, %v2031
  %v2136 = vpack.c.b16 %v2034, %v2033
  %v2137 = vpack.c.b16 %v2036, %v2035
  %v2138 = vpack.c.b16 %v2038, %v2037
  %v2139 = vpack.c.b16 %v2040, %v2039
  %v2140 = vpack.c.b16 %v2042, %v2041
  %v2141 = vpack.c.b16 %v2044, %v2043
  %v2142 = vpack.c.b16 %v2046, %v2045
  %v2143 = vpack.c.b16 %v2048, %v2047
  %v2144 = vpack.c.b16 %v2050, %v2049
  %v2145 = vpack.c.b16 %v2052, %v2051
  %v2146 = vpack.c.b16 %v2054, %v2053
  %v2147 = vpack.c.b16 %v2056, %v2055
  %v2148 = vpack.c.b16 %v2058, %v2057
  %v2149 = vpack.c.b16 %v2060, %v2059
  %v2150 = vpack.c.b16 %v2062, %v2061
  %v2151 = vpack.c.b16 %v2064, %v2063
  %v2152 = vpack.c.b16 %v2066, %v2065
  %v2153 = vpack.c.b16 %v2068, %v2067
  %v2154 = vpack.c.b16 %v2070, %v2069
  %v2155 = vpack.c.b16 %v2072, %v2071
  %v2156 = vpack.c.b16 %v2074, %v2073
  %v2157 = vpack.c.b16 %v2076, %v2075
  %v2158 = vpack.c.b16 %v2078, %v2077
  %v2159 = vpack.c.b16 %v2080, %v2079
  %v2160 = vpack.c.b16 %v2082, %v2081
  %v2161 = vpack.c.b16 %v2084, %v2083
  %v2162 = vpack.c.b16 %v2086, %v2085
  %v2163 = vpack.c.b16 %v2088, %v2087
  %v2164 = vpack.c.b16 %v2090, %v2089
  %v2165 = vpack.c.b16 %v2092, %v2091
  %v2166 = vpack.c.b16 %v2094, %v2093
  %2239 = vst [vmem:[%s3] sm:$0xff] %v2095
  %2240 = vst [vmem:[%s3 + $0x8] sm:$0xff] %v2096
  %2241 = vst [vmem:[%s3 + $0x10] sm:$0xff] %v2097
  %2242 = vst [vmem:[%s3 + $0x18] sm:$0xff] %v2098
  %2243 = vst [vmem:[%s3 + $0x20] sm:$0xff] %v2099
  %2244 = vst [vmem:[%s3 + $0x28] sm:$0xff] %v2100
  %2245 = vst [vmem:[%s3 + $0x30] sm:$0xff] %v2101
  %2246 = vst [vmem:[%s3 + $0x38] sm:$0xff] %v2102
  %2247 = vst [vmem:[%s3 + $0x40] sm:$0xff] %v2103
  %2248 = vst [vmem:[%s3 + $0x48] sm:$0xff] %v2104
  %2249 = vst [vmem:[%s3 + $0x50] sm:$0xff] %v2105
  %2250 = vst [vmem:[%s3 + $0x58] sm:$0xff] %v2106
  %2251 = vst [vmem:[%s3 + $0x60] sm:$0xff] %v2107
  %2252 = vst [vmem:[%s3 + $0x68] sm:$0xff] %v2108
  %2253 = vst [vmem:[%s3 + $0x70] sm:$0xff] %v2109
  %2254 = vst [vmem:[%s3 + $0x78] sm:$0xff] %v2110
  %2255 = vst [vmem:[%s3 + $0x80] sm:$0xff] %v2111
  %2256 = vst [vmem:[%s3 + $0x88] sm:$0xff] %v2112
  %2257 = vst [vmem:[%s3 + $0x90] sm:$0xff] %v2113
  %2258 = vst [vmem:[%s3 + $0x98] sm:$0xff] %v2114
  %2259 = vst [vmem:[%s3 + $0xa0] sm:$0xff] %v2115
  %2260 = vst [vmem:[%s3 + $0xa8] sm:$0xff] %v2116
  %2261 = vst [vmem:[%s3 + $0xb0] sm:$0xff] %v2117
  %2262 = vst [vmem:[%s3 + $0xb8] sm:$0xff] %v2118
  %2263 = vst [vmem:[%s3 + $0xc0] sm:$0xff] %v2119
  %2264 = vst [vmem:[%s3 + $0xc8] sm:$0xff] %v2120
  %2265 = vst [vmem:[%s3 + $0xd0] sm:$0xff] %v2121
  %2266 = vst [vmem:[%s3 + $0xd8] sm:$0xff] %v2122
  %2267 = vst [vmem:[%s3 + $0xe0] sm:$0xff] %v2123
  %2268 = vst [vmem:[%s3 + $0xe8] sm:$0xff] %v2124
  %2269 = vst [vmem:[%s3 + $0xf0] sm:$0xff] %v2125
  %2270 = vst [vmem:[%s3 + $0xf8] sm:$0xff] %v2126
  %2271 = vst [vmem:[%s3 + $0x100] sm:$0xff] %v2127
  %2272 = vst [vmem:[%s3 + $0x108] sm:$0xff] %v2128
  %2273 = vst [vmem:[%s3 + $0x110] sm:$0xff] %v2129
  %2274 = vst [vmem:[%s3 + $0x118] sm:$0xff] %v2130
  %2275 = vst [vmem:[%s3 + $0x120] sm:$0xff] %v2131
  %2276 = vst [vmem:[%s3 + $0x128] sm:$0xff] %v2132
  %2277 = vst [vmem:[%s3 + $0x130] sm:$0xff] %v2133
  %2278 = vst [vmem:[%s3 + $0x138] sm:$0xff] %v2134
  %2279 = vst [vmem:[%s3 + $0x140] sm:$0xff] %v2135
  %2280 = vst [vmem:[%s3 + $0x148] sm:$0xff] %v2136
  %2281 = vst [vmem:[%s3 + $0x150] sm:$0xff] %v2137
  %2282 = vst [vmem:[%s3 + $0x158] sm:$0xff] %v2138
  %2283 = vst [vmem:[%s3 + $0x160] sm:$0xff] %v2139
  %2284 = vst [vmem:[%s3 + $0x168] sm:$0xff] %v2140
  %2285 = vst [vmem:[%s3 + $0x170] sm:$0xff] %v2141
  %2286 = vst [vmem:[%s3 + $0x178] sm:$0xff] %v2142
  %2287 = vst [vmem:[%s3 + $0x180] sm:$0xff] %v2143
  %2288 = vst [vmem:[%s3 + $0x188] sm:$0xff] %v2144
  %2289 = vst [vmem:[%s3 + $0x190] sm:$0xff] %v2145
  %2290 = vst [vmem:[%s3 + $0x198] sm:$0xff] %v2146
  %2291 = vst [vmem:[%s3 + $0x1a0] sm:$0xff] %v2147
  %2292 = vst [vmem:[%s3 + $0x1a8] sm:$0xff] %v2148
  %2293 = vst [vmem:[%s3 + $0x1b0] sm:$0xff] %v2149
  %2294 = vst [vmem:[%s3 + $0x1b8] sm:$0xff] %v2150
  %2295 = vst [vmem:[%s3 + $0x1c0] sm:$0xff] %v2151
  %2296 = vst [vmem:[%s3 + $0x1c8] sm:$0xff] %v2152
  %2297 = vst [vmem:[%s3 + $0x1d0] sm:$0xff] %v2153
  %2298 = vst [vmem:[%s3 + $0x1d8] sm:$0xff] %v2154
  %2299 = vst [vmem:[%s3 + $0x1e0] sm:$0xff] %v2155
  %2300 = vst [vmem:[%s3 + $0x1e8] sm:$0xff] %v2156
  %2301 = vst [vmem:[%s3 + $0x1f0] sm:$0xff] %v2157
  %2302 = vst [vmem:[%s3 + $0x1f8] sm:$0xff] %v2158
  %2303 = vst [vmem:[%s3 + $0x200] sm:$0xff] %v2159
  %2304 = vst [vmem:[%s3 + $0x208] sm:$0xff] %v2160
  %2305 = vst [vmem:[%s3 + $0x210] sm:$0xff] %v2161
  %2306 = vst [vmem:[%s3 + $0x218] sm:$0xff] %v2162
  %2307 = vst [vmem:[%s3 + $0x220] sm:$0xff] %v2163
  %2308 = vst [vmem:[%s3 + $0x228] sm:$0xff] %v2164
  %2309 = vst [vmem:[%s3 + $0x230] sm:$0xff] %v2165
  %2310 = vst [vmem:[%s3 + $0x238] sm:$0xff] %v2166
  // Predicated region
  $region14: #{actor_forward.3} parent=0 // pred_check
    _
  $region15: #{actor_forward.3} parent=0 // pred_check_branch
    %2312 = sbr.rel (0) target = $region17
  $region16: #{actor_forward.3} parent=0 // pred_region
    _
  $region17: #{actor_forward.3} parent=0 // pred_fallthru
    _
  // Predicated region
  $region18: #{actor_forward.3} parent=0 // pred_check
    _
  $region19: #{actor_forward.3} parent=0 // pred_check_branch
    %2314 = sbr.rel (0) target = $region21
  $region20: #{actor_forward.3} parent=0 // pred_region
    _
  $region21: #{actor_forward.3} parent=0 // pred_fallthru
    _

// kernel: actor_forward.5
$region0: #{actor_forward.5}
  #allocation0 [shape = 'u32[]', space=smem, size = 0x4, offset = 0x4, fixed_abs, tag = 'smem constant byte address 0x4 - core index']
  #allocation1 [shape = 'u32[144,128]{1,0:T(1,128)}', space=vmem, size = 0x12000, scoped, tag = 'internal scratch']
  %s0 = inlined_call_operand.vmem [shape: bf16[2,576], index: 0, kind: input, shape index: {}]
  %s1 = inlined_call_operand.vmem [shape: bf16[576,256], index: 1, kind: input, shape index: {}]
  %s2 = inlined_call_operand.vmem [shape: f32[1,256], index: 2, kind: input, shape index: {}]
  %s3 = inlined_call_operand.vmem [shape: bf16[256,128], index: 3, kind: input, shape index: {}]
  %s4 = inlined_call_operand.vmem [shape: f32[1,128], index: 4, kind: input, shape index: {}]
  %s5 = inlined_call_operand.hbm [shape: f32[2,128], index: 5, kind: output, shape index: {}]
  %s6 = sld [smem:[#allocation0]]
  $region30: #{actor_forward.5} parent=0
    _
  %s8 = ssub.s32 1, %s6
  %s9 = scalar_select 0, %s8, %s6
  $region1: #{actor_forward.5} parent=0
    #allocation2 [shape = 'u8[1024]{0}', space=vmem, size = 0x400, scoped, tag = 'output window, operand 0, single buffered']
    #allocation3 [shape = 's32[1]{0}', space=sflag, size = 0x4, scoped, tag = 'scoped memory for actor_forward.5']
    %10 = vsyncpa [#allocation3], 0
    // Predicated region
    $region2: #{actor_forward.5} parent=1 // pred_check
      _
    $region3: #{actor_forward.5} parent=1 // pred_check_branch
      %12 = sbr.rel (0) target = $region5
    $region4: #{actor_forward.5} parent=1 // pred_region
      _
    $region5: #{actor_forward.5} parent=1 // pred_fallthru
      _
    // Predicated region
    $region6: #{actor_forward.5} parent=1 // pred_check
      _
    $region7: #{actor_forward.5} parent=1 // pred_check_branch
      %14 = sbr.rel (0) target = $region9
    $region8: #{actor_forward.5} parent=1 // pred_region
      _
    $region9: #{actor_forward.5} parent=1 // pred_fallthru
      _
    // Predicated region
    $region10: #{actor_forward.5} parent=1 // pred_check
      _
    $region11: #{actor_forward.5} parent=1 // pred_check_branch
      %16 = sbr.rel (0) target = $region13
    $region12: #{actor_forward.5} parent=1 // pred_region
      _
    $region13: #{actor_forward.5} parent=1 // pred_fallthru
      _
    // Predicated region
    $region14: #{actor_forward.5} parent=1 // pred_check
      _
    $region15: #{actor_forward.5} parent=1 // pred_check_branch
      %18 = sbr.rel (0) target = $region17
    $region16: #{actor_forward.5} parent=1 // pred_region
      _
    $region17: #{actor_forward.5} parent=1 // pred_fallthru
      _
    // Predicated region
    $region18: #{actor_forward.5} parent=1 // pred_check
      _
    $region19: #{actor_forward.5} parent=1 // pred_check_branch
      %20 = sbr.rel (0) target = $region21
    $region20: #{actor_forward.5} parent=1 // pred_region
      _
    $region21: #{actor_forward.5} parent=1 // pred_fallthru
      _
    %v22 = vld [vmem:[%s0] sm:$0x1f]
    %v23 = vld [vmem:[%s1] sm:$0xff]
    %v24 = vld [vmem:[%s1 + $0x8] sm:$0xff]
    %v25 = vld [vmem:[%s1 + $0x10] sm:$0xff]
    %v26 = vld [vmem:[%s1 + $0x18] sm:$0xff]
    %v27 = vld [vmem:[%s1 + $0x20] sm:$0xff]
    %v28 = vld [vmem:[%s1 + $0x28] sm:$0xff]
    %v29 = vld [vmem:[%s1 + $0x30] sm:$0xff]
    %v30 = vld [vmem:[%s1 + $0x38] sm:$0xff]
    %v31 = vld [vmem:[%s1 + $0x40] sm:$0xff]
    %v32 = vld [vmem:[%s1 + $0x48] sm:$0xff]
    %v33 = vld [vmem:[%s1 + $0x50] sm:$0xff]
    %v34 = vld [vmem:[%s1 + $0x58] sm:$0xff]
    %v35 = vld [vmem:[%s1 + $0x60] sm:$0xff]
    %v36 = vld [vmem:[%s1 + $0x68] sm:$0xff]
    %v37 = vld [vmem:[%s1 + $0x70] sm:$0xff]
    %v38 = vld [vmem:[%s1 + $0x78] sm:$0xff]
    %v39 = vld [vmem:[%s1 + $0x80] sm:$0xff]
    %v40 = vld [vmem:[%s1 + $0x88] sm:$0xff]
    %v41 = vld [vmem:[%s1 + $0x90] sm:$0xff]
    %v42 = vld [vmem:[%s1 + $0x98] sm:$0xff]
    %v43 = vld [vmem:[%s1 + $0xa0] sm:$0xff]
    %v44 = vld [vmem:[%s1 + $0xa8] sm:$0xff]
    %v45 = vld [vmem:[%s1 + $0xb0] sm:$0xff]
    %v46 = vld [vmem:[%s1 + $0xb8] sm:$0xff]
    %v47 = vld [vmem:[%s1 + $0xc0] sm:$0xff]
    %v48 = vld [vmem:[%s1 + $0xc8] sm:$0xff]
    %v49 = vld [vmem:[%s1 + $0xd0] sm:$0xff]
    %v50 = vld [vmem:[%s1 + $0xd8] sm:$0xff]
    %v51 = vld [vmem:[%s1 + $0xe0] sm:$0xff]
    %v52 = vld [vmem:[%s1 + $0xe8] sm:$0xff]
    %v53 = vld [vmem:[%s1 + $0xf0] sm:$0xff]
    %v54 = vld [vmem:[%s1 + $0xf8] sm:$0xff]
    %v55 = vld [vmem:[%s1 + $0x100] sm:$0xff]
    %v56 = vld [vmem:[%s1 + $0x108] sm:$0xff]
    %v57 = vld [vmem:[%s1 + $0x110] sm:$0xff]
    %v58 = vld [vmem:[%s1 + $0x118] sm:$0xff]
    %v59 = vld [vmem:[%s1 + $0x120] sm:$0xff]
    %v60 = vld [vmem:[%s1 + $0x128] sm:$0xff]
    %v61 = vld [vmem:[%s1 + $0x130] sm:$0xff]
    %v62 = vld [vmem:[%s1 + $0x138] sm:$0xff]
    %v63 = vld [vmem:[%s1 + $0x140] sm:$0xff]
    %v64 = vld [vmem:[%s1 + $0x148] sm:$0xff]
    %v65 = vld [vmem:[%s1 + $0x150] sm:$0xff]
    %v66 = vld [vmem:[%s1 + $0x158] sm:$0xff]
    %v67 = vld [vmem:[%s1 + $0x160] sm:$0xff]
    %v68 = vld [vmem:[%s1 + $0x168] sm:$0xff]
    %v69 = vld [vmem:[%s1 + $0x170] sm:$0xff]
    %v70 = vld [vmem:[%s1 + $0x178] sm:$0xff]
    %v71 = vld [vmem:[%s1 + $0x180] sm:$0xff]
    %v72 = vld [vmem:[%s1 + $0x188] sm:$0xff]
    %v73 = vld [vmem:[%s1 + $0x190] sm:$0xff]
    %v74 = vld [vmem:[%s1 + $0x198] sm:$0xff]
    %v75 = vld [vmem:[%s1 + $0x1a0] sm:$0xff]
    %v76 = vld [vmem:[%s1 + $0x1a8] sm:$0xff]
    %v77 = vld [vmem:[%s1 + $0x1b0] sm:$0xff]
    %v78 = vld [vmem:[%s1 + $0x1b8] sm:$0xff]
    %v79 = vld [vmem:[%s1 + $0x1c0] sm:$0xff]
    %v80 = vld [vmem:[%s1 + $0x1c8] sm:$0xff]
    %v81 = vld [vmem:[%s1 + $0x1d0] sm:$0xff]
    %v82 = vld [vmem:[%s1 + $0x1d8] sm:$0xff]
    %v83 = vld [vmem:[%s1 + $0x1e0] sm:$0xff]
    %v84 = vld [vmem:[%s1 + $0x1e8] sm:$0xff]
    %v85 = vld [vmem:[%s1 + $0x1f0] sm:$0xff]
    %v86 = vld [vmem:[%s1 + $0x1f8] sm:$0xff]
    %v87 = vld [vmem:[%s1 + $0x200] sm:$0xff]
    %v88 = vld [vmem:[%s1 + $0x208] sm:$0xff]
    %v89 = vld [vmem:[%s1 + $0x210] sm:$0xff]
    %v90 = vld [vmem:[%s1 + $0x218] sm:$0xff]
    %v91 = vld [vmem:[%s1 + $0x220] sm:$0xff]
    %v92 = vld [vmem:[%s1 + $0x228] sm:$0xff]
    %v93 = vld [vmem:[%s1 + $0x230] sm:$0xff]
    %v94 = vld [vmem:[%s1 + $0x238] sm:$0xff]
    %v95 = vld [vmem:[%s2] sm:$0x3]
    %v97 = vlaneseq
    %v98 = vshrl.u32 %v97, 7
    %v99 = vsub.s32 0, %v98
    %v100 = vrot.slane %v95, %v99
    %v101 = vlaneseq
    %v102 = vshrl.u32 %v101, 7
    %v103 = vsub.s32 1, %v102
    %v104 = vrot.slane %v95, %v103
    %v108 = vcombine.high %v22, %v22
    %v110 = vunpack.c.l.s4 1966171168
    %v111 = vunpack.c.0.s8 %v110
    %v112 = vlaneseq
    %v113 = vshrl.u32 %v112, 7
    %v114 = vsub.s32 %v111, %v113
    %v115 = vrot.slane %v22, %v114
    %v117 = vunpack.c.l.s4 1966171168
    %v118 = vunpack.c.0.s8 %v117
    %v119 = vlaneseq
    %v120 = vshrl.u32 %v119, 7
    %v121 = vsub.s32 %v118, %v120
    %v122 = vrot.slane %v108, %v121
    %v123 = vcombine.high %v115, %v115
    %v125 = vunpack.c.l.s4 1966171168
    %v126 = vunpack.c.0.s8 %v125
    %v127 = vlaneseq
    %v128 = vshrl.u32 %v127, 7
    %v129 = vsub.s32 %v126, %v128
    %v130 = vrot.slane %v115, %v129
    %v132 = vunpack.c.l.s4 1966171168
    %v133 = vunpack.c.0.s8 %v132
    %v134 = vlaneseq
    %v135 = vshrl.u32 %v134, 7
    %v136 = vsub.s32 %v133, %v135
    %v137 = vrot.slane %v122, %v136
    %v139 = vunpack.c.l.s4 1966171168
    %v140 = vunpack.c.0.s8 %v139
    %v141 = vlaneseq
    %v142 = vshrl.u32 %v141, 7
    %v143 = vsub.s32 %v140, %v142
    %v144 = vrot.slane %v123, %v143
    %v145 = vcombine.high %v130, %v130
    %v146 = vcombine.high %v144, %v144
    %v223 = vunpack.c.l.b16 %v23
    %v224 = vunpack.c.h.b16 %v23
    %v225 = vunpack.c.l.b16 %v24
    %v226 = vunpack.c.h.b16 %v24
    %v227 = vunpack.c.l.b16 %v25
    %v228 = vunpack.c.h.b16 %v25
    %v229 = vunpack.c.l.b16 %v26
    %v230 = vunpack.c.h.b16 %v26
    %v231 = vunpack.c.l.b16 %v27
    %v232 = vunpack.c.h.b16 %v27
    %v233 = vunpack.c.l.b16 %v28
    %v234 = vunpack.c.h.b16 %v28
    %v235 = vunpack.c.l.b16 %v29
    %v236 = vunpack.c.h.b16 %v29
    %v237 = vunpack.c.l.b16 %v30
    %v238 = vunpack.c.h.b16 %v30
    %v239 = vunpack.c.l.b16 %v31
    %v240 = vunpack.c.h.b16 %v31
    %v241 = vunpack.c.l.b16 %v32
    %v242 = vunpack.c.h.b16 %v32
    %v243 = vunpack.c.l.b16 %v33
    %v244 = vunpack.c.h.b16 %v33
    %v245 = vunpack.c.l.b16 %v34
    %v246 = vunpack.c.h.b16 %v34
    %v247 = vunpack.c.l.b16 %v35
    %v248 = vunpack.c.h.b16 %v35
    %v249 = vunpack.c.l.b16 %v36
    %v250 = vunpack.c.h.b16 %v36
    %v251 = vunpack.c.l.b16 %v37
    %v252 = vunpack.c.h.b16 %v37
    %v253 = vunpack.c.l.b16 %v38
    %v254 = vunpack.c.h.b16 %v38
    %v255 = vunpack.c.l.b16 %v39
    %v256 = vunpack.c.h.b16 %v39
    %v257 = vunpack.c.l.b16 %v40
    %v258 = vunpack.c.h.b16 %v40
    %v259 = vunpack.c.l.b16 %v41
    %v260 = vunpack.c.h.b16 %v41
    %v261 = vunpack.c.l.b16 %v42
    %v262 = vunpack.c.h.b16 %v42
    %v263 = vunpack.c.l.b16 %v43
    %v264 = vunpack.c.h.b16 %v43
    %v265 = vunpack.c.l.b16 %v44
    %v266 = vunpack.c.h.b16 %v44
    %v267 = vunpack.c.l.b16 %v45
    %v268 = vunpack.c.h.b16 %v45
    %v269 = vunpack.c.l.b16 %v46
    %v270 = vunpack.c.h.b16 %v46
    %v271 = vunpack.c.l.b16 %v47
    %v272 = vunpack.c.h.b16 %v47
    %v273 = vunpack.c.l.b16 %v48
    %v274 = vunpack.c.h.b16 %v48
    %v275 = vunpack.c.l.b16 %v49
    %v276 = vunpack.c.h.b16 %v49
    %v277 = vunpack.c.l.b16 %v50
    %v278 = vunpack.c.h.b16 %v50
    %v279 = vunpack.c.l.b16 %v51
    %v280 = vunpack.c.h.b16 %v51
    %v281 = vunpack.c.l.b16 %v52
    %v282 = vunpack.c.h.b16 %v52
    %v283 = vunpack.c.l.b16 %v53
    %v284 = vunpack.c.h.b16 %v53
    %v285 = vunpack.c.l.b16 %v54
    %v286 = vunpack.c.h.b16 %v54
    %v287 = vunpack.c.l.b16 %v55
    %v288 = vunpack.c.h.b16 %v55
    %v289 = vunpack.c.l.b16 %v56
    %v290 = vunpack.c.h.b16 %v56
    %v291 = vunpack.c.l.b16 %v57
    %v292 = vunpack.c.h.b16 %v57
    %v293 = vunpack.c.l.b16 %v58
    %v294 = vunpack.c.h.b16 %v58
    %v295 = vunpack.c.l.b16 %v59
    %v296 = vunpack.c.h.b16 %v59
    %v297 = vunpack.c.l.b16 %v60
    %v298 = vunpack.c.h.b16 %v60
    %v299 = vunpack.c.l.b16 %v61
    %v300 = vunpack.c.h.b16 %v61
    %v301 = vunpack.c.l.b16 %v62
    %v302 = vunpack.c.h.b16 %v62
    %v303 = vunpack.c.l.b16 %v63
    %v304 = vunpack.c.h.b16 %v63
    %v305 = vunpack.c.l.b16 %v64
    %v306 = vunpack.c.h.b16 %v64
    %v307 = vunpack.c.l.b16 %v65
    %v308 = vunpack.c.h.b16 %v65
    %v309 = vunpack.c.l.b16 %v66
    %v310 = vunpack.c.h.b16 %v66
    %v311 = vunpack.c.l.b16 %v67
    %v312 = vunpack.c.h.b16 %v67
    %v313 = vunpack.c.l.b16 %v68
    %v314 = vunpack.c.h.b16 %v68
    %v315 = vunpack.c.l.b16 %v69
    %v316 = vunpack.c.h.b16 %v69
    %v317 = vunpack.c.l.b16 %v70
    %v318 = vunpack.c.h.b16 %v70
    %v319 = vunpack.c.l.b16 %v71
    %v320 = vunpack.c.h.b16 %v71
    %v321 = vunpack.c.l.b16 %v72
    %v322 = vunpack.c.h.b16 %v72
    %v323 = vunpack.c.l.b16 %v73
    %v324 = vunpack.c.h.b16 %v73
    %v325 = vunpack.c.l.b16 %v74
    %v326 = vunpack.c.h.b16 %v74
    %v327 = vunpack.c.l.b16 %v75
    %v328 = vunpack.c.h.b16 %v75
    %v329 = vunpack.c.l.b16 %v76
    %v330 = vunpack.c.h.b16 %v76
    %v331 = vunpack.c.l.b16 %v77
    %v332 = vunpack.c.h.b16 %v77
    %v333 = vunpack.c.l.b16 %v78
    %v334 = vunpack.c.h.b16 %v78
    %v335 = vunpack.c.l.b16 %v79
    %v336 = vunpack.c.h.b16 %v79
    %v337 = vunpack.c.l.b16 %v80
    %v338 = vunpack.c.h.b16 %v80
    %v339 = vunpack.c.l.b16 %v81
    %v340 = vunpack.c.h.b16 %v81
    %v341 = vunpack.c.l.b16 %v82
    %v342 = vunpack.c.h.b16 %v82
    %v343 = vunpack.c.l.b16 %v83
    %v344 = vunpack.c.h.b16 %v83
    %v345 = vunpack.c.l.b16 %v84
    %v346 = vunpack.c.h.b16 %v84
    %v347 = vunpack.c.l.b16 %v85
    %v348 = vunpack.c.h.b16 %v85
    %v349 = vunpack.c.l.b16 %v86
    %v350 = vunpack.c.h.b16 %v86
    %v351 = vunpack.c.l.b16 %v87
    %v352 = vunpack.c.h.b16 %v87
    %v353 = vunpack.c.l.b16 %v88
    %v354 = vunpack.c.h.b16 %v88
    %v355 = vunpack.c.l.b16 %v89
    %v356 = vunpack.c.h.b16 %v89
    %v357 = vunpack.c.l.b16 %v90
    %v358 = vunpack.c.h.b16 %v90
    %v359 = vunpack.c.l.b16 %v91
    %v360 = vunpack.c.h.b16 %v91
    %v361 = vunpack.c.l.b16 %v92
    %v362 = vunpack.c.h.b16 %v92
    %v363 = vunpack.c.l.b16 %v93
    %v364 = vunpack.c.h.b16 %v93
    %v365 = vunpack.c.l.b16 %v94
    %v366 = vunpack.c.h.b16 %v94
    %v367 = vpack.c.b16 %v225, %v223
    %v368 = vpack.c.b16 %v226, %v224
    %v369 = vpack.c.b16 %v229, %v227
    %v370 = vpack.c.b16 %v230, %v228
    %v371 = vpack.c.b16 %v233, %v231
    %v372 = vpack.c.b16 %v234, %v232
    %v373 = vpack.c.b16 %v237, %v235
    %v374 = vpack.c.b16 %v238, %v236
    %v375 = vpack.c.b16 %v241, %v239
    %v376 = vpack.c.b16 %v242, %v240
    %v377 = vpack.c.b16 %v245, %v243
    %v378 = vpack.c.b16 %v246, %v244
    %v379 = vpack.c.b16 %v249, %v247
    %v380 = vpack.c.b16 %v250, %v248
    %v381 = vpack.c.b16 %v253, %v251
    %v382 = vpack.c.b16 %v254, %v252
    %v383 = vpack.c.b16 %v257, %v255
    %v384 = vpack.c.b16 %v258, %v256
    %v385 = vpack.c.b16 %v261, %v259
    %v386 = vpack.c.b16 %v262, %v260
    %v387 = vpack.c.b16 %v265, %v263
    %v388 = vpack.c.b16 %v266, %v264
    %v389 = vpack.c.b16 %v269, %v267
    %v390 = vpack.c.b16 %v270, %v268
    %v391 = vpack.c.b16 %v273, %v271
    %v392 = vpack.c.b16 %v274, %v272
    %v393 = vpack.c.b16 %v277, %v275
    %v394 = vpack.c.b16 %v278, %v276
    %v395 = vpack.c.b16 %v281, %v279
    %v396 = vpack.c.b16 %v282, %v280
    %v397 = vpack.c.b16 %v285, %v283
    %v398 = vpack.c.b16 %v286, %v284
    %v399 = vpack.c.b16 %v289, %v287
    %v400 = vpack.c.b16 %v290, %v288
    %v401 = vpack.c.b16 %v293, %v291
    %v402 = vpack.c.b16 %v294, %v292
    %v403 = vpack.c.b16 %v297, %v295
    %v404 = vpack.c.b16 %v298, %v296
    %v405 = vpack.c.b16 %v301, %v299
    %v406 = vpack.c.b16 %v302, %v300
    %v407 = vpack.c.b16 %v305, %v303
    %v408 = vpack.c.b16 %v306, %v304
    %v409 = vpack.c.b16 %v309, %v307
    %v410 = vpack.c.b16 %v310, %v308
    %v411 = vpack.c.b16 %v313, %v311
    %v412 = vpack.c.b16 %v314, %v312
    %v413 = vpack.c.b16 %v317, %v315
    %v414 = vpack.c.b16 %v318, %v316
    %v415 = vpack.c.b16 %v321, %v319
    %v416 = vpack.c.b16 %v322, %v320
    %v417 = vpack.c.b16 %v325, %v323
    %v418 = vpack.c.b16 %v326, %v324
    %v419 = vpack.c.b16 %v329, %v327
    %v420 = vpack.c.b16 %v330, %v328
    %v421 = vpack.c.b16 %v333, %v331
    %v422 = vpack.c.b16 %v334, %v332
    %v423 = vpack.c.b16 %v337, %v335
    %v424 = vpack.c.b16 %v338, %v336
    %v425 = vpack.c.b16 %v341, %v339
    %v426 = vpack.c.b16 %v342, %v340
    %v427 = vpack.c.b16 %v345, %v343
    %v428 = vpack.c.b16 %v346, %v344
    %v429 = vpack.c.b16 %v349, %v347
    %v430 = vpack.c.b16 %v350, %v348
    %v431 = vpack.c.b16 %v353, %v351
    %v432 = vpack.c.b16 %v354, %v352
    %v433 = vpack.c.b16 %v357, %v355
    %v434 = vpack.c.b16 %v358, %v356
    %v435 = vpack.c.b16 %v361, %v359
    %v436 = vpack.c.b16 %v362, %v360
    %v437 = vpack.c.b16 %v365, %v363
    %v438 = vpack.c.b16 %v366, %v364
    %vm511 = vcmask 523264
    %v513 = vsel %vm511, %v137, 0
    %515 = vmatprep.subr.bf16.mxu0 %v368
    %516 = vmatpush1.bf16.msra.mxu0 %v367
    %517 = vmatprep.subr.bf16.mxu0 %v370
    %518 = vmatpush1.bf16.msra.mxu0 %v369
    %519 = vmatprep.subr.bf16.mxu0 %v372
    %520 = vmatpush1.bf16.msra.mxu0 %v371
    %521 = vmatprep.subr.bf16.mxu0 %v374
    %522 = vmatpush1.bf16.msra.mxu0 %v373
    %523 = vmatprep.subr.bf16.mxu0 %v376
    %524 = vmatpush1.bf16.msra.mxu0 %v375
    %525 = vmatprep.subr.bf16.mxu0 %v378
    %526 = vmatpush1.bf16.msra.mxu0 %v377
    %527 = vmatprep.subr.bf16.mxu0 %v380
    %528 = vmatpush1.bf16.msra.mxu0 %v379
    %529 = vmatprep.subr.bf16.mxu0 %v382
    %530 = vmatpush1.bf16.msra.mxu0 %v381
    %531 = vmatprep.subr.bf16.mxu0 %v384
    %532 = vmatpush1.bf16.msra.mxu0 %v383
    %533 = vmatprep.subr.bf16.mxu0 %v386
    %534 = vmatpush1.bf16.msra.mxu0 %v385
    %535 = vmatprep.subr.bf16.mxu0 %v388
    %536 = vmatpush1.bf16.msra.mxu0 %v387
    %537 = vmatprep.subr.bf16.mxu0 %v390
    %538 = vmatpush1.bf16.msra.mxu0 %v389
    %539 = vmatprep.subr.bf16.mxu0 %v392
    %540 = vmatpush1.bf16.msra.mxu0 %v391
    %541 = vmatprep.subr.bf16.mxu0 %v394
    %542 = vmatpush1.bf16.msra.mxu0 %v393
    %543 = vmatprep.subr.bf16.mxu0 %v396
    %544 = vmatpush1.bf16.msra.mxu0 %v395
    %545 = vmatprep.subr.bf16.mxu0 %v398
    %546 = vmatpush1.bf16.msra.mxu0 %v397
    %547 = vmatprep.mubr.bf16.mxu0 %v144
    %548 = vmatmul.mubr.bf16.gmra.mrb[0].mxu0 %v130
    %v549 = vpop.f32.mrb[0].mxu0
    %v550 = vadd.f32 %v100, %v549
    %v551 = vpop.f32.mrb[0].mxu0
    %v552 = vadd.f32 %v104, %v551
    %v553 = vpop.f32.mrb[0].mxu0
    %v554 = vpop.f32.mrb[0].mxu0
    %555 = vdwg.mxu0
    %556 = vmatprep.subr.bf16.mxu0 %v400
    %557 = vmatpush1.bf16.msra.mxu0 %v399
    %558 = vmatprep.subr.bf16.mxu0 %v402
    %559 = vmatpush1.bf16.msra.mxu0 %v401
    %560 = vmatprep.subr.bf16.mxu0 %v404
    %561 = vmatpush1.bf16.msra.mxu0 %v403
    %562 = vmatprep.subr.bf16.mxu0 %v406
    %563 = vmatpush1.bf16.msra.mxu0 %v405
    %564 = vmatprep.subr.bf16.mxu0 %v408
    %565 = vmatpush1.bf16.msra.mxu0 %v407
    %566 = vmatprep.subr.bf16.mxu0 %v410
    %567 = vmatpush1.bf16.msra.mxu0 %v409
    %568 = vmatprep.subr.bf16.mxu0 %v412
    %569 = vmatpush1.bf16.msra.mxu0 %v411
    %570 = vmatprep.subr.bf16.mxu0 %v414
    %571 = vmatpush1.bf16.msra.mxu0 %v413
    %572 = vmatprep.subr.bf16.mxu0 %v416
    %573 = vmatpush1.bf16.msra.mxu0 %v415
    %574 = vmatprep.subr.bf16.mxu0 %v418
    %575 = vmatpush1.bf16.msra.mxu0 %v417
    %576 = vmatprep.subr.bf16.mxu0 %v420
    %577 = vmatpush1.bf16.msra.mxu0 %v419
    %578 = vmatprep.subr.bf16.mxu0 %v422
    %579 = vmatpush1.bf16.msra.mxu0 %v421
    %580 = vmatprep.subr.bf16.mxu0 %v424
    %581 = vmatpush1.bf16.msra.mxu0 %v423
    %582 = vmatprep.subr.bf16.mxu0 %v426
    %583 = vmatpush1.bf16.msra.mxu0 %v425
    %584 = vmatprep.subr.bf16.mxu0 %v428
    %585 = vmatpush1.bf16.msra.mxu0 %v427
    %586 = vmatprep.subr.bf16.mxu0 %v430
    %587 = vmatpush1.bf16.msra.mxu0 %v429
    %588 = vmatprep.mubr.bf16.mxu0 %v146
    %589 = vmatmul.mubr.bf16.gmra.mrb[0].mxu0 %v145
    %v590 = vpop.f32.mrb[0].mxu0
    %v591 = vadd.f32 %v550, %v590
    %v592 = vpop.f32.mrb[0].mxu0
    %v593 = vadd.f32 %v552, %v592
    %v594 = vpop.f32.mrb[0].mxu0
    %v595 = vpop.f32.mrb[0].mxu0
    %596 = vdwg.mxu0
    %597 = vmatprep.subr.bf16.mxu0 %v432
    %598 = vmatpush1.bf16.msra.mxu0 %v431
    %599 = vmatprep.subr.bf16.mxu0 %v434
    %600 = vmatpush1.bf16.msra.mxu0 %v433
    %601 = vmatprep.subr.bf16.mxu0 %v436
    %602 = vmatpush1.bf16.msra.mxu0 %v435
    %603 = vmatprep.subr.bf16.mxu0 %v438
    %604 = vmatpush1.bf16.msra.mxu0 %v437
    %605 = vmatprep.subr.bf16.mxu0 0
    %606 = vmatpush1.bf16.msra.mxu0 0
    %607 = vmatprep.subr.bf16.mxu0 0
    %608 = vmatpush1.bf16.msra.mxu0 0
    %609 = vmatprep.subr.bf16.mxu0 0
    %610 = vmatpush1.bf16.msra.mxu0 0
    %611 = vmatprep.subr.bf16.mxu0 0
    %612 = vmatpush1.bf16.msra.mxu0 0
    %613 = vmatprep.subr.bf16.mxu0 0
    %614 = vmatpush1.bf16.msra.mxu0 0
    %615 = vmatprep.subr.bf16.mxu0 0
    %616 = vmatpush1.bf16.msra.mxu0 0
    %617 = vmatprep.subr.bf16.mxu0 0
    %618 = vmatpush1.bf16.msra.mxu0 0
    %619 = vmatprep.subr.bf16.mxu0 0
    %620 = vmatpush1.bf16.msra.mxu0 0
    %621 = vmatprep.subr.bf16.mxu0 0
    %622 = vmatpush1.bf16.msra.mxu0 0
    %623 = vmatprep.subr.bf16.mxu0 0
    %624 = vmatpush1.bf16.msra.mxu0 0
    %625 = vmatprep.subr.bf16.mxu0 0
    %626 = vmatpush1.bf16.msra.mxu0 0
    %627 = vmatprep.subr.bf16.mxu0 0
    %628 = vmatpush1.bf16.msra.mxu0 0
    %629 = vmatprep.mubr.bf16.mxu0 0
    %630 = vmatmul.mubr.bf16.gmra.mrb[0].mxu0 %v513
    %v631 = vpop.f32.mrb[0].mxu0
    %v632 = vadd.f32 %v591, %v631
    %v633 = vpop.f32.mrb[0].mxu0
    %v634 = vadd.f32 %v593, %v633
    %v635 = vpop.f32.mrb[0].mxu0
    %v636 = vpop.f32.mrb[0].mxu0
    %637 = vdwg.mxu0
    %v638 = vmax.f32 %v632, 0.0
    %v639 = vmax.f32 %v634, 0.0
    %v640 = vpack.c.bf16 %v638, %v638
    %v641 = vpack.c.bf16 %v639, %v639
    %v642 = vld [vmem:[%s3] sm:$0xf]
    %v643 = vld [vmem:[%s3 + $0x4] sm:$0xf]
    %v644 = vld [vmem:[%s3 + $0x8] sm:$0xf]
    %v645 = vld [vmem:[%s3 + $0xc] sm:$0xf]
    %v646 = vld [vmem:[%s3 + $0x10] sm:$0xf]
    %v647 = vld [vmem:[%s3 + $0x14] sm:$0xf]
    %v648 = vld [vmem:[%s3 + $0x18] sm:$0xf]
    %v649 = vld [vmem:[%s3 + $0x1c] sm:$0xf]
    %v650 = vld [vmem:[%s3 + $0x20] sm:$0xf]
    %v651 = vld [vmem:[%s3 + $0x24] sm:$0xf]
    %v652 = vld [vmem:[%s3 + $0x28] sm:$0xf]
    %v653 = vld [vmem:[%s3 + $0x2c] sm:$0xf]
    %v654 = vld [vmem:[%s3 + $0x30] sm:$0xf]
    %v655 = vld [vmem:[%s3 + $0x34] sm:$0xf]
    %v656 = vld [vmem:[%s3 + $0x38] sm:$0xf]
    %v657 = vld [vmem:[%s3 + $0x3c] sm:$0xf]
    %v658 = vld [vmem:[%s3 + $0x40] sm:$0xf]
    %v659 = vld [vmem:[%s3 + $0x44] sm:$0xf]
    %v660 = vld [vmem:[%s3 + $0x48] sm:$0xf]
    %v661 = vld [vmem:[%s3 + $0x4c] sm:$0xf]
    %v662 = vld [vmem:[%s3 + $0x50] sm:$0xf]
    %v663 = vld [vmem:[%s3 + $0x54] sm:$0xf]
    %v664 = vld [vmem:[%s3 + $0x58] sm:$0xf]
    %v665 = vld [vmem:[%s3 + $0x5c] sm:$0xf]
    %v666 = vld [vmem:[%s3 + $0x60] sm:$0xf]
    %v667 = vld [vmem:[%s3 + $0x64] sm:$0xf]
    %v668 = vld [vmem:[%s3 + $0x68] sm:$0xf]
    %v669 = vld [vmem:[%s3 + $0x6c] sm:$0xf]
    %v670 = vld [vmem:[%s3 + $0x70] sm:$0xf]
    %v671 = vld [vmem:[%s3 + $0x74] sm:$0xf]
    %v672 = vld [vmem:[%s3 + $0x78] sm:$0xf]
    %v673 = vld [vmem:[%s3 + $0x7c] sm:$0xf]
    %v674 = vld [vmem:[%s4] sm:$0x1]
    %v676 = vlaneseq
    %v677 = vshrl.u32 %v676, 7
    %v678 = vsub.s32 0, %v677
    %v679 = vrot.slane %v674, %v678
    %v713 = vunpack.c.l.b16 %v642
    %v714 = vunpack.c.l.b16 %v643
    %v715 = vunpack.c.l.b16 %v644
    %v716 = vunpack.c.l.b16 %v645
    %v717 = vunpack.c.l.b16 %v646
    %v718 = vunpack.c.l.b16 %v647
    %v719 = vunpack.c.l.b16 %v648
    %v720 = vunpack.c.l.b16 %v649
    %v721 = vunpack.c.l.b16 %v650
    %v722 = vunpack.c.l.b16 %v651
    %v723 = vunpack.c.l.b16 %v652
    %v724 = vunpack.c.l.b16 %v653
    %v725 = vunpack.c.l.b16 %v654
    %v726 = vunpack.c.l.b16 %v655
    %v727 = vunpack.c.l.b16 %v656
    %v728 = vunpack.c.l.b16 %v657
    %v729 = vunpack.c.l.b16 %v658
    %v730 = vunpack.c.l.b16 %v659
    %v731 = vunpack.c.l.b16 %v660
    %v732 = vunpack.c.l.b16 %v661
    %v733 = vunpack.c.l.b16 %v662
    %v734 = vunpack.c.l.b16 %v663
    %v735 = vunpack.c.l.b16 %v664
    %v736 = vunpack.c.l.b16 %v665
    %v737 = vunpack.c.l.b16 %v666
    %v738 = vunpack.c.l.b16 %v667
    %v739 = vunpack.c.l.b16 %v668
    %v740 = vunpack.c.l.b16 %v669
    %v741 = vunpack.c.l.b16 %v670
    %v742 = vunpack.c.l.b16 %v671
    %v743 = vunpack.c.l.b16 %v672
    %v744 = vunpack.c.l.b16 %v673
    %v745 = vpack.c.b16 %v714, %v713
    %v746 = vpack.c.b16 %v716, %v715
    %v747 = vpack.c.b16 %v718, %v717
    %v748 = vpack.c.b16 %v720, %v719
    %v749 = vpack.c.b16 %v722, %v721
    %v750 = vpack.c.b16 %v724, %v723
    %v751 = vpack.c.b16 %v726, %v725
    %v752 = vpack.c.b16 %v728, %v727
    %v753 = vpack.c.b16 %v730, %v729
    %v754 = vpack.c.b16 %v732, %v731
    %v755 = vpack.c.b16 %v734, %v733
    %v756 = vpack.c.b16 %v736, %v735
    %v757 = vpack.c.b16 %v738, %v737
    %v758 = vpack.c.b16 %v740, %v739
    %v759 = vpack.c.b16 %v742, %v741
    %v760 = vpack.c.b16 %v744, %v743
    %777 = vmatprep.subr.bf16.mxu0 0
    %778 = vmatpush1.bf16.msra.mxu0 %v745
    %779 = vmatprep.subr.bf16.mxu0 0
    %780 = vmatpush1.bf16.msra.mxu0 %v746
    %781 = vmatprep.subr.bf16.mxu0 0
    %782 = vmatpush1.bf16.msra.mxu0 %v747
    %783 = vmatprep.subr.bf16.mxu0 0
    %784 = vmatpush1.bf16.msra.mxu0 %v748
    %785 = vmatprep.subr.bf16.mxu0 0
    %786 = vmatpush1.bf16.msra.mxu0 %v749
    %787 = vmatprep.subr.bf16.mxu0 0
    %788 = vmatpush1.bf16.msra.mxu0 %v750
    %789 = vmatprep.subr.bf16.mxu0 0
    %790 = vmatpush1.bf16.msra.mxu0 %v751
    %791 = vmatprep.subr.bf16.mxu0 0
    %792 = vmatpush1.bf16.msra.mxu0 %v752
    %793 = vmatprep.subr.bf16.mxu0 0
    %794 = vmatpush1.bf16.msra.mxu0 %v753
    %795 = vmatprep.subr.bf16.mxu0 0
    %796 = vmatpush1.bf16.msra.mxu0 %v754
    %797 = vmatprep.subr.bf16.mxu0 0
    %798 = vmatpush1.bf16.msra.mxu0 %v755
    %799 = vmatprep.subr.bf16.mxu0 0
    %800 = vmatpush1.bf16.msra.mxu0 %v756
    %801 = vmatprep.subr.bf16.mxu0 0
    %802 = vmatpush1.bf16.msra.mxu0 %v757
    %803 = vmatprep.subr.bf16.mxu0 0
    %804 = vmatpush1.bf16.msra.mxu0 %v758
    %805 = vmatprep.subr.bf16.mxu0 0
    %806 = vmatpush1.bf16.msra.mxu0 %v759
    %807 = vmatprep.subr.bf16.mxu0 0
    %808 = vmatpush1.bf16.msra.mxu0 %v760
    %809 = vmatprep.mubr.bf16.mxu0 %v641
    %810 = vmatmul.mubr.bf16.gmra.mrb[0].mxu0 %v640
    %v811 = vpop.f32.mrb[0].mxu0
    %v812 = vadd.f32 %v679, %v811
    %v813 = vpop.f32.mrb[0].mxu0
    %v814 = vpop.f32.mrb[0].mxu0
    %v815 = vpop.f32.mrb[0].mxu0
    %816 = vdwg.mxu0
    %v817 = vtanh.pop %v812
    %818 = vst [vmem:[#allocation2] sm:$0x3] %v817
    // Predicated region
    $region22: #{actor_forward.5} parent=1 // pred_check
      _
    $region23: #{actor_forward.5} parent=1 // pred_check_branch
      %820 = sbr.rel (0) target = $region25
    $region24: #{actor_forward.5} parent=1 // pred_region
      %s822 = ssub.s32 32, 32
      %823 = vsyncadd [#allocation3], %s822
      %s825 = sshll.u32 [#allocation2], 4
      %s826 = int_to_ptr.vmem [resolvable:$true] %s825
      %828 = dma.vmem_to_hbm [thread:$0]  %s826, 32, %s5, [#allocation3]
    $region25: #{actor_forward.5} parent=1 // pred_fallthru
      _
    // Predicated region
    $region26: #{actor_forward.5} parent=1 // pred_check
      _
    $region27: #{actor_forward.5} parent=1 // pred_check_branch
      %830 = sbr.rel (0) target = $region29
    $region28: #{actor_forward.5} parent=1 // pred_region
      %831 = dma.done [#allocation3], 32
    $region29: #{actor_forward.5} parent=1 // pred_fallthru
      _
    %832 = vsyncpa [#allocation3], 1

// kernel: actor_forward.4
$region0: #{actor_forward.4}
  #allocation0 [shape = 'u32[]', space=smem, size = 0x4, offset = 0x4, fixed_abs, tag = 'smem constant byte address 0x4 - core index']
  #allocation1 [shape = 'u32[144,128]{1,0:T(1,128)}', space=vmem, size = 0x12000, scoped, tag = 'internal scratch']
  %s0 = inlined_call_operand.vmem [shape: bf16[2,288,576], index: 0, kind: input, shape index: {}]
  %s1 = inlined_call_operand.vmem [shape: bf16[64,288], index: 1, kind: input, shape index: {}]
  %s2 = inlined_call_operand.vmem [shape: f32[64,1], index: 2, kind: input, shape index: {}]
  %s3 = inlined_call_operand.vmem [shape: bf16[288,64], index: 3, kind: input, shape index: {}]
  %s4 = inlined_call_operand.vmem [shape: f32[32,1], index: 4, kind: input, shape index: {}]
  %s5 = inlined_call_operand.vmem [shape: bf16[9,576,144], index: 5, kind: input, shape index: {}]
  %s6 = inlined_call_operand.vmem [shape: bf16[144,32], index: 6, kind: input, shape index: {}]
  %s7 = inlined_call_operand.vmem [shape: f32[16,1], index: 7, kind: input, shape index: {}]
  %s8 = inlined_call_operand.vmem [shape: bf16[9,144,36], index: 8, kind: input, shape index: {}]
  %s9 = inlined_call_operand.vmem [shape: bf16[2,16,36], index: 9, kind: output, shape index: {}]
  %s10 = sld [smem:[#allocation0]]
  $region69: #{actor_forward.4} parent=0
    _
  %s12 = ssub.s32 1, %s10
  %s13 = scalar_select 0, %s12, %s10
  loop: start=0, step=1, limit=4
  $region2: #{actor_forward.4} parent=0 // loop_pre_header
    _
  $region3: #{actor_forward.4} parent=0 // loop_header
    %s15 = sphi 0, %s19
    %p16 = scmp.ge.s32.totalorder %s15, 4
    %s25 = sphi 0, %s27
    %s28 = sphi 0, %s25
    %s29 = sphi 0, %s28
    %s45 = sphi 0, %s29
    %s49 = sphi 0, %s49
    %s51 = sphi 0, %s49
    %s52 = sphi 0, %s51
    %s66 = sphi 0, %s52
    %s70 = sphi 0, %s70
    %s72 = sphi 0, %s70
    %s73 = sphi 0, %s72
    %s87 = sphi 0, %s73
    %s91 = sphi 0, %s91
    %s93 = sphi 0, %s91
    %s94 = sphi 0, %s93
    %s108 = sphi 0, %s94
    %s112 = sphi 0, %s112
    %s114 = sphi 0, %s112
    %s115 = sphi 0, %s114
    %s129 = sphi 0, %s115
    %s133 = sphi 0, %s133
    %s135 = sphi 0, %s133
    %s136 = sphi 0, %s135
    %s150 = sphi 0, %s136
    %s154 = sphi 0, %s154
    %s156 = sphi 0, %s154
    %s157 = sphi 0, %s156
    %s171 = sphi 0, %s157
    %s175 = sphi 0, %s175
    %s177 = sphi 0, %s175
    %s178 = sphi 0, %s177
    %s192 = sphi 0, %s178
    %s196 = sphi 0, %s196
    %s198 = sphi 0, %s196
    %s199 = sphi 0, %s198
    %s213 = sphi 0, %s199
    %s219 = sphi 0, %s221
    %s222 = sphi 0, %s219
    %s223 = sphi 0, %s222
    %s239 = sphi 0, %s223
  $region4: #{actor_forward.4} parent=0 // loop_header_branch
    %18 = sbr.rel (%p16) target = $region8
  $region5: #{actor_forward.4} parent=0 // loop_body
    %s20 = ssub.s32 %s15, 1
    %s21 = ssub.s32 %s15, 2
    %s22 = sadd.s32 %s15, 1
    %s23 = ssub.s32 %s15, %s22
    %p24 = scmp.eq.s32.totalorder %s23, 0
    %s26 = sadd.s32 %s25, 1
    %s27 = scalar_select %p24, %s25, %s26
    %p30 = pneg %p24
    %p31 = scmp.eq.s32.totalorder %s15, 1
    %p32 = por %p30, %p31
    %p33 = scmp.ne.s32.totalorder %s25, %s28
    %p34 = scmp.eq.s32.totalorder %s15, 0
    %p35 = por %p33, %p34
    %p36 = scmp.ne.s32.totalorder %s25, %s28
    %p37 = scmp.eq.s32.totalorder %s20, 1
    %p38 = por %p36, %p37
    %p39 = scmp.ne.s32.totalorder %s28, %s29
    %p40 = scmp.eq.s32.totalorder %s20, 0
    %p41 = por %p39, %p40
    %p42 = scmp.ne.s32.totalorder %s28, %s29
    %p43 = scmp.eq.s32.totalorder %s21, 1
    %p44 = por %p42, %p43
    %p46 = scmp.ne.s32.totalorder %s29, %s45
    %p47 = scmp.eq.s32.totalorder %s21, 0
    %p48 = por %p46, %p47
    %s50 = sadd.s32 %s49, 1
    %p53 = scmp.eq.s32.totalorder %s15, 1
    %p54 = scmp.ne.s32.totalorder %s49, %s51
    %p55 = scmp.eq.s32.totalorder %s15, 0
    %p56 = por %p54, %p55
    %p57 = scmp.ne.s32.totalorder %s49, %s51
    %p58 = scmp.eq.s32.totalorder %s20, 1
    %p59 = por %p57, %p58
    %p60 = scmp.ne.s32.totalorder %s51, %s52
    %p61 = scmp.eq.s32.totalorder %s20, 0
    %p62 = por %p60, %p61
    %p63 = scmp.ne.s32.totalorder %s51, %s52
    %p64 = scmp.eq.s32.totalorder %s21, 1
    %p65 = por %p63, %p64
    %p67 = scmp.ne.s32.totalorder %s52, %s66
    %p68 = scmp.eq.s32.totalorder %s21, 0
    %p69 = por %p67, %p68
    %s71 = sadd.s32 %s70, 1
    %p74 = scmp.eq.s32.totalorder %s15, 1
    %p75 = scmp.ne.s32.totalorder %s70, %s72
    %p76 = scmp.eq.s32.totalorder %s15, 0
    %p77 = por %p75, %p76
    %p78 = scmp.ne.s32.totalorder %s70, %s72
    %p79 = scmp.eq.s32.totalorder %s20, 1
    %p80 = por %p78, %p79
    %p81 = scmp.ne.s32.totalorder %s72, %s73
    %p82 = scmp.eq.s32.totalorder %s20, 0
    %p83 = por %p81, %p82
    %p84 = scmp.ne.s32.totalorder %s72, %s73
    %p85 = scmp.eq.s32.totalorder %s21, 1
    %p86 = por %p84, %p85
    %p88 = scmp.ne.s32.totalorder %s73, %s87
    %p89 = scmp.eq.s32.totalorder %s21, 0
    %p90 = por %p88, %p89
    %s92 = sadd.s32 %s91, 1
    %p95 = scmp.eq.s32.totalorder %s15, 1
    %p96 = scmp.ne.s32.totalorder %s91, %s93
    %p97 = scmp.eq.s32.totalorder %s15, 0
    %p98 = por %p96, %p97
    %p99 = scmp.ne.s32.totalorder %s91, %s93
    %p100 = scmp.eq.s32.totalorder %s20, 1
    %p101 = por %p99, %p100
    %p102 = scmp.ne.s32.totalorder %s93, %s94
    %p103 = scmp.eq.s32.totalorder %s20, 0
    %p104 = por %p102, %p103
    %p105 = scmp.ne.s32.totalorder %s93, %s94
    %p106 = scmp.eq.s32.totalorder %s21, 1
    %p107 = por %p105, %p106
    %p109 = scmp.ne.s32.totalorder %s94, %s108
    %p110 = scmp.eq.s32.totalorder %s21, 0
    %p111 = por %p109, %p110
    %s113 = sadd.s32 %s112, 1
    %p116 = scmp.eq.s32.totalorder %s15, 1
    %p117 = scmp.ne.s32.totalorder %s112, %s114
    %p118 = scmp.eq.s32.totalorder %s15, 0
    %p119 = por %p117, %p118
    %p120 = scmp.ne.s32.totalorder %s112, %s114
    %p121 = scmp.eq.s32.totalorder %s20, 1
    %p122 = por %p120, %p121
    %p123 = scmp.ne.s32.totalorder %s114, %s115
    %p124 = scmp.eq.s32.totalorder %s20, 0
    %p125 = por %p123, %p124
    %p126 = scmp.ne.s32.totalorder %s114, %s115
    %p127 = scmp.eq.s32.totalorder %s21, 1
    %p128 = por %p126, %p127
    %p130 = scmp.ne.s32.totalorder %s115, %s129
    %p131 = scmp.eq.s32.totalorder %s21, 0
    %p132 = por %p130, %p131
    %s134 = sadd.s32 %s133, 1
    %p137 = scmp.eq.s32.totalorder %s15, 1
    %p138 = scmp.ne.s32.totalorder %s133, %s135
    %p139 = scmp.eq.s32.totalorder %s15, 0
    %p140 = por %p138, %p139
    %p141 = scmp.ne.s32.totalorder %s133, %s135
    %p142 = scmp.eq.s32.totalorder %s20, 1
    %p143 = por %p141, %p142
    %p144 = scmp.ne.s32.totalorder %s135, %s136
    %p145 = scmp.eq.s32.totalorder %s20, 0
    %p146 = por %p144, %p145
    %p147 = scmp.ne.s32.totalorder %s135, %s136
    %p148 = scmp.eq.s32.totalorder %s21, 1
    %p149 = por %p147, %p148
    %p151 = scmp.ne.s32.totalorder %s136, %s150
    %p152 = scmp.eq.s32.totalorder %s21, 0
    %p153 = por %p151, %p152
    %s155 = sadd.s32 %s154, 1
    %p158 = scmp.eq.s32.totalorder %s15, 1
    %p159 = scmp.ne.s32.totalorder %s154, %s156
    %p160 = scmp.eq.s32.totalorder %s15, 0
    %p161 = por %p159, %p160
    %p162 = scmp.ne.s32.totalorder %s154, %s156
    %p163 = scmp.eq.s32.totalorder %s20, 1
    %p164 = por %p162, %p163
    %p165 = scmp.ne.s32.totalorder %s156, %s157
    %p166 = scmp.eq.s32.totalorder %s20, 0
    %p167 = por %p165, %p166
    %p168 = scmp.ne.s32.totalorder %s156, %s157
    %p169 = scmp.eq.s32.totalorder %s21, 1
    %p170 = por %p168, %p169
    %p172 = scmp.ne.s32.totalorder %s157, %s171
    %p173 = scmp.eq.s32.totalorder %s21, 0
    %p174 = por %p172, %p173
    %s176 = sadd.s32 %s175, 1
    %p179 = scmp.eq.s32.totalorder %s15, 1
    %p180 = scmp.ne.s32.totalorder %s175, %s177
    %p181 = scmp.eq.s32.totalorder %s15, 0
    %p182 = por %p180, %p181
    %p183 = scmp.ne.s32.totalorder %s175, %s177
    %p184 = scmp.eq.s32.totalorder %s20, 1
    %p185 = por %p183, %p184
    %p186 = scmp.ne.s32.totalorder %s177, %s178
    %p187 = scmp.eq.s32.totalorder %s20, 0
    %p188 = por %p186, %p187
    %p189 = scmp.ne.s32.totalorder %s177, %s178
    %p190 = scmp.eq.s32.totalorder %s21, 1
    %p191 = por %p189, %p190
    %p193 = scmp.ne.s32.totalorder %s178, %s192
    %p194 = scmp.eq.s32.totalorder %s21, 0
    %p195 = por %p193, %p194
    %s197 = sadd.s32 %s196, 1
    %p200 = scmp.eq.s32.totalorder %s15, 1
    %p201 = scmp.ne.s32.totalorder %s196, %s198
    %p202 = scmp.eq.s32.totalorder %s15, 0
    %p203 = por %p201, %p202
    %p204 = scmp.ne.s32.totalorder %s196, %s198
    %p205 = scmp.eq.s32.totalorder %s20, 1
    %p206 = por %p204, %p205
    %p207 = scmp.ne.s32.totalorder %s198, %s199
    %p208 = scmp.eq.s32.totalorder %s20, 0
    %p209 = por %p207, %p208
    %p210 = scmp.ne.s32.totalorder %s198, %s199
    %p211 = scmp.eq.s32.totalorder %s21, 1
    %p212 = por %p210, %p211
    %p214 = scmp.ne.s32.totalorder %s199, %s213
    %p215 = scmp.eq.s32.totalorder %s21, 0
    %p216 = por %p214, %p215
    %s217 = ssub.s32 %s15, %s22
    %p218 = scmp.eq.s32.totalorder %s217, 0
    %s220 = sadd.s32 %s219, 1
    %s221 = scalar_select %p218, %s219, %s220
    %p224 = pneg %p218
    %p225 = scmp.eq.s32.totalorder %s15, 1
    %p226 = por %p224, %p225
    %p227 = scmp.ne.s32.totalorder %s219, %s222
    %p228 = scmp.eq.s32.totalorder %s15, 0
    %p229 = por %p227, %p228
    %p230 = scmp.ne.s32.totalorder %s219, %s222
    %p231 = scmp.eq.s32.totalorder %s20, 1
    %p232 = por %p230, %p231
    %p233 = scmp.ne.s32.totalorder %s222, %s223
    %p234 = scmp.eq.s32.totalorder %s20, 0
    %p235 = por %p233, %p234
    %p236 = scmp.ne.s32.totalorder %s222, %s223
    %p237 = scmp.eq.s32.totalorder %s21, 1
    %p238 = por %p236, %p237
    %p240 = scmp.ne.s32.totalorder %s223, %s239
    %p241 = scmp.eq.s32.totalorder %s21, 0
    %p242 = por %p240, %p241
    %p243 = scmp.le.s32.totalorder 1, %s15
    %p244 = scmp.lt.s32.totalorder %s15, 3
    %p245 = pnand %p243, %p244
    %p246 = pneg %p245
    // Predicated region
    $region9: #{actor_forward.4} parent=5 // pred_check
      _
    $region10: #{actor_forward.4} parent=5 // pred_check_branch
      %248 = sbr.rel (%p245) target = $region12
    $region11: #{actor_forward.4} parent=5 // pred_region
      %s249 = ssub.s32 %s15, 1
      // Predicated region
      $region13: #{actor_forward.4} parent=11 // pred_check
        %p250 = pneg %p62
      $region14: #{actor_forward.4} parent=11 // pred_check_branch
        %252 = sbr.rel (%p250) target = $region16
      $region15: #{actor_forward.4} parent=11 // pred_region
        _
      $region16: #{actor_forward.4} parent=11 // pred_fallthru
        _
      // Predicated region
      $region17: #{actor_forward.4} parent=11 // pred_check
        %p253 = pneg %p83
      $region18: #{actor_forward.4} parent=11 // pred_check_branch
        %255 = sbr.rel (%p253) target = $region20
      $region19: #{actor_forward.4} parent=11 // pred_region
        _
      $region20: #{actor_forward.4} parent=11 // pred_fallthru
        _
      // Predicated region
      $region21: #{actor_forward.4} parent=11 // pred_check
        %p256 = pneg %p104
      $region22: #{actor_forward.4} parent=11 // pred_check_branch
        %258 = sbr.rel (%p256) target = $region24
      $region23: #{actor_forward.4} parent=11 // pred_region
        _
      $region24: #{actor_forward.4} parent=11 // pred_fallthru
        _
      // Predicated region
      $region25: #{actor_forward.4} parent=11 // pred_check
        %p259 = pneg %p125
      $region26: #{actor_forward.4} parent=11 // pred_check_branch
        %261 = sbr.rel (%p259) target = $region28
      $region27: #{actor_forward.4} parent=11 // pred_region
        _
      $region28: #{actor_forward.4} parent=11 // pred_fallthru
        _
      // Predicated region
      $region29: #{actor_forward.4} parent=11 // pred_check
        %p262 = pneg %p146
      $region30: #{actor_forward.4} parent=11 // pred_check_branch
        %264 = sbr.rel (%p262) target = $region32
      $region31: #{actor_forward.4} parent=11 // pred_region
        _
      $region32: #{actor_forward.4} parent=11 // pred_fallthru
        _
      // Predicated region
      $region33: #{actor_forward.4} parent=11 // pred_check
        %p265 = pneg %p167
      $region34: #{actor_forward.4} parent=11 // pred_check_branch
        %267 = sbr.rel (%p265) target = $region36
      $region35: #{actor_forward.4} parent=11 // pred_region
        _
      $region36: #{actor_forward.4} parent=11 // pred_fallthru
        _
      // Predicated region
      $region37: #{actor_forward.4} parent=11 // pred_check
        %p268 = pneg %p188
      $region38: #{actor_forward.4} parent=11 // pred_check_branch
        %270 = sbr.rel (%p268) target = $region40
      $region39: #{actor_forward.4} parent=11 // pred_region
        _
      $region40: #{actor_forward.4} parent=11 // pred_fallthru
        _
      // Predicated region
      $region41: #{actor_forward.4} parent=11 // pred_check
        %p271 = pneg %p209
      $region42: #{actor_forward.4} parent=11 // pred_check_branch
        %273 = sbr.rel (%p271) target = $region44
      $region43: #{actor_forward.4} parent=11 // pred_region
        _
      $region44: #{actor_forward.4} parent=11 // pred_fallthru
        _
    $region12: #{actor_forward.4} parent=5 // pred_fallthru
      _
    %p274 = scmp.lt.s32.totalorder %s15, 2
    // Predicated region
    $region45: #{actor_forward.4} parent=5 // pred_check
      %p275 = pneg %p274
    $region46: #{actor_forward.4} parent=5 // pred_check_branch
      %277 = sbr.rel (%p275) target = $region48
    $region47: #{actor_forward.4} parent=5 // pred_region
      // Predicated region
      $region49: #{actor_forward.4} parent=47 // pred_check
        %p278 = pneg %p35
      $region50: #{actor_forward.4} parent=47 // pred_check_branch
        %280 = sbr.rel (%p278) target = $region52
      $region51: #{actor_forward.4} parent=47 // pred_region
        %p281 = scmp.lt.s32.totalorder %s15, 1
        %s282 = scalar_select %p281, %s15, 1
        %s283 = smul.addr %s282, 180
        %s284 = smul.addr %s283, 4
        %s285 = scalar_lea.vmem %s0, %s284
      $region52: #{actor_forward.4} parent=47 // pred_fallthru
        _
    $region48: #{actor_forward.4} parent=5 // pred_fallthru
      _
    %p286 = scmp.le.s32.totalorder 1, %s15
    %p287 = scmp.lt.s32.totalorder %s15, 3
    %p288 = pnand %p286, %p287
    %p289 = pneg %p288
    // Predicated region
    $region53: #{actor_forward.4} parent=5 // pred_check
      _
    $region54: #{actor_forward.4} parent=5 // pred_check_branch
      %291 = sbr.rel (%p288) target = $region56
    $region55: #{actor_forward.4} parent=5 // pred_region
      %s292 = ssub.s32 %s15, 1
      %p293 = scmp.lt.s32.totalorder %s20, 1
      %s294 = scalar_select %p293, %s20, 1
      %s295 = smul.addr %s294, 180
      %s296 = smul.addr %s295, 4
      %s297 = scalar_lea.vmem %s0, %s296
      %p298 = pneg %p41
      %p299 = pneg %p38
      %p300 = pneg %p62
      %p301 = pneg %p59
      %p302 = pneg %p83
      %p303 = pneg %p80
      %p304 = pneg %p104
      %p305 = pneg %p101
      %p306 = pneg %p125
      %p307 = pneg %p122
      %p308 = pneg %p146
      %p309 = pneg %p143
      %p310 = pneg %p167
      %p311 = pneg %p164
      %p312 = pneg %p188
      %p313 = pneg %p185
      %p314 = pneg %p209
      %p315 = pneg %p206
      %p316 = pneg %p235
      %p317 = pneg %p232
      %p318 = scmp.lt.s32.totalorder %s20, 1
      %s319 = scalar_select %p318, %s20, 1
      %s320 = smul.addr %s319, 2
      %s321 = smul.addr %s320, 4
      %s322 = scalar_lea.vmem %s9, %s321
      %p323 = scmp.lt.s32.totalorder %s20, 1
      %s324 = scalar_select %p323, %s20, 1
      %s325 = smul.addr %s324, 180
      %s326 = smul.addr %s325, 4
      %s327 = scalar_lea.vmem %s0, %s326
      %p328 = scmp.lt.s32.totalorder %s20, 1
      %s329 = scalar_select %p328, %s20, 1
      %s330 = smul.addr %s329, 2
      %s331 = smul.addr %s330, 4
      %s332 = scalar_lea.vmem %s9, %s331
      %v334 = vld [vmem:[%s1] sm:$0xff]
      %v335 = vld [vmem:[%s1 + $0x8] sm:$0xf]
      %v336 = vld [vmem:[%s1 + $0xc] sm:$0xff]
      %v337 = vld [vmem:[%s1 + $0x14] sm:$0xf]
      %v338 = vld [vmem:[%s1 + $0x18] sm:$0xff]
      %v339 = vld [vmem:[%s1 + $0x20] sm:$0xf]
      %v340 = vld [vmem:[%s1 + $0x24] sm:$0xff]
      %v341 = vld [vmem:[%s1 + $0x2c] sm:$0xf]
      %v342 = vld [vmem:[%s1 + $0x30] sm:$0xff]
      %v343 = vld [vmem:[%s1 + $0x38] sm:$0xf]
      %v344 = vld [vmem:[%s1 + $0x3c] sm:$0xff]
      %v345 = vld [vmem:[%s1 + $0x44] sm:$0xf]
      %v346 = vld [vmem:[%s1 + $0x48] sm:$0xff]
      %v347 = vld [vmem:[%s1 + $0x50] sm:$0xf]
      %v348 = vld [vmem:[%s1 + $0x54] sm:$0xff]
      %v349 = vld [vmem:[%s1 + $0x5c] sm:$0xf]
      %v350 = vld [vmem:[%s327] sm:$0xff]
      %v351 = vld [vmem:[%s327 + $0x8] sm:$0xff]
      %v352 = vld [vmem:[%s327 + $0x10] sm:$0xf]
      %v353 = vld [vmem:[%s327 + $0x14] sm:$0xff]
      %v354 = vld [vmem:[%s327 + $0x1c] sm:$0xff]
      %v355 = vld [vmem:[%s327 + $0x24] sm:$0xf]
      %v356 = vld [vmem:[%s327 + $0x28] sm:$0xff]
      %v357 = vld [vmem:[%s327 + $0x30] sm:$0xff]
      %v358 = vld [vmem:[%s327 + $0x38] sm:$0xf]
      %v359 = vld [vmem:[%s327 + $0x3c] sm:$0xff]
      %v360 = vld [vmem:[%s327 + $0x44] sm:$0xff]
      %v361 = vld [vmem:[%s327 + $0x4c] sm:$0xf]
      %v362 = vld [vmem:[%s327 + $0x50] sm:$0xff]
      %v363 = vld [vmem:[%s327 + $0x58] sm:$0xff]
      %v364 = vld [vmem:[%s327 + $0x60] sm:$0xf]
      %v365 = vld [vmem:[%s327 + $0x64] sm:$0xff]
      %v366 = vld [vmem:[%s327 + $0x6c] sm:$0xff]
      %v367 = vld [vmem:[%s327 + $0x74] sm:$0xf]
      %v368 = vld [vmem:[%s327 + $0x78] sm:$0xff]
      %v369 = vld [vmem:[%s327 + $0x80] sm:$0xff]
      %v370 = vld [vmem:[%s327 + $0x88] sm:$0xf]
      %v371 = vld [vmem:[%s327 + $0x8c] sm:$0xff]
      %v372 = vld [vmem:[%s327 + $0x94] sm:$0xff]
      %v373 = vld [vmem:[%s327 + $0x9c] sm:$0xf]
      %v374 = vld [vmem:[%s327 + $0xa0] sm:$0xff]
      %v375 = vld [vmem:[%s327 + $0xa8] sm:$0xff]
      %v376 = vld [vmem:[%s327 + $0xb0] sm:$0xf]
      %v377 = vld [vmem:[%s327 + $0xb4] sm:$0xff]
      %v378 = vld [vmem:[%s327 + $0xbc] sm:$0xff]
      %v379 = vld [vmem:[%s327 + $0xc4] sm:$0xf]
      %v380 = vld [vmem:[%s327 + $0xc8] sm:$0xff]
      %v381 = vld [vmem:[%s327 + $0xd0] sm:$0xff]
      %v382 = vld [vmem:[%s327 + $0xd8] sm:$0xf]
      %v383 = vld [vmem:[%s327 + $0xdc] sm:$0xff]
      %v384 = vld [vmem:[%s327 + $0xe4] sm:$0xff]
      %v385 = vld [vmem:[%s327 + $0xec] sm:$0xf]
      %v386 = vld [vmem:[%s327 + $0xf0] sm:$0xff]
      %v387 = vld [vmem:[%s327 + $0xf8] sm:$0xff]
      %v388 = vld [vmem:[%s327 + $0x100] sm:$0xf]
      %v389 = vld [vmem:[%s327 + $0x104] sm:$0xff]
      %v390 = vld [vmem:[%s327 + $0x10c] sm:$0xff]
      %v391 = vld [vmem:[%s327 + $0x114] sm:$0xf]
      %v392 = vld [vmem:[%s327 + $0x118] sm:$0xff]
      %v393 = vld [vmem:[%s327 + $0x120] sm:$0xff]
      %v394 = vld [vmem:[%s327 + $0x128] sm:$0xf]
      %v395 = vld [vmem:[%s327 + $0x12c] sm:$0xff]
      %v396 = vld [vmem:[%s327 + $0x134] sm:$0xff]
      %v397 = vld [vmem:[%s327 + $0x13c] sm:$0xf]
      %v398 = vld [vmem:[%s327 + $0x140] sm:$0xff]
      %v399 = vld [vmem:[%s327 + $0x148] sm:$0xff]
      %v400 = vld [vmem:[%s327 + $0x150] sm:$0xf]
      %v401 = vld [vmem:[%s327 + $0x154] sm:$0xff]
      %v402 = vld [vmem:[%s327 + $0x15c] sm:$0xff]
      %v403 = vld [vmem:[%s327 + $0x164] sm:$0xf]
      %v404 = vld [vmem:[%s327 + $0x168] sm:$0xff]
      %v405 = vld [vmem:[%s327 + $0x170] sm:$0xff]
      %v406 = vld [vmem:[%s327 + $0x178] sm:$0xf]
      %v407 = vld [vmem:[%s327 + $0x17c] sm:$0xff]
      %v408 = vld [vmem:[%s327 + $0x184] sm:$0xff]
      %v409 = vld [vmem:[%s327 + $0x18c] sm:$0xf]
      %v410 = vld [vmem:[%s327 + $0x190] sm:$0xff]
      %v411 = vld [vmem:[%s327 + $0x198] sm:$0xff]
      %v412 = vld [vmem:[%s327 + $0x1a0] sm:$0xf]
      %v413 = vld [vmem:[%s327 + $0x1a4] sm:$0xff]
      %v414 = vld [vmem:[%s327 + $0x1ac] sm:$0xff]
      %v415 = vld [vmem:[%s327 + $0x1b4] sm:$0xf]
      %v416 = vld [vmem:[%s327 + $0x1b8] sm:$0xff]
      %v417 = vld [vmem:[%s327 + $0x1c0] sm:$0xff]
      %v418 = vld [vmem:[%s327 + $0x1c8] sm:$0xf]
      %v419 = vld [vmem:[%s327 + $0x1cc] sm:$0xff]
      %v420 = vld [vmem:[%s327 + $0x1d4] sm:$0xff]
      %v421 = vld [vmem:[%s327 + $0x1dc] sm:$0xf]
      %v422 = vld [vmem:[%s327 + $0x1e0] sm:$0xff]
      %v423 = vld [vmem:[%s327 + $0x1e8] sm:$0xff]
      %v424 = vld [vmem:[%s327 + $0x1f0] sm:$0xf]
      %v425 = vld [vmem:[%s327 + $0x1f4] sm:$0xff]
      %v426 = vld [vmem:[%s327 + $0x1fc] sm:$0xff]
      %v427 = vld [vmem:[%s327 + $0x204] sm:$0xf]
      %v428 = vld [vmem:[%s327 + $0x208] sm:$0xff]
      %v429 = vld [vmem:[%s327 + $0x210] sm:$0xff]
      %v430 = vld [vmem:[%s327 + $0x218] sm:$0xf]
      %v431 = vld [vmem:[%s327 + $0x21c] sm:$0xff]
      %v432 = vld [vmem:[%s327 + $0x224] sm:$0xff]
      %v433 = vld [vmem:[%s327 + $0x22c] sm:$0xf]
      %v434 = vld [vmem:[%s327 + $0x230] sm:$0xff]
      %v435 = vld [vmem:[%s327 + $0x238] sm:$0xff]
      %v436 = vld [vmem:[%s327 + $0x240] sm:$0xf]
      %v437 = vld [vmem:[%s327 + $0x244] sm:$0xff]
      %v438 = vld [vmem:[%s327 + $0x24c] sm:$0xff]
      %v439 = vld [vmem:[%s327 + $0x254] sm:$0xf]
      %v440 = vld [vmem:[%s327 + $0x258] sm:$0xff]
      %v441 = vld [vmem:[%s327 + $0x260] sm:$0xff]
      %v442 = vld [vmem:[%s327 + $0x268] sm:$0xf]
      %v443 = vld [vmem:[%s327 + $0x26c] sm:$0xff]
      %v444 = vld [vmem:[%s327 + $0x274] sm:$0xff]
      %v445 = vld [vmem:[%s327 + $0x27c] sm:$0xf]
      %v446 = vld [vmem:[%s327 + $0x280] sm:$0xff]
      %v447 = vld [vmem:[%s327 + $0x288] sm:$0xff]
      %v448 = vld [vmem:[%s327 + $0x290] sm:$0xf]
      %v449 = vld [vmem:[%s327 + $0x294] sm:$0xff]
      %v450 = vld [vmem:[%s327 + $0x29c] sm:$0xff]
      %v451 = vld [vmem:[%s327 + $0x2a4] sm:$0xf]
      %v452 = vld [vmem:[%s327 + $0x2a8] sm:$0xff]
      %v453 = vld [vmem:[%s327 + $0x2b0] sm:$0xff]
      %v454 = vld [vmem:[%s327 + $0x2b8] sm:$0xf]
      %v455 = vld [vmem:[%s327 + $0x2bc] sm:$0xff]
      %v456 = vld [vmem:[%s327 + $0x2c4] sm:$0xff]
      %v457 = vld [vmem:[%s327 + $0x2cc] sm:$0xf]
      %v458 = vld [vmem:[%s2] sm:$0xff]
      %v459 = vld [vmem:[%s2 + $0x8] sm:$0xff]
      %v460 = vld [vmem:[%s2 + $0x10] sm:$0xff]
      %v461 = vld [vmem:[%s2 + $0x18] sm:$0xff]
      %v462 = vld [vmem:[%s2 + $0x20] sm:$0xff]
      %v463 = vld [vmem:[%s2 + $0x28] sm:$0xff]
      %v464 = vld [vmem:[%s2 + $0x30] sm:$0xff]
      %v465 = vld [vmem:[%s2 + $0x38] sm:$0xff]
      %467 = vset.pattern.permute.xlu0 0
      %468 = vperm.xlu0 %467, %v458
      %v469 = vpop.permute.xlu0 %468
      %472 = vset.pattern.permute.xlu0 0
      %473 = vperm.xlu0 %472, %v459
      %v474 = vpop.permute.xlu0 %473
      %477 = vset.pattern.permute.xlu0 0
      %478 = vperm.xlu0 %477, %v460
      %v479 = vpop.permute.xlu0 %478
      %482 = vset.pattern.permute.xlu0 0
      %483 = vperm.xlu0 %482, %v461
      %v484 = vpop.permute.xlu0 %483
      %487 = vset.pattern.permute.xlu0 0
      %488 = vperm.xlu0 %487, %v462
      %v489 = vpop.permute.xlu0 %488
      %492 = vset.pattern.permute.xlu0 0
      %493 = vperm.xlu0 %492, %v463
      %v494 = vpop.permute.xlu0 %493
      %497 = vset.pattern.permute.xlu0 0
      %498 = vperm.xlu0 %497, %v464
      %v499 = vpop.permute.xlu0 %498
      %502 = vset.pattern.permute.xlu0 0
      %503 = vperm.xlu0 %502, %v465
      %v504 = vpop.permute.xlu0 %503
      %v522 = vunpack.c.l.b16 %v334
      %v523 = vunpack.c.h.b16 %v334
      %v524 = vunpack.c.l.b16 %v335
      %v525 = vunpack.c.l.b16 %v336
      %v526 = vunpack.c.h.b16 %v336
      %v527 = vunpack.c.l.b16 %v337
      %v528 = vunpack.c.l.b16 %v338
      %v529 = vunpack.c.h.b16 %v338
      %v530 = vunpack.c.l.b16 %v339
      %v531 = vunpack.c.l.b16 %v340
      %v532 = vunpack.c.h.b16 %v340
      %v533 = vunpack.c.l.b16 %v341
      %v534 = vunpack.c.l.b16 %v342
      %v535 = vunpack.c.h.b16 %v342
      %v536 = vunpack.c.l.b16 %v343
      %v537 = vunpack.c.l.b16 %v344
      %v538 = vunpack.c.h.b16 %v344
      %v539 = vunpack.c.l.b16 %v345
      %v540 = vunpack.c.l.b16 %v346
      %v541 = vunpack.c.h.b16 %v346
      %v542 = vunpack.c.l.b16 %v347
      %v543 = vunpack.c.l.b16 %v348
      %v544 = vunpack.c.h.b16 %v348
      %v545 = vunpack.c.l.b16 %v349
      %v546 = vpack.c.b16 %v525, %v522
      %v547 = vpack.c.b16 %v526, %v523
      %v548 = vpack.c.b16 %v527, %v524
      %v549 = vpack.c.b16 %v531, %v528
      %v550 = vpack.c.b16 %v532, %v529
      %v551 = vpack.c.b16 %v533, %v530
      %v552 = vpack.c.b16 %v537, %v534
      %v553 = vpack.c.b16 %v538, %v535
      %v554 = vpack.c.b16 %v539, %v536
      %v555 = vpack.c.b16 %v543, %v540
      %v556 = vpack.c.b16 %v544, %v541
      %v557 = vpack.c.b16 %v545, %v542
      %v674 = vunpack.c.l.b16 %v350
      %v675 = vunpack.c.h.b16 %v350
      %v676 = vunpack.c.l.b16 %v351
      %v677 = vunpack.c.h.b16 %v351
      %v678 = vunpack.c.l.b16 %v352
      %v679 = vunpack.c.l.b16 %v353
      %v680 = vunpack.c.h.b16 %v353
      %v681 = vunpack.c.l.b16 %v354
      %v682 = vunpack.c.h.b16 %v354
      %v683 = vunpack.c.l.b16 %v355
      %v684 = vunpack.c.l.b16 %v356
      %v685 = vunpack.c.h.b16 %v356
      %v686 = vunpack.c.l.b16 %v357
      %v687 = vunpack.c.h.b16 %v357
      %v688 = vunpack.c.l.b16 %v358
      %v689 = vunpack.c.l.b16 %v359
      %v690 = vunpack.c.h.b16 %v359
      %v691 = vunpack.c.l.b16 %v360
      %v692 = vunpack.c.h.b16 %v360
      %v693 = vunpack.c.l.b16 %v361
      %v694 = vunpack.c.l.b16 %v362
      %v695 = vunpack.c.h.b16 %v362
      %v696 = vunpack.c.l.b16 %v363
      %v697 = vunpack.c.h.b16 %v363
      %v698 = vunpack.c.l.b16 %v364
      %v699 = vunpack.c.l.b16 %v365
      %v700 = vunpack.c.h.b16 %v365
      %v701 = vunpack.c.l.b16 %v366
      %v702 = vunpack.c.h.b16 %v366
      %v703 = vunpack.c.l.b16 %v367
      %v704 = vunpack.c.l.b16 %v368
      %v705 = vunpack.c.h.b16 %v368
      %v706 = vunpack.c.l.b16 %v369
      %v707 = vunpack.c.h.b16 %v369
      %v708 = vunpack.c.l.b16 %v370
      %v709 = vunpack.c.l.b16 %v371
      %v710 = vunpack.c.h.b16 %v371
      %v711 = vunpack.c.l.b16 %v372
      %v712 = vunpack.c.h.b16 %v372
      %v713 = vunpack.c.l.b16 %v373
      %v714 = vunpack.c.l.b16 %v374
      %v715 = vunpack.c.h.b16 %v374
      %v716 = vunpack.c.l.b16 %v375
      %v717 = vunpack.c.h.b16 %v375
      %v718 = vunpack.c.l.b16 %v376
      %v719 = vunpack.c.l.b16 %v377
      %v720 = vunpack.c.h.b16 %v377
      %v721 = vunpack.c.l.b16 %v378
      %v722 = vunpack.c.h.b16 %v378
      %v723 = vunpack.c.l.b16 %v379
      %v724 = vunpack.c.l.b16 %v380
      %v725 = vunpack.c.h.b16 %v380
      %v726 = vunpack.c.l.b16 %v381
      %v727 = vunpack.c.h.b16 %v381
      %v728 = vunpack.c.l.b16 %v382
      %v729 = vunpack.c.l.b16 %v383
      %v730 = vunpack.c.h.b16 %v383
      %v731 = vunpack.c.l.b16 %v384
      %v732 = vunpack.c.h.b16 %v384
      %v733 = vunpack.c.l.b16 %v385
      %v734 = vunpack.c.l.b16 %v386
      %v735 = vunpack.c.h.b16 %v386
      %v736 = vunpack.c.l.b16 %v387
      %v737 = vunpack.c.h.b16 %v387
      %v738 = vunpack.c.l.b16 %v388
      %v739 = vunpack.c.l.b16 %v389
      %v740 = vunpack.c.h.b16 %v389
      %v741 = vunpack.c.l.b16 %v390
      %v742 = vunpack.c.h.b16 %v390
      %v743 = vunpack.c.l.b16 %v391
      %v744 = vunpack.c.l.b16 %v392
      %v745 = vunpack.c.h.b16 %v392
      %v746 = vunpack.c.l.b16 %v393
      %v747 = vunpack.c.h.b16 %v393
      %v748 = vunpack.c.l.b16 %v394
      %v749 = vunpack.c.l.b16 %v395
      %v750 = vunpack.c.h.b16 %v395
      %v751 = vunpack.c.l.b16 %v396
      %v752 = vunpack.c.h.b16 %v396
      %v753 = vunpack.c.l.b16 %v397
      %v754 = vunpack.c.l.b16 %v398
      %v755 = vunpack.c.h.b16 %v398
      %v756 = vunpack.c.l.b16 %v399
      %v757 = vunpack.c.h.b16 %v399
      %v758 = vunpack.c.l.b16 %v400
      %v759 = vunpack.c.l.b16 %v401
      %v760 = vunpack.c.h.b16 %v401
      %v761 = vunpack.c.l.b16 %v402
      %v762 = vunpack.c.h.b16 %v402
      %v763 = vunpack.c.l.b16 %v403
      %v764 = vunpack.c.l.b16 %v404
      %v765 = vunpack.c.h.b16 %v404
      %v766 = vunpack.c.l.b16 %v405
      %v767 = vunpack.c.h.b16 %v405
      %v768 = vunpack.c.l.b16 %v406
      %v769 = vunpack.c.l.b16 %v407
      %v770 = vunpack.c.h.b16 %v407
      %v771 = vunpack.c.l.b16 %v408
      %v772 = vunpack.c.h.b16 %v408
      %v773 = vunpack.c.l.b16 %v409
      %v774 = vunpack.c.l.b16 %v410
      %v775 = vunpack.c.h.b16 %v410
      %v776 = vunpack.c.l.b16 %v411
      %v777 = vunpack.c.h.b16 %v411
      %v778 = vunpack.c.l.b16 %v412
      %v779 = vunpack.c.l.b16 %v413
      %v780 = vunpack.c.h.b16 %v413
      %v781 = vunpack.c.l.b16 %v414
      %v782 = vunpack.c.h.b16 %v414
      %v783 = vunpack.c.l.b16 %v415
      %v784 = vunpack.c.l.b16 %v416
      %v785 = vunpack.c.h.b16 %v416
      %v786 = vunpack.c.l.b16 %v417
      %v787 = vunpack.c.h.b16 %v417
      %v788 = vunpack.c.l.b16 %v418
      %v789 = vunpack.c.l.b16 %v419
      %v790 = vunpack.c.h.b16 %v419
      %v791 = vunpack.c.l.b16 %v420
      %v792 = vunpack.c.h.b16 %v420
      %v793 = vunpack.c.l.b16 %v421
      %v794 = vunpack.c.l.b16 %v422
      %v795 = vunpack.c.h.b16 %v422
      %v796 = vunpack.c.l.b16 %v423
      %v797 = vunpack.c.h.b16 %v423
      %v798 = vunpack.c.l.b16 %v424
      %v799 = vunpack.c.l.b16 %v425
      %v800 = vunpack.c.h.b16 %v425
      %v801 = vunpack.c.l.b16 %v426
      %v802 = vunpack.c.h.b16 %v426
      %v803 = vunpack.c.l.b16 %v427
      %v804 = vunpack.c.l.b16 %v428
      %v805 = vunpack.c.h.b16 %v428
      %v806 = vunpack.c.l.b16 %v429
      %v807 = vunpack.c.h.b16 %v429
      %v808 = vunpack.c.l.b16 %v430
      %v809 = vunpack.c.l.b16 %v431
      %v810 = vunpack.c.h.b16 %v431
      %v811 = vunpack.c.l.b16 %v432
      %v812 = vunpack.c.h.b16 %v432
      %v813 = vunpack.c.l.b16 %v433
      %v814 = vunpack.c.l.b16 %v434
      %v815 = vunpack.c.h.b16 %v434
      %v816 = vunpack.c.l.b16 %v435
      %v817 = vunpack.c.h.b16 %v435
      %v818 = vunpack.c.l.b16 %v436
      %v819 = vunpack.c.l.b16 %v437
      %v820 = vunpack.c.h.b16 %v437
      %v821 = vunpack.c.l.b16 %v438
      %v822 = vunpack.c.h.b16 %v438
      %v823 = vunpack.c.l.b16 %v439
      %v824 = vunpack.c.l.b16 %v440
      %v825 = vunpack.c.h.b16 %v440
      %v826 = vunpack.c.l.b16 %v441
      %v827 = vunpack.c.h.b16 %v441
      %v828 = vunpack.c.l.b16 %v442
      %v829 = vunpack.c.l.b16 %v443
      %v830 = vunpack.c.h.b16 %v443
      %v831 = vunpack.c.l.b16 %v444
      %v832 = vunpack.c.h.b16 %v444
      %v833 = vunpack.c.l.b16 %v445
      %v834 = vunpack.c.l.b16 %v446
      %v835 = vunpack.c.h.b16 %v446
      %v836 = vunpack.c.l.b16 %v447
      %v837 = vunpack.c.h.b16 %v447
      %v838 = vunpack.c.l.b16 %v448
      %v839 = vunpack.c.l.b16 %v449
      %v840 = vunpack.c.h.b16 %v449
      %v841 = vunpack.c.l.b16 %v450
      %v842 = vunpack.c.h.b16 %v450
      %v843 = vunpack.c.l.b16 %v451
      %v844 = vunpack.c.l.b16 %v452
      %v845 = vunpack.c.h.b16 %v452
      %v846 = vunpack.c.l.b16 %v453
      %v847 = vunpack.c.h.b16 %v453
      %v848 = vunpack.c.l.b16 %v454
      %v849 = vunpack.c.l.b16 %v455
      %v850 = vunpack.c.h.b16 %v455
      %v851 = vunpack.c.l.b16 %v456
      %v852 = vunpack.c.h.b16 %v456
      %v853 = vunpack.c.l.b16 %v457
      %v854 = vpack.c.b16 %v679, %v674
      %v855 = vpack.c.b16 %v680, %v675
      %v856 = vpack.c.b16 %v681, %v676
      %v857 = vpack.c.b16 %v682, %v677
      %v858 = vpack.c.b16 %v683, %v678
      %v859 = vpack.c.b16 %v689, %v684
      %v860 = vpack.c.b16 %v690, %v685
      %v861 = vpack.c.b16 %v691, %v686
      %v862 = vpack.c.b16 %v692, %v687
      %v863 = vpack.c.b16 %v693, %v688
      %v864 = vpack.c.b16 %v699, %v694
      %v865 = vpack.c.b16 %v700, %v695
      %v866 = vpack.c.b16 %v701, %v696
      %v867 = vpack.c.b16 %v702, %v697
      %v868 = vpack.c.b16 %v703, %v698
      %v869 = vpack.c.b16 %v709, %v704
      %v870 = vpack.c.b16 %v710, %v705
      %v871 = vpack.c.b16 %v711, %v706
      %v872 = vpack.c.b16 %v712, %v707
      %v873 = vpack.c.b16 %v713, %v708
      %v874 = vpack.c.b16 %v719, %v714
      %v875 = vpack.c.b16 %v720, %v715
      %v876 = vpack.c.b16 %v721, %v716
      %v877 = vpack.c.b16 %v722, %v717
      %v878 = vpack.c.b16 %v723, %v718
      %v879 = vpack.c.b16 %v729, %v724
      %v880 = vpack.c.b16 %v730, %v725
      %v881 = vpack.c.b16 %v731, %v726
      %v882 = vpack.c.b16 %v732, %v727
      %v883 = vpack.c.b16 %v733, %v728
      %v884 = vpack.c.b16 %v739, %v734
      %v885 = vpack.c.b16 %v740, %v735
      %v886 = vpack.c.b16 %v741, %v736
      %v887 = vpack.c.b16 %v742, %v737
      %v888 = vpack.c.b16 %v743, %v738
      %v889 = vpack.c.b16 %v749, %v744
      %v890 = vpack.c.b16 %v750, %v745
      %v891 = vpack.c.b16 %v751, %v746
      %v892 = vpack.c.b16 %v752, %v747
      %v893 = vpack.c.b16 %v753, %v748
      %v894 = vpack.c.b16 %v759, %v754
      %v895 = vpack.c.b16 %v760, %v755
      %v896 = vpack.c.b16 %v761, %v756
      %v897 = vpack.c.b16 %v762, %v757
      %v898 = vpack.c.b16 %v763, %v758
      %v899 = vpack.c.b16 %v769, %v764
      %v900 = vpack.c.b16 %v770, %v765
      %v901 = vpack.c.b16 %v771, %v766
      %v902 = vpack.c.b16 %v772, %v767
      %v903 = vpack.c.b16 %v773, %v768
      %v904 = vpack.c.b16 %v779, %v774
      %v905 = vpack.c.b16 %v780, %v775
      %v906 = vpack.c.b16 %v781, %v776
      %v907 = vpack.c.b16 %v782, %v777
      %v908 = vpack.c.b16 %v783, %v778
      %v909 = vpack.c.b16 %v789, %v784
      %v910 = vpack.c.b16 %v790, %v785
      %v911 = vpack.c.b16 %v791, %v786
      %v912 = vpack.c.b16 %v792, %v787
      %v913 = vpack.c.b16 %v793, %v788
      %v914 = vpack.c.b16 %v799, %v794
      %v915 = vpack.c.b16 %v800, %v795
      %v916 = vpack.c.b16 %v801, %v796
      %v917 = vpack.c.b16 %v802, %v797
      %v918 = vpack.c.b16 %v803, %v798
      %v919 = vpack.c.b16 %v809, %v804
      %v920 = vpack.c.b16 %v810, %v805
      %v921 = vpack.c.b16 %v811, %v806
      %v922 = vpack.c.b16 %v812, %v807
      %v923 = vpack.c.b16 %v813, %v808
      %v924 = vpack.c.b16 %v819, %v814
      %v925 = vpack.c.b16 %v820, %v815
      %v926 = vpack.c.b16 %v821, %v816
      %v927 = vpack.c.b16 %v822, %v817
      %v928 = vpack.c.b16 %v823, %v818
      %v929 = vpack.c.b16 %v829, %v824
      %v930 = vpack.c.b16 %v830, %v825
      %v931 = vpack.c.b16 %v831, %v826
      %v932 = vpack.c.b16 %v832, %v827
      %v933 = vpack.c.b16 %v833, %v828
      %v934 = vpack.c.b16 %v839, %v834
      %v935 = vpack.c.b16 %v840, %v835
      %v936 = vpack.c.b16 %v841, %v836
      %v937 = vpack.c.b16 %v842, %v837
      %v938 = vpack.c.b16 %v843, %v838
      %v939 = vpack.c.b16 %v849, %v844
      %v940 = vpack.c.b16 %v850, %v845
      %v941 = vpack.c.b16 %v851, %v846
      %v942 = vpack.c.b16 %v852, %v847
      %v943 = vpack.c.b16 %v853, %v848
      %vm1034 = vcmask 261120
      %v1036 = vsel %vm1034, %v548, 0
      %v1039 = vsel %vm1034, %v551, 0
      %v1042 = vsel %vm1034, %v554, 0
      %v1045 = vsel %vm1034, %v557, 0
      %1047 = vmatprep.subr.bf16.mxu0 %v855
      %1048 = vmatpush1.bf16.msra.mxu0 %v854
      %1049 = vmatprep.subr.bf16.mxu0 %v860
      %1050 = vmatpush1.bf16.msra.mxu0 %v859
      %1051 = vmatprep.subr.bf16.mxu0 %v865
      %1052 = vmatpush1.bf16.msra.mxu0 %v864
      %1053 = vmatprep.subr.bf16.mxu0 %v870
      %1054 = vmatpush1.bf16.msra.mxu0 %v869
      %1055 = vmatprep.subr.bf16.mxu0 %v875
      %1056 = vmatpush1.bf16.msra.mxu0 %v874
      %1057 = vmatprep.subr.bf16.mxu0 %v880
      %1058 = vmatpush1.bf16.msra.mxu0 %v879
      %1059 = vmatprep.subr.bf16.mxu0 %v885
      %1060 = vmatpush1.bf16.msra.mxu0 %v884
      %1061 = vmatprep.subr.bf16.mxu0 %v890
      %1062 = vmatpush1.bf16.msra.mxu0 %v889
      %1063 = vmatprep.subr.bf16.mxu0 %v895
      %1064 = vmatpush1.bf16.msra.mxu0 %v894
      %1065 = vmatprep.subr.bf16.mxu0 %v900
      %1066 = vmatpush1.bf16.msra.mxu0 %v899
      %1067 = vmatprep.subr.bf16.mxu0 %v905
      %1068 = vmatpush1.bf16.msra.mxu0 %v904
      %1069 = vmatprep.subr.bf16.mxu0 %v910
      %1070 = vmatpush1.bf16.msra.mxu0 %v909
      %1071 = vmatprep.subr.bf16.mxu0 %v915
      %1072 = vmatpush1.bf16.msra.mxu0 %v914
      %1073 = vmatprep.subr.bf16.mxu0 %v920
      %1074 = vmatpush1.bf16.msra.mxu0 %v919
      %1075 = vmatprep.subr.bf16.mxu0 %v925
      %1076 = vmatpush1.bf16.msra.mxu0 %v924
      %1077 = vmatprep.subr.bf16.mxu0 %v930
      %1078 = vmatpush1.bf16.msra.mxu0 %v929
      %1079 = vmatprep.mubr.bf16.mxu0 %v547
      %1080 = vmatmul.mubr.bf16.gmra.mrb[0].mxu0 %v546
      %v1081 = vpop.f32.mrb[0].mxu0
      %v1082 = vadd.f32 %v469, %v1081
      %v1083 = vpop.f32.mrb[0].mxu0
      %v1084 = vadd.f32 %v469, %v1083
      %v1085 = vpop.f32.mrb[0].mxu0
      %v1086 = vadd.f32 %v474, %v1085
      %v1087 = vpop.f32.mrb[0].mxu0
      %v1088 = vadd.f32 %v474, %v1087
      %1089 = vmatprep.mubr.bf16.mxu0 %v550
      %1090 = vmatmul.mubr.bf16.gmra.mrb[0].mxu0 %v549
      %v1091 = vpop.f32.mrb[0].mxu0
      %v1092 = vadd.f32 %v479, %v1091
      %v1093 = vpop.f32.mrb[0].mxu0
      %v1094 = vadd.f32 %v479, %v1093
      %v1095 = vpop.f32.mrb[0].mxu0
      %v1096 = vadd.f32 %v484, %v1095
      %v1097 = vpop.f32.mrb[0].mxu0
      %v1098 = vadd.f32 %v484, %v1097
      %1099 = vmatprep.mubr.bf16.mxu0 %v553
      %1100 = vmatmul.mubr.bf16.gmra.mrb[0].mxu0 %v552
      %v1101 = vpop.f32.mrb[0].mxu0
      %v1102 = vadd.f32 %v489, %v1101
      %v1103 = vpop.f32.mrb[0].mxu0
      %v1104 = vadd.f32 %v489, %v1103
      %v1105 = vpop.f32.mrb[0].mxu0
      %v1106 = vadd.f32 %v494, %v1105
      %v1107 = vpop.f32.mrb[0].mxu0
      %v1108 = vadd.f32 %v494, %v1107
      %1109 = vmatprep.mubr.bf16.mxu0 %v556
      %1110 = vmatmul.mubr.bf16.gmra.mrb[0].mxu0 %v555
      %v1111 = vpop.f32.mrb[0].mxu0
      %v1112 = vadd.f32 %v499, %v1111
      %v1113 = vpop.f32.mrb[0].mxu0
      %v1114 = vadd.f32 %v499, %v1113
      %v1115 = vpop.f32.mrb[0].mxu0
      %v1116 = vadd.f32 %v504, %v1115
      %v1117 = vpop.f32.mrb[0].mxu0
      %v1118 = vadd.f32 %v504, %v1117
      %1119 = vdwg.mxu0
      %1120 = vmatprep.subr.bf16.mxu0 %v935
      %1121 = vmatpush1.bf16.msra.mxu0 %v934
      %1122 = vmatprep.subr.bf16.mxu0 %v940
      %1123 = vmatpush1.bf16.msra.mxu0 %v939
      %1124 = vmatprep.subr.bf16.mxu0 0
      %1125 = vmatpush1.bf16.msra.mxu0 0
      %1126 = vmatprep.subr.bf16.mxu0 0
      %1127 = vmatpush1.bf16.msra.mxu0 0
      %1128 = vmatprep.subr.bf16.mxu0 0
      %1129 = vmatpush1.bf16.msra.mxu0 0
      %1130 = vmatprep.subr.bf16.mxu0 0
      %1131 = vmatpush1.bf16.msra.mxu0 0
      %1132 = vmatprep.subr.bf16.mxu0 0
      %1133 = vmatpush1.bf16.msra.mxu0 0
      %1134 = vmatprep.subr.bf16.mxu0 0
      %1135 = vmatpush1.bf16.msra.mxu0 0
      %1136 = vmatprep.subr.bf16.mxu0 0
      %1137 = vmatpush1.bf16.msra.mxu0 0
      %1138 = vmatprep.subr.bf16.mxu0 0
      %1139 = vmatpush1.bf16.msra.mxu0 0
      %1140 = vmatprep.subr.bf16.mxu0 0
      %1141 = vmatpush1.bf16.msra.mxu0 0
      %1142 = vmatprep.subr.bf16.mxu0 0
      %1143 = vmatpush1.bf16.msra.mxu0 0
      %1144 = vmatprep.subr.bf16.mxu0 0
      %1145 = vmatpush1.bf16.msra.mxu0 0
      %1146 = vmatprep.subr.bf16.mxu0 0
      %1147 = vmatpush1.bf16.msra.mxu0 0
      %1148 = vmatprep.subr.bf16.mxu0 0
      %1149 = vmatpush1.bf16.msra.mxu0 0
      %1150 = vmatprep.subr.bf16.mxu0 0
      %1151 = vmatpush1.bf16.msra.mxu0 0
      %1152 = vmatprep.mubr.bf16.mxu0 0
      %1153 = vmatmul.mubr.bf16.gmra.mrb[0].mxu0 %v1036
      %v1154 = vpop.f32.mrb[0].mxu0
      %v1155 = vadd.f32 %v1082, %v1154
      %v1156 = vpop.f32.mrb[0].mxu0
      %v1157 = vadd.f32 %v1084, %v1156
      %v1158 = vpop.f32.mrb[0].mxu0
      %v1159 = vadd.f32 %v1086, %v1158
      %v1160 = vpop.f32.mrb[0].mxu0
      %v1161 = vadd.f32 %v1088, %v1160
      %1162 = vmatprep.mubr.bf16.mxu0 0
      %1163 = vmatmul.mubr.bf16.gmra.mrb[0].mxu0 %v1039
      %v1164 = vpop.f32.mrb[0].mxu0
      %v1165 = vadd.f32 %v1092, %v1164
      %v1166 = vpop.f32.mrb[0].mxu0
      %v1167 = vadd.f32 %v1094, %v1166
      %v1168 = vpop.f32.mrb[0].mxu0
      %v1169 = vadd.f32 %v1096, %v1168
      %v1170 = vpop.f32.mrb[0].mxu0
      %v1171 = vadd.f32 %v1098, %v1170
      %1172 = vmatprep.mubr.bf16.mxu0 0
      %1173 = vmatmul.mubr.bf16.gmra.mrb[0].mxu0 %v1042
      %v1174 = vpop.f32.mrb[0].mxu0
      %v1175 = vadd.f32 %v1102, %v1174
      %v1176 = vpop.f32.mrb[0].mxu0
      %v1177 = vadd.f32 %v1104, %v1176
      %v1178 = vpop.f32.mrb[0].mxu0
      %v1179 = vadd.f32 %v1106, %v1178
      %v1180 = vpop.f32.mrb[0].mxu0
      %v1181 = vadd.f32 %v1108, %v1180
      %1182 = vmatprep.mubr.bf16.mxu0 0
      %1183 = vmatmul.mubr.bf16.gmra.mrb[0].mxu0 %v1045
      %v1184 = vpop.f32.mrb[0].mxu0
      %v1185 = vadd.f32 %v1112, %v1184
      %v1186 = vpop.f32.mrb[0].mxu0
      %v1187 = vadd.f32 %v1114, %v1186
      %v1188 = vpop.f32.mrb[0].mxu0
      %v1189 = vadd.f32 %v1116, %v1188
      %v1190 = vpop.f32.mrb[0].mxu0
      %v1191 = vadd.f32 %v1118, %v1190
      %1192 = vdwg.mxu0
      %1193 = vmatprep.subr.bf16.mxu0 %v857
      %1194 = vmatpush1.bf16.msra.mxu0 %v856
      %1195 = vmatprep.subr.bf16.mxu0 %v862
      %1196 = vmatpush1.bf16.msra.mxu0 %v861
      %1197 = vmatprep.subr.bf16.mxu0 %v867
      %1198 = vmatpush1.bf16.msra.mxu0 %v866
      %1199 = vmatprep.subr.bf16.mxu0 %v872
      %1200 = vmatpush1.bf16.msra.mxu0 %v871
      %1201 = vmatprep.subr.bf16.mxu0 %v877
      %1202 = vmatpush1.bf16.msra.mxu0 %v876
      %1203 = vmatprep.subr.bf16.mxu0 %v882
      %1204 = vmatpush1.bf16.msra.mxu0 %v881
      %1205 = vmatprep.subr.bf16.mxu0 %v887
      %1206 = vmatpush1.bf16.msra.mxu0 %v886
      %1207 = vmatprep.subr.bf16.mxu0 %v892
      %1208 = vmatpush1.bf16.msra.mxu0 %v891
      %1209 = vmatprep.subr.bf16.mxu0 %v897
      %1210 = vmatpush1.bf16.msra.mxu0 %v896
      %1211 = vmatprep.subr.bf16.mxu0 %v902
      %1212 = vmatpush1.bf16.msra.mxu0 %v901
      %1213 = vmatprep.subr.bf16.mxu0 %v907
      %1214 = vmatpush1.bf16.msra.mxu0 %v906
      %1215 = vmatprep.subr.bf16.mxu0 %v912
      %1216 = vmatpush1.bf16.msra.mxu0 %v911
      %1217 = vmatprep.subr.bf16.mxu0 %v917
      %1218 = vmatpush1.bf16.msra.mxu0 %v916
      %1219 = vmatprep.subr.bf16.mxu0 %v922
      %1220 = vmatpush1.bf16.msra.mxu0 %v921
      %1221 = vmatprep.subr.bf16.mxu0 %v927
      %1222 = vmatpush1.bf16.msra.mxu0 %v926
      %1223 = vmatprep.subr.bf16.mxu0 %v932
      %1224 = vmatpush1.bf16.msra.mxu0 %v931
      %1225 = vmatprep.mubr.bf16.mxu0 %v547
      %1226 = vmatmul.mubr.bf16.gmra.mrb[0].mxu0 %v546
      %v1227 = vpop.f32.mrb[0].mxu0
      %v1228 = vadd.f32 %v469, %v1227
      %v1229 = vpop.f32.mrb[0].mxu0
      %v1230 = vadd.f32 %v469, %v1229
      %v1231 = vpop.f32.mrb[0].mxu0
      %v1232 = vadd.f32 %v474, %v1231
      %v1233 = vpop.f32.mrb[0].mxu0
      %v1234 = vadd.f32 %v474, %v1233
      %1235 = vmatprep.mubr.bf16.mxu0 %v550
      %1236 = vmatmul.mubr.bf16.gmra.mrb[0].mxu0 %v549
      %v1237 = vpop.f32.mrb[0].mxu0
      %v1238 = vadd.f32 %v479, %v1237
      %v1239 = vpop.f32.mrb[0].mxu0
      %v1240 = vadd.f32 %v479, %v1239
      %v1241 = vpop.f32.mrb[0].mxu0
      %v1242 = vadd.f32 %v484, %v1241
      %v1243 = vpop.f32.mrb[0].mxu0
      %v1244 = vadd.f32 %v484, %v1243
      %1245 = vmatprep.mubr.bf16.mxu0 %v553
      %1246 = vmatmul.mubr.bf16.gmra.mrb[0].mxu0 %v552
      %v1247 = vpop.f32.mrb[0].mxu0
      %v1248 = vadd.f32 %v489, %v1247
      %v1249 = vpop.f32.mrb[0].mxu0
      %v1250 = vadd.f32 %v489, %v1249
      %v1251 = vpop.f32.mrb[0].mxu0
      %v1252 = vadd.f32 %v494, %v1251
      %v1253 = vpop.f32.mrb[0].mxu0
      %v1254 = vadd.f32 %v494, %v1253
      %1255 = vmatprep.mubr.bf16.mxu0 %v556
      %1256 = vmatmul.mubr.bf16.gmra.mrb[0].mxu0 %v555
      %v1257 = vpop.f32.mrb[0].mxu0
      %v1258 = vadd.f32 %v499, %v1257
      %v1259 = vpop.f32.mrb[0].mxu0
      %v1260 = vadd.f32 %v499, %v1259
      %v1261 = vpop.f32.mrb[0].mxu0
      %v1262 = vadd.f32 %v504, %v1261
      %v1263 = vpop.f32.mrb[0].mxu0
      %v1264 = vadd.f32 %v504, %v1263
      %1265 = vdwg.mxu0
      %1266 = vmatprep.subr.bf16.mxu0 %v937
      %1267 = vmatpush1.bf16.msra.mxu0 %v936
      %1268 = vmatprep.subr.bf16.mxu0 %v942
      %1269 = vmatpush1.bf16.msra.mxu0 %v941
      %1270 = vmatprep.subr.bf16.mxu0 0
      %1271 = vmatpush1.bf16.msra.mxu0 0
      %1272 = vmatprep.subr.bf16.mxu0 0
      %1273 = vmatpush1.bf16.msra.mxu0 0
      %1274 = vmatprep.subr.bf16.mxu0 0
      %1275 = vmatpush1.bf16.msra.mxu0 0
      %1276 = vmatprep.subr.bf16.mxu0 0
      %1277 = vmatpush1.bf16.msra.mxu0 0
      %1278 = vmatprep.subr.bf16.mxu0 0
      %1279 = vmatpush1.bf16.msra.mxu0 0
      %1280 = vmatprep.subr.bf16.mxu0 0
      %1281 = vmatpush1.bf16.msra.mxu0 0
      %1282 = vmatprep.subr.bf16.mxu0 0
      %1283 = vmatpush1.bf16.msra.mxu0 0
      %1284 = vmatprep.subr.bf16.mxu0 0
      %1285 = vmatpush1.bf16.msra.mxu0 0
      %1286 = vmatprep.subr.bf16.mxu0 0
      %1287 = vmatpush1.bf16.msra.mxu0 0
      %1288 = vmatprep.subr.bf16.mxu0 0
      %1289 = vmatpush1.bf16.msra.mxu0 0
      %1290 = vmatprep.subr.bf16.mxu0 0
      %1291 = vmatpush1.bf16.msra.mxu0 0
      %1292 = vmatprep.subr.bf16.mxu0 0
      %1293 = vmatpush1.bf16.msra.mxu0 0
      %1294 = vmatprep.subr.bf16.mxu0 0
      %1295 = vmatpush1.bf16.msra.mxu0 0
      %1296 = vmatprep.subr.bf16.mxu0 0
      %1297 = vmatpush1.bf16.msra.mxu0 0
      %1298 = vmatprep.mubr.bf16.mxu0 0
      %1299 = vmatmul.mubr.bf16.gmra.mrb[0].mxu0 %v1036
      %v1300 = vpop.f32.mrb[0].mxu0
      %v1301 = vadd.f32 %v1228, %v1300
      %v1302 = vpop.f32.mrb[0].mxu0
      %v1303 = vadd.f32 %v1230, %v1302
      %v1304 = vpop.f32.mrb[0].mxu0
      %v1305 = vadd.f32 %v1232, %v1304
      %v1306 = vpop.f32.mrb[0].mxu0
      %v1307 = vadd.f32 %v1234, %v1306
      %1308 = vmatprep.mubr.bf16.mxu0 0
      %1309 = vmatmul.mubr.bf16.gmra.mrb[0].mxu0 %v1039
      %v1310 = vpop.f32.mrb[0].mxu0
      %v1311 = vadd.f32 %v1238, %v1310
      %v1312 = vpop.f32.mrb[0].mxu0
      %v1313 = vadd.f32 %v1240, %v1312
      %v1314 = vpop.f32.mrb[0].mxu0
      %v1315 = vadd.f32 %v1242, %v1314
      %v1316 = vpop.f32.mrb[0].mxu0
      %v1317 = vadd.f32 %v1244, %v1316
      %1318 = vmatprep.mubr.bf16.mxu0 0
      %1319 = vmatmul.mubr.bf16.gmra.mrb[0].mxu0 %v1042
      %v1320 = vpop.f32.mrb[0].mxu0
      %v1321 = vadd.f32 %v1248, %v1320
      %v1322 = vpop.f32.mrb[0].mxu0
      %v1323 = vadd.f32 %v1250, %v1322
      %v1324 = vpop.f32.mrb[0].mxu0
      %v1325 = vadd.f32 %v1252, %v1324
      %v1326 = vpop.f32.mrb[0].mxu0
      %v1327 = vadd.f32 %v1254, %v1326
      %1328 = vmatprep.mubr.bf16.mxu0 0
      %1329 = vmatmul.mubr.bf16.gmra.mrb[0].mxu0 %v1045
      %v1330 = vpop.f32.mrb[0].mxu0
      %v1331 = vadd.f32 %v1258, %v1330
      %v1332 = vpop.f32.mrb[0].mxu0
      %v1333 = vadd.f32 %v1260, %v1332
      %v1334 = vpop.f32.mrb[0].mxu0
      %v1335 = vadd.f32 %v1262, %v1334
      %v1336 = vpop.f32.mrb[0].mxu0
      %v1337 = vadd.f32 %v1264, %v1336
      %1338 = vdwg.mxu0
      %1339 = vmatprep.subr.bf16.mxu0 0
      %1340 = vmatpush1.bf16.msra.mxu0 %v858
      %1341 = vmatprep.subr.bf16.mxu0 0
      %1342 = vmatpush1.bf16.msra.mxu0 %v863
      %1343 = vmatprep.subr.bf16.mxu0 0
      %1344 = vmatpush1.bf16.msra.mxu0 %v868
      %1345 = vmatprep.subr.bf16.mxu0 0
      %1346 = vmatpush1.bf16.msra.mxu0 %v873
      %1347 = vmatprep.subr.bf16.mxu0 0
      %1348 = vmatpush1.bf16.msra.mxu0 %v878
      %1349 = vmatprep.subr.bf16.mxu0 0
      %1350 = vmatpush1.bf16.msra.mxu0 %v883
      %1351 = vmatprep.subr.bf16.mxu0 0
      %1352 = vmatpush1.bf16.msra.mxu0 %v888
      %1353 = vmatprep.subr.bf16.mxu0 0
      %1354 = vmatpush1.bf16.msra.mxu0 %v893
      %1355 = vmatprep.subr.bf16.mxu0 0
      %1356 = vmatpush1.bf16.msra.mxu0 %v898
      %1357 = vmatprep.subr.bf16.mxu0 0
      %1358 = vmatpush1.bf16.msra.mxu0 %v903
      %1359 = vmatprep.subr.bf16.mxu0 0
      %1360 = vmatpush1.bf16.msra.mxu0 %v908
      %1361 = vmatprep.subr.bf16.mxu0 0
      %1362 = vmatpush1.bf16.msra.mxu0 %v913
      %1363 = vmatprep.subr.bf16.mxu0 0
      %1364 = vmatpush1.bf16.msra.mxu0 %v918
      %1365 = vmatprep.subr.bf16.mxu0 0
      %1366 = vmatpush1.bf16.msra.mxu0 %v923
      %1367 = vmatprep.subr.bf16.mxu0 0
      %1368 = vmatpush1.bf16.msra.mxu0 %v928
      %1369 = vmatprep.subr.bf16.mxu0 0
      %1370 = vmatpush1.bf16.msra.mxu0 %v933
      %1371 = vmatprep.mubr.bf16.mxu0 %v547
      %1372 = vmatmul.mubr.bf16.gmra.mrb[0].mxu0 %v546
      %v1373 = vpop.f32.mrb[0].mxu0
      %v1374 = vadd.f32 %v469, %v1373
      %v1375 = vpop.f32.mrb[0].mxu0
      %v1376 = vpop.f32.mrb[0].mxu0
      %v1377 = vadd.f32 %v474, %v1376
      %v1378 = vpop.f32.mrb[0].mxu0
      %1379 = vmatprep.mubr.bf16.mxu0 %v550
      %1380 = vmatmul.mubr.bf16.gmra.mrb[0].mxu0 %v549
      %v1381 = vpop.f32.mrb[0].mxu0
      %v1382 = vadd.f32 %v479, %v1381
      %v1383 = vpop.f32.mrb[0].mxu0
      %v1384 = vpop.f32.mrb[0].mxu0
      %v1385 = vadd.f32 %v484, %v1384
      %v1386 = vpop.f32.mrb[0].mxu0
      %1387 = vmatprep.mubr.bf16.mxu0 %v553
      %1388 = vmatmul.mubr.bf16.gmra.mrb[0].mxu0 %v552
      %v1389 = vpop.f32.mrb[0].mxu0
      %v1390 = vadd.f32 %v489, %v1389
      %v1391 = vpop.f32.mrb[0].mxu0
      %v1392 = vpop.f32.mrb[0].mxu0
      %v1393 = vadd.f32 %v494, %v1392
      %v1394 = vpop.f32.mrb[0].mxu0
      %1395 = vmatprep.mubr.bf16.mxu0 %v556
      %1396 = vmatmul.mubr.bf16.gmra.mrb[0].mxu0 %v555
      %v1397 = vpop.f32.mrb[0].mxu0
      %v1398 = vadd.f32 %v499, %v1397
      %v1399 = vpop.f32.mrb[0].mxu0
      %v1400 = vpop.f32.mrb[0].mxu0
      %v1401 = vadd.f32 %v504, %v1400
      %v1402 = vpop.f32.mrb[0].mxu0
      %1403 = vdwg.mxu0
      %1404 = vmatprep.subr.bf16.mxu0 0
      %1405 = vmatpush1.bf16.msra.mxu0 %v938
      %1406 = vmatprep.subr.bf16.mxu0 0
      %1407 = vmatpush1.bf16.msra.mxu0 %v943
      %1408 = vmatprep.subr.bf16.mxu0 0
      %1409 = vmatpush1.bf16.msra.mxu0 0
      %1410 = vmatprep.subr.bf16.mxu0 0
      %1411 = vmatpush1.bf16.msra.mxu0 0
      %1412 = vmatprep.subr.bf16.mxu0 0
      %1413 = vmatpush1.bf16.msra.mxu0 0
      %1414 = vmatprep.subr.bf16.mxu0 0
      %1415 = vmatpush1.bf16.msra.mxu0 0
      %1416 = vmatprep.subr.bf16.mxu0 0
      %1417 = vmatpush1.bf16.msra.mxu0 0
      %1418 = vmatprep.subr.bf16.mxu0 0
      %1419 = vmatpush1.bf16.msra.mxu0 0
      %1420 = vmatprep.subr.bf16.mxu0 0
      %1421 = vmatpush1.bf16.msra.mxu0 0
      %1422 = vmatprep.subr.bf16.mxu0 0
      %1423 = vmatpush1.bf16.msra.mxu0 0
      %1424 = vmatprep.subr.bf16.mxu0 0
      %1425 = vmatpush1.bf16.msra.mxu0 0
      %1426 = vmatprep.subr.bf16.mxu0 0
      %1427 = vmatpush1.bf16.msra.mxu0 0
      %1428 = vmatprep.subr.bf16.mxu0 0
      %1429 = vmatpush1.bf16.msra.mxu0 0
      %1430 = vmatprep.subr.bf16.mxu0 0
      %1431 = vmatpush1.bf16.msra.mxu0 0
      %1432 = vmatprep.subr.bf16.mxu0 0
      %1433 = vmatpush1.bf16.msra.mxu0 0
      %1434 = vmatprep.subr.bf16.mxu0 0
      %1435 = vmatpush1.bf16.msra.mxu0 0
      %1436 = vmatprep.mubr.bf16.mxu0 0
      %1437 = vmatmul.mubr.bf16.gmra.mrb[0].mxu0 %v1036
      %v1438 = vpop.f32.mrb[0].mxu0
      %v1439 = vadd.f32 %v1374, %v1438
      %v1440 = vpop.f32.mrb[0].mxu0
      %v1441 = vpop.f32.mrb[0].mxu0
      %v1442 = vadd.f32 %v1377, %v1441
      %v1443 = vpop.f32.mrb[0].mxu0
      %1444 = vmatprep.mubr.bf16.mxu0 0
      %1445 = vmatmul.mubr.bf16.gmra.mrb[0].mxu0 %v1039
      %v1446 = vpop.f32.mrb[0].mxu0
      %v1447 = vadd.f32 %v1382, %v1446
      %v1448 = vpop.f32.mrb[0].mxu0
      %v1449 = vpop.f32.mrb[0].mxu0
      %v1450 = vadd.f32 %v1385, %v1449
      %v1451 = vpop.f32.mrb[0].mxu0
      %1452 = vmatprep.mubr.bf16.mxu0 0
      %1453 = vmatmul.mubr.bf16.gmra.mrb[0].mxu0 %v1042
      %v1454 = vpop.f32.mrb[0].mxu0
      %v1455 = vadd.f32 %v1390, %v1454
      %v1456 = vpop.f32.mrb[0].mxu0
      %v1457 = vpop.f32.mrb[0].mxu0
      %v1458 = vadd.f32 %v1393, %v1457
      %v1459 = vpop.f32.mrb[0].mxu0
      %1460 = vmatprep.mubr.bf16.mxu0 0
      %1461 = vmatmul.mubr.bf16.gmra.mrb[0].mxu0 %v1045
      %v1462 = vpop.f32.mrb[0].mxu0
      %v1463 = vadd.f32 %v1398, %v1462
      %v1464 = vpop.f32.mrb[0].mxu0
      %v1465 = vpop.f32.mrb[0].mxu0
      %v1466 = vadd.f32 %v1401, %v1465
      %v1467 = vpop.f32.mrb[0].mxu0
      %1468 = vdwg.mxu0
      %v1469 = vmax.f32 %v1155, 0.0
      %v1470 = vmax.f32 %v1157, 0.0
      %v1471 = vmax.f32 %v1301, 0.0
      %v1472 = vmax.f32 %v1303, 0.0
      %v1473 = vmax.f32 %v1439, 0.0
      %v1474 = vmax.f32 %v1159, 0.0
      %v1475 = vmax.f32 %v1161, 0.0
      %v1476 = vmax.f32 %v1305, 0.0
      %v1477 = vmax.f32 %v1307, 0.0
      %v1478 = vmax.f32 %v1442, 0.0
      %v1479 = vmax.f32 %v1165, 0.0
      %v1480 = vmax.f32 %v1167, 0.0
      %v1481 = vmax.f32 %v1311, 0.0
      %v1482 = vmax.f32 %v1313, 0.0
      %v1483 = vmax.f32 %v1447, 0.0
      %v1484 = vmax.f32 %v1169, 0.0
      %v1485 = vmax.f32 %v1171, 0.0
      %v1486 = vmax.f32 %v1315, 0.0
      %v1487 = vmax.f32 %v1317, 0.0
      %v1488 = vmax.f32 %v1450, 0.0
      %v1489 = vmax.f32 %v1175, 0.0
      %v1490 = vmax.f32 %v1177, 0.0
      %v1491 = vmax.f32 %v1321, 0.0
      %v1492 = vmax.f32 %v1323, 0.0
      %v1493 = vmax.f32 %v1455, 0.0
      %v1494 = vmax.f32 %v1179, 0.0
      %v1495 = vmax.f32 %v1181, 0.0
      %v1496 = vmax.f32 %v1325, 0.0
      %v1497 = vmax.f32 %v1327, 0.0
      %v1498 = vmax.f32 %v1458, 0.0
      %v1499 = vmax.f32 %v1185, 0.0
      %v1500 = vmax.f32 %v1187, 0.0
      %v1501 = vmax.f32 %v1331, 0.0
      %v1502 = vmax.f32 %v1333, 0.0
      %v1503 = vmax.f32 %v1463, 0.0
      %v1504 = vmax.f32 %v1189, 0.0
      %v1505 = vmax.f32 %v1191, 0.0
      %v1506 = vmax.f32 %v1335, 0.0
      %v1507 = vmax.f32 %v1337, 0.0
      %v1508 = vmax.f32 %v1466, 0.0
      %v1509 = vpack.c.bf16 %v1474, %v1469
      %v1510 = vpack.c.bf16 %v1475, %v1470
      %v1511 = vpack.c.bf16 %v1476, %v1471
      %v1512 = vpack.c.bf16 %v1477, %v1472
      %v1513 = vpack.c.bf16 %v1478, %v1473
      %v1514 = vpack.c.bf16 %v1484, %v1479
      %v1515 = vpack.c.bf16 %v1485, %v1480
      %v1516 = vpack.c.bf16 %v1486, %v1481
      %v1517 = vpack.c.bf16 %v1487, %v1482
      %v1518 = vpack.c.bf16 %v1488, %v1483
      %v1519 = vpack.c.bf16 %v1494, %v1489
      %v1520 = vpack.c.bf16 %v1495, %v1490
      %v1521 = vpack.c.bf16 %v1496, %v1491
      %v1522 = vpack.c.bf16 %v1497, %v1492
      %v1523 = vpack.c.bf16 %v1498, %v1493
      %v1524 = vpack.c.bf16 %v1504, %v1499
      %v1525 = vpack.c.bf16 %v1505, %v1500
      %v1526 = vpack.c.bf16 %v1506, %v1501
      %v1527 = vpack.c.bf16 %v1507, %v1502
      %v1528 = vpack.c.bf16 %v1508, %v1503
      %v1529 = vld [vmem:[%s3] sm:$0xf]
      %v1530 = vld [vmem:[%s3 + $0x4] sm:$0xf]
      %v1531 = vld [vmem:[%s3 + $0x8] sm:$0xf]
      %v1532 = vld [vmem:[%s3 + $0xc] sm:$0xf]
      %v1533 = vld [vmem:[%s3 + $0x10] sm:$0xf]
      %v1534 = vld [vmem:[%s3 + $0x14] sm:$0xf]
      %v1535 = vld [vmem:[%s3 + $0x18] sm:$0xf]
      %v1536 = vld [vmem:[%s3 + $0x1c] sm:$0xf]
      %v1537 = vld [vmem:[%s3 + $0x20] sm:$0xf]
      %v1538 = vld [vmem:[%s3 + $0x24] sm:$0xf]
      %v1539 = vld [vmem:[%s3 + $0x28] sm:$0xf]
      %v1540 = vld [vmem:[%s3 + $0x2c] sm:$0xf]
      %v1541 = vld [vmem:[%s3 + $0x30] sm:$0xf]
      %v1542 = vld [vmem:[%s3 + $0x34] sm:$0xf]
      %v1543 = vld [vmem:[%s3 + $0x38] sm:$0xf]
      %v1544 = vld [vmem:[%s3 + $0x3c] sm:$0xf]
      %v1545 = vld [vmem:[%s3 + $0x40] sm:$0xf]
      %v1546 = vld [vmem:[%s3 + $0x44] sm:$0xf]
      %v1547 = vld [vmem:[%s3 + $0x48] sm:$0xf]
      %v1548 = vld [vmem:[%s3 + $0x4c] sm:$0xf]
      %v1549 = vld [vmem:[%s3 + $0x50] sm:$0xf]
      %v1550 = vld [vmem:[%s3 + $0x54] sm:$0xf]
      %v1551 = vld [vmem:[%s3 + $0x58] sm:$0xf]
      %v1552 = vld [vmem:[%s3 + $0x5c] sm:$0xf]
      %v1553 = vld [vmem:[%s3 + $0x60] sm:$0xf]
      %v1554 = vld [vmem:[%s3 + $0x64] sm:$0xf]
      %v1555 = vld [vmem:[%s3 + $0x68] sm:$0xf]
      %v1556 = vld [vmem:[%s3 + $0x6c] sm:$0xf]
      %v1557 = vld [vmem:[%s3 + $0x70] sm:$0xf]
      %v1558 = vld [vmem:[%s3 + $0x74] sm:$0xf]
      %v1559 = vld [vmem:[%s3 + $0x78] sm:$0xf]
      %v1560 = vld [vmem:[%s3 + $0x7c] sm:$0xf]
      %v1561 = vld [vmem:[%s3 + $0x80] sm:$0xf]
      %v1562 = vld [vmem:[%s3 + $0x84] sm:$0xf]
      %v1563 = vld [vmem:[%s3 + $0x88] sm:$0xf]
      %v1564 = vld [vmem:[%s3 + $0x8c] sm:$0xf]
      %v1601 = vunpack.c.l.b16 %v1529
      %v1602 = vunpack.c.l.b16 %v1530
      %v1603 = vunpack.c.l.b16 %v1531
      %v1604 = vunpack.c.l.b16 %v1532
      %v1605 = vunpack.c.l.b16 %v1533
      %v1606 = vunpack.c.l.b16 %v1534
      %v1607 = vunpack.c.l.b16 %v1535
      %v1608 = vunpack.c.l.b16 %v1536
      %v1609 = vunpack.c.l.b16 %v1537
      %v1610 = vunpack.c.l.b16 %v1538
      %v1611 = vunpack.c.l.b16 %v1539
      %v1612 = vunpack.c.l.b16 %v1540
      %v1613 = vunpack.c.l.b16 %v1541
      %v1614 = vunpack.c.l.b16 %v1542
      %v1615 = vunpack.c.l.b16 %v1543
      %v1616 = vunpack.c.l.b16 %v1544
      %v1617 = vunpack.c.l.b16 %v1545
      %v1618 = vunpack.c.l.b16 %v1546
      %v1619 = vunpack.c.l.b16 %v1547
      %v1620 = vunpack.c.l.b16 %v1548
      %v1621 = vunpack.c.l.b16 %v1549
      %v1622 = vunpack.c.l.b16 %v1550
      %v1623 = vunpack.c.l.b16 %v1551
      %v1624 = vunpack.c.l.b16 %v1552
      %v1625 = vunpack.c.l.b16 %v1553
      %v1626 = vunpack.c.l.b16 %v1554
      %v1627 = vunpack.c.l.b16 %v1555
      %v1628 = vunpack.c.l.b16 %v1556
      %v1629 = vunpack.c.l.b16 %v1557
      %v1630 = vunpack.c.l.b16 %v1558
      %v1631 = vunpack.c.l.b16 %v1559
      %v1632 = vunpack.c.l.b16 %v1560
      %v1633 = vunpack.c.l.b16 %v1561
      %v1634 = vunpack.c.l.b16 %v1562
      %v1635 = vunpack.c.l.b16 %v1563
      %v1636 = vunpack.c.l.b16 %v1564
      %v1637 = vpack.c.b16 %v1602, %v1601
      %v1638 = vpack.c.b16 %v1604, %v1603
      %v1639 = vpack.c.b16 %v1606, %v1605
      %v1640 = vpack.c.b16 %v1608, %v1607
      %v1641 = vpack.c.b16 %v1610, %v1609
      %v1642 = vpack.c.b16 %v1612, %v1611
      %v1643 = vpack.c.b16 %v1614, %v1613
      %v1644 = vpack.c.b16 %v1616, %v1615
      %v1645 = vpack.c.b16 %v1618, %v1617
      %v1646 = vpack.c.b16 %v1620, %v1619
      %v1647 = vpack.c.b16 %v1622, %v1621
      %v1648 = vpack.c.b16 %v1624, %v1623
      %v1649 = vpack.c.b16 %v1626, %v1625
      %v1650 = vpack.c.b16 %v1628, %v1627
      %v1651 = vpack.c.b16 %v1630, %v1629
      %v1652 = vpack.c.b16 %v1632, %v1631
      %v1653 = vpack.c.b16 %v1634, %v1633
      %v1654 = vpack.c.b16 %v1636, %v1635
      %vm1655 = vcmask 523264
      %v1657 = vsel %vm1655, %v1637, 0
      %v1660 = vsel %vm1655, %v1638, 0
      %v1663 = vsel %vm1655, %v1639, 0
      %v1666 = vsel %vm1655, %v1640, 0
      %v1669 = vsel %vm1655, %v1641, 0
      %v1672 = vsel %vm1655, %v1642, 0
      %v1675 = vsel %vm1655, %v1643, 0
      %v1678 = vsel %vm1655, %v1644, 0
      %v1681 = vsel %vm1655, %v1645, 0
      %v1684 = vsel %vm1655, %v1646, 0
      %v1687 = vsel %vm1655, %v1647, 0
      %v1690 = vsel %vm1655, %v1648, 0
      %v1693 = vsel %vm1655, %v1649, 0
      %v1696 = vsel %vm1655, %v1650, 0
      %v1699 = vsel %vm1655, %v1651, 0
      %v1702 = vsel %vm1655, %v1652, 0
      %v1705 = vsel %vm1655, %v1653, 0
      %v1708 = vsel %vm1655, %v1654, 0
      %1710 = vmatprep.subr.bf16.mxu0 %v1510
      %1711 = vmatpush1.bf16.msra.mxu0 %v1509
      %1712 = vmatprep.subr.bf16.mxu0 %v1515
      %1713 = vmatpush1.bf16.msra.mxu0 %v1514
      %1714 = vmatprep.subr.bf16.mxu0 %v1520
      %1715 = vmatpush1.bf16.msra.mxu0 %v1519
      %1716 = vmatprep.subr.bf16.mxu0 %v1525
      %1717 = vmatpush1.bf16.msra.mxu0 %v1524
      %1718 = vmatprep.subr.bf16.mxu0 0
      %1719 = vmatpush1.bf16.msra.mxu0 0
      %1720 = vmatprep.subr.bf16.mxu0 0
      %1721 = vmatpush1.bf16.msra.mxu0 0
      %1722 = vmatprep.subr.bf16.mxu0 0
      %1723 = vmatpush1.bf16.msra.mxu0 0
      %1724 = vmatprep.subr.bf16.mxu0 0
      %1725 = vmatpush1.bf16.msra.mxu0 0
      %1726 = vmatprep.subr.bf16.mxu0 0
      %1727 = vmatpush1.bf16.msra.mxu0 0
      %1728 = vmatprep.subr.bf16.mxu0 0
      %1729 = vmatpush1.bf16.msra.mxu0 0
      %1730 = vmatprep.subr.bf16.mxu0 0
      %1731 = vmatpush1.bf16.msra.mxu0 0
      %1732 = vmatprep.subr.bf16.mxu0 0
      %1733 = vmatpush1.bf16.msra.mxu0 0
      %1734 = vmatprep.subr.bf16.mxu0 0
      %1735 = vmatpush1.bf16.msra.mxu0 0
      %1736 = vmatprep.subr.bf16.mxu0 0
      %1737 = vmatpush1.bf16.msra.mxu0 0
      %1738 = vmatprep.subr.bf16.mxu0 0
      %1739 = vmatpush1.bf16.msra.mxu0 0
      %1740 = vmatprep.subr.bf16.mxu0 0
      %1741 = vmatpush1.bf16.msra.mxu0 0
      %1742 = vmatprep.mubr.bf16.mxu0 0
      %1743 = vmatmul.mubr.bf16.gmra.mrb[0].mxu0 %v1657
      %v1744 = vpop.f32.mrb[0].mxu0
      %v1745 = vadd.f32 0.0, %v1744
      %v1746 = vpop.f32.mrb[0].mxu0
      %v1747 = vadd.f32 0.0, %v1746
      %v1748 = vpop.f32.mrb[0].mxu0
      %v1749 = vadd.f32 0.0, %v1748
      %v1750 = vpop.f32.mrb[0].mxu0
      %v1751 = vadd.f32 0.0, %v1750
      %1752 = vmatprep.mubr.bf16.mxu0 0
      %1753 = vmatmul.mubr.bf16.gmra.mrb[0].mxu0 %v1660
      %v1754 = vpop.f32.mrb[0].mxu0
      %v1755 = vadd.f32 0.0, %v1754
      %v1756 = vpop.f32.mrb[0].mxu0
      %v1757 = vadd.f32 0.0, %v1756
      %v1758 = vpop.f32.mrb[0].mxu0
      %v1759 = vadd.f32 0.0, %v1758
      %v1760 = vpop.f32.mrb[0].mxu0
      %v1761 = vadd.f32 0.0, %v1760
      %1762 = vmatprep.mubr.bf16.mxu0 0
      %1763 = vmatmul.mubr.bf16.gmra.mrb[0].mxu0 %v1663
      %v1764 = vpop.f32.mrb[0].mxu0
      %v1765 = vadd.f32 0.0, %v1764
      %v1766 = vpop.f32.mrb[0].mxu0
      %v1767 = vadd.f32 0.0, %v1766
      %v1768 = vpop.f32.mrb[0].mxu0
      %v1769 = vadd.f32 0.0, %v1768
      %v1770 = vpop.f32.mrb[0].mxu0
      %v1771 = vadd.f32 0.0, %v1770
      %1772 = vmatprep.mubr.bf16.mxu0 0
      %1773 = vmatmul.mubr.bf16.gmra.mrb[0].mxu0 %v1666
      %v1774 = vpop.f32.mrb[0].mxu0
      %v1775 = vadd.f32 0.0, %v1774
      %v1776 = vpop.f32.mrb[0].mxu0
      %v1777 = vadd.f32 0.0, %v1776
      %v1778 = vpop.f32.mrb[0].mxu0
      %v1779 = vadd.f32 0.0, %v1778
      %v1780 = vpop.f32.mrb[0].mxu0
      %v1781 = vadd.f32 0.0, %v1780
      %1782 = vmatprep.mubr.bf16.mxu0 0
      %1783 = vmatmul.mubr.bf16.gmra.mrb[0].mxu0 %v1669
      %v1784 = vpop.f32.mrb[0].mxu0
      %v1785 = vadd.f32 0.0, %v1784
      %v1786 = vpop.f32.mrb[0].mxu0
      %v1787 = vadd.f32 0.0, %v1786
      %v1788 = vpop.f32.mrb[0].mxu0
      %v1789 = vadd.f32 0.0, %v1788
      %v1790 = vpop.f32.mrb[0].mxu0
      %v1791 = vadd.f32 0.0, %v1790
      %1792 = vmatprep.mubr.bf16.mxu0 0
      %1793 = vmatmul.mubr.bf16.gmra.mrb[0].mxu0 %v1672
      %v1794 = vpop.f32.mrb[0].mxu0
      %v1795 = vadd.f32 0.0, %v1794
      %v1796 = vpop.f32.mrb[0].mxu0
      %v1797 = vadd.f32 0.0, %v1796
      %v1798 = vpop.f32.mrb[0].mxu0
      %v1799 = vadd.f32 0.0, %v1798
      %v1800 = vpop.f32.mrb[0].mxu0
      %v1801 = vadd.f32 0.0, %v1800
      %1802 = vmatprep.mubr.bf16.mxu0 0
      %1803 = vmatmul.mubr.bf16.gmra.mrb[0].mxu0 %v1675
      %v1804 = vpop.f32.mrb[0].mxu0
      %v1805 = vadd.f32 0.0, %v1804
      %v1806 = vpop.f32.mrb[0].mxu0
      %v1807 = vadd.f32 0.0, %v1806
      %v1808 = vpop.f32.mrb[0].mxu0
      %v1809 = vadd.f32 0.0, %v1808
      %v1810 = vpop.f32.mrb[0].mxu0
      %v1811 = vadd.f32 0.0, %v1810
      %1812 = vmatprep.mubr.bf16.mxu0 0
      %1813 = vmatmul.mubr.bf16.gmra.mrb[0].mxu0 %v1678
      %v1814 = vpop.f32.mrb[0].mxu0
      %v1815 = vadd.f32 0.0, %v1814
      %v1816 = vpop.f32.mrb[0].mxu0
      %v1817 = vadd.f32 0.0, %v1816
      %v1818 = vpop.f32.mrb[0].mxu0
      %v1819 = vadd.f32 0.0, %v1818
      %v1820 = vpop.f32.mrb[0].mxu0
      %v1821 = vadd.f32 0.0, %v1820
      %1822 = vmatprep.mubr.bf16.mxu0 0
      %1823 = vmatmul.mubr.bf16.gmra.mrb[0].mxu0 %v1681
      %v1824 = vpop.f32.mrb[0].mxu0
      %v1825 = vadd.f32 0.0, %v1824
      %v1826 = vpop.f32.mrb[0].mxu0
      %v1827 = vadd.f32 0.0, %v1826
      %v1828 = vpop.f32.mrb[0].mxu0
      %v1829 = vadd.f32 0.0, %v1828
      %v1830 = vpop.f32.mrb[0].mxu0
      %v1831 = vadd.f32 0.0, %v1830
      %1832 = vmatprep.mubr.bf16.mxu0 0
      %1833 = vmatmul.mubr.bf16.gmra.mrb[0].mxu0 %v1684
      %v1834 = vpop.f32.mrb[0].mxu0
      %v1835 = vadd.f32 0.0, %v1834
      %v1836 = vpop.f32.mrb[0].mxu0
      %v1837 = vadd.f32 0.0, %v1836
      %v1838 = vpop.f32.mrb[0].mxu0
      %v1839 = vadd.f32 0.0, %v1838
      %v1840 = vpop.f32.mrb[0].mxu0
      %v1841 = vadd.f32 0.0, %v1840
      %1842 = vmatprep.mubr.bf16.mxu0 0
      %1843 = vmatmul.mubr.bf16.gmra.mrb[0].mxu0 %v1687
      %v1844 = vpop.f32.mrb[0].mxu0
      %v1845 = vadd.f32 0.0, %v1844
      %v1846 = vpop.f32.mrb[0].mxu0
      %v1847 = vadd.f32 0.0, %v1846
      %v1848 = vpop.f32.mrb[0].mxu0
      %v1849 = vadd.f32 0.0, %v1848
      %v1850 = vpop.f32.mrb[0].mxu0
      %v1851 = vadd.f32 0.0, %v1850
      %1852 = vmatprep.mubr.bf16.mxu0 0
      %1853 = vmatmul.mubr.bf16.gmra.mrb[0].mxu0 %v1690
      %v1854 = vpop.f32.mrb[0].mxu0
      %v1855 = vadd.f32 0.0, %v1854
      %v1856 = vpop.f32.mrb[0].mxu0
      %v1857 = vadd.f32 0.0, %v1856
      %v1858 = vpop.f32.mrb[0].mxu0
      %v1859 = vadd.f32 0.0, %v1858
      %v1860 = vpop.f32.mrb[0].mxu0
      %v1861 = vadd.f32 0.0, %v1860
      %1862 = vmatprep.mubr.bf16.mxu0 0
      %1863 = vmatmul.mubr.bf16.gmra.mrb[0].mxu0 %v1693
      %v1864 = vpop.f32.mrb[0].mxu0
      %v1865 = vadd.f32 0.0, %v1864
      %v1866 = vpop.f32.mrb[0].mxu0
      %v1867 = vadd.f32 0.0, %v1866
      %v1868 = vpop.f32.mrb[0].mxu0
      %v1869 = vadd.f32 0.0, %v1868
      %v1870 = vpop.f32.mrb[0].mxu0
      %v1871 = vadd.f32 0.0, %v1870
      %1872 = vmatprep.mubr.bf16.mxu0 0
      %1873 = vmatmul.mubr.bf16.gmra.mrb[0].mxu0 %v1696
      %v1874 = vpop.f32.mrb[0].mxu0
      %v1875 = vadd.f32 0.0, %v1874
      %v1876 = vpop.f32.mrb[0].mxu0
      %v1877 = vadd.f32 0.0, %v1876
      %v1878 = vpop.f32.mrb[0].mxu0
      %v1879 = vadd.f32 0.0, %v1878
      %v1880 = vpop.f32.mrb[0].mxu0
      %v1881 = vadd.f32 0.0, %v1880
      %1882 = vmatprep.mubr.bf16.mxu0 0
      %1883 = vmatmul.mubr.bf16.gmra.mrb[0].mxu0 %v1699
      %v1884 = vpop.f32.mrb[0].mxu0
      %v1885 = vadd.f32 0.0, %v1884
      %v1886 = vpop.f32.mrb[0].mxu0
      %v1887 = vadd.f32 0.0, %v1886
      %v1888 = vpop.f32.mrb[0].mxu0
      %v1889 = vadd.f32 0.0, %v1888
      %v1890 = vpop.f32.mrb[0].mxu0
      %v1891 = vadd.f32 0.0, %v1890
      %1892 = vmatprep.mubr.bf16.mxu0 0
      %1893 = vmatmul.mubr.bf16.gmra.mrb[0].mxu0 %v1702
      %v1894 = vpop.f32.mrb[0].mxu0
      %v1895 = vadd.f32 0.0, %v1894
      %v1896 = vpop.f32.mrb[0].mxu0
      %v1897 = vadd.f32 0.0, %v1896
      %v1898 = vpop.f32.mrb[0].mxu0
      %v1899 = vadd.f32 0.0, %v1898
      %v1900 = vpop.f32.mrb[0].mxu0
      %v1901 = vadd.f32 0.0, %v1900
      %1902 = vmatprep.mubr.bf16.mxu0 0
      %1903 = vmatmul.mubr.bf16.gmra.mrb[0].mxu0 %v1705
      %v1904 = vpop.f32.mrb[0].mxu0
      %v1905 = vadd.f32 0.0, %v1904
      %v1906 = vpop.f32.mrb[0].mxu0
      %v1907 = vadd.f32 0.0, %v1906
      %v1908 = vpop.f32.mrb[0].mxu0
      %v1909 = vadd.f32 0.0, %v1908
      %v1910 = vpop.f32.mrb[0].mxu0
      %v1911 = vadd.f32 0.0, %v1910
      %1912 = vmatprep.mubr.bf16.mxu0 0
      %1913 = vmatmul.mubr.bf16.gmra.mrb[0].mxu0 %v1708
      %v1914 = vpop.f32.mrb[0].mxu0
      %v1915 = vadd.f32 0.0, %v1914
      %v1916 = vpop.f32.mrb[0].mxu0
      %v1917 = vadd.f32 0.0, %v1916
      %v1918 = vpop.f32.mrb[0].mxu0
      %v1919 = vadd.f32 0.0, %v1918
      %v1920 = vpop.f32.mrb[0].mxu0
      %v1921 = vadd.f32 0.0, %v1920
      %1922 = vdwg.mxu0
      %1923 = vmatprep.subr.bf16.mxu0 %v1512
      %1924 = vmatpush1.bf16.msra.mxu0 %v1511
      %1925 = vmatprep.subr.bf16.mxu0 %v1517
      %1926 = vmatpush1.bf16.msra.mxu0 %v1516
      %1927 = vmatprep.subr.bf16.mxu0 %v1522
      %1928 = vmatpush1.bf16.msra.mxu0 %v1521
      %1929 = vmatprep.subr.bf16.mxu0 %v1527
      %1930 = vmatpush1.bf16.msra.mxu0 %v1526
      %1931 = vmatprep.subr.bf16.mxu0 0
      %1932 = vmatpush1.bf16.msra.mxu0 0
      %1933 = vmatprep.subr.bf16.mxu0 0
      %1934 = vmatpush1.bf16.msra.mxu0 0
      %1935 = vmatprep.subr.bf16.mxu0 0
      %1936 = vmatpush1.bf16.msra.mxu0 0
      %1937 = vmatprep.subr.bf16.mxu0 0
      %1938 = vmatpush1.bf16.msra.mxu0 0
      %1939 = vmatprep.subr.bf16.mxu0 0
      %1940 = vmatpush1.bf16.msra.mxu0 0
      %1941 = vmatprep.subr.bf16.mxu0 0
      %1942 = vmatpush1.bf16.msra.mxu0 0
      %1943 = vmatprep.subr.bf16.mxu0 0
      %1944 = vmatpush1.bf16.msra.mxu0 0
      %1945 = vmatprep.subr.bf16.mxu0 0
      %1946 = vmatpush1.bf16.msra.mxu0 0
      %1947 = vmatprep.subr.bf16.mxu0 0
      %1948 = vmatpush1.bf16.msra.mxu0 0
      %1949 = vmatprep.subr.bf16.mxu0 0
      %1950 = vmatpush1.bf16.msra.mxu0 0
      %1951 = vmatprep.subr.bf16.mxu0 0
      %1952 = vmatpush1.bf16.msra.mxu0 0
      %1953 = vmatprep.subr.bf16.mxu0 0
      %1954 = vmatpush1.bf16.msra.mxu0 0
      %1955 = vmatprep.mubr.bf16.mxu0 0
      %1956 = vmatmul.mubr.bf16.gmra.mrb[0].mxu0 %v1657
      %v1957 = vpop.f32.mrb[0].mxu0
      %v1958 = vadd.f32 0.0, %v1957
      %v1959 = vpop.f32.mrb[0].mxu0
      %v1960 = vadd.f32 0.0, %v1959
      %v1961 = vpop.f32.mrb[0].mxu0
      %v1962 = vadd.f32 0.0, %v1961
      %v1963 = vpop.f32.mrb[0].mxu0
      %v1964 = vadd.f32 0.0, %v1963
      %1965 = vmatprep.mubr.bf16.mxu0 0
      %1966 = vmatmul.mubr.bf16.gmra.mrb[0].mxu0 %v1660
      %v1967 = vpop.f32.mrb[0].mxu0
      %v1968 = vadd.f32 0.0, %v1967
      %v1969 = vpop.f32.mrb[0].mxu0
      %v1970 = vadd.f32 0.0, %v1969
      %v1971 = vpop.f32.mrb[0].mxu0
      %v1972 = vadd.f32 0.0, %v1971
      %v1973 = vpop.f32.mrb[0].mxu0
      %v1974 = vadd.f32 0.0, %v1973
      %1975 = vmatprep.mubr.bf16.mxu0 0
      %1976 = vmatmul.mubr.bf16.gmra.mrb[0].mxu0 %v1663
      %v1977 = vpop.f32.mrb[0].mxu0
      %v1978 = vadd.f32 0.0, %v1977
      %v1979 = vpop.f32.mrb[0].mxu0
      %v1980 = vadd.f32 0.0, %v1979
      %v1981 = vpop.f32.mrb[0].mxu0
      %v1982 = vadd.f32 0.0, %v1981
      %v1983 = vpop.f32.mrb[0].mxu0
      %v1984 = vadd.f32 0.0, %v1983
      %1985 = vmatprep.mubr.bf16.mxu0 0
      %1986 = vmatmul.mubr.bf16.gmra.mrb[0].mxu0 %v1666
      %v1987 = vpop.f32.mrb[0].mxu0
      %v1988 = vadd.f32 0.0, %v1987
      %v1989 = vpop.f32.mrb[0].mxu0
      %v1990 = vadd.f32 0.0, %v1989
      %v1991 = vpop.f32.mrb[0].mxu0
      %v1992 = vadd.f32 0.0, %v1991
      %v1993 = vpop.f32.mrb[0].mxu0
      %v1994 = vadd.f32 0.0, %v1993
      %1995 = vmatprep.mubr.bf16.mxu0 0
      %1996 = vmatmul.mubr.bf16.gmra.mrb[0].mxu0 %v1669
      %v1997 = vpop.f32.mrb[0].mxu0
      %v1998 = vadd.f32 0.0, %v1997
      %v1999 = vpop.f32.mrb[0].mxu0
      %v2000 = vadd.f32 0.0, %v1999
      %v2001 = vpop.f32.mrb[0].mxu0
      %v2002 = vadd.f32 0.0, %v2001
      %v2003 = vpop.f32.mrb[0].mxu0
      %v2004 = vadd.f32 0.0, %v2003
      %2005 = vmatprep.mubr.bf16.mxu0 0
      %2006 = vmatmul.mubr.bf16.gmra.mrb[0].mxu0 %v1672
      %v2007 = vpop.f32.mrb[0].mxu0
      %v2008 = vadd.f32 0.0, %v2007
      %v2009 = vpop.f32.mrb[0].mxu0
      %v2010 = vadd.f32 0.0, %v2009
      %v2011 = vpop.f32.mrb[0].mxu0
      %v2012 = vadd.f32 0.0, %v2011
      %v2013 = vpop.f32.mrb[0].mxu0
      %v2014 = vadd.f32 0.0, %v2013
      %2015 = vmatprep.mubr.bf16.mxu0 0
      %2016 = vmatmul.mubr.bf16.gmra.mrb[0].mxu0 %v1675
      %v2017 = vpop.f32.mrb[0].mxu0
      %v2018 = vadd.f32 0.0, %v2017
      %v2019 = vpop.f32.mrb[0].mxu0
      %v2020 = vadd.f32 0.0, %v2019
      %v2021 = vpop.f32.mrb[0].mxu0
      %v2022 = vadd.f32 0.0, %v2021
      %v2023 = vpop.f32.mrb[0].mxu0
      %v2024 = vadd.f32 0.0, %v2023
      %2025 = vmatprep.mubr.bf16.mxu0 0
      %2026 = vmatmul.mubr.bf16.gmra.mrb[0].mxu0 %v1678
      %v2027 = vpop.f32.mrb[0].mxu0
      %v2028 = vadd.f32 0.0, %v2027
      %v2029 = vpop.f32.mrb[0].mxu0
      %v2030 = vadd.f32 0.0, %v2029
      %v2031 = vpop.f32.mrb[0].mxu0
      %v2032 = vadd.f32 0.0, %v2031
      %v2033 = vpop.f32.mrb[0].mxu0
      %v2034 = vadd.f32 0.0, %v2033
      %2035 = vmatprep.mubr.bf16.mxu0 0
      %2036 = vmatmul.mubr.bf16.gmra.mrb[0].mxu0 %v1681
      %v2037 = vpop.f32.mrb[0].mxu0
      %v2038 = vadd.f32 0.0, %v2037
      %v2039 = vpop.f32.mrb[0].mxu0
      %v2040 = vadd.f32 0.0, %v2039
      %v2041 = vpop.f32.mrb[0].mxu0
      %v2042 = vadd.f32 0.0, %v2041
      %v2043 = vpop.f32.mrb[0].mxu0
      %v2044 = vadd.f32 0.0, %v2043
      %2045 = vmatprep.mubr.bf16.mxu0 0
      %2046 = vmatmul.mubr.bf16.gmra.mrb[0].mxu0 %v1684
      %v2047 = vpop.f32.mrb[0].mxu0
      %v2048 = vadd.f32 0.0, %v2047
      %v2049 = vpop.f32.mrb[0].mxu0
      %v2050 = vadd.f32 0.0, %v2049
      %v2051 = vpop.f32.mrb[0].mxu0
      %v2052 = vadd.f32 0.0, %v2051
      %v2053 = vpop.f32.mrb[0].mxu0
      %v2054 = vadd.f32 0.0, %v2053
      %2055 = vmatprep.mubr.bf16.mxu0 0
      %2056 = vmatmul.mubr.bf16.gmra.mrb[0].mxu0 %v1687
      %v2057 = vpop.f32.mrb[0].mxu0
      %v2058 = vadd.f32 0.0, %v2057
      %v2059 = vpop.f32.mrb[0].mxu0
      %v2060 = vadd.f32 0.0, %v2059
      %v2061 = vpop.f32.mrb[0].mxu0
      %v2062 = vadd.f32 0.0, %v2061
      %v2063 = vpop.f32.mrb[0].mxu0
      %v2064 = vadd.f32 0.0, %v2063
      %2065 = vmatprep.mubr.bf16.mxu0 0
      %2066 = vmatmul.mubr.bf16.gmra.mrb[0].mxu0 %v1690
      %v2067 = vpop.f32.mrb[0].mxu0
      %v2068 = vadd.f32 0.0, %v2067
      %v2069 = vpop.f32.mrb[0].mxu0
      %v2070 = vadd.f32 0.0, %v2069
      %v2071 = vpop.f32.mrb[0].mxu0
      %v2072 = vadd.f32 0.0, %v2071
      %v2073 = vpop.f32.mrb[0].mxu0
      %v2074 = vadd.f32 0.0, %v2073
      %2075 = vmatprep.mubr.bf16.mxu0 0
      %2076 = vmatmul.mubr.bf16.gmra.mrb[0].mxu0 %v1693
      %v2077 = vpop.f32.mrb[0].mxu0
      %v2078 = vadd.f32 0.0, %v2077
      %v2079 = vpop.f32.mrb[0].mxu0
      %v2080 = vadd.f32 0.0, %v2079
      %v2081 = vpop.f32.mrb[0].mxu0
      %v2082 = vadd.f32 0.0, %v2081
      %v2083 = vpop.f32.mrb[0].mxu0
      %v2084 = vadd.f32 0.0, %v2083
      %2085 = vmatprep.mubr.bf16.mxu0 0
      %2086 = vmatmul.mubr.bf16.gmra.mrb[0].mxu0 %v1696
      %v2087 = vpop.f32.mrb[0].mxu0
      %v2088 = vadd.f32 0.0, %v2087
      %v2089 = vpop.f32.mrb[0].mxu0
      %v2090 = vadd.f32 0.0, %v2089
      %v2091 = vpop.f32.mrb[0].mxu0
      %v2092 = vadd.f32 0.0, %v2091
      %v2093 = vpop.f32.mrb[0].mxu0
      %v2094 = vadd.f32 0.0, %v2093
      %2095 = vmatprep.mubr.bf16.mxu0 0
      %2096 = vmatmul.mubr.bf16.gmra.mrb[0].mxu0 %v1699
      %v2097 = vpop.f32.mrb[0].mxu0
      %v2098 = vadd.f32 0.0, %v2097
      %v2099 = vpop.f32.mrb[0].mxu0
      %v2100 = vadd.f32 0.0, %v2099
      %v2101 = vpop.f32.mrb[0].mxu0
      %v2102 = vadd.f32 0.0, %v2101
      %v2103 = vpop.f32.mrb[0].mxu0
      %v2104 = vadd.f32 0.0, %v2103
      %2105 = vmatprep.mubr.bf16.mxu0 0
      %2106 = vmatmul.mubr.bf16.gmra.mrb[0].mxu0 %v1702
      %v2107 = vpop.f32.mrb[0].mxu0
      %v2108 = vadd.f32 0.0, %v2107
      %v2109 = vpop.f32.mrb[0].mxu0
      %v2110 = vadd.f32 0.0, %v2109
      %v2111 = vpop.f32.mrb[0].mxu0
      %v2112 = vadd.f32 0.0, %v2111
      %v2113 = vpop.f32.mrb[0].mxu0
      %v2114 = vadd.f32 0.0, %v2113
      %2115 = vmatprep.mubr.bf16.mxu0 0
      %2116 = vmatmul.mubr.bf16.gmra.mrb[0].mxu0 %v1705
      %v2117 = vpop.f32.mrb[0].mxu0
      %v2118 = vadd.f32 0.0, %v2117
      %v2119 = vpop.f32.mrb[0].mxu0
      %v2120 = vadd.f32 0.0, %v2119
      %v2121 = vpop.f32.mrb[0].mxu0
      %v2122 = vadd.f32 0.0, %v2121
      %v2123 = vpop.f32.mrb[0].mxu0
      %v2124 = vadd.f32 0.0, %v2123
      %2125 = vmatprep.mubr.bf16.mxu0 0
      %2126 = vmatmul.mubr.bf16.gmra.mrb[0].mxu0 %v1708
      %v2127 = vpop.f32.mrb[0].mxu0
      %v2128 = vadd.f32 0.0, %v2127
      %v2129 = vpop.f32.mrb[0].mxu0
      %v2130 = vadd.f32 0.0, %v2129
      %v2131 = vpop.f32.mrb[0].mxu0
      %v2132 = vadd.f32 0.0, %v2131
      %v2133 = vpop.f32.mrb[0].mxu0
      %v2134 = vadd.f32 0.0, %v2133
      %2135 = vdwg.mxu0
      %2136 = vmatprep.subr.bf16.mxu0 0
      %2137 = vmatpush1.bf16.msra.mxu0 %v1513
      %2138 = vmatprep.subr.bf16.mxu0 0
      %2139 = vmatpush1.bf16.msra.mxu0 %v1518
      %2140 = vmatprep.subr.bf16.mxu0 0
      %2141 = vmatpush1.bf16.msra.mxu0 %v1523
      %2142 = vmatprep.subr.bf16.mxu0 0
      %2143 = vmatpush1.bf16.msra.mxu0 %v1528
      %2144 = vmatprep.subr.bf16.mxu0 0
      %2145 = vmatpush1.bf16.msra.mxu0 0
      %2146 = vmatprep.subr.bf16.mxu0 0
      %2147 = vmatpush1.bf16.msra.mxu0 0
      %2148 = vmatprep.subr.bf16.mxu0 0
      %2149 = vmatpush1.bf16.msra.mxu0 0
      %2150 = vmatprep.subr.bf16.mxu0 0
      %2151 = vmatpush1.bf16.msra.mxu0 0
      %2152 = vmatprep.subr.bf16.mxu0 0
      %2153 = vmatpush1.bf16.msra.mxu0 0
      %2154 = vmatprep.subr.bf16.mxu0 0
      %2155 = vmatpush1.bf16.msra.mxu0 0
      %2156 = vmatprep.subr.bf16.mxu0 0
      %2157 = vmatpush1.bf16.msra.mxu0 0
      %2158 = vmatprep.subr.bf16.mxu0 0
      %2159 = vmatpush1.bf16.msra.mxu0 0
      %2160 = vmatprep.subr.bf16.mxu0 0
      %2161 = vmatpush1.bf16.msra.mxu0 0
      %2162 = vmatprep.subr.bf16.mxu0 0
      %2163 = vmatpush1.bf16.msra.mxu0 0
      %2164 = vmatprep.subr.bf16.mxu0 0
      %2165 = vmatpush1.bf16.msra.mxu0 0
      %2166 = vmatprep.subr.bf16.mxu0 0
      %2167 = vmatpush1.bf16.msra.mxu0 0
      %2168 = vmatprep.mubr.bf16.mxu0 0
      %2169 = vmatmul.mubr.bf16.gmra.mrb[0].mxu0 %v1657
      %v2170 = vpop.f32.mrb[0].mxu0
      %v2171 = vadd.f32 0.0, %v2170
      %v2172 = vpop.f32.mrb[0].mxu0
      %v2173 = vpop.f32.mrb[0].mxu0
      %v2174 = vadd.f32 0.0, %v2173
      %v2175 = vpop.f32.mrb[0].mxu0
      %2176 = vmatprep.mubr.bf16.mxu0 0
      %2177 = vmatmul.mubr.bf16.gmra.mrb[0].mxu0 %v1660
      %v2178 = vpop.f32.mrb[0].mxu0
      %v2179 = vadd.f32 0.0, %v2178
      %v2180 = vpop.f32.mrb[0].mxu0
      %v2181 = vpop.f32.mrb[0].mxu0
      %v2182 = vadd.f32 0.0, %v2181
      %v2183 = vpop.f32.mrb[0].mxu0
      %2184 = vmatprep.mubr.bf16.mxu0 0
      %2185 = vmatmul.mubr.bf16.gmra.mrb[0].mxu0 %v1663
      %v2186 = vpop.f32.mrb[0].mxu0
      %v2187 = vadd.f32 0.0, %v2186
      %v2188 = vpop.f32.mrb[0].mxu0
      %v2189 = vpop.f32.mrb[0].mxu0
      %v2190 = vadd.f32 0.0, %v2189
      %v2191 = vpop.f32.mrb[0].mxu0
      %2192 = vmatprep.mubr.bf16.mxu0 0
      %2193 = vmatmul.mubr.bf16.gmra.mrb[0].mxu0 %v1666
      %v2194 = vpop.f32.mrb[0].mxu0
      %v2195 = vadd.f32 0.0, %v2194
      %v2196 = vpop.f32.mrb[0].mxu0
      %v2197 = vpop.f32.mrb[0].mxu0
      %v2198 = vadd.f32 0.0, %v2197
      %v2199 = vpop.f32.mrb[0].mxu0
      %2200 = vmatprep.mubr.bf16.mxu0 0
      %2201 = vmatmul.mubr.bf16.gmra.mrb[0].mxu0 %v1669
      %v2202 = vpop.f32.mrb[0].mxu0
      %v2203 = vadd.f32 0.0, %v2202
      %v2204 = vpop.f32.mrb[0].mxu0
      %v2205 = vpop.f32.mrb[0].mxu0
      %v2206 = vadd.f32 0.0, %v2205
      %v2207 = vpop.f32.mrb[0].mxu0
      %2208 = vmatprep.mubr.bf16.mxu0 0
      %2209 = vmatmul.mubr.bf16.gmra.mrb[0].mxu0 %v1672
      %v2210 = vpop.f32.mrb[0].mxu0
      %v2211 = vadd.f32 0.0, %v2210
      %v2212 = vpop.f32.mrb[0].mxu0
      %v2213 = vpop.f32.mrb[0].mxu0
      %v2214 = vadd.f32 0.0, %v2213
      %v2215 = vpop.f32.mrb[0].mxu0
      %2216 = vmatprep.mubr.bf16.mxu0 0
      %2217 = vmatmul.mubr.bf16.gmra.mrb[0].mxu0 %v1675
      %v2218 = vpop.f32.mrb[0].mxu0
      %v2219 = vadd.f32 0.0, %v2218
      %v2220 = vpop.f32.mrb[0].mxu0
      %v2221 = vpop.f32.mrb[0].mxu0
      %v2222 = vadd.f32 0.0, %v2221
      %v2223 = vpop.f32.mrb[0].mxu0
      %2224 = vmatprep.mubr.bf16.mxu0 0
      %2225 = vmatmul.mubr.bf16.gmra.mrb[0].mxu0 %v1678
      %v2226 = vpop.f32.mrb[0].mxu0
      %v2227 = vadd.f32 0.0, %v2226
      %v2228 = vpop.f32.mrb[0].mxu0
      %v2229 = vpop.f32.mrb[0].mxu0
      %v2230 = vadd.f32 0.0, %v2229
      %v2231 = vpop.f32.mrb[0].mxu0
      %2232 = vmatprep.mubr.bf16.mxu0 0
      %2233 = vmatmul.mubr.bf16.gmra.mrb[0].mxu0 %v1681
      %v2234 = vpop.f32.mrb[0].mxu0
      %v2235 = vadd.f32 0.0, %v2234
      %v2236 = vpop.f32.mrb[0].mxu0
      %v2237 = vpop.f32.mrb[0].mxu0
      %v2238 = vadd.f32 0.0, %v2237
      %v2239 = vpop.f32.mrb[0].mxu0
      %2240 = vmatprep.mubr.bf16.mxu0 0
      %2241 = vmatmul.mubr.bf16.gmra.mrb[0].mxu0 %v1684
      %v2242 = vpop.f32.mrb[0].mxu0
      %v2243 = vadd.f32 0.0, %v2242
      %v2244 = vpop.f32.mrb[0].mxu0
      %v2245 = vpop.f32.mrb[0].mxu0
      %v2246 = vadd.f32 0.0, %v2245
      %v2247 = vpop.f32.mrb[0].mxu0
      %2248 = vmatprep.mubr.bf16.mxu0 0
      %2249 = vmatmul.mubr.bf16.gmra.mrb[0].mxu0 %v1687
      %v2250 = vpop.f32.mrb[0].mxu0
      %v2251 = vadd.f32 0.0, %v2250
      %v2252 = vpop.f32.mrb[0].mxu0
      %v2253 = vpop.f32.mrb[0].mxu0
      %v2254 = vadd.f32 0.0, %v2253
      %v2255 = vpop.f32.mrb[0].mxu0
      %2256 = vmatprep.mubr.bf16.mxu0 0
      %2257 = vmatmul.mubr.bf16.gmra.mrb[0].mxu0 %v1690
      %v2258 = vpop.f32.mrb[0].mxu0
      %v2259 = vadd.f32 0.0, %v2258
      %v2260 = vpop.f32.mrb[0].mxu0
      %v2261 = vpop.f32.mrb[0].mxu0
      %v2262 = vadd.f32 0.0, %v2261
      %v2263 = vpop.f32.mrb[0].mxu0
      %2264 = vmatprep.mubr.bf16.mxu0 0
      %2265 = vmatmul.mubr.bf16.gmra.mrb[0].mxu0 %v1693
      %v2266 = vpop.f32.mrb[0].mxu0
      %v2267 = vadd.f32 0.0, %v2266
      %v2268 = vpop.f32.mrb[0].mxu0
      %v2269 = vpop.f32.mrb[0].mxu0
      %v2270 = vadd.f32 0.0, %v2269
      %v2271 = vpop.f32.mrb[0].mxu0
      %2272 = vmatprep.mubr.bf16.mxu0 0
      %2273 = vmatmul.mubr.bf16.gmra.mrb[0].mxu0 %v1696
      %v2274 = vpop.f32.mrb[0].mxu0
      %v2275 = vadd.f32 0.0, %v2274
      %v2276 = vpop.f32.mrb[0].mxu0
      %v2277 = vpop.f32.mrb[0].mxu0
      %v2278 = vadd.f32 0.0, %v2277
      %v2279 = vpop.f32.mrb[0].mxu0
      %2280 = vmatprep.mubr.bf16.mxu0 0
      %2281 = vmatmul.mubr.bf16.gmra.mrb[0].mxu0 %v1699
      %v2282 = vpop.f32.mrb[0].mxu0
      %v2283 = vadd.f32 0.0, %v2282
      %v2284 = vpop.f32.mrb[0].mxu0
      %v2285 = vpop.f32.mrb[0].mxu0
      %v2286 = vadd.f32 0.0, %v2285
      %v2287 = vpop.f32.mrb[0].mxu0
      %2288 = vmatprep.mubr.bf16.mxu0 0
      %2289 = vmatmul.mubr.bf16.gmra.mrb[0].mxu0 %v1702
      %v2290 = vpop.f32.mrb[0].mxu0
      %v2291 = vadd.f32 0.0, %v2290
      %v2292 = vpop.f32.mrb[0].mxu0
      %v2293 = vpop.f32.mrb[0].mxu0
      %v2294 = vadd.f32 0.0, %v2293
      %v2295 = vpop.f32.mrb[0].mxu0
      %2296 = vmatprep.mubr.bf16.mxu0 0
      %2297 = vmatmul.mubr.bf16.gmra.mrb[0].mxu0 %v1705
      %v2298 = vpop.f32.mrb[0].mxu0
      %v2299 = vadd.f32 0.0, %v2298
      %v2300 = vpop.f32.mrb[0].mxu0
      %v2301 = vpop.f32.mrb[0].mxu0
      %v2302 = vadd.f32 0.0, %v2301
      %v2303 = vpop.f32.mrb[0].mxu0
      %2304 = vmatprep.mubr.bf16.mxu0 0
      %2305 = vmatmul.mubr.bf16.gmra.mrb[0].mxu0 %v1708
      %v2306 = vpop.f32.mrb[0].mxu0
      %v2307 = vadd.f32 0.0, %v2306
      %v2308 = vpop.f32.mrb[0].mxu0
      %v2309 = vpop.f32.mrb[0].mxu0
      %v2310 = vadd.f32 0.0, %v2309
      %v2311 = vpop.f32.mrb[0].mxu0
      %2312 = vdwg.mxu0
      %v2313 = vpack.c.bf16 %v1749, %v1745
      %v2314 = vpack.c.bf16 %v1751, %v1747
      %v2315 = vpack.c.bf16 %v1962, %v1958
      %v2316 = vpack.c.bf16 %v1964, %v1960
      %v2317 = vpack.c.bf16 %v2174, %v2171
      %v2318 = vpack.c.bf16 %v1759, %v1755
      %v2319 = vpack.c.bf16 %v1761, %v1757
      %v2320 = vpack.c.bf16 %v1972, %v1968
      %v2321 = vpack.c.bf16 %v1974, %v1970
      %v2322 = vpack.c.bf16 %v2182, %v2179
      %v2323 = vpack.c.bf16 %v1769, %v1765
      %v2324 = vpack.c.bf16 %v1771, %v1767
      %v2325 = vpack.c.bf16 %v1982, %v1978
      %v2326 = vpack.c.bf16 %v1984, %v1980
      %v2327 = vpack.c.bf16 %v2190, %v2187
      %v2328 = vpack.c.bf16 %v1779, %v1775
      %v2329 = vpack.c.bf16 %v1781, %v1777
      %v2330 = vpack.c.bf16 %v1992, %v1988
      %v2331 = vpack.c.bf16 %v1994, %v1990
      %v2332 = vpack.c.bf16 %v2198, %v2195
      %v2333 = vpack.c.bf16 %v1789, %v1785
      %v2334 = vpack.c.bf16 %v1791, %v1787
      %v2335 = vpack.c.bf16 %v2002, %v1998
      %v2336 = vpack.c.bf16 %v2004, %v2000
      %v2337 = vpack.c.bf16 %v2206, %v2203
      %v2338 = vpack.c.bf16 %v1799, %v1795
      %v2339 = vpack.c.bf16 %v1801, %v1797
      %v2340 = vpack.c.bf16 %v2012, %v2008
      %v2341 = vpack.c.bf16 %v2014, %v2010
      %v2342 = vpack.c.bf16 %v2214, %v2211
      %v2343 = vpack.c.bf16 %v1809, %v1805
      %v2344 = vpack.c.bf16 %v1811, %v1807
      %v2345 = vpack.c.bf16 %v2022, %v2018
      %v2346 = vpack.c.bf16 %v2024, %v2020
      %v2347 = vpack.c.bf16 %v2222, %v2219
      %v2348 = vpack.c.bf16 %v1819, %v1815
      %v2349 = vpack.c.bf16 %v1821, %v1817
      %v2350 = vpack.c.bf16 %v2032, %v2028
      %v2351 = vpack.c.bf16 %v2034, %v2030
      %v2352 = vpack.c.bf16 %v2230, %v2227
      %v2353 = vpack.c.bf16 %v1829, %v1825
      %v2354 = vpack.c.bf16 %v1831, %v1827
      %v2355 = vpack.c.bf16 %v2042, %v2038
      %v2356 = vpack.c.bf16 %v2044, %v2040
      %v2357 = vpack.c.bf16 %v2238, %v2235
      %v2358 = vpack.c.bf16 %v1839, %v1835
      %v2359 = vpack.c.bf16 %v1841, %v1837
      %v2360 = vpack.c.bf16 %v2052, %v2048
      %v2361 = vpack.c.bf16 %v2054, %v2050
      %v2362 = vpack.c.bf16 %v2246, %v2243
      %v2363 = vpack.c.bf16 %v1849, %v1845
      %v2364 = vpack.c.bf16 %v1851, %v1847
      %v2365 = vpack.c.bf16 %v2062, %v2058
      %v2366 = vpack.c.bf16 %v2064, %v2060
      %v2367 = vpack.c.bf16 %v2254, %v2251
      %v2368 = vpack.c.bf16 %v1859, %v1855
      %v2369 = vpack.c.bf16 %v1861, %v1857
      %v2370 = vpack.c.bf16 %v2072, %v2068
      %v2371 = vpack.c.bf16 %v2074, %v2070
      %v2372 = vpack.c.bf16 %v2262, %v2259
      %v2373 = vpack.c.bf16 %v1869, %v1865
      %v2374 = vpack.c.bf16 %v1871, %v1867
      %v2375 = vpack.c.bf16 %v2082, %v2078
      %v2376 = vpack.c.bf16 %v2084, %v2080
      %v2377 = vpack.c.bf16 %v2270, %v2267
      %v2378 = vpack.c.bf16 %v1879, %v1875
      %v2379 = vpack.c.bf16 %v1881, %v1877
      %v2380 = vpack.c.bf16 %v2092, %v2088
      %v2381 = vpack.c.bf16 %v2094, %v2090
      %v2382 = vpack.c.bf16 %v2278, %v2275
      %v2383 = vpack.c.bf16 %v1889, %v1885
      %v2384 = vpack.c.bf16 %v1891, %v1887
      %v2385 = vpack.c.bf16 %v2102, %v2098
      %v2386 = vpack.c.bf16 %v2104, %v2100
      %v2387 = vpack.c.bf16 %v2286, %v2283
      %v2388 = vpack.c.bf16 %v1899, %v1895
      %v2389 = vpack.c.bf16 %v1901, %v1897
      %v2390 = vpack.c.bf16 %v2112, %v2108
      %v2391 = vpack.c.bf16 %v2114, %v2110
      %v2392 = vpack.c.bf16 %v2294, %v2291
      %v2393 = vpack.c.bf16 %v1909, %v1905
      %v2394 = vpack.c.bf16 %v1911, %v1907
      %v2395 = vpack.c.bf16 %v2122, %v2118
      %v2396 = vpack.c.bf16 %v2124, %v2120
      %v2397 = vpack.c.bf16 %v2302, %v2299
      %v2398 = vpack.c.bf16 %v1919, %v1915
      %v2399 = vpack.c.bf16 %v1921, %v1917
      %v2400 = vpack.c.bf16 %v2132, %v2128
      %v2401 = vpack.c.bf16 %v2134, %v2130
      %v2402 = vpack.c.bf16 %v2310, %v2307
      %v2403 = vld [vmem:[%s5] sm:$0xff]
      %v2404 = vld [vmem:[%s5 + $0x8] sm:$0xff]
      %v2405 = vld [vmem:[%s5 + $0x10] sm:$0xff]
      %v2406 = vld [vmem:[%s5 + $0x18] sm:$0xff]
      %v2407 = vld [vmem:[%s5 + $0x20] sm:$0xff]
      %v2408 = vld [vmem:[%s5 + $0x28] sm:$0xff]
      %v2409 = vld [vmem:[%s5 + $0x30] sm:$0xff]
      %v2410 = vld [vmem:[%s5 + $0x38] sm:$0xff]
      %v2411 = vld [vmem:[%s5 + $0x40] sm:$0xff]
      %v2412 = vld [vmem:[%s5 + $0x48] sm:$0xff]
      %v2413 = vld [vmem:[%s5 + $0x50] sm:$0xff]
      %v2414 = vld [vmem:[%s5 + $0x58] sm:$0xff]
      %v2415 = vld [vmem:[%s5 + $0x60] sm:$0xff]
      %v2416 = vld [vmem:[%s5 + $0x68] sm:$0xff]
      %v2417 = vld [vmem:[%s5 + $0x70] sm:$0xff]
      %v2418 = vld [vmem:[%s5 + $0x78] sm:$0xff]
      %v2419 = vld [vmem:[%s5 + $0x80] sm:$0xff]
      %v2420 = vld [vmem:[%s5 + $0x88] sm:$0xff]
      %v2421 = vld [vmem:[%s5 + $0x90] sm:$0xff]
      %v2422 = vld [vmem:[%s5 + $0x98] sm:$0xff]
      %v2423 = vld [vmem:[%s5 + $0xa0] sm:$0xff]
      %v2424 = vld [vmem:[%s5 + $0xa8] sm:$0xff]
      %v2425 = vld [vmem:[%s5 + $0xb0] sm:$0xff]
      %v2426 = vld [vmem:[%s5 + $0xb8] sm:$0xff]
      %v2427 = vld [vmem:[%s5 + $0xc0] sm:$0xff]
      %v2428 = vld [vmem:[%s5 + $0xc8] sm:$0xff]
      %v2429 = vld [vmem:[%s5 + $0xd0] sm:$0xff]
      %v2430 = vld [vmem:[%s5 + $0xd8] sm:$0xff]
      %v2431 = vld [vmem:[%s5 + $0xe0] sm:$0xff]
      %v2432 = vld [vmem:[%s5 + $0xe8] sm:$0xff]
      %v2433 = vld [vmem:[%s5 + $0xf0] sm:$0xff]
      %v2434 = vld [vmem:[%s5 + $0xf8] sm:$0xff]
      %v2435 = vld [vmem:[%s5 + $0x100] sm:$0xff]
      %v2436 = vld [vmem:[%s5 + $0x108] sm:$0xff]
      %v2437 = vld [vmem:[%s5 + $0x110] sm:$0xff]
      %v2438 = vld [vmem:[%s5 + $0x118] sm:$0xff]
      %v2439 = vld [vmem:[%s5 + $0x120] sm:$0xff]
      %v2440 = vld [vmem:[%s5 + $0x128] sm:$0xff]
      %v2441 = vld [vmem:[%s5 + $0x130] sm:$0xff]
      %v2442 = vld [vmem:[%s5 + $0x138] sm:$0xff]
      %v2443 = vld [vmem:[%s5 + $0x140] sm:$0xff]
      %v2444 = vld [vmem:[%s5 + $0x148] sm:$0xff]
      %v2445 = vld [vmem:[%s5 + $0x150] sm:$0xff]
      %v2446 = vld [vmem:[%s5 + $0x158] sm:$0xff]
      %v2447 = vld [vmem:[%s5 + $0x160] sm:$0xff]
      %v2448 = vld [vmem:[%s5 + $0x168] sm:$0xff]
      %v2449 = vld [vmem:[%s5 + $0x170] sm:$0xff]
      %v2450 = vld [vmem:[%s5 + $0x178] sm:$0xff]
      %v2451 = vld [vmem:[%s5 + $0x180] sm:$0xff]
      %v2452 = vld [vmem:[%s5 + $0x188] sm:$0xff]
      %v2453 = vld [vmem:[%s5 + $0x190] sm:$0xff]
      %v2454 = vld [vmem:[%s5 + $0x198] sm:$0xff]
      %v2455 = vld [vmem:[%s5 + $0x1a0] sm:$0xff]
      %v2456 = vld [vmem:[%s5 + $0x1a8] sm:$0xff]
      %v2457 = vld [vmem:[%s5 + $0x1b0] sm:$0xff]
      %v2458 = vld [vmem:[%s5 + $0x1b8] sm:$0xff]
      %v2459 = vld [vmem:[%s5 + $0x1c0] sm:$0xff]
      %v2460 = vld [vmem:[%s5 + $0x1c8] sm:$0xff]
      %v2461 = vld [vmem:[%s5 + $0x1d0] sm:$0xff]
      %v2462 = vld [vmem:[%s5 + $0x1d8] sm:$0xff]
      %v2463 = vld [vmem:[%s5 + $0x1e0] sm:$0xff]
      %v2464 = vld [vmem:[%s5 + $0x1e8] sm:$0xff]
      %v2465 = vld [vmem:[%s5 + $0x1f0] sm:$0xff]
      %v2466 = vld [vmem:[%s5 + $0x1f8] sm:$0xff]
      %v2467 = vld [vmem:[%s5 + $0x200] sm:$0xff]
      %v2468 = vld [vmem:[%s5 + $0x208] sm:$0xff]
      %v2469 = vld [vmem:[%s5 + $0x210] sm:$0xff]
      %v2470 = vld [vmem:[%s5 + $0x218] sm:$0xff]
      %v2471 = vld [vmem:[%s5 + $0x220] sm:$0xff]
      %v2472 = vld [vmem:[%s5 + $0x228] sm:$0xff]
      %v2473 = vld [vmem:[%s5 + $0x230] sm:$0xff]
      %v2474 = vld [vmem:[%s5 + $0x238] sm:$0xff]
      %s2475 = scalar_lea.vmem %s5, 576
      %v2476 = vld [vmem:[%s2475] sm:$0xff]
      %v2477 = vld [vmem:[%s2475 + $0x8] sm:$0xff]
      %v2478 = vld [vmem:[%s2475 + $0x10] sm:$0xff]
      %v2479 = vld [vmem:[%s2475 + $0x18] sm:$0xff]
      %v2480 = vld [vmem:[%s2475 + $0x20] sm:$0xff]
      %v2481 = vld [vmem:[%s2475 + $0x28] sm:$0xff]
      %v2482 = vld [vmem:[%s2475 + $0x30] sm:$0xff]
      %v2483 = vld [vmem:[%s2475 + $0x38] sm:$0xff]
      %v2484 = vld [vmem:[%s2475 + $0x40] sm:$0xff]
      %v2485 = vld [vmem:[%s2475 + $0x48] sm:$0xff]
      %v2486 = vld [vmem:[%s2475 + $0x50] sm:$0xff]
      %v2487 = vld [vmem:[%s2475 + $0x58] sm:$0xff]
      %v2488 = vld [vmem:[%s2475 + $0x60] sm:$0xff]
      %v2489 = vld [vmem:[%s2475 + $0x68] sm:$0xff]
      %v2490 = vld [vmem:[%s2475 + $0x70] sm:$0xff]
      %v2491 = vld [vmem:[%s2475 + $0x78] sm:$0xff]
      %v2492 = vld [vmem:[%s2475 + $0x80] sm:$0xff]
      %v2493 = vld [vmem:[%s2475 + $0x88] sm:$0xff]
      %v2494 = vld [vmem:[%s2475 + $0x90] sm:$0xff]
      %v2495 = vld [vmem:[%s2475 + $0x98] sm:$0xff]
      %v2496 = vld [vmem:[%s2475 + $0xa0] sm:$0xff]
      %v2497 = vld [vmem:[%s2475 + $0xa8] sm:$0xff]
      %v2498 = vld [vmem:[%s2475 + $0xb0] sm:$0xff]
      %v2499 = vld [vmem:[%s2475 + $0xb8] sm:$0xff]
      %v2500 = vld [vmem:[%s2475 + $0xc0] sm:$0xff]
      %v2501 = vld [vmem:[%s2475 + $0xc8] sm:$0xff]
      %v2502 = vld [vmem:[%s2475 + $0xd0] sm:$0xff]
      %v2503 = vld [vmem:[%s2475 + $0xd8] sm:$0xff]
      %v2504 = vld [vmem:[%s2475 + $0xe0] sm:$0xff]
      %v2505 = vld [vmem:[%s2475 + $0xe8] sm:$0xff]
      %v2506 = vld [vmem:[%s2475 + $0xf0] sm:$0xff]
      %v2507 = vld [vmem:[%s2475 + $0xf8] sm:$0xff]
      %v2508 = vld [vmem:[%s2475 + $0x100] sm:$0xff]
      %v2509 = vld [vmem:[%s2475 + $0x108] sm:$0xff]
      %v2510 = vld [vmem:[%s2475 + $0x110] sm:$0xff]
      %v2511 = vld [vmem:[%s2475 + $0x118] sm:$0xff]
      %v2512 = vld [vmem:[%s2475 + $0x120] sm:$0xff]
      %v2513 = vld [vmem:[%s2475 + $0x128] sm:$0xff]
      %v2514 = vld [vmem:[%s2475 + $0x130] sm:$0xff]
      %v2515 = vld [vmem:[%s2475 + $0x138] sm:$0xff]
      %v2516 = vld [vmem:[%s2475 + $0x140] sm:$0xff]
      %v2517 = vld [vmem:[%s2475 + $0x148] sm:$0xff]
      %v2518 = vld [vmem:[%s2475 + $0x150] sm:$0xff]
      %v2519 = vld [vmem:[%s2475 + $0x158] sm:$0xff]
      %v2520 = vld [vmem:[%s2475 + $0x160] sm:$0xff]
      %v2521 = vld [vmem:[%s2475 + $0x168] sm:$0xff]
      %v2522 = vld [vmem:[%s2475 + $0x170] sm:$0xff]
      %v2523 = vld [vmem:[%s2475 + $0x178] sm:$0xff]
      %v2524 = vld [vmem:[%s2475 + $0x180] sm:$0xff]
      %v2525 = vld [vmem:[%s2475 + $0x188] sm:$0xff]
      %v2526 = vld [vmem:[%s2475 + $0x190] sm:$0xff]
      %v2527 = vld [vmem:[%s2475 + $0x198] sm:$0xff]
      %v2528 = vld [vmem:[%s2475 + $0x1a0] sm:$0xff]
      %v2529 = vld [vmem:[%s2475 + $0x1a8] sm:$0xff]
      %v2530 = vld [vmem:[%s2475 + $0x1b0] sm:$0xff]
      %v2531 = vld [vmem:[%s2475 + $0x1b8] sm:$0xff]
      %v2532 = vld [vmem:[%s2475 + $0x1c0] sm:$0xff]
      %v2533 = vld [vmem:[%s2475 + $0x1c8] sm:$0xff]
      %v2534 = vld [vmem:[%s2475 + $0x1d0] sm:$0xff]
      %v2535 = vld [vmem:[%s2475 + $0x1d8] sm:$0xff]
      %v2536 = vld [vmem:[%s2475 + $0x1e0] sm:$0xff]
      %v2537 = vld [vmem:[%s2475 + $0x1e8] sm:$0xff]
      %v2538 = vld [vmem:[%s2475 + $0x1f0] sm:$0xff]
      %v2539 = vld [vmem:[%s2475 + $0x1f8] sm:$0xff]
      %v2540 = vld [vmem:[%s2475 + $0x200] sm:$0xff]
      %v2541 = vld [vmem:[%s2475 + $0x208] sm:$0xff]
      %v2542 = vld [vmem:[%s2475 + $0x210] sm:$0xff]
      %v2543 = vld [vmem:[%s2475 + $0x218] sm:$0xff]
      %v2544 = vld [vmem:[%s2475 + $0x220] sm:$0xff]
      %v2545 = vld [vmem:[%s2475 + $0x228] sm:$0xff]
      %v2546 = vld [vmem:[%s2475 + $0x230] sm:$0xff]
      %v2547 = vld [vmem:[%s2475 + $0x238] sm:$0xff]
      %v2620 = vunpack.c.l.b16 %v2476
      %v2621 = vunpack.c.h.b16 %v2476
      %v2622 = vunpack.c.l.b16 %v2477
      %v2623 = vunpack.c.h.b16 %v2477
      %v2624 = vunpack.c.l.b16 %v2478
      %v2625 = vunpack.c.h.b16 %v2478
      %v2626 = vunpack.c.l.b16 %v2479
      %v2627 = vunpack.c.h.b16 %v2479
      %v2628 = vunpack.c.l.b16 %v2480
      %v2629 = vunpack.c.h.b16 %v2480
      %v2630 = vunpack.c.l.b16 %v2481
      %v2631 = vunpack.c.h.b16 %v2481
      %v2632 = vunpack.c.l.b16 %v2482
      %v2633 = vunpack.c.h.b16 %v2482
      %v2634 = vunpack.c.l.b16 %v2483
      %v2635 = vunpack.c.h.b16 %v2483
      %v2636 = vunpack.c.l.b16 %v2484
      %v2637 = vunpack.c.h.b16 %v2484
      %v2638 = vunpack.c.l.b16 %v2485
      %v2639 = vunpack.c.h.b16 %v2485
      %v2640 = vunpack.c.l.b16 %v2486
      %v2641 = vunpack.c.h.b16 %v2486
      %v2642 = vunpack.c.l.b16 %v2487
      %v2643 = vunpack.c.h.b16 %v2487
      %v2644 = vunpack.c.l.b16 %v2488
      %v2645 = vunpack.c.h.b16 %v2488
      %v2646 = vunpack.c.l.b16 %v2489
      %v2647 = vunpack.c.h.b16 %v2489
      %v2648 = vunpack.c.l.b16 %v2490
      %v2649 = vunpack.c.h.b16 %v2490
      %v2650 = vunpack.c.l.b16 %v2491
      %v2651 = vunpack.c.h.b16 %v2491
      %v2652 = vunpack.c.l.b16 %v2492
      %v2653 = vunpack.c.h.b16 %v2492
      %v2654 = vunpack.c.l.b16 %v2493
      %v2655 = vunpack.c.h.b16 %v2493
      %v2656 = vunpack.c.l.b16 %v2494
      %v2657 = vunpack.c.h.b16 %v2494
      %v2658 = vunpack.c.l.b16 %v2495
      %v2659 = vunpack.c.h.b16 %v2495
      %v2660 = vunpack.c.l.b16 %v2496
      %v2661 = vunpack.c.h.b16 %v2496
      %v2662 = vunpack.c.l.b16 %v2497
      %v2663 = vunpack.c.h.b16 %v2497
      %v2664 = vunpack.c.l.b16 %v2498
      %v2665 = vunpack.c.h.b16 %v2498
      %v2666 = vunpack.c.l.b16 %v2499
      %v2667 = vunpack.c.h.b16 %v2499
      %v2668 = vunpack.c.l.b16 %v2500
      %v2669 = vunpack.c.h.b16 %v2500
      %v2670 = vunpack.c.l.b16 %v2501
      %v2671 = vunpack.c.h.b16 %v2501
      %v2672 = vunpack.c.l.b16 %v2502
      %v2673 = vunpack.c.h.b16 %v2502
      %v2674 = vunpack.c.l.b16 %v2503
      %v2675 = vunpack.c.h.b16 %v2503
      %v2676 = vunpack.c.l.b16 %v2504
      %v2677 = vunpack.c.h.b16 %v2504
      %v2678 = vunpack.c.l.b16 %v2505
      %v2679 = vunpack.c.h.b16 %v2505
      %v2680 = vunpack.c.l.b16 %v2506
      %v2681 = vunpack.c.h.b16 %v2506
      %v2682 = vunpack.c.l.b16 %v2507
      %v2683 = vunpack.c.h.b16 %v2507
      %v2684 = vunpack.c.l.b16 %v2508
      %v2685 = vunpack.c.h.b16 %v2508
      %v2686 = vunpack.c.l.b16 %v2509
      %v2687 = vunpack.c.h.b16 %v2509
      %v2688 = vunpack.c.l.b16 %v2510
      %v2689 = vunpack.c.h.b16 %v2510
      %v2690 = vunpack.c.l.b16 %v2511
      %v2691 = vunpack.c.h.b16 %v2511
      %v2692 = vunpack.c.l.b16 %v2512
      %v2693 = vunpack.c.h.b16 %v2512
      %v2694 = vunpack.c.l.b16 %v2513
      %v2695 = vunpack.c.h.b16 %v2513
      %v2696 = vunpack.c.l.b16 %v2514
      %v2697 = vunpack.c.h.b16 %v2514
      %v2698 = vunpack.c.l.b16 %v2515
      %v2699 = vunpack.c.h.b16 %v2515
      %v2700 = vunpack.c.l.b16 %v2516
      %v2701 = vunpack.c.h.b16 %v2516
      %v2702 = vunpack.c.l.b16 %v2517
      %v2703 = vunpack.c.h.b16 %v2517
      %v2704 = vunpack.c.l.b16 %v2518
      %v2705 = vunpack.c.h.b16 %v2518
      %v2706 = vunpack.c.l.b16 %v2519
      %v2707 = vunpack.c.h.b16 %v2519
      %v2708 = vunpack.c.l.b16 %v2520
      %v2709 = vunpack.c.h.b16 %v2520
      %v2710 = vunpack.c.l.b16 %v2521
      %v2711 = vunpack.c.h.b16 %v2521
      %v2712 = vunpack.c.l.b16 %v2522
      %v2713 = vunpack.c.h.b16 %v2522
      %v2714 = vunpack.c.l.b16 %v2523
      %v2715 = vunpack.c.h.b16 %v2523
      %v2716 = vunpack.c.l.b16 %v2524
      %v2717 = vunpack.c.h.b16 %v2524
      %v2718 = vunpack.c.l.b16 %v2525
      %v2719 = vunpack.c.h.b16 %v2525
      %v2720 = vunpack.c.l.b16 %v2526
      %v2721 = vunpack.c.h.b16 %v2526
      %v2722 = vunpack.c.l.b16 %v2527
      %v2723 = vunpack.c.h.b16 %v2527
      %v2724 = vunpack.c.l.b16 %v2528
      %v2725 = vunpack.c.h.b16 %v2528
      %v2726 = vunpack.c.l.b16 %v2529
      %v2727 = vunpack.c.h.b16 %v2529
      %v2728 = vunpack.c.l.b16 %v2530
      %v2729 = vunpack.c.h.b16 %v2530
      %v2730 = vunpack.c.l.b16 %v2531
      %v2731 = vunpack.c.h.b16 %v2531
      %v2732 = vunpack.c.l.b16 %v2532
      %v2733 = vunpack.c.h.b16 %v2532
      %v2734 = vunpack.c.l.b16 %v2533
      %v2735 = vunpack.c.h.b16 %v2533
      %v2736 = vunpack.c.l.b16 %v2534
      %v2737 = vunpack.c.h.b16 %v2534
      %v2738 = vunpack.c.l.b16 %v2535
      %v2739 = vunpack.c.h.b16 %v2535
      %v2740 = vunpack.c.l.b16 %v2536
      %v2741 = vunpack.c.h.b16 %v2536
      %v2742 = vunpack.c.l.b16 %v2537
      %v2743 = vunpack.c.h.b16 %v2537
      %v2744 = vunpack.c.l.b16 %v2538
      %v2745 = vunpack.c.h.b16 %v2538
      %v2746 = vunpack.c.l.b16 %v2539
      %v2747 = vunpack.c.h.b16 %v2539
      %v2748 = vunpack.c.l.b16 %v2540
      %v2749 = vunpack.c.h.b16 %v2540
      %v2750 = vunpack.c.l.b16 %v2541
      %v2751 = vunpack.c.h.b16 %v2541
      %v2752 = vunpack.c.l.b16 %v2542
      %v2753 = vunpack.c.h.b16 %v2542
      %v2754 = vunpack.c.l.b16 %v2543
      %v2755 = vunpack.c.h.b16 %v2543
      %v2756 = vunpack.c.l.b16 %v2544
      %v2757 = vunpack.c.h.b16 %v2544
      %v2758 = vunpack.c.l.b16 %v2545
      %v2759 = vunpack.c.h.b16 %v2545
      %v2760 = vunpack.c.l.b16 %v2546
      %v2761 = vunpack.c.h.b16 %v2546
      %v2762 = vunpack.c.l.b16 %v2547
      %v2763 = vunpack.c.h.b16 %v2547
      %v2764 = vpack.c.b16 %v2622, %v2620
      %v2765 = vpack.c.b16 %v2623, %v2621
      %v2766 = vpack.c.b16 %v2626, %v2624
      %v2767 = vpack.c.b16 %v2627, %v2625
      %v2768 = vpack.c.b16 %v2630, %v2628
      %v2769 = vpack.c.b16 %v2631, %v2629
      %v2770 = vpack.c.b16 %v2634, %v2632
      %v2771 = vpack.c.b16 %v2635, %v2633
      %v2772 = vpack.c.b16 %v2638, %v2636
      %v2773 = vpack.c.b16 %v2639, %v2637
      %v2774 = vpack.c.b16 %v2642, %v2640
      %v2775 = vpack.c.b16 %v2643, %v2641
      %v2776 = vpack.c.b16 %v2646, %v2644
      %v2777 = vpack.c.b16 %v2647, %v2645
      %v2778 = vpack.c.b16 %v2650, %v2648
      %v2779 = vpack.c.b16 %v2651, %v2649
      %v2780 = vpack.c.b16 %v2654, %v2652
      %v2781 = vpack.c.b16 %v2655, %v2653
      %v2782 = vpack.c.b16 %v2658, %v2656
      %v2783 = vpack.c.b16 %v2659, %v2657
      %v2784 = vpack.c.b16 %v2662, %v2660
      %v2785 = vpack.c.b16 %v2663, %v2661
      %v2786 = vpack.c.b16 %v2666, %v2664
      %v2787 = vpack.c.b16 %v2667, %v2665
      %v2788 = vpack.c.b16 %v2670, %v2668
      %v2789 = vpack.c.b16 %v2671, %v2669
      %v2790 = vpack.c.b16 %v2674, %v2672
      %v2791 = vpack.c.b16 %v2675, %v2673
      %v2792 = vpack.c.b16 %v2678, %v2676
      %v2793 = vpack.c.b16 %v2679, %v2677
      %v2794 = vpack.c.b16 %v2682, %v2680
      %v2795 = vpack.c.b16 %v2683, %v2681
      %v2796 = vpack.c.b16 %v2686, %v2684
      %v2797 = vpack.c.b16 %v2687, %v2685
      %v2798 = vpack.c.b16 %v2690, %v2688
      %v2799 = vpack.c.b16 %v2691, %v2689
      %v2800 = vpack.c.b16 %v2694, %v2692
      %v2801 = vpack.c.b16 %v2695, %v2693
      %v2802 = vpack.c.b16 %v2698, %v2696
      %v2803 = vpack.c.b16 %v2699, %v2697
      %v2804 = vpack.c.b16 %v2702, %v2700
      %v2805 = vpack.c.b16 %v2703, %v2701
      %v2806 = vpack.c.b16 %v2706, %v2704
      %v2807 = vpack.c.b16 %v2707, %v2705
      %v2808 = vpack.c.b16 %v2710, %v2708
      %v2809 = vpack.c.b16 %v2711, %v2709
      %v2810 = vpack.c.b16 %v2714, %v2712
      %v2811 = vpack.c.b16 %v2715, %v2713
      %v2812 = vpack.c.b16 %v2718, %v2716
      %v2813 = vpack.c.b16 %v2719, %v2717
      %v2814 = vpack.c.b16 %v2722, %v2720
      %v2815 = vpack.c.b16 %v2723, %v2721
      %v2816 = vpack.c.b16 %v2726, %v2724
      %v2817 = vpack.c.b16 %v2727, %v2725
      %v2818 = vpack.c.b16 %v2730, %v2728
      %v2819 = vpack.c.b16 %v2731, %v2729
      %v2820 = vpack.c.b16 %v2734, %v2732
      %v2821 = vpack.c.b16 %v2735, %v2733
      %v2822 = vpack.c.b16 %v2738, %v2736
      %v2823 = vpack.c.b16 %v2739, %v2737
      %v2824 = vpack.c.b16 %v2742, %v2740
      %v2825 = vpack.c.b16 %v2743, %v2741
      %v2826 = vpack.c.b16 %v2746, %v2744
      %v2827 = vpack.c.b16 %v2747, %v2745
      %v2828 = vpack.c.b16 %v2750, %v2748
      %v2829 = vpack.c.b16 %v2751, %v2749
      %v2830 = vpack.c.b16 %v2754, %v2752
      %v2831 = vpack.c.b16 %v2755, %v2753
      %v2832 = vpack.c.b16 %v2758, %v2756
      %v2833 = vpack.c.b16 %v2759, %v2757
      %v2834 = vpack.c.b16 %v2762, %v2760
      %v2835 = vpack.c.b16 %v2763, %v2761
      %v2909 = vsel %vm1655, %v2327, 0
      %v2912 = vsel %vm1655, %v2332, 0
      %2914 = vmatprep.subr.bf16.mxu0 %v2765
      %2915 = vmatpush1.bf16.msra.mxu0 %v2764
      %2916 = vmatprep.subr.bf16.mxu0 %v2767
      %2917 = vmatpush1.bf16.msra.mxu0 %v2766
      %2918 = vmatprep.subr.bf16.mxu0 %v2769
      %2919 = vmatpush1.bf16.msra.mxu0 %v2768
      %2920 = vmatprep.subr.bf16.mxu0 %v2771
      %2921 = vmatpush1.bf16.msra.mxu0 %v2770
      %2922 = vmatprep.subr.bf16.mxu0 %v2773
      %2923 = vmatpush1.bf16.msra.mxu0 %v2772
      %2924 = vmatprep.subr.bf16.mxu0 %v2775
      %2925 = vmatpush1.bf16.msra.mxu0 %v2774
      %2926 = vmatprep.subr.bf16.mxu0 %v2777
      %2927 = vmatpush1.bf16.msra.mxu0 %v2776
      %2928 = vmatprep.subr.bf16.mxu0 %v2779
      %2929 = vmatpush1.bf16.msra.mxu0 %v2778
      %2930 = vmatprep.subr.bf16.mxu0 %v2781
      %2931 = vmatpush1.bf16.msra.mxu0 %v2780
      %2932 = vmatprep.subr.bf16.mxu0 %v2783
      %2933 = vmatpush1.bf16.msra.mxu0 %v2782
      %2934 = vmatprep.subr.bf16.mxu0 %v2785
      %2935 = vmatpush1.bf16.msra.mxu0 %v2784
      %2936 = vmatprep.subr.bf16.mxu0 %v2787
      %2937 = vmatpush1.bf16.msra.mxu0 %v2786
      %2938 = vmatprep.subr.bf16.mxu0 %v2789
      %2939 = vmatpush1.bf16.msra.mxu0 %v2788
      %2940 = vmatprep.subr.bf16.mxu0 %v2791
      %2941 = vmatpush1.bf16.msra.mxu0 %v2790
      %2942 = vmatprep.subr.bf16.mxu0 %v2793
      %2943 = vmatpush1.bf16.msra.mxu0 %v2792
      %2944 = vmatprep.subr.bf16.mxu0 %v2795
      %2945 = vmatpush1.bf16.msra.mxu0 %v2794
      %2946 = vmatprep.mubr.bf16.mxu0 %v2324
      %2947 = vmatmul.mubr.bf16.gmra.mrb[0].mxu0 %v2323
      %v2948 = vpop.f32.mrb[0].mxu0
      %v2949 = vadd.f32 0.0, %v2948
      %v2950 = vpop.f32.mrb[0].mxu0
      %v2951 = vadd.f32 0.0, %v2950
      %v2952 = vpop.f32.mrb[0].mxu0
      %v2953 = vadd.f32 0.0, %v2952
      %v2954 = vpop.f32.mrb[0].mxu0
      %v2955 = vadd.f32 0.0, %v2954
      %2956 = vmatprep.mubr.bf16.mxu0 %v2329
      %2957 = vmatmul.mubr.bf16.gmra.mrb[0].mxu0 %v2328
      %v2958 = vpop.f32.mrb[0].mxu0
      %v2959 = vadd.f32 0.0, %v2958
      %v2960 = vpop.f32.mrb[0].mxu0
      %v2961 = vadd.f32 0.0, %v2960
      %v2962 = vpop.f32.mrb[0].mxu0
      %v2963 = vadd.f32 0.0, %v2962
      %v2964 = vpop.f32.mrb[0].mxu0
      %v2965 = vadd.f32 0.0, %v2964
      %2966 = vdwg.mxu0
      %2967 = vmatprep.subr.bf16.mxu0 %v2797
      %2968 = vmatpush1.bf16.msra.mxu0 %v2796
      %2969 = vmatprep.subr.bf16.mxu0 %v2799
      %2970 = vmatpush1.bf16.msra.mxu0 %v2798
      %2971 = vmatprep.subr.bf16.mxu0 %v2801
      %2972 = vmatpush1.bf16.msra.mxu0 %v2800
      %2973 = vmatprep.subr.bf16.mxu0 %v2803
      %2974 = vmatpush1.bf16.msra.mxu0 %v2802
      %2975 = vmatprep.subr.bf16.mxu0 %v2805
      %2976 = vmatpush1.bf16.msra.mxu0 %v2804
      %2977 = vmatprep.subr.bf16.mxu0 %v2807
      %2978 = vmatpush1.bf16.msra.mxu0 %v2806
      %2979 = vmatprep.subr.bf16.mxu0 %v2809
      %2980 = vmatpush1.bf16.msra.mxu0 %v2808
      %2981 = vmatprep.subr.bf16.mxu0 %v2811
      %2982 = vmatpush1.bf16.msra.mxu0 %v2810
      %2983 = vmatprep.subr.bf16.mxu0 %v2813
      %2984 = vmatpush1.bf16.msra.mxu0 %v2812
      %2985 = vmatprep.subr.bf16.mxu0 %v2815
      %2986 = vmatpush1.bf16.msra.mxu0 %v2814
      %2987 = vmatprep.subr.bf16.mxu0 %v2817
      %2988 = vmatpush1.bf16.msra.mxu0 %v2816
      %2989 = vmatprep.subr.bf16.mxu0 %v2819
      %2990 = vmatpush1.bf16.msra.mxu0 %v2818
      %2991 = vmatprep.subr.bf16.mxu0 %v2821
      %2992 = vmatpush1.bf16.msra.mxu0 %v2820
      %2993 = vmatprep.subr.bf16.mxu0 %v2823
      %2994 = vmatpush1.bf16.msra.mxu0 %v2822
      %2995 = vmatprep.subr.bf16.mxu0 %v2825
      %2996 = vmatpush1.bf16.msra.mxu0 %v2824
      %2997 = vmatprep.subr.bf16.mxu0 %v2827
      %2998 = vmatpush1.bf16.msra.mxu0 %v2826
      %2999 = vmatprep.mubr.bf16.mxu0 %v2326
      %3000 = vmatmul.mubr.bf16.gmra.mrb[0].mxu0 %v2325
      %v3001 = vpop.f32.mrb[0].mxu0
      %v3002 = vadd.f32 %v2949, %v3001
      %v3003 = vpop.f32.mrb[0].mxu0
      %v3004 = vadd.f32 %v2951, %v3003
      %v3005 = vpop.f32.mrb[0].mxu0
      %v3006 = vadd.f32 %v2953, %v3005
      %v3007 = vpop.f32.mrb[0].mxu0
      %v3008 = vadd.f32 %v2955, %v3007
      %3009 = vmatprep.mubr.bf16.mxu0 %v2331
      %3010 = vmatmul.mubr.bf16.gmra.mrb[0].mxu0 %v2330
      %v3011 = vpop.f32.mrb[0].mxu0
      %v3012 = vadd.f32 %v2959, %v3011
      %v3013 = vpop.f32.mrb[0].mxu0
      %v3014 = vadd.f32 %v2961, %v3013
      %v3015 = vpop.f32.mrb[0].mxu0
      %v3016 = vadd.f32 %v2963, %v3015
      %v3017 = vpop.f32.mrb[0].mxu0
      %v3018 = vadd.f32 %v2965, %v3017
      %3019 = vdwg.mxu0
      %3020 = vmatprep.subr.bf16.mxu0 %v2829
      %3021 = vmatpush1.bf16.msra.mxu0 %v2828
      %3022 = vmatprep.subr.bf16.mxu0 %v2831
      %3023 = vmatpush1.bf16.msra.mxu0 %v2830
      %3024 = vmatprep.subr.bf16.mxu0 %v2833
      %3025 = vmatpush1.bf16.msra.mxu0 %v2832
      %3026 = vmatprep.subr.bf16.mxu0 %v2835
      %3027 = vmatpush1.bf16.msra.mxu0 %v2834
      %3028 = vmatprep.subr.bf16.mxu0 0
      %3029 = vmatpush1.bf16.msra.mxu0 0
      %3030 = vmatprep.subr.bf16.mxu0 0
      %3031 = vmatpush1.bf16.msra.mxu0 0
      %3032 = vmatprep.subr.bf16.mxu0 0
      %3033 = vmatpush1.bf16.msra.mxu0 0
      %3034 = vmatprep.subr.bf16.mxu0 0
      %3035 = vmatpush1.bf16.msra.mxu0 0
      %3036 = vmatprep.subr.bf16.mxu0 0
      %3037 = vmatpush1.bf16.msra.mxu0 0
      %3038 = vmatprep.subr.bf16.mxu0 0
      %3039 = vmatpush1.bf16.msra.mxu0 0
      %3040 = vmatprep.subr.bf16.mxu0 0
      %3041 = vmatpush1.bf16.msra.mxu0 0
      %3042 = vmatprep.subr.bf16.mxu0 0
      %3043 = vmatpush1.bf16.msra.mxu0 0
      %3044 = vmatprep.subr.bf16.mxu0 0
      %3045 = vmatpush1.bf16.msra.mxu0 0
      %3046 = vmatprep.subr.bf16.mxu0 0
      %3047 = vmatpush1.bf16.msra.mxu0 0
      %3048 = vmatprep.subr.bf16.mxu0 0
      %3049 = vmatpush1.bf16.msra.mxu0 0
      %3050 = vmatprep.subr.bf16.mxu0 0
      %3051 = vmatpush1.bf16.msra.mxu0 0
      %3052 = vmatprep.mubr.bf16.mxu0 0
      %3053 = vmatmul.mubr.bf16.gmra.mrb[0].mxu0 %v2909
      %v3054 = vpop.f32.mrb[0].mxu0
      %v3055 = vadd.f32 %v3002, %v3054
      %v3056 = vpop.f32.mrb[0].mxu0
      %v3057 = vadd.f32 %v3004, %v3056
      %v3058 = vpop.f32.mrb[0].mxu0
      %v3059 = vadd.f32 %v3006, %v3058
      %v3060 = vpop.f32.mrb[0].mxu0
      %v3061 = vadd.f32 %v3008, %v3060
      %3062 = vmatprep.mubr.bf16.mxu0 0
      %3063 = vmatmul.mubr.bf16.gmra.mrb[0].mxu0 %v2912
      %v3064 = vpop.f32.mrb[0].mxu0
      %v3065 = vadd.f32 %v3012, %v3064
      %v3066 = vpop.f32.mrb[0].mxu0
      %v3067 = vadd.f32 %v3014, %v3066
      %v3068 = vpop.f32.mrb[0].mxu0
      %v3069 = vadd.f32 %v3016, %v3068
      %v3070 = vpop.f32.mrb[0].mxu0
      %v3071 = vadd.f32 %v3018, %v3070
      %3072 = vdwg.mxu0
      %v3145 = vunpack.c.l.b16 %v2403
      %v3146 = vunpack.c.h.b16 %v2403
      %v3147 = vunpack.c.l.b16 %v2404
      %v3148 = vunpack.c.h.b16 %v2404
      %v3149 = vunpack.c.l.b16 %v2405
      %v3150 = vunpack.c.h.b16 %v2405
      %v3151 = vunpack.c.l.b16 %v2406
      %v3152 = vunpack.c.h.b16 %v2406
      %v3153 = vunpack.c.l.b16 %v2407
      %v3154 = vunpack.c.h.b16 %v2407
      %v3155 = vunpack.c.l.b16 %v2408
      %v3156 = vunpack.c.h.b16 %v2408
      %v3157 = vunpack.c.l.b16 %v2409
      %v3158 = vunpack.c.h.b16 %v2409
      %v3159 = vunpack.c.l.b16 %v2410
      %v3160 = vunpack.c.h.b16 %v2410
      %v3161 = vunpack.c.l.b16 %v2411
      %v3162 = vunpack.c.h.b16 %v2411
      %v3163 = vunpack.c.l.b16 %v2412
      %v3164 = vunpack.c.h.b16 %v2412
      %v3165 = vunpack.c.l.b16 %v2413
      %v3166 = vunpack.c.h.b16 %v2413
      %v3167 = vunpack.c.l.b16 %v2414
      %v3168 = vunpack.c.h.b16 %v2414
      %v3169 = vunpack.c.l.b16 %v2415
      %v3170 = vunpack.c.h.b16 %v2415
      %v3171 = vunpack.c.l.b16 %v2416
      %v3172 = vunpack.c.h.b16 %v2416
      %v3173 = vunpack.c.l.b16 %v2417
      %v3174 = vunpack.c.h.b16 %v2417
      %v3175 = vunpack.c.l.b16 %v2418
      %v3176 = vunpack.c.h.b16 %v2418
      %v3177 = vunpack.c.l.b16 %v2419
      %v3178 = vunpack.c.h.b16 %v2419
      %v3179 = vunpack.c.l.b16 %v2420
      %v3180 = vunpack.c.h.b16 %v2420
      %v3181 = vunpack.c.l.b16 %v2421
      %v3182 = vunpack.c.h.b16 %v2421
      %v3183 = vunpack.c.l.b16 %v2422
      %v3184 = vunpack.c.h.b16 %v2422
      %v3185 = vunpack.c.l.b16 %v2423
      %v3186 = vunpack.c.h.b16 %v2423
      %v3187 = vunpack.c.l.b16 %v2424
      %v3188 = vunpack.c.h.b16 %v2424
      %v3189 = vunpack.c.l.b16 %v2425
      %v3190 = vunpack.c.h.b16 %v2425
      %v3191 = vunpack.c.l.b16 %v2426
      %v3192 = vunpack.c.h.b16 %v2426
      %v3193 = vunpack.c.l.b16 %v2427
      %v3194 = vunpack.c.h.b16 %v2427
      %v3195 = vunpack.c.l.b16 %v2428
      %v3196 = vunpack.c.h.b16 %v2428
      %v3197 = vunpack.c.l.b16 %v2429
      %v3198 = vunpack.c.h.b16 %v2429
      %v3199 = vunpack.c.l.b16 %v2430
      %v3200 = vunpack.c.h.b16 %v2430
      %v3201 = vunpack.c.l.b16 %v2431
      %v3202 = vunpack.c.h.b16 %v2431
      %v3203 = vunpack.c.l.b16 %v2432
      %v3204 = vunpack.c.h.b16 %v2432
      %v3205 = vunpack.c.l.b16 %v2433
      %v3206 = vunpack.c.h.b16 %v2433
      %v3207 = vunpack.c.l.b16 %v2434
      %v3208 = vunpack.c.h.b16 %v2434
      %v3209 = vunpack.c.l.b16 %v2435
      %v3210 = vunpack.c.h.b16 %v2435
      %v3211 = vunpack.c.l.b16 %v2436
      %v3212 = vunpack.c.h.b16 %v2436
      %v3213 = vunpack.c.l.b16 %v2437
      %v3214 = vunpack.c.h.b16 %v2437
      %v3215 = vunpack.c.l.b16 %v2438
      %v3216 = vunpack.c.h.b16 %v2438
      %v3217 = vunpack.c.l.b16 %v2439
      %v3218 = vunpack.c.h.b16 %v2439
      %v3219 = vunpack.c.l.b16 %v2440
      %v3220 = vunpack.c.h.b16 %v2440
      %v3221 = vunpack.c.l.b16 %v2441
      %v3222 = vunpack.c.h.b16 %v2441
      %v3223 = vunpack.c.l.b16 %v2442
      %v3224 = vunpack.c.h.b16 %v2442
      %v3225 = vunpack.c.l.b16 %v2443
      %v3226 = vunpack.c.h.b16 %v2443
      %v3227 = vunpack.c.l.b16 %v2444
      %v3228 = vunpack.c.h.b16 %v2444
      %v3229 = vunpack.c.l.b16 %v2445
      %v3230 = vunpack.c.h.b16 %v2445
      %v3231 = vunpack.c.l.b16 %v2446
      %v3232 = vunpack.c.h.b16 %v2446
      %v3233 = vunpack.c.l.b16 %v2447
      %v3234 = vunpack.c.h.b16 %v2447
      %v3235 = vunpack.c.l.b16 %v2448
      %v3236 = vunpack.c.h.b16 %v2448
      %v3237 = vunpack.c.l.b16 %v2449
      %v3238 = vunpack.c.h.b16 %v2449
      %v3239 = vunpack.c.l.b16 %v2450
      %v3240 = vunpack.c.h.b16 %v2450
      %v3241 = vunpack.c.l.b16 %v2451
      %v3242 = vunpack.c.h.b16 %v2451
      %v3243 = vunpack.c.l.b16 %v2452
      %v3244 = vunpack.c.h.b16 %v2452
      %v3245 = vunpack.c.l.b16 %v2453
      %v3246 = vunpack.c.h.b16 %v2453
      %v3247 = vunpack.c.l.b16 %v2454
      %v3248 = vunpack.c.h.b16 %v2454
      %v3249 = vunpack.c.l.b16 %v2455
      %v3250 = vunpack.c.h.b16 %v2455
      %v3251 = vunpack.c.l.b16 %v2456
      %v3252 = vunpack.c.h.b16 %v2456
      %v3253 = vunpack.c.l.b16 %v2457
      %v3254 = vunpack.c.h.b16 %v2457
      %v3255 = vunpack.c.l.b16 %v2458
      %v3256 = vunpack.c.h.b16 %v2458
      %v3257 = vunpack.c.l.b16 %v2459
      %v3258 = vunpack.c.h.b16 %v2459
      %v3259 = vunpack.c.l.b16 %v2460
      %v3260 = vunpack.c.h.b16 %v2460
      %v3261 = vunpack.c.l.b16 %v2461
      %v3262 = vunpack.c.h.b16 %v2461
      %v3263 = vunpack.c.l.b16 %v2462
      %v3264 = vunpack.c.h.b16 %v2462
      %v3265 = vunpack.c.l.b16 %v2463
      %v3266 = vunpack.c.h.b16 %v2463
      %v3267 = vunpack.c.l.b16 %v2464
      %v3268 = vunpack.c.h.b16 %v2464
      %v3269 = vunpack.c.l.b16 %v2465
      %v3270 = vunpack.c.h.b16 %v2465
      %v3271 = vunpack.c.l.b16 %v2466
      %v3272 = vunpack.c.h.b16 %v2466
      %v3273 = vunpack.c.l.b16 %v2467
      %v3274 = vunpack.c.h.b16 %v2467
      %v3275 = vunpack.c.l.b16 %v2468
      %v3276 = vunpack.c.h.b16 %v2468
      %v3277 = vunpack.c.l.b16 %v2469
      %v3278 = vunpack.c.h.b16 %v2469
      %v3279 = vunpack.c.l.b16 %v2470
      %v3280 = vunpack.c.h.b16 %v2470
      %v3281 = vunpack.c.l.b16 %v2471
      %v3282 = vunpack.c.h.b16 %v2471
      %v3283 = vunpack.c.l.b16 %v2472
      %v3284 = vunpack.c.h.b16 %v2472
      %v3285 = vunpack.c.l.b16 %v2473
      %v3286 = vunpack.c.h.b16 %v2473
      %v3287 = vunpack.c.l.b16 %v2474
      %v3288 = vunpack.c.h.b16 %v2474
      %v3289 = vpack.c.b16 %v3147, %v3145
      %v3290 = vpack.c.b16 %v3148, %v3146
      %v3291 = vpack.c.b16 %v3151, %v3149
      %v3292 = vpack.c.b16 %v3152, %v3150
      %v3293 = vpack.c.b16 %v3155, %v3153
      %v3294 = vpack.c.b16 %v3156, %v3154
      %v3295 = vpack.c.b16 %v3159, %v3157
      %v3296 = vpack.c.b16 %v3160, %v3158
      %v3297 = vpack.c.b16 %v3163, %v3161
      %v3298 = vpack.c.b16 %v3164, %v3162
      %v3299 = vpack.c.b16 %v3167, %v3165
      %v3300 = vpack.c.b16 %v3168, %v3166
      %v3301 = vpack.c.b16 %v3171, %v3169
      %v3302 = vpack.c.b16 %v3172, %v3170
      %v3303 = vpack.c.b16 %v3175, %v3173
      %v3304 = vpack.c.b16 %v3176, %v3174
      %v3305 = vpack.c.b16 %v3179, %v3177
      %v3306 = vpack.c.b16 %v3180, %v3178
      %v3307 = vpack.c.b16 %v3183, %v3181
      %v3308 = vpack.c.b16 %v3184, %v3182
      %v3309 = vpack.c.b16 %v3187, %v3185
      %v3310 = vpack.c.b16 %v3188, %v3186
      %v3311 = vpack.c.b16 %v3191, %v3189
      %v3312 = vpack.c.b16 %v3192, %v3190
      %v3313 = vpack.c.b16 %v3195, %v3193
      %v3314 = vpack.c.b16 %v3196, %v3194
      %v3315 = vpack.c.b16 %v3199, %v3197
      %v3316 = vpack.c.b16 %v3200, %v3198
      %v3317 = vpack.c.b16 %v3203, %v3201
      %v3318 = vpack.c.b16 %v3204, %v3202
      %v3319 = vpack.c.b16 %v3207, %v3205
      %v3320 = vpack.c.b16 %v3208, %v3206
      %v3321 = vpack.c.b16 %v3211, %v3209
      %v3322 = vpack.c.b16 %v3212, %v3210
      %v3323 = vpack.c.b16 %v3215, %v3213
      %v3324 = vpack.c.b16 %v3216, %v3214
      %v3325 = vpack.c.b16 %v3219, %v3217
      %v3326 = vpack.c.b16 %v3220, %v3218
      %v3327 = vpack.c.b16 %v3223, %v3221
      %v3328 = vpack.c.b16 %v3224, %v3222
      %v3329 = vpack.c.b16 %v3227, %v3225
      %v3330 = vpack.c.b16 %v3228, %v3226
      %v3331 = vpack.c.b16 %v3231, %v3229
      %v3332 = vpack.c.b16 %v3232, %v3230
      %v3333 = vpack.c.b16 %v3235, %v3233
      %v3334 = vpack.c.b16 %v3236, %v3234
      %v3335 = vpack.c.b16 %v3239, %v3237
      %v3336 = vpack.c.b16 %v3240, %v3238
      %v3337 = vpack.c.b16 %v3243, %v3241
      %v3338 = vpack.c.b16 %v3244, %v3242
      %v3339 = vpack.c.b16 %v3247, %v3245
      %v3340 = vpack.c.b16 %v3248, %v3246
      %v3341 = vpack.c.b16 %v3251, %v3249
      %v3342 = vpack.c.b16 %v3252, %v3250
      %v3343 = vpack.c.b16 %v3255, %v3253
      %v3344 = vpack.c.b16 %v3256, %v3254
      %v3345 = vpack.c.b16 %v3259, %v3257
      %v3346 = vpack.c.b16 %v3260, %v3258
      %v3347 = vpack.c.b16 %v3263, %v3261
      %v3348 = vpack.c.b16 %v3264, %v3262
      %v3349 = vpack.c.b16 %v3267, %v3265
      %v3350 = vpack.c.b16 %v3268, %v3266
      %v3351 = vpack.c.b16 %v3271, %v3269
      %v3352 = vpack.c.b16 %v3272, %v3270
      %v3353 = vpack.c.b16 %v3275, %v3273
      %v3354 = vpack.c.b16 %v3276, %v3274
      %v3355 = vpack.c.b16 %v3279, %v3277
      %v3356 = vpack.c.b16 %v3280, %v3278
      %v3357 = vpack.c.b16 %v3283, %v3281
      %v3358 = vpack.c.b16 %v3284, %v3282
      %v3359 = vpack.c.b16 %v3287, %v3285
      %v3360 = vpack.c.b16 %v3288, %v3286
      %v3434 = vsel %vm1655, %v2317, 0
      %v3437 = vsel %vm1655, %v2322, 0
      %3439 = vmatprep.subr.bf16.mxu0 %v3290
      %3440 = vmatpush1.bf16.msra.mxu0 %v3289
      %3441 = vmatprep.subr.bf16.mxu0 %v3292
      %3442 = vmatpush1.bf16.msra.mxu0 %v3291
      %3443 = vmatprep.subr.bf16.mxu0 %v3294
      %3444 = vmatpush1.bf16.msra.mxu0 %v3293
      %3445 = vmatprep.subr.bf16.mxu0 %v3296
      %3446 = vmatpush1.bf16.msra.mxu0 %v3295
      %3447 = vmatprep.subr.bf16.mxu0 %v3298
      %3448 = vmatpush1.bf16.msra.mxu0 %v3297
      %3449 = vmatprep.subr.bf16.mxu0 %v3300
      %3450 = vmatpush1.bf16.msra.mxu0 %v3299
      %3451 = vmatprep.subr.bf16.mxu0 %v3302
      %3452 = vmatpush1.bf16.msra.mxu0 %v3301
      %3453 = vmatprep.subr.bf16.mxu0 %v3304
      %3454 = vmatpush1.bf16.msra.mxu0 %v3303
      %3455 = vmatprep.subr.bf16.mxu0 %v3306
      %3456 = vmatpush1.bf16.msra.mxu0 %v3305
      %3457 = vmatprep.subr.bf16.mxu0 %v3308
      %3458 = vmatpush1.bf16.msra.mxu0 %v3307
      %3459 = vmatprep.subr.bf16.mxu0 %v3310
      %3460 = vmatpush1.bf16.msra.mxu0 %v3309
      %3461 = vmatprep.subr.bf16.mxu0 %v3312
      %3462 = vmatpush1.bf16.msra.mxu0 %v3311
      %3463 = vmatprep.subr.bf16.mxu0 %v3314
      %3464 = vmatpush1.bf16.msra.mxu0 %v3313
      %3465 = vmatprep.subr.bf16.mxu0 %v3316
      %3466 = vmatpush1.bf16.msra.mxu0 %v3315
      %3467 = vmatprep.subr.bf16.mxu0 %v3318
      %3468 = vmatpush1.bf16.msra.mxu0 %v3317
      %3469 = vmatprep.subr.bf16.mxu0 %v3320
      %3470 = vmatpush1.bf16.msra.mxu0 %v3319
      %3471 = vmatprep.mubr.bf16.mxu0 %v2314
      %3472 = vmatmul.mubr.bf16.gmra.mrb[0].mxu0 %v2313
      %v3473 = vpop.f32.mrb[0].mxu0
      %v3474 = vadd.f32 %v3055, %v3473
      %v3475 = vpop.f32.mrb[0].mxu0
      %v3476 = vadd.f32 %v3057, %v3475
      %v3477 = vpop.f32.mrb[0].mxu0
      %v3478 = vadd.f32 %v3059, %v3477
      %v3479 = vpop.f32.mrb[0].mxu0
      %v3480 = vadd.f32 %v3061, %v3479
      %3481 = vmatprep.mubr.bf16.mxu0 %v2319
      %3482 = vmatmul.mubr.bf16.gmra.mrb[0].mxu0 %v2318
      %v3483 = vpop.f32.mrb[0].mxu0
      %v3484 = vadd.f32 %v3065, %v3483
      %v3485 = vpop.f32.mrb[0].mxu0
      %v3486 = vadd.f32 %v3067, %v3485
      %v3487 = vpop.f32.mrb[0].mxu0
      %v3488 = vadd.f32 %v3069, %v3487
      %v3489 = vpop.f32.mrb[0].mxu0
      %v3490 = vadd.f32 %v3071, %v3489
      %3491 = vdwg.mxu0
      %3492 = vmatprep.subr.bf16.mxu0 %v3322
      %3493 = vmatpush1.bf16.msra.mxu0 %v3321
      %3494 = vmatprep.subr.bf16.mxu0 %v3324
      %3495 = vmatpush1.bf16.msra.mxu0 %v3323
      %3496 = vmatprep.subr.bf16.mxu0 %v3326
      %3497 = vmatpush1.bf16.msra.mxu0 %v3325
      %3498 = vmatprep.subr.bf16.mxu0 %v3328
      %3499 = vmatpush1.bf16.msra.mxu0 %v3327
      %3500 = vmatprep.subr.bf16.mxu0 %v3330
      %3501 = vmatpush1.bf16.msra.mxu0 %v3329
      %3502 = vmatprep.subr.bf16.mxu0 %v3332
      %3503 = vmatpush1.bf16.msra.mxu0 %v3331
      %3504 = vmatprep.subr.bf16.mxu0 %v3334
      %3505 = vmatpush1.bf16.msra.mxu0 %v3333
      %3506 = vmatprep.subr.bf16.mxu0 %v3336
      %3507 = vmatpush1.bf16.msra.mxu0 %v3335
      %3508 = vmatprep.subr.bf16.mxu0 %v3338
      %3509 = vmatpush1.bf16.msra.mxu0 %v3337
      %3510 = vmatprep.subr.bf16.mxu0 %v3340
      %3511 = vmatpush1.bf16.msra.mxu0 %v3339
      %3512 = vmatprep.subr.bf16.mxu0 %v3342
      %3513 = vmatpush1.bf16.msra.mxu0 %v3341
      %3514 = vmatprep.subr.bf16.mxu0 %v3344
      %3515 = vmatpush1.bf16.msra.mxu0 %v3343
      %3516 = vmatprep.subr.bf16.mxu0 %v3346
      %3517 = vmatpush1.bf16.msra.mxu0 %v3345
      %3518 = vmatprep.subr.bf16.mxu0 %v3348
      %3519 = vmatpush1.bf16.msra.mxu0 %v3347
      %3520 = vmatprep.subr.bf16.mxu0 %v3350
      %3521 = vmatpush1.bf16.msra.mxu0 %v3349
      %3522 = vmatprep.subr.bf16.mxu0 %v3352
      %3523 = vmatpush1.bf16.msra.mxu0 %v3351
      %3524 = vmatprep.mubr.bf16.mxu0 %v2316
      %3525 = vmatmul.mubr.bf16.gmra.mrb[0].mxu0 %v2315
      %v3526 = vpop.f32.mrb[0].mxu0
      %v3527 = vadd.f32 %v3474, %v3526
      %v3528 = vpop.f32.mrb[0].mxu0
      %v3529 = vadd.f32 %v3476, %v3528
      %v3530 = vpop.f32.mrb[0].mxu0
      %v3531 = vadd.f32 %v3478, %v3530
      %v3532 = vpop.f32.mrb[0].mxu0
      %v3533 = vadd.f32 %v3480, %v3532
      %3534 = vmatprep.mubr.bf16.mxu0 %v2321
      %3535 = vmatmul.mubr.bf16.gmra.mrb[0].mxu0 %v2320
      %v3536 = vpop.f32.mrb[0].mxu0
      %v3537 = vadd.f32 %v3484, %v3536
      %v3538 = vpop.f32.mrb[0].mxu0
      %v3539 = vadd.f32 %v3486, %v3538
      %v3540 = vpop.f32.mrb[0].mxu0
      %v3541 = vadd.f32 %v3488, %v3540
      %v3542 = vpop.f32.mrb[0].mxu0
      %v3543 = vadd.f32 %v3490, %v3542
      %3544 = vdwg.mxu0
      %3545 = vmatprep.subr.bf16.mxu0 %v3354
      %3546 = vmatpush1.bf16.msra.mxu0 %v3353
      %3547 = vmatprep.subr.bf16.mxu0 %v3356
      %3548 = vmatpush1.bf16.msra.mxu0 %v3355
      %3549 = vmatprep.subr.bf16.mxu0 %v3358
      %3550 = vmatpush1.bf16.msra.mxu0 %v3357
      %3551 = vmatprep.subr.bf16.mxu0 %v3360
      %3552 = vmatpush1.bf16.msra.mxu0 %v3359
      %3553 = vmatprep.subr.bf16.mxu0 0
      %3554 = vmatpush1.bf16.msra.mxu0 0
      %3555 = vmatprep.subr.bf16.mxu0 0
      %3556 = vmatpush1.bf16.msra.mxu0 0
      %3557 = vmatprep.subr.bf16.mxu0 0
      %3558 = vmatpush1.bf16.msra.mxu0 0
      %3559 = vmatprep.subr.bf16.mxu0 0
      %3560 = vmatpush1.bf16.msra.mxu0 0
      %3561 = vmatprep.subr.bf16.mxu0 0
      %3562 = vmatpush1.bf16.msra.mxu0 0
      %3563 = vmatprep.subr.bf16.mxu0 0
      %3564 = vmatpush1.bf16.msra.mxu0 0
      %3565 = vmatprep.subr.bf16.mxu0 0
      %3566 = vmatpush1.bf16.msra.mxu0 0
      %3567 = vmatprep.subr.bf16.mxu0 0
      %3568 = vmatpush1.bf16.msra.mxu0 0
      %3569 = vmatprep.subr.bf16.mxu0 0
      %3570 = vmatpush1.bf16.msra.mxu0 0
      %3571 = vmatprep.subr.bf16.mxu0 0
      %3572 = vmatpush1.bf16.msra.mxu0 0
      %3573 = vmatprep.subr.bf16.mxu0 0
      %3574 = vmatpush1.bf16.msra.mxu0 0
      %3575 = vmatprep.subr.bf16.mxu0 0
      %3576 = vmatpush1.bf16.msra.mxu0 0
      %3577 = vmatprep.mubr.bf16.mxu0 0
      %3578 = vmatmul.mubr.bf16.gmra.mrb[0].mxu0 %v3434
      %v3579 = vpop.f32.mrb[0].mxu0
      %v3580 = vadd.f32 %v3527, %v3579
      %v3581 = vpop.f32.mrb[0].mxu0
      %v3582 = vadd.f32 %v3529, %v3581
      %v3583 = vpop.f32.mrb[0].mxu0
      %v3584 = vadd.f32 %v3531, %v3583
      %v3585 = vpop.f32.mrb[0].mxu0
      %v3586 = vadd.f32 %v3533, %v3585
      %3587 = vmatprep.mubr.bf16.mxu0 0
      %3588 = vmatmul.mubr.bf16.gmra.mrb[0].mxu0 %v3437
      %v3589 = vpop.f32.mrb[0].mxu0
      %v3590 = vadd.f32 %v3537, %v3589
      %v3591 = vpop.f32.mrb[0].mxu0
      %v3592 = vadd.f32 %v3539, %v3591
      %v3593 = vpop.f32.mrb[0].mxu0
      %v3594 = vadd.f32 %v3541, %v3593
      %v3595 = vpop.f32.mrb[0].mxu0
      %v3596 = vadd.f32 %v3543, %v3595
      %3597 = vdwg.mxu0
      %s3598 = scalar_lea.vmem %s5, 1152
      %v3599 = vld [vmem:[%s3598] sm:$0xff]
      %v3600 = vld [vmem:[%s3598 + $0x8] sm:$0xff]
      %v3601 = vld [vmem:[%s3598 + $0x10] sm:$0xff]
      %v3602 = vld [vmem:[%s3598 + $0x18] sm:$0xff]
      %v3603 = vld [vmem:[%s3598 + $0x20] sm:$0xff]
      %v3604 = vld [vmem:[%s3598 + $0x28] sm:$0xff]
      %v3605 = vld [vmem:[%s3598 + $0x30] sm:$0xff]
      %v3606 = vld [vmem:[%s3598 + $0x38] sm:$0xff]
      %v3607 = vld [vmem:[%s3598 + $0x40] sm:$0xff]
      %v3608 = vld [vmem:[%s3598 + $0x48] sm:$0xff]
      %v3609 = vld [vmem:[%s3598 + $0x50] sm:$0xff]
      %v3610 = vld [vmem:[%s3598 + $0x58] sm:$0xff]
      %v3611 = vld [vmem:[%s3598 + $0x60] sm:$0xff]
      %v3612 = vld [vmem:[%s3598 + $0x68] sm:$0xff]
      %v3613 = vld [vmem:[%s3598 + $0x70] sm:$0xff]
      %v3614 = vld [vmem:[%s3598 + $0x78] sm:$0xff]
      %v3615 = vld [vmem:[%s3598 + $0x80] sm:$0xff]
      %v3616 = vld [vmem:[%s3598 + $0x88] sm:$0xff]
      %v3617 = vld [vmem:[%s3598 + $0x90] sm:$0xff]
      %v3618 = vld [vmem:[%s3598 + $0x98] sm:$0xff]
      %v3619 = vld [vmem:[%s3598 + $0xa0] sm:$0xff]
      %v3620 = vld [vmem:[%s3598 + $0xa8] sm:$0xff]
      %v3621 = vld [vmem:[%s3598 + $0xb0] sm:$0xff]
      %v3622 = vld [vmem:[%s3598 + $0xb8] sm:$0xff]
      %v3623 = vld [vmem:[%s3598 + $0xc0] sm:$0xff]
      %v3624 = vld [vmem:[%s3598 + $0xc8] sm:$0xff]
      %v3625 = vld [vmem:[%s3598 + $0xd0] sm:$0xff]
      %v3626 = vld [vmem:[%s3598 + $0xd8] sm:$0xff]
      %v3627 = vld [vmem:[%s3598 + $0xe0] sm:$0xff]
      %v3628 = vld [vmem:[%s3598 + $0xe8] sm:$0xff]
      %v3629 = vld [vmem:[%s3598 + $0xf0] sm:$0xff]
      %v3630 = vld [vmem:[%s3598 + $0xf8] sm:$0xff]
      %v3631 = vld [vmem:[%s3598 + $0x100] sm:$0xff]
      %v3632 = vld [vmem:[%s3598 + $0x108] sm:$0xff]
      %v3633 = vld [vmem:[%s3598 + $0x110] sm:$0xff]
      %v3634 = vld [vmem:[%s3598 + $0x118] sm:$0xff]
      %v3635 = vld [vmem:[%s3598 + $0x120] sm:$0xff]
      %v3636 = vld [vmem:[%s3598 + $0x128] sm:$0xff]
      %v3637 = vld [vmem:[%s3598 + $0x130] sm:$0xff]
      %v3638 = vld [vmem:[%s3598 + $0x138] sm:$0xff]
      %v3639 = vld [vmem:[%s3598 + $0x140] sm:$0xff]
      %v3640 = vld [vmem:[%s3598 + $0x148] sm:$0xff]
      %v3641 = vld [vmem:[%s3598 + $0x150] sm:$0xff]
      %v3642 = vld [vmem:[%s3598 + $0x158] sm:$0xff]
      %v3643 = vld [vmem:[%s3598 + $0x160] sm:$0xff]
      %v3644 = vld [vmem:[%s3598 + $0x168] sm:$0xff]
      %v3645 = vld [vmem:[%s3598 + $0x170] sm:$0xff]
      %v3646 = vld [vmem:[%s3598 + $0x178] sm:$0xff]
      %v3647 = vld [vmem:[%s3598 + $0x180] sm:$0xff]
      %v3648 = vld [vmem:[%s3598 + $0x188] sm:$0xff]
      %v3649 = vld [vmem:[%s3598 + $0x190] sm:$0xff]
      %v3650 = vld [vmem:[%s3598 + $0x198] sm:$0xff]
      %v3651 = vld [vmem:[%s3598 + $0x1a0] sm:$0xff]
      %v3652 = vld [vmem:[%s3598 + $0x1a8] sm:$0xff]
      %v3653 = vld [vmem:[%s3598 + $0x1b0] sm:$0xff]
      %v3654 = vld [vmem:[%s3598 + $0x1b8] sm:$0xff]
      %v3655 = vld [vmem:[%s3598 + $0x1c0] sm:$0xff]
      %v3656 = vld [vmem:[%s3598 + $0x1c8] sm:$0xff]
      %v3657 = vld [vmem:[%s3598 + $0x1d0] sm:$0xff]
      %v3658 = vld [vmem:[%s3598 + $0x1d8] sm:$0xff]
      %v3659 = vld [vmem:[%s3598 + $0x1e0] sm:$0xff]
      %v3660 = vld [vmem:[%s3598 + $0x1e8] sm:$0xff]
      %v3661 = vld [vmem:[%s3598 + $0x1f0] sm:$0xff]
      %v3662 = vld [vmem:[%s3598 + $0x1f8] sm:$0xff]
      %v3663 = vld [vmem:[%s3598 + $0x200] sm:$0xff]
      %v3664 = vld [vmem:[%s3598 + $0x208] sm:$0xff]
      %v3665 = vld [vmem:[%s3598 + $0x210] sm:$0xff]
      %v3666 = vld [vmem:[%s3598 + $0x218] sm:$0xff]
      %v3667 = vld [vmem:[%s3598 + $0x220] sm:$0xff]
      %v3668 = vld [vmem:[%s3598 + $0x228] sm:$0xff]
      %v3669 = vld [vmem:[%s3598 + $0x230] sm:$0xff]
      %v3670 = vld [vmem:[%s3598 + $0x238] sm:$0xff]
      %v3743 = vunpack.c.l.b16 %v3599
      %v3744 = vunpack.c.h.b16 %v3599
      %v3745 = vunpack.c.l.b16 %v3600
      %v3746 = vunpack.c.h.b16 %v3600
      %v3747 = vunpack.c.l.b16 %v3601
      %v3748 = vunpack.c.h.b16 %v3601
      %v3749 = vunpack.c.l.b16 %v3602
      %v3750 = vunpack.c.h.b16 %v3602
      %v3751 = vunpack.c.l.b16 %v3603
      %v3752 = vunpack.c.h.b16 %v3603
      %v3753 = vunpack.c.l.b16 %v3604
      %v3754 = vunpack.c.h.b16 %v3604
      %v3755 = vunpack.c.l.b16 %v3605
      %v3756 = vunpack.c.h.b16 %v3605
      %v3757 = vunpack.c.l.b16 %v3606
      %v3758 = vunpack.c.h.b16 %v3606
      %v3759 = vunpack.c.l.b16 %v3607
      %v3760 = vunpack.c.h.b16 %v3607
      %v3761 = vunpack.c.l.b16 %v3608
      %v3762 = vunpack.c.h.b16 %v3608
      %v3763 = vunpack.c.l.b16 %v3609
      %v3764 = vunpack.c.h.b16 %v3609
      %v3765 = vunpack.c.l.b16 %v3610
      %v3766 = vunpack.c.h.b16 %v3610
      %v3767 = vunpack.c.l.b16 %v3611
      %v3768 = vunpack.c.h.b16 %v3611
      %v3769 = vunpack.c.l.b16 %v3612
      %v3770 = vunpack.c.h.b16 %v3612
      %v3771 = vunpack.c.l.b16 %v3613
      %v3772 = vunpack.c.h.b16 %v3613
      %v3773 = vunpack.c.l.b16 %v3614
      %v3774 = vunpack.c.h.b16 %v3614
      %v3775 = vunpack.c.l.b16 %v3615
      %v3776 = vunpack.c.h.b16 %v3615
      %v3777 = vunpack.c.l.b16 %v3616
      %v3778 = vunpack.c.h.b16 %v3616
      %v3779 = vunpack.c.l.b16 %v3617
      %v3780 = vunpack.c.h.b16 %v3617
      %v3781 = vunpack.c.l.b16 %v3618
      %v3782 = vunpack.c.h.b16 %v3618
      %v3783 = vunpack.c.l.b16 %v3619
      %v3784 = vunpack.c.h.b16 %v3619
      %v3785 = vunpack.c.l.b16 %v3620
      %v3786 = vunpack.c.h.b16 %v3620
      %v3787 = vunpack.c.l.b16 %v3621
      %v3788 = vunpack.c.h.b16 %v3621
      %v3789 = vunpack.c.l.b16 %v3622
      %v3790 = vunpack.c.h.b16 %v3622
      %v3791 = vunpack.c.l.b16 %v3623
      %v3792 = vunpack.c.h.b16 %v3623
      %v3793 = vunpack.c.l.b16 %v3624
      %v3794 = vunpack.c.h.b16 %v3624
      %v3795 = vunpack.c.l.b16 %v3625
      %v3796 = vunpack.c.h.b16 %v3625
      %v3797 = vunpack.c.l.b16 %v3626
      %v3798 = vunpack.c.h.b16 %v3626
      %v3799 = vunpack.c.l.b16 %v3627
      %v3800 = vunpack.c.h.b16 %v3627
      %v3801 = vunpack.c.l.b16 %v3628
      %v3802 = vunpack.c.h.b16 %v3628
      %v3803 = vunpack.c.l.b16 %v3629
      %v3804 = vunpack.c.h.b16 %v3629
      %v3805 = vunpack.c.l.b16 %v3630
      %v3806 = vunpack.c.h.b16 %v3630
      %v3807 = vunpack.c.l.b16 %v3631
      %v3808 = vunpack.c.h.b16 %v3631
      %v3809 = vunpack.c.l.b16 %v3632
      %v3810 = vunpack.c.h.b16 %v3632
      %v3811 = vunpack.c.l.b16 %v3633
      %v3812 = vunpack.c.h.b16 %v3633
      %v3813 = vunpack.c.l.b16 %v3634
      %v3814 = vunpack.c.h.b16 %v3634
      %v3815 = vunpack.c.l.b16 %v3635
      %v3816 = vunpack.c.h.b16 %v3635
      %v3817 = vunpack.c.l.b16 %v3636
      %v3818 = vunpack.c.h.b16 %v3636
      %v3819 = vunpack.c.l.b16 %v3637
      %v3820 = vunpack.c.h.b16 %v3637
      %v3821 = vunpack.c.l.b16 %v3638
      %v3822 = vunpack.c.h.b16 %v3638
      %v3823 = vunpack.c.l.b16 %v3639
      %v3824 = vunpack.c.h.b16 %v3639
      %v3825 = vunpack.c.l.b16 %v3640
      %v3826 = vunpack.c.h.b16 %v3640
      %v3827 = vunpack.c.l.b16 %v3641
      %v3828 = vunpack.c.h.b16 %v3641
      %v3829 = vunpack.c.l.b16 %v3642
      %v3830 = vunpack.c.h.b16 %v3642
      %v3831 = vunpack.c.l.b16 %v3643
      %v3832 = vunpack.c.h.b16 %v3643
      %v3833 = vunpack.c.l.b16 %v3644
      %v3834 = vunpack.c.h.b16 %v3644
      %v3835 = vunpack.c.l.b16 %v3645
      %v3836 = vunpack.c.h.b16 %v3645
      %v3837 = vunpack.c.l.b16 %v3646
      %v3838 = vunpack.c.h.b16 %v3646
      %v3839 = vunpack.c.l.b16 %v3647
      %v3840 = vunpack.c.h.b16 %v3647
      %v3841 = vunpack.c.l.b16 %v3648
      %v3842 = vunpack.c.h.b16 %v3648
      %v3843 = vunpack.c.l.b16 %v3649
      %v3844 = vunpack.c.h.b16 %v3649
      %v3845 = vunpack.c.l.b16 %v3650
      %v3846 = vunpack.c.h.b16 %v3650
      %v3847 = vunpack.c.l.b16 %v3651
      %v3848 = vunpack.c.h.b16 %v3651
      %v3849 = vunpack.c.l.b16 %v3652
      %v3850 = vunpack.c.h.b16 %v3652
      %v3851 = vunpack.c.l.b16 %v3653
      %v3852 = vunpack.c.h.b16 %v3653
      %v3853 = vunpack.c.l.b16 %v3654
      %v3854 = vunpack.c.h.b16 %v3654
      %v3855 = vunpack.c.l.b16 %v3655
      %v3856 = vunpack.c.h.b16 %v3655
      %v3857 = vunpack.c.l.b16 %v3656
      %v3858 = vunpack.c.h.b16 %v3656
      %v3859 = vunpack.c.l.b16 %v3657
      %v3860 = vunpack.c.h.b16 %v3657
      %v3861 = vunpack.c.l.b16 %v3658
      %v3862 = vunpack.c.h.b16 %v3658
      %v3863 = vunpack.c.l.b16 %v3659
      %v3864 = vunpack.c.h.b16 %v3659
      %v3865 = vunpack.c.l.b16 %v3660
      %v3866 = vunpack.c.h.b16 %v3660
      %v3867 = vunpack.c.l.b16 %v3661
      %v3868 = vunpack.c.h.b16 %v3661
      %v3869 = vunpack.c.l.b16 %v3662
      %v3870 = vunpack.c.h.b16 %v3662
      %v3871 = vunpack.c.l.b16 %v3663
      %v3872 = vunpack.c.h.b16 %v3663
      %v3873 = vunpack.c.l.b16 %v3664
      %v3874 = vunpack.c.h.b16 %v3664
      %v3875 = vunpack.c.l.b16 %v3665
      %v3876 = vunpack.c.h.b16 %v3665
      %v3877 = vunpack.c.l.b16 %v3666
      %v3878 = vunpack.c.h.b16 %v3666
      %v3879 = vunpack.c.l.b16 %v3667
      %v3880 = vunpack.c.h.b16 %v3667
      %v3881 = vunpack.c.l.b16 %v3668
      %v3882 = vunpack.c.h.b16 %v3668
      %v3883 = vunpack.c.l.b16 %v3669
      %v3884 = vunpack.c.h.b16 %v3669
      %v3885 = vunpack.c.l.b16 %v3670
      %v3886 = vunpack.c.h.b16 %v3670
      %v3887 = vpack.c.b16 %v3745, %v3743
      %v3888 = vpack.c.b16 %v3746, %v3744
      %v3889 = vpack.c.b16 %v3749, %v3747
      %v3890 = vpack.c.b16 %v3750, %v3748
      %v3891 = vpack.c.b16 %v3753, %v3751
      %v3892 = vpack.c.b16 %v3754, %v3752
      %v3893 = vpack.c.b16 %v3757, %v3755
      %v3894 = vpack.c.b16 %v3758, %v3756
      %v3895 = vpack.c.b16 %v3761, %v3759
      %v3896 = vpack.c.b16 %v3762, %v3760
      %v3897 = vpack.c.b16 %v3765, %v3763
      %v3898 = vpack.c.b16 %v3766, %v3764
      %v3899 = vpack.c.b16 %v3769, %v3767
      %v3900 = vpack.c.b16 %v3770, %v3768
      %v3901 = vpack.c.b16 %v3773, %v3771
      %v3902 = vpack.c.b16 %v3774, %v3772
      %v3903 = vpack.c.b16 %v3777, %v3775
      %v3904 = vpack.c.b16 %v3778, %v3776
      %v3905 = vpack.c.b16 %v3781, %v3779
      %v3906 = vpack.c.b16 %v3782, %v3780
      %v3907 = vpack.c.b16 %v3785, %v3783
      %v3908 = vpack.c.b16 %v3786, %v3784
      %v3909 = vpack.c.b16 %v3789, %v3787
      %v3910 = vpack.c.b16 %v3790, %v3788
      %v3911 = vpack.c.b16 %v3793, %v3791
      %v3912 = vpack.c.b16 %v3794, %v3792
      %v3913 = vpack.c.b16 %v3797, %v3795
      %v3914 = vpack.c.b16 %v3798, %v3796
      %v3915 = vpack.c.b16 %v3801, %v3799
      %v3916 = vpack.c.b16 %v3802, %v3800
      %v3917 = vpack.c.b16 %v3805, %v3803
      %v3918 = vpack.c.b16 %v3806, %v3804
      %v3919 = vpack.c.b16 %v3809, %v3807
      %v3920 = vpack.c.b16 %v3810, %v3808
      %v3921 = vpack.c.b16 %v3813, %v3811
      %v3922 = vpack.c.b16 %v3814, %v3812
      %v3923 = vpack.c.b16 %v3817, %v3815
      %v3924 = vpack.c.b16 %v3818, %v3816
      %v3925 = vpack.c.b16 %v3821, %v3819
      %v3926 = vpack.c.b16 %v3822, %v3820
      %v3927 = vpack.c.b16 %v3825, %v3823
      %v3928 = vpack.c.b16 %v3826, %v3824
      %v3929 = vpack.c.b16 %v3829, %v3827
      %v3930 = vpack.c.b16 %v3830, %v3828
      %v3931 = vpack.c.b16 %v3833, %v3831
      %v3932 = vpack.c.b16 %v3834, %v3832
      %v3933 = vpack.c.b16 %v3837, %v3835
      %v3934 = vpack.c.b16 %v3838, %v3836
      %v3935 = vpack.c.b16 %v3841, %v3839
      %v3936 = vpack.c.b16 %v3842, %v3840
      %v3937 = vpack.c.b16 %v3845, %v3843
      %v3938 = vpack.c.b16 %v3846, %v3844
      %v3939 = vpack.c.b16 %v3849, %v3847
      %v3940 = vpack.c.b16 %v3850, %v3848
      %v3941 = vpack.c.b16 %v3853, %v3851
      %v3942 = vpack.c.b16 %v3854, %v3852
      %v3943 = vpack.c.b16 %v3857, %v3855
      %v3944 = vpack.c.b16 %v3858, %v3856
      %v3945 = vpack.c.b16 %v3861, %v3859
      %v3946 = vpack.c.b16 %v3862, %v3860
      %v3947 = vpack.c.b16 %v3865, %v3863
      %v3948 = vpack.c.b16 %v3866, %v3864
      %v3949 = vpack.c.b16 %v3869, %v3867
      %v3950 = vpack.c.b16 %v3870, %v3868
      %v3951 = vpack.c.b16 %v3873, %v3871
      %v3952 = vpack.c.b16 %v3874, %v3872
      %v3953 = vpack.c.b16 %v3877, %v3875
      %v3954 = vpack.c.b16 %v3878, %v3876
      %v3955 = vpack.c.b16 %v3881, %v3879
      %v3956 = vpack.c.b16 %v3882, %v3880
      %v3957 = vpack.c.b16 %v3885, %v3883
      %v3958 = vpack.c.b16 %v3886, %v3884
      %v4032 = vsel %vm1655, %v2337, 0
      %v4035 = vsel %vm1655, %v2342, 0
      %4037 = vmatprep.subr.bf16.mxu0 %v3888
      %4038 = vmatpush1.bf16.msra.mxu0 %v3887
      %4039 = vmatprep.subr.bf16.mxu0 %v3890
      %4040 = vmatpush1.bf16.msra.mxu0 %v3889
      %4041 = vmatprep.subr.bf16.mxu0 %v3892
      %4042 = vmatpush1.bf16.msra.mxu0 %v3891
      %4043 = vmatprep.subr.bf16.mxu0 %v3894
      %4044 = vmatpush1.bf16.msra.mxu0 %v3893
      %4045 = vmatprep.subr.bf16.mxu0 %v3896
      %4046 = vmatpush1.bf16.msra.mxu0 %v3895
      %4047 = vmatprep.subr.bf16.mxu0 %v3898
      %4048 = vmatpush1.bf16.msra.mxu0 %v3897
      %4049 = vmatprep.subr.bf16.mxu0 %v3900
      %4050 = vmatpush1.bf16.msra.mxu0 %v3899
      %4051 = vmatprep.subr.bf16.mxu0 %v3902
      %4052 = vmatpush1.bf16.msra.mxu0 %v3901
      %4053 = vmatprep.subr.bf16.mxu0 %v3904
      %4054 = vmatpush1.bf16.msra.mxu0 %v3903
      %4055 = vmatprep.subr.bf16.mxu0 %v3906
      %4056 = vmatpush1.bf16.msra.mxu0 %v3905
      %4057 = vmatprep.subr.bf16.mxu0 %v3908
      %4058 = vmatpush1.bf16.msra.mxu0 %v3907
      %4059 = vmatprep.subr.bf16.mxu0 %v3910
      %4060 = vmatpush1.bf16.msra.mxu0 %v3909
      %4061 = vmatprep.subr.bf16.mxu0 %v3912
      %4062 = vmatpush1.bf16.msra.mxu0 %v3911
      %4063 = vmatprep.subr.bf16.mxu0 %v3914
      %4064 = vmatpush1.bf16.msra.mxu0 %v3913
      %4065 = vmatprep.subr.bf16.mxu0 %v3916
      %4066 = vmatpush1.bf16.msra.mxu0 %v3915
      %4067 = vmatprep.subr.bf16.mxu0 %v3918
      %4068 = vmatpush1.bf16.msra.mxu0 %v3917
      %4069 = vmatprep.mubr.bf16.mxu0 %v2334
      %4070 = vmatmul.mubr.bf16.gmra.mrb[0].mxu0 %v2333
      %v4071 = vpop.f32.mrb[0].mxu0
      %v4072 = vadd.f32 0.0, %v4071
      %v4073 = vpop.f32.mrb[0].mxu0
      %v4074 = vadd.f32 0.0, %v4073
      %v4075 = vpop.f32.mrb[0].mxu0
      %v4076 = vadd.f32 0.0, %v4075
      %v4077 = vpop.f32.mrb[0].mxu0
      %v4078 = vadd.f32 0.0, %v4077
      %4079 = vmatprep.mubr.bf16.mxu0 %v2339
      %4080 = vmatmul.mubr.bf16.gmra.mrb[0].mxu0 %v2338
      %v4081 = vpop.f32.mrb[0].mxu0
      %v4082 = vadd.f32 0.0, %v4081
      %v4083 = vpop.f32.mrb[0].mxu0
      %v4084 = vadd.f32 0.0, %v4083
      %v4085 = vpop.f32.mrb[0].mxu0
      %v4086 = vadd.f32 0.0, %v4085
      %v4087 = vpop.f32.mrb[0].mxu0
      %v4088 = vadd.f32 0.0, %v4087
      %4089 = vdwg.mxu0
      %4090 = vmatprep.subr.bf16.mxu0 %v3920
      %4091 = vmatpush1.bf16.msra.mxu0 %v3919
      %4092 = vmatprep.subr.bf16.mxu0 %v3922
      %4093 = vmatpush1.bf16.msra.mxu0 %v3921
      %4094 = vmatprep.subr.bf16.mxu0 %v3924
      %4095 = vmatpush1.bf16.msra.mxu0 %v3923
      %4096 = vmatprep.subr.bf16.mxu0 %v3926
      %4097 = vmatpush1.bf16.msra.mxu0 %v3925
      %4098 = vmatprep.subr.bf16.mxu0 %v3928
      %4099 = vmatpush1.bf16.msra.mxu0 %v3927
      %4100 = vmatprep.subr.bf16.mxu0 %v3930
      %4101 = vmatpush1.bf16.msra.mxu0 %v3929
      %4102 = vmatprep.subr.bf16.mxu0 %v3932
      %4103 = vmatpush1.bf16.msra.mxu0 %v3931
      %4104 = vmatprep.subr.bf16.mxu0 %v3934
      %4105 = vmatpush1.bf16.msra.mxu0 %v3933
      %4106 = vmatprep.subr.bf16.mxu0 %v3936
      %4107 = vmatpush1.bf16.msra.mxu0 %v3935
      %4108 = vmatprep.subr.bf16.mxu0 %v3938
      %4109 = vmatpush1.bf16.msra.mxu0 %v3937
      %4110 = vmatprep.subr.bf16.mxu0 %v3940
      %4111 = vmatpush1.bf16.msra.mxu0 %v3939
      %4112 = vmatprep.subr.bf16.mxu0 %v3942
      %4113 = vmatpush1.bf16.msra.mxu0 %v3941
      %4114 = vmatprep.subr.bf16.mxu0 %v3944
      %4115 = vmatpush1.bf16.msra.mxu0 %v3943
      %4116 = vmatprep.subr.bf16.mxu0 %v3946
      %4117 = vmatpush1.bf16.msra.mxu0 %v3945
      %4118 = vmatprep.subr.bf16.mxu0 %v3948
      %4119 = vmatpush1.bf16.msra.mxu0 %v3947
      %4120 = vmatprep.subr.bf16.mxu0 %v3950
      %4121 = vmatpush1.bf16.msra.mxu0 %v3949
      %4122 = vmatprep.mubr.bf16.mxu0 %v2336
      %4123 = vmatmul.mubr.bf16.gmra.mrb[0].mxu0 %v2335
      %v4124 = vpop.f32.mrb[0].mxu0
      %v4125 = vadd.f32 %v4072, %v4124
      %v4126 = vpop.f32.mrb[0].mxu0
      %v4127 = vadd.f32 %v4074, %v4126
      %v4128 = vpop.f32.mrb[0].mxu0
      %v4129 = vadd.f32 %v4076, %v4128
      %v4130 = vpop.f32.mrb[0].mxu0
      %v4131 = vadd.f32 %v4078, %v4130
      %4132 = vmatprep.mubr.bf16.mxu0 %v2341
      %4133 = vmatmul.mubr.bf16.gmra.mrb[0].mxu0 %v2340
      %v4134 = vpop.f32.mrb[0].mxu0
      %v4135 = vadd.f32 %v4082, %v4134
      %v4136 = vpop.f32.mrb[0].mxu0
      %v4137 = vadd.f32 %v4084, %v4136
      %v4138 = vpop.f32.mrb[0].mxu0
      %v4139 = vadd.f32 %v4086, %v4138
      %v4140 = vpop.f32.mrb[0].mxu0
      %v4141 = vadd.f32 %v4088, %v4140
      %4142 = vdwg.mxu0
      %4143 = vmatprep.subr.bf16.mxu0 %v3952
      %4144 = vmatpush1.bf16.msra.mxu0 %v3951
      %4145 = vmatprep.subr.bf16.mxu0 %v3954
      %4146 = vmatpush1.bf16.msra.mxu0 %v3953
      %4147 = vmatprep.subr.bf16.mxu0 %v3956
      %4148 = vmatpush1.bf16.msra.mxu0 %v3955
      %4149 = vmatprep.subr.bf16.mxu0 %v3958
      %4150 = vmatpush1.bf16.msra.mxu0 %v3957
      %4151 = vmatprep.subr.bf16.mxu0 0
      %4152 = vmatpush1.bf16.msra.mxu0 0
      %4153 = vmatprep.subr.bf16.mxu0 0
      %4154 = vmatpush1.bf16.msra.mxu0 0
      %4155 = vmatprep.subr.bf16.mxu0 0
      %4156 = vmatpush1.bf16.msra.mxu0 0
      %4157 = vmatprep.subr.bf16.mxu0 0
      %4158 = vmatpush1.bf16.msra.mxu0 0
      %4159 = vmatprep.subr.bf16.mxu0 0
      %4160 = vmatpush1.bf16.msra.mxu0 0
      %4161 = vmatprep.subr.bf16.mxu0 0
      %4162 = vmatpush1.bf16.msra.mxu0 0
      %4163 = vmatprep.subr.bf16.mxu0 0
      %4164 = vmatpush1.bf16.msra.mxu0 0
      %4165 = vmatprep.subr.bf16.mxu0 0
      %4166 = vmatpush1.bf16.msra.mxu0 0
      %4167 = vmatprep.subr.bf16.mxu0 0
      %4168 = vmatpush1.bf16.msra.mxu0 0
      %4169 = vmatprep.subr.bf16.mxu0 0
      %4170 = vmatpush1.bf16.msra.mxu0 0
      %4171 = vmatprep.subr.bf16.mxu0 0
      %4172 = vmatpush1.bf16.msra.mxu0 0
      %4173 = vmatprep.subr.bf16.mxu0 0
      %4174 = vmatpush1.bf16.msra.mxu0 0
      %4175 = vmatprep.mubr.bf16.mxu0 0
      %4176 = vmatmul.mubr.bf16.gmra.mrb[0].mxu0 %v4032
      %v4177 = vpop.f32.mrb[0].mxu0
      %v4178 = vadd.f32 %v4125, %v4177
      %v4179 = vpop.f32.mrb[0].mxu0
      %v4180 = vadd.f32 %v4127, %v4179
      %v4181 = vpop.f32.mrb[0].mxu0
      %v4182 = vadd.f32 %v4129, %v4181
      %v4183 = vpop.f32.mrb[0].mxu0
      %v4184 = vadd.f32 %v4131, %v4183
      %4185 = vmatprep.mubr.bf16.mxu0 0
      %4186 = vmatmul.mubr.bf16.gmra.mrb[0].mxu0 %v4035
      %v4187 = vpop.f32.mrb[0].mxu0
      %v4188 = vadd.f32 %v4135, %v4187
      %v4189 = vpop.f32.mrb[0].mxu0
      %v4190 = vadd.f32 %v4137, %v4189
      %v4191 = vpop.f32.mrb[0].mxu0
      %v4192 = vadd.f32 %v4139, %v4191
      %v4193 = vpop.f32.mrb[0].mxu0
      %v4194 = vadd.f32 %v4141, %v4193
      %4195 = vdwg.mxu0
      %v4196 = vadd.f32 %v3580, %v4178
      %v4197 = vadd.f32 %v3582, %v4180
      %v4198 = vadd.f32 %v3584, %v4182
      %v4199 = vadd.f32 %v3586, %v4184
      %v4200 = vadd.f32 %v3590, %v4188
      %v4201 = vadd.f32 %v3592, %v4190
      %v4202 = vadd.f32 %v3594, %v4192
      %v4203 = vadd.f32 %v3596, %v4194
      %s4204 = scalar_lea.vmem %s5, 1728
      %v4205 = vld [vmem:[%s4204] sm:$0xff]
      %v4206 = vld [vmem:[%s4204 + $0x8] sm:$0xff]
      %v4207 = vld [vmem:[%s4204 + $0x10] sm:$0xff]
      %v4208 = vld [vmem:[%s4204 + $0x18] sm:$0xff]
      %v4209 = vld [vmem:[%s4204 + $0x20] sm:$0xff]
      %v4210 = vld [vmem:[%s4204 + $0x28] sm:$0xff]
      %v4211 = vld [vmem:[%s4204 + $0x30] sm:$0xff]
      %v4212 = vld [vmem:[%s4204 + $0x38] sm:$0xff]
      %v4213 = vld [vmem:[%s4204 + $0x40] sm:$0xff]
      %v4214 = vld [vmem:[%s4204 + $0x48] sm:$0xff]
      %v4215 = vld [vmem:[%s4204 + $0x50] sm:$0xff]
      %v4216 = vld [vmem:[%s4204 + $0x58] sm:$0xff]
      %v4217 = vld [vmem:[%s4204 + $0x60] sm:$0xff]
      %v4218 = vld [vmem:[%s4204 + $0x68] sm:$0xff]
      %v4219 = vld [vmem:[%s4204 + $0x70] sm:$0xff]
      %v4220 = vld [vmem:[%s4204 + $0x78] sm:$0xff]
      %v4221 = vld [vmem:[%s4204 + $0x80] sm:$0xff]
      %v4222 = vld [vmem:[%s4204 + $0x88] sm:$0xff]
      %v4223 = vld [vmem:[%s4204 + $0x90] sm:$0xff]
      %v4224 = vld [vmem:[%s4204 + $0x98] sm:$0xff]
      %v4225 = vld [vmem:[%s4204 + $0xa0] sm:$0xff]
      %v4226 = vld [vmem:[%s4204 + $0xa8] sm:$0xff]
      %v4227 = vld [vmem:[%s4204 + $0xb0] sm:$0xff]
      %v4228 = vld [vmem:[%s4204 + $0xb8] sm:$0xff]
      %v4229 = vld [vmem:[%s4204 + $0xc0] sm:$0xff]
      %v4230 = vld [vmem:[%s4204 + $0xc8] sm:$0xff]
      %v4231 = vld [vmem:[%s4204 + $0xd0] sm:$0xff]
      %v4232 = vld [vmem:[%s4204 + $0xd8] sm:$0xff]
      %v4233 = vld [vmem:[%s4204 + $0xe0] sm:$0xff]
      %v4234 = vld [vmem:[%s4204 + $0xe8] sm:$0xff]
      %v4235 = vld [vmem:[%s4204 + $0xf0] sm:$0xff]
      %v4236 = vld [vmem:[%s4204 + $0xf8] sm:$0xff]
      %v4237 = vld [vmem:[%s4204 + $0x100] sm:$0xff]
      %v4238 = vld [vmem:[%s4204 + $0x108] sm:$0xff]
      %v4239 = vld [vmem:[%s4204 + $0x110] sm:$0xff]
      %v4240 = vld [vmem:[%s4204 + $0x118] sm:$0xff]
      %v4241 = vld [vmem:[%s4204 + $0x120] sm:$0xff]
      %v4242 = vld [vmem:[%s4204 + $0x128] sm:$0xff]
      %v4243 = vld [vmem:[%s4204 + $0x130] sm:$0xff]
      %v4244 = vld [vmem:[%s4204 + $0x138] sm:$0xff]
      %v4245 = vld [vmem:[%s4204 + $0x140] sm:$0xff]
      %v4246 = vld [vmem:[%s4204 + $0x148] sm:$0xff]
      %v4247 = vld [vmem:[%s4204 + $0x150] sm:$0xff]
      %v4248 = vld [vmem:[%s4204 + $0x158] sm:$0xff]
      %v4249 = vld [vmem:[%s4204 + $0x160] sm:$0xff]
      %v4250 = vld [vmem:[%s4204 + $0x168] sm:$0xff]
      %v4251 = vld [vmem:[%s4204 + $0x170] sm:$0xff]
      %v4252 = vld [vmem:[%s4204 + $0x178] sm:$0xff]
      %v4253 = vld [vmem:[%s4204 + $0x180] sm:$0xff]
      %v4254 = vld [vmem:[%s4204 + $0x188] sm:$0xff]
      %v4255 = vld [vmem:[%s4204 + $0x190] sm:$0xff]
      %v4256 = vld [vmem:[%s4204 + $0x198] sm:$0xff]
      %v4257 = vld [vmem:[%s4204 + $0x1a0] sm:$0xff]
      %v4258 = vld [vmem:[%s4204 + $0x1a8] sm:$0xff]
      %v4259 = vld [vmem:[%s4204 + $0x1b0] sm:$0xff]
      %v4260 = vld [vmem:[%s4204 + $0x1b8] sm:$0xff]
      %v4261 = vld [vmem:[%s4204 + $0x1c0] sm:$0xff]
      %v4262 = vld [vmem:[%s4204 + $0x1c8] sm:$0xff]
      %v4263 = vld [vmem:[%s4204 + $0x1d0] sm:$0xff]
      %v4264 = vld [vmem:[%s4204 + $0x1d8] sm:$0xff]
      %v4265 = vld [vmem:[%s4204 + $0x1e0] sm:$0xff]
      %v4266 = vld [vmem:[%s4204 + $0x1e8] sm:$0xff]
      %v4267 = vld [vmem:[%s4204 + $0x1f0] sm:$0xff]
      %v4268 = vld [vmem:[%s4204 + $0x1f8] sm:$0xff]
      %v4269 = vld [vmem:[%s4204 + $0x200] sm:$0xff]
      %v4270 = vld [vmem:[%s4204 + $0x208] sm:$0xff]
      %v4271 = vld [vmem:[%s4204 + $0x210] sm:$0xff]
      %v4272 = vld [vmem:[%s4204 + $0x218] sm:$0xff]
      %v4273 = vld [vmem:[%s4204 + $0x220] sm:$0xff]
      %v4274 = vld [vmem:[%s4204 + $0x228] sm:$0xff]
      %v4275 = vld [vmem:[%s4204 + $0x230] sm:$0xff]
      %v4276 = vld [vmem:[%s4204 + $0x238] sm:$0xff]
      %v4349 = vunpack.c.l.b16 %v4205
      %v4350 = vunpack.c.h.b16 %v4205
      %v4351 = vunpack.c.l.b16 %v4206
      %v4352 = vunpack.c.h.b16 %v4206
      %v4353 = vunpack.c.l.b16 %v4207
      %v4354 = vunpack.c.h.b16 %v4207
      %v4355 = vunpack.c.l.b16 %v4208
      %v4356 = vunpack.c.h.b16 %v4208
      %v4357 = vunpack.c.l.b16 %v4209
      %v4358 = vunpack.c.h.b16 %v4209
      %v4359 = vunpack.c.l.b16 %v4210
      %v4360 = vunpack.c.h.b16 %v4210
      %v4361 = vunpack.c.l.b16 %v4211
      %v4362 = vunpack.c.h.b16 %v4211
      %v4363 = vunpack.c.l.b16 %v4212
      %v4364 = vunpack.c.h.b16 %v4212
      %v4365 = vunpack.c.l.b16 %v4213
      %v4366 = vunpack.c.h.b16 %v4213
      %v4367 = vunpack.c.l.b16 %v4214
      %v4368 = vunpack.c.h.b16 %v4214
      %v4369 = vunpack.c.l.b16 %v4215
      %v4370 = vunpack.c.h.b16 %v4215
      %v4371 = vunpack.c.l.b16 %v4216
      %v4372 = vunpack.c.h.b16 %v4216
      %v4373 = vunpack.c.l.b16 %v4217
      %v4374 = vunpack.c.h.b16 %v4217
      %v4375 = vunpack.c.l.b16 %v4218
      %v4376 = vunpack.c.h.b16 %v4218
      %v4377 = vunpack.c.l.b16 %v4219
      %v4378 = vunpack.c.h.b16 %v4219
      %v4379 = vunpack.c.l.b16 %v4220
      %v4380 = vunpack.c.h.b16 %v4220
      %v4381 = vunpack.c.l.b16 %v4221
      %v4382 = vunpack.c.h.b16 %v4221
      %v4383 = vunpack.c.l.b16 %v4222
      %v4384 = vunpack.c.h.b16 %v4222
      %v4385 = vunpack.c.l.b16 %v4223
      %v4386 = vunpack.c.h.b16 %v4223
      %v4387 = vunpack.c.l.b16 %v4224
      %v4388 = vunpack.c.h.b16 %v4224
      %v4389 = vunpack.c.l.b16 %v4225
      %v4390 = vunpack.c.h.b16 %v4225
      %v4391 = vunpack.c.l.b16 %v4226
      %v4392 = vunpack.c.h.b16 %v4226
      %v4393 = vunpack.c.l.b16 %v4227
      %v4394 = vunpack.c.h.b16 %v4227
      %v4395 = vunpack.c.l.b16 %v4228
      %v4396 = vunpack.c.h.b16 %v4228
      %v4397 = vunpack.c.l.b16 %v4229
      %v4398 = vunpack.c.h.b16 %v4229
      %v4399 = vunpack.c.l.b16 %v4230
      %v4400 = vunpack.c.h.b16 %v4230
      %v4401 = vunpack.c.l.b16 %v4231
      %v4402 = vunpack.c.h.b16 %v4231
      %v4403 = vunpack.c.l.b16 %v4232
      %v4404 = vunpack.c.h.b16 %v4232
      %v4405 = vunpack.c.l.b16 %v4233
      %v4406 = vunpack.c.h.b16 %v4233
      %v4407 = vunpack.c.l.b16 %v4234
      %v4408 = vunpack.c.h.b16 %v4234
      %v4409 = vunpack.c.l.b16 %v4235
      %v4410 = vunpack.c.h.b16 %v4235
      %v4411 = vunpack.c.l.b16 %v4236
      %v4412 = vunpack.c.h.b16 %v4236
      %v4413 = vunpack.c.l.b16 %v4237
      %v4414 = vunpack.c.h.b16 %v4237
      %v4415 = vunpack.c.l.b16 %v4238
      %v4416 = vunpack.c.h.b16 %v4238
      %v4417 = vunpack.c.l.b16 %v4239
      %v4418 = vunpack.c.h.b16 %v4239
      %v4419 = vunpack.c.l.b16 %v4240
      %v4420 = vunpack.c.h.b16 %v4240
      %v4421 = vunpack.c.l.b16 %v4241
      %v4422 = vunpack.c.h.b16 %v4241
      %v4423 = vunpack.c.l.b16 %v4242
      %v4424 = vunpack.c.h.b16 %v4242
      %v4425 = vunpack.c.l.b16 %v4243
      %v4426 = vunpack.c.h.b16 %v4243
      %v4427 = vunpack.c.l.b16 %v4244
      %v4428 = vunpack.c.h.b16 %v4244
      %v4429 = vunpack.c.l.b16 %v4245
      %v4430 = vunpack.c.h.b16 %v4245
      %v4431 = vunpack.c.l.b16 %v4246
      %v4432 = vunpack.c.h.b16 %v4246
      %v4433 = vunpack.c.l.b16 %v4247
      %v4434 = vunpack.c.h.b16 %v4247
      %v4435 = vunpack.c.l.b16 %v4248
      %v4436 = vunpack.c.h.b16 %v4248
      %v4437 = vunpack.c.l.b16 %v4249
      %v4438 = vunpack.c.h.b16 %v4249
      %v4439 = vunpack.c.l.b16 %v4250
      %v4440 = vunpack.c.h.b16 %v4250
      %v4441 = vunpack.c.l.b16 %v4251
      %v4442 = vunpack.c.h.b16 %v4251
      %v4443 = vunpack.c.l.b16 %v4252
      %v4444 = vunpack.c.h.b16 %v4252
      %v4445 = vunpack.c.l.b16 %v4253
      %v4446 = vunpack.c.h.b16 %v4253
      %v4447 = vunpack.c.l.b16 %v4254
      %v4448 = vunpack.c.h.b16 %v4254
      %v4449 = vunpack.c.l.b16 %v4255
      %v4450 = vunpack.c.h.b16 %v4255
      %v4451 = vunpack.c.l.b16 %v4256
      %v4452 = vunpack.c.h.b16 %v4256
      %v4453 = vunpack.c.l.b16 %v4257
      %v4454 = vunpack.c.h.b16 %v4257
      %v4455 = vunpack.c.l.b16 %v4258
      %v4456 = vunpack.c.h.b16 %v4258
      %v4457 = vunpack.c.l.b16 %v4259
      %v4458 = vunpack.c.h.b16 %v4259
      %v4459 = vunpack.c.l.b16 %v4260
      %v4460 = vunpack.c.h.b16 %v4260
      %v4461 = vunpack.c.l.b16 %v4261
      %v4462 = vunpack.c.h.b16 %v4261
      %v4463 = vunpack.c.l.b16 %v4262
      %v4464 = vunpack.c.h.b16 %v4262
      %v4465 = vunpack.c.l.b16 %v4263
      %v4466 = vunpack.c.h.b16 %v4263
      %v4467 = vunpack.c.l.b16 %v4264
      %v4468 = vunpack.c.h.b16 %v4264
      %v4469 = vunpack.c.l.b16 %v4265
      %v4470 = vunpack.c.h.b16 %v4265
      %v4471 = vunpack.c.l.b16 %v4266
      %v4472 = vunpack.c.h.b16 %v4266
      %v4473 = vunpack.c.l.b16 %v4267
      %v4474 = vunpack.c.h.b16 %v4267
      %v4475 = vunpack.c.l.b16 %v4268
      %v4476 = vunpack.c.h.b16 %v4268
      %v4477 = vunpack.c.l.b16 %v4269
      %v4478 = vunpack.c.h.b16 %v4269
      %v4479 = vunpack.c.l.b16 %v4270
      %v4480 = vunpack.c.h.b16 %v4270
      %v4481 = vunpack.c.l.b16 %v4271
      %v4482 = vunpack.c.h.b16 %v4271
      %v4483 = vunpack.c.l.b16 %v4272
      %v4484 = vunpack.c.h.b16 %v4272
      %v4485 = vunpack.c.l.b16 %v4273
      %v4486 = vunpack.c.h.b16 %v4273
      %v4487 = vunpack.c.l.b16 %v4274
      %v4488 = vunpack.c.h.b16 %v4274
      %v4489 = vunpack.c.l.b16 %v4275
      %v4490 = vunpack.c.h.b16 %v4275
      %v4491 = vunpack.c.l.b16 %v4276
      %v4492 = vunpack.c.h.b16 %v4276
      %v4493 = vpack.c.b16 %v4351, %v4349
      %v4494 = vpack.c.b16 %v4352, %v4350
      %v4495 = vpack.c.b16 %v4355, %v4353
      %v4496 = vpack.c.b16 %v4356, %v4354
      %v4497 = vpack.c.b16 %v4359, %v4357
      %v4498 = vpack.c.b16 %v4360, %v4358
      %v4499 = vpack.c.b16 %v4363, %v4361
      %v4500 = vpack.c.b16 %v4364, %v4362
      %v4501 = vpack.c.b16 %v4367, %v4365
      %v4502 = vpack.c.b16 %v4368, %v4366
      %v4503 = vpack.c.b16 %v4371, %v4369
      %v4504 = vpack.c.b16 %v4372, %v4370
      %v4505 = vpack.c.b16 %v4375, %v4373
      %v4506 = vpack.c.b16 %v4376, %v4374
      %v4507 = vpack.c.b16 %v4379, %v4377
      %v4508 = vpack.c.b16 %v4380, %v4378
      %v4509 = vpack.c.b16 %v4383, %v4381
      %v4510 = vpack.c.b16 %v4384, %v4382
      %v4511 = vpack.c.b16 %v4387, %v4385
      %v4512 = vpack.c.b16 %v4388, %v4386
      %v4513 = vpack.c.b16 %v4391, %v4389
      %v4514 = vpack.c.b16 %v4392, %v4390
      %v4515 = vpack.c.b16 %v4395, %v4393
      %v4516 = vpack.c.b16 %v4396, %v4394
      %v4517 = vpack.c.b16 %v4399, %v4397
      %v4518 = vpack.c.b16 %v4400, %v4398
      %v4519 = vpack.c.b16 %v4403, %v4401
      %v4520 = vpack.c.b16 %v4404, %v4402
      %v4521 = vpack.c.b16 %v4407, %v4405
      %v4522 = vpack.c.b16 %v4408, %v4406
      %v4523 = vpack.c.b16 %v4411, %v4409
      %v4524 = vpack.c.b16 %v4412, %v4410
      %v4525 = vpack.c.b16 %v4415, %v4413
      %v4526 = vpack.c.b16 %v4416, %v4414
      %v4527 = vpack.c.b16 %v4419, %v4417
      %v4528 = vpack.c.b16 %v4420, %v4418
      %v4529 = vpack.c.b16 %v4423, %v4421
      %v4530 = vpack.c.b16 %v4424, %v4422
      %v4531 = vpack.c.b16 %v4427, %v4425
      %v4532 = vpack.c.b16 %v4428, %v4426
      %v4533 = vpack.c.b16 %v4431, %v4429
      %v4534 = vpack.c.b16 %v4432, %v4430
      %v4535 = vpack.c.b16 %v4435, %v4433
      %v4536 = vpack.c.b16 %v4436, %v4434
      %v4537 = vpack.c.b16 %v4439, %v4437
      %v4538 = vpack.c.b16 %v4440, %v4438
      %v4539 = vpack.c.b16 %v4443, %v4441
      %v4540 = vpack.c.b16 %v4444, %v4442
      %v4541 = vpack.c.b16 %v4447, %v4445
      %v4542 = vpack.c.b16 %v4448, %v4446
      %v4543 = vpack.c.b16 %v4451, %v4449
      %v4544 = vpack.c.b16 %v4452, %v4450
      %v4545 = vpack.c.b16 %v4455, %v4453
      %v4546 = vpack.c.b16 %v4456, %v4454
      %v4547 = vpack.c.b16 %v4459, %v4457
      %v4548 = vpack.c.b16 %v4460, %v4458
      %v4549 = vpack.c.b16 %v4463, %v4461
      %v4550 = vpack.c.b16 %v4464, %v4462
      %v4551 = vpack.c.b16 %v4467, %v4465
      %v4552 = vpack.c.b16 %v4468, %v4466
      %v4553 = vpack.c.b16 %v4471, %v4469
      %v4554 = vpack.c.b16 %v4472, %v4470
      %v4555 = vpack.c.b16 %v4475, %v4473
      %v4556 = vpack.c.b16 %v4476, %v4474
      %v4557 = vpack.c.b16 %v4479, %v4477
      %v4558 = vpack.c.b16 %v4480, %v4478
      %v4559 = vpack.c.b16 %v4483, %v4481
      %v4560 = vpack.c.b16 %v4484, %v4482
      %v4561 = vpack.c.b16 %v4487, %v4485
      %v4562 = vpack.c.b16 %v4488, %v4486
      %v4563 = vpack.c.b16 %v4491, %v4489
      %v4564 = vpack.c.b16 %v4492, %v4490
      %v4638 = vsel %vm1655, %v2347, 0
      %v4641 = vsel %vm1655, %v2352, 0
      %4643 = vmatprep.subr.bf16.mxu0 %v4494
      %4644 = vmatpush1.bf16.msra.mxu0 %v4493
      %4645 = vmatprep.subr.bf16.mxu0 %v4496
      %4646 = vmatpush1.bf16.msra.mxu0 %v4495
      %4647 = vmatprep.subr.bf16.mxu0 %v4498
      %4648 = vmatpush1.bf16.msra.mxu0 %v4497
      %4649 = vmatprep.subr.bf16.mxu0 %v4500
      %4650 = vmatpush1.bf16.msra.mxu0 %v4499
      %4651 = vmatprep.subr.bf16.mxu0 %v4502
      %4652 = vmatpush1.bf16.msra.mxu0 %v4501
      %4653 = vmatprep.subr.bf16.mxu0 %v4504
      %4654 = vmatpush1.bf16.msra.mxu0 %v4503
      %4655 = vmatprep.subr.bf16.mxu0 %v4506
      %4656 = vmatpush1.bf16.msra.mxu0 %v4505
      %4657 = vmatprep.subr.bf16.mxu0 %v4508
      %4658 = vmatpush1.bf16.msra.mxu0 %v4507
      %4659 = vmatprep.subr.bf16.mxu0 %v4510
      %4660 = vmatpush1.bf16.msra.mxu0 %v4509
      %4661 = vmatprep.subr.bf16.mxu0 %v4512
      %4662 = vmatpush1.bf16.msra.mxu0 %v4511
      %4663 = vmatprep.subr.bf16.mxu0 %v4514
      %4664 = vmatpush1.bf16.msra.mxu0 %v4513
      %4665 = vmatprep.subr.bf16.mxu0 %v4516
      %4666 = vmatpush1.bf16.msra.mxu0 %v4515
      %4667 = vmatprep.subr.bf16.mxu0 %v4518
      %4668 = vmatpush1.bf16.msra.mxu0 %v4517
      %4669 = vmatprep.subr.bf16.mxu0 %v4520
      %4670 = vmatpush1.bf16.msra.mxu0 %v4519
      %4671 = vmatprep.subr.bf16.mxu0 %v4522
      %4672 = vmatpush1.bf16.msra.mxu0 %v4521
      %4673 = vmatprep.subr.bf16.mxu0 %v4524
      %4674 = vmatpush1.bf16.msra.mxu0 %v4523
      %4675 = vmatprep.mubr.bf16.mxu0 %v2344
      %4676 = vmatmul.mubr.bf16.gmra.mrb[0].mxu0 %v2343
      %v4677 = vpop.f32.mrb[0].mxu0
      %v4678 = vadd.f32 0.0, %v4677
      %v4679 = vpop.f32.mrb[0].mxu0
      %v4680 = vadd.f32 0.0, %v4679
      %v4681 = vpop.f32.mrb[0].mxu0
      %v4682 = vadd.f32 0.0, %v4681
      %v4683 = vpop.f32.mrb[0].mxu0
      %v4684 = vadd.f32 0.0, %v4683
      %4685 = vmatprep.mubr.bf16.mxu0 %v2349
      %4686 = vmatmul.mubr.bf16.gmra.mrb[0].mxu0 %v2348
      %v4687 = vpop.f32.mrb[0].mxu0
      %v4688 = vadd.f32 0.0, %v4687
      %v4689 = vpop.f32.mrb[0].mxu0
      %v4690 = vadd.f32 0.0, %v4689
      %v4691 = vpop.f32.mrb[0].mxu0
      %v4692 = vadd.f32 0.0, %v4691
      %v4693 = vpop.f32.mrb[0].mxu0
      %v4694 = vadd.f32 0.0, %v4693
      %4695 = vdwg.mxu0
      %4696 = vmatprep.subr.bf16.mxu0 %v4526
      %4697 = vmatpush1.bf16.msra.mxu0 %v4525
      %4698 = vmatprep.subr.bf16.mxu0 %v4528
      %4699 = vmatpush1.bf16.msra.mxu0 %v4527
      %4700 = vmatprep.subr.bf16.mxu0 %v4530
      %4701 = vmatpush1.bf16.msra.mxu0 %v4529
      %4702 = vmatprep.subr.bf16.mxu0 %v4532
      %4703 = vmatpush1.bf16.msra.mxu0 %v4531
      %4704 = vmatprep.subr.bf16.mxu0 %v4534
      %4705 = vmatpush1.bf16.msra.mxu0 %v4533
      %4706 = vmatprep.subr.bf16.mxu0 %v4536
      %4707 = vmatpush1.bf16.msra.mxu0 %v4535
      %4708 = vmatprep.subr.bf16.mxu0 %v4538
      %4709 = vmatpush1.bf16.msra.mxu0 %v4537
      %4710 = vmatprep.subr.bf16.mxu0 %v4540
      %4711 = vmatpush1.bf16.msra.mxu0 %v4539
      %4712 = vmatprep.subr.bf16.mxu0 %v4542
      %4713 = vmatpush1.bf16.msra.mxu0 %v4541
      %4714 = vmatprep.subr.bf16.mxu0 %v4544
      %4715 = vmatpush1.bf16.msra.mxu0 %v4543
      %4716 = vmatprep.subr.bf16.mxu0 %v4546
      %4717 = vmatpush1.bf16.msra.mxu0 %v4545
      %4718 = vmatprep.subr.bf16.mxu0 %v4548
      %4719 = vmatpush1.bf16.msra.mxu0 %v4547
      %4720 = vmatprep.subr.bf16.mxu0 %v4550
      %4721 = vmatpush1.bf16.msra.mxu0 %v4549
      %4722 = vmatprep.subr.bf16.mxu0 %v4552
      %4723 = vmatpush1.bf16.msra.mxu0 %v4551
      %4724 = vmatprep.subr.bf16.mxu0 %v4554
      %4725 = vmatpush1.bf16.msra.mxu0 %v4553
      %4726 = vmatprep.subr.bf16.mxu0 %v4556
      %4727 = vmatpush1.bf16.msra.mxu0 %v4555
      %4728 = vmatprep.mubr.bf16.mxu0 %v2346
      %4729 = vmatmul.mubr.bf16.gmra.mrb[0].mxu0 %v2345
      %v4730 = vpop.f32.mrb[0].mxu0
      %v4731 = vadd.f32 %v4678, %v4730
      %v4732 = vpop.f32.mrb[0].mxu0
      %v4733 = vadd.f32 %v4680, %v4732
      %v4734 = vpop.f32.mrb[0].mxu0
      %v4735 = vadd.f32 %v4682, %v4734
      %v4736 = vpop.f32.mrb[0].mxu0
      %v4737 = vadd.f32 %v4684, %v4736
      %4738 = vmatprep.mubr.bf16.mxu0 %v2351
      %4739 = vmatmul.mubr.bf16.gmra.mrb[0].mxu0 %v2350
      %v4740 = vpop.f32.mrb[0].mxu0
      %v4741 = vadd.f32 %v4688, %v4740
      %v4742 = vpop.f32.mrb[0].mxu0
      %v4743 = vadd.f32 %v4690, %v4742
      %v4744 = vpop.f32.mrb[0].mxu0
      %v4745 = vadd.f32 %v4692, %v4744
      %v4746 = vpop.f32.mrb[0].mxu0
      %v4747 = vadd.f32 %v4694, %v4746
      %4748 = vdwg.mxu0
      %4749 = vmatprep.subr.bf16.mxu0 %v4558
      %4750 = vmatpush1.bf16.msra.mxu0 %v4557
      %4751 = vmatprep.subr.bf16.mxu0 %v4560
      %4752 = vmatpush1.bf16.msra.mxu0 %v4559
      %4753 = vmatprep.subr.bf16.mxu0 %v4562
      %4754 = vmatpush1.bf16.msra.mxu0 %v4561
      %4755 = vmatprep.subr.bf16.mxu0 %v4564
      %4756 = vmatpush1.bf16.msra.mxu0 %v4563
      %4757 = vmatprep.subr.bf16.mxu0 0
      %4758 = vmatpush1.bf16.msra.mxu0 0
      %4759 = vmatprep.subr.bf16.mxu0 0
      %4760 = vmatpush1.bf16.msra.mxu0 0
      %4761 = vmatprep.subr.bf16.mxu0 0
      %4762 = vmatpush1.bf16.msra.mxu0 0
      %4763 = vmatprep.subr.bf16.mxu0 0
      %4764 = vmatpush1.bf16.msra.mxu0 0
      %4765 = vmatprep.subr.bf16.mxu0 0
      %4766 = vmatpush1.bf16.msra.mxu0 0
      %4767 = vmatprep.subr.bf16.mxu0 0
      %4768 = vmatpush1.bf16.msra.mxu0 0
      %4769 = vmatprep.subr.bf16.mxu0 0
      %4770 = vmatpush1.bf16.msra.mxu0 0
      %4771 = vmatprep.subr.bf16.mxu0 0
      %4772 = vmatpush1.bf16.msra.mxu0 0
      %4773 = vmatprep.subr.bf16.mxu0 0
      %4774 = vmatpush1.bf16.msra.mxu0 0
      %4775 = vmatprep.subr.bf16.mxu0 0
      %4776 = vmatpush1.bf16.msra.mxu0 0
      %4777 = vmatprep.subr.bf16.mxu0 0
      %4778 = vmatpush1.bf16.msra.mxu0 0
      %4779 = vmatprep.subr.bf16.mxu0 0
      %4780 = vmatpush1.bf16.msra.mxu0 0
      %4781 = vmatprep.mubr.bf16.mxu0 0
      %4782 = vmatmul.mubr.bf16.gmra.mrb[0].mxu0 %v4638
      %v4783 = vpop.f32.mrb[0].mxu0
      %v4784 = vadd.f32 %v4731, %v4783
      %v4785 = vpop.f32.mrb[0].mxu0
      %v4786 = vadd.f32 %v4733, %v4785
      %v4787 = vpop.f32.mrb[0].mxu0
      %v4788 = vadd.f32 %v4735, %v4787
      %v4789 = vpop.f32.mrb[0].mxu0
      %v4790 = vadd.f32 %v4737, %v4789
      %4791 = vmatprep.mubr.bf16.mxu0 0
      %4792 = vmatmul.mubr.bf16.gmra.mrb[0].mxu0 %v4641
      %v4793 = vpop.f32.mrb[0].mxu0
      %v4794 = vadd.f32 %v4741, %v4793
      %v4795 = vpop.f32.mrb[0].mxu0
      %v4796 = vadd.f32 %v4743, %v4795
      %v4797 = vpop.f32.mrb[0].mxu0
      %v4798 = vadd.f32 %v4745, %v4797
      %v4799 = vpop.f32.mrb[0].mxu0
      %v4800 = vadd.f32 %v4747, %v4799
      %4801 = vdwg.mxu0
      %v4802 = vadd.f32 %v4196, %v4784
      %v4803 = vadd.f32 %v4197, %v4786
      %v4804 = vadd.f32 %v4198, %v4788
      %v4805 = vadd.f32 %v4199, %v4790
      %v4806 = vadd.f32 %v4200, %v4794
      %v4807 = vadd.f32 %v4201, %v4796
      %v4808 = vadd.f32 %v4202, %v4798
      %v4809 = vadd.f32 %v4203, %v4800
      %s4810 = scalar_lea.vmem %s5, 2304
      %v4811 = vld [vmem:[%s4810] sm:$0xff]
      %v4812 = vld [vmem:[%s4810 + $0x8] sm:$0xff]
      %v4813 = vld [vmem:[%s4810 + $0x10] sm:$0xff]
      %v4814 = vld [vmem:[%s4810 + $0x18] sm:$0xff]
      %v4815 = vld [vmem:[%s4810 + $0x20] sm:$0xff]
      %v4816 = vld [vmem:[%s4810 + $0x28] sm:$0xff]
      %v4817 = vld [vmem:[%s4810 + $0x30] sm:$0xff]
      %v4818 = vld [vmem:[%s4810 + $0x38] sm:$0xff]
      %v4819 = vld [vmem:[%s4810 + $0x40] sm:$0xff]
      %v4820 = vld [vmem:[%s4810 + $0x48] sm:$0xff]
      %v4821 = vld [vmem:[%s4810 + $0x50] sm:$0xff]
      %v4822 = vld [vmem:[%s4810 + $0x58] sm:$0xff]
      %v4823 = vld [vmem:[%s4810 + $0x60] sm:$0xff]
      %v4824 = vld [vmem:[%s4810 + $0x68] sm:$0xff]
      %v4825 = vld [vmem:[%s4810 + $0x70] sm:$0xff]
      %v4826 = vld [vmem:[%s4810 + $0x78] sm:$0xff]
      %v4827 = vld [vmem:[%s4810 + $0x80] sm:$0xff]
      %v4828 = vld [vmem:[%s4810 + $0x88] sm:$0xff]
      %v4829 = vld [vmem:[%s4810 + $0x90] sm:$0xff]
      %v4830 = vld [vmem:[%s4810 + $0x98] sm:$0xff]
      %v4831 = vld [vmem:[%s4810 + $0xa0] sm:$0xff]
      %v4832 = vld [vmem:[%s4810 + $0xa8] sm:$0xff]
      %v4833 = vld [vmem:[%s4810 + $0xb0] sm:$0xff]
      %v4834 = vld [vmem:[%s4810 + $0xb8] sm:$0xff]
      %v4835 = vld [vmem:[%s4810 + $0xc0] sm:$0xff]
      %v4836 = vld [vmem:[%s4810 + $0xc8] sm:$0xff]
      %v4837 = vld [vmem:[%s4810 + $0xd0] sm:$0xff]
      %v4838 = vld [vmem:[%s4810 + $0xd8] sm:$0xff]
      %v4839 = vld [vmem:[%s4810 + $0xe0] sm:$0xff]
      %v4840 = vld [vmem:[%s4810 + $0xe8] sm:$0xff]
      %v4841 = vld [vmem:[%s4810 + $0xf0] sm:$0xff]
      %v4842 = vld [vmem:[%s4810 + $0xf8] sm:$0xff]
      %v4843 = vld [vmem:[%s4810 + $0x100] sm:$0xff]
      %v4844 = vld [vmem:[%s4810 + $0x108] sm:$0xff]
      %v4845 = vld [vmem:[%s4810 + $0x110] sm:$0xff]
      %v4846 = vld [vmem:[%s4810 + $0x118] sm:$0xff]
      %v4847 = vld [vmem:[%s4810 + $0x120] sm:$0xff]
      %v4848 = vld [vmem:[%s4810 + $0x128] sm:$0xff]
      %v4849 = vld [vmem:[%s4810 + $0x130] sm:$0xff]
      %v4850 = vld [vmem:[%s4810 + $0x138] sm:$0xff]
      %v4851 = vld [vmem:[%s4810 + $0x140] sm:$0xff]
      %v4852 = vld [vmem:[%s4810 + $0x148] sm:$0xff]
      %v4853 = vld [vmem:[%s4810 + $0x150] sm:$0xff]
      %v4854 = vld [vmem:[%s4810 + $0x158] sm:$0xff]
      %v4855 = vld [vmem:[%s4810 + $0x160] sm:$0xff]
      %v4856 = vld [vmem:[%s4810 + $0x168] sm:$0xff]
      %v4857 = vld [vmem:[%s4810 + $0x170] sm:$0xff]
      %v4858 = vld [vmem:[%s4810 + $0x178] sm:$0xff]
      %v4859 = vld [vmem:[%s4810 + $0x180] sm:$0xff]
      %v4860 = vld [vmem:[%s4810 + $0x188] sm:$0xff]
      %v4861 = vld [vmem:[%s4810 + $0x190] sm:$0xff]
      %v4862 = vld [vmem:[%s4810 + $0x198] sm:$0xff]
      %v4863 = vld [vmem:[%s4810 + $0x1a0] sm:$0xff]
      %v4864 = vld [vmem:[%s4810 + $0x1a8] sm:$0xff]
      %v4865 = vld [vmem:[%s4810 + $0x1b0] sm:$0xff]
      %v4866 = vld [vmem:[%s4810 + $0x1b8] sm:$0xff]
      %v4867 = vld [vmem:[%s4810 + $0x1c0] sm:$0xff]
      %v4868 = vld [vmem:[%s4810 + $0x1c8] sm:$0xff]
      %v4869 = vld [vmem:[%s4810 + $0x1d0] sm:$0xff]
      %v4870 = vld [vmem:[%s4810 + $0x1d8] sm:$0xff]
      %v4871 = vld [vmem:[%s4810 + $0x1e0] sm:$0xff]
      %v4872 = vld [vmem:[%s4810 + $0x1e8] sm:$0xff]
      %v4873 = vld [vmem:[%s4810 + $0x1f0] sm:$0xff]
      %v4874 = vld [vmem:[%s4810 + $0x1f8] sm:$0xff]
      %v4875 = vld [vmem:[%s4810 + $0x200] sm:$0xff]
      %v4876 = vld [vmem:[%s4810 + $0x208] sm:$0xff]
      %v4877 = vld [vmem:[%s4810 + $0x210] sm:$0xff]
      %v4878 = vld [vmem:[%s4810 + $0x218] sm:$0xff]
      %v4879 = vld [vmem:[%s4810 + $0x220] sm:$0xff]
      %v4880 = vld [vmem:[%s4810 + $0x228] sm:$0xff]
      %v4881 = vld [vmem:[%s4810 + $0x230] sm:$0xff]
      %v4882 = vld [vmem:[%s4810 + $0x238] sm:$0xff]
      %v4955 = vunpack.c.l.b16 %v4811
      %v4956 = vunpack.c.h.b16 %v4811
      %v4957 = vunpack.c.l.b16 %v4812
      %v4958 = vunpack.c.h.b16 %v4812
      %v4959 = vunpack.c.l.b16 %v4813
      %v4960 = vunpack.c.h.b16 %v4813
      %v4961 = vunpack.c.l.b16 %v4814
      %v4962 = vunpack.c.h.b16 %v4814
      %v4963 = vunpack.c.l.b16 %v4815
      %v4964 = vunpack.c.h.b16 %v4815
      %v4965 = vunpack.c.l.b16 %v4816
      %v4966 = vunpack.c.h.b16 %v4816
      %v4967 = vunpack.c.l.b16 %v4817
      %v4968 = vunpack.c.h.b16 %v4817
      %v4969 = vunpack.c.l.b16 %v4818
      %v4970 = vunpack.c.h.b16 %v4818
      %v4971 = vunpack.c.l.b16 %v4819
      %v4972 = vunpack.c.h.b16 %v4819
      %v4973 = vunpack.c.l.b16 %v4820
      %v4974 = vunpack.c.h.b16 %v4820
      %v4975 = vunpack.c.l.b16 %v4821
      %v4976 = vunpack.c.h.b16 %v4821
      %v4977 = vunpack.c.l.b16 %v4822
      %v4978 = vunpack.c.h.b16 %v4822
      %v4979 = vunpack.c.l.b16 %v4823
      %v4980 = vunpack.c.h.b16 %v4823
      %v4981 = vunpack.c.l.b16 %v4824
      %v4982 = vunpack.c.h.b16 %v4824
      %v4983 = vunpack.c.l.b16 %v4825
      %v4984 = vunpack.c.h.b16 %v4825
      %v4985 = vunpack.c.l.b16 %v4826
      %v4986 = vunpack.c.h.b16 %v4826
      %v4987 = vunpack.c.l.b16 %v4827
      %v4988 = vunpack.c.h.b16 %v4827
      %v4989 = vunpack.c.l.b16 %v4828
      %v4990 = vunpack.c.h.b16 %v4828
      %v4991 = vunpack.c.l.b16 %v4829
      %v4992 = vunpack.c.h.b16 %v4829
      %v4993 = vunpack.c.l.b16 %v4830
      %v4994 = vunpack.c.h.b16 %v4830
      %v4995 = vunpack.c.l.b16 %v4831
      %v4996 = vunpack.c.h.b16 %v4831
      %v4997 = vunpack.c.l.b16 %v4832
      %v4998 = vunpack.c.h.b16 %v4832
      %v4999 = vunpack.c.l.b16 %v4833
      %v5000 = vunpack.c.h.b16 %v4833
      %v5001 = vunpack.c.l.b16 %v4834
      %v5002 = vunpack.c.h.b16 %v4834
      %v5003 = vunpack.c.l.b16 %v4835
      %v5004 = vunpack.c.h.b16 %v4835
      %v5005 = vunpack.c.l.b16 %v4836
      %v5006 = vunpack.c.h.b16 %v4836
      %v5007 = vunpack.c.l.b16 %v4837
      %v5008 = vunpack.c.h.b16 %v4837
      %v5009 = vunpack.c.l.b16 %v4838
      %v5010 = vunpack.c.h.b16 %v4838
      %v5011 = vunpack.c.l.b16 %v4839
      %v5012 = vunpack.c.h.b16 %v4839
      %v5013 = vunpack.c.l.b16 %v4840
      %v5014 = vunpack.c.h.b16 %v4840
      %v5015 = vunpack.c.l.b16 %v4841
      %v5016 = vunpack.c.h.b16 %v4841
      %v5017 = vunpack.c.l.b16 %v4842
      %v5018 = vunpack.c.h.b16 %v4842
      %v5019 = vunpack.c.l.b16 %v4843
      %v5020 = vunpack.c.h.b16 %v4843
      %v5021 = vunpack.c.l.b16 %v4844
      %v5022 = vunpack.c.h.b16 %v4844
      %v5023 = vunpack.c.l.b16 %v4845
      %v5024 = vunpack.c.h.b16 %v4845
      %v5025 = vunpack.c.l.b16 %v4846
      %v5026 = vunpack.c.h.b16 %v4846
      %v5027 = vunpack.c.l.b16 %v4847
      %v5028 = vunpack.c.h.b16 %v4847
      %v5029 = vunpack.c.l.b16 %v4848
      %v5030 = vunpack.c.h.b16 %v4848
      %v5031 = vunpack.c.l.b16 %v4849
      %v5032 = vunpack.c.h.b16 %v4849
      %v5033 = vunpack.c.l.b16 %v4850
      %v5034 = vunpack.c.h.b16 %v4850
      %v5035 = vunpack.c.l.b16 %v4851
      %v5036 = vunpack.c.h.b16 %v4851
      %v5037 = vunpack.c.l.b16 %v4852
      %v5038 = vunpack.c.h.b16 %v4852
      %v5039 = vunpack.c.l.b16 %v4853
      %v5040 = vunpack.c.h.b16 %v4853
      %v5041 = vunpack.c.l.b16 %v4854
      %v5042 = vunpack.c.h.b16 %v4854
      %v5043 = vunpack.c.l.b16 %v4855
      %v5044 = vunpack.c.h.b16 %v4855
      %v5045 = vunpack.c.l.b16 %v4856
      %v5046 = vunpack.c.h.b16 %v4856
      %v5047 = vunpack.c.l.b16 %v4857
      %v5048 = vunpack.c.h.b16 %v4857
      %v5049 = vunpack.c.l.b16 %v4858
      %v5050 = vunpack.c.h.b16 %v4858
      %v5051 = vunpack.c.l.b16 %v4859
      %v5052 = vunpack.c.h.b16 %v4859
      %v5053 = vunpack.c.l.b16 %v4860
      %v5054 = vunpack.c.h.b16 %v4860
      %v5055 = vunpack.c.l.b16 %v4861
      %v5056 = vunpack.c.h.b16 %v4861
      %v5057 = vunpack.c.l.b16 %v4862
      %v5058 = vunpack.c.h.b16 %v4862
      %v5059 = vunpack.c.l.b16 %v4863
      %v5060 = vunpack.c.h.b16 %v4863
      %v5061 = vunpack.c.l.b16 %v4864
      %v5062 = vunpack.c.h.b16 %v4864
      %v5063 = vunpack.c.l.b16 %v4865
      %v5064 = vunpack.c.h.b16 %v4865
      %v5065 = vunpack.c.l.b16 %v4866
      %v5066 = vunpack.c.h.b16 %v4866
      %v5067 = vunpack.c.l.b16 %v4867
      %v5068 = vunpack.c.h.b16 %v4867
      %v5069 = vunpack.c.l.b16 %v4868
      %v5070 = vunpack.c.h.b16 %v4868
      %v5071 = vunpack.c.l.b16 %v4869
      %v5072 = vunpack.c.h.b16 %v4869
      %v5073 = vunpack.c.l.b16 %v4870
      %v5074 = vunpack.c.h.b16 %v4870
      %v5075 = vunpack.c.l.b16 %v4871
      %v5076 = vunpack.c.h.b16 %v4871
      %v5077 = vunpack.c.l.b16 %v4872
      %v5078 = vunpack.c.h.b16 %v4872
      %v5079 = vunpack.c.l.b16 %v4873
      %v5080 = vunpack.c.h.b16 %v4873
      %v5081 = vunpack.c.l.b16 %v4874
      %v5082 = vunpack.c.h.b16 %v4874
      %v5083 = vunpack.c.l.b16 %v4875
      %v5084 = vunpack.c.h.b16 %v4875
      %v5085 = vunpack.c.l.b16 %v4876
      %v5086 = vunpack.c.h.b16 %v4876
      %v5087 = vunpack.c.l.b16 %v4877
      %v5088 = vunpack.c.h.b16 %v4877
      %v5089 = vunpack.c.l.b16 %v4878
      %v5090 = vunpack.c.h.b16 %v4878
      %v5091 = vunpack.c.l.b16 %v4879
      %v5092 = vunpack.c.h.b16 %v4879
      %v5093 = vunpack.c.l.b16 %v4880
      %v5094 = vunpack.c.h.b16 %v4880
      %v5095 = vunpack.c.l.b16 %v4881
      %v5096 = vunpack.c.h.b16 %v4881
      %v5097 = vunpack.c.l.b16 %v4882
      %v5098 = vunpack.c.h.b16 %v4882
      %v5099 = vpack.c.b16 %v4957, %v4955
      %v5100 = vpack.c.b16 %v4958, %v4956
      %v5101 = vpack.c.b16 %v4961, %v4959
      %v5102 = vpack.c.b16 %v4962, %v4960
      %v5103 = vpack.c.b16 %v4965, %v4963
      %v5104 = vpack.c.b16 %v4966, %v4964
      %v5105 = vpack.c.b16 %v4969, %v4967
      %v5106 = vpack.c.b16 %v4970, %v4968
      %v5107 = vpack.c.b16 %v4973, %v4971
      %v5108 = vpack.c.b16 %v4974, %v4972
      %v5109 = vpack.c.b16 %v4977, %v4975
      %v5110 = vpack.c.b16 %v4978, %v4976
      %v5111 = vpack.c.b16 %v4981, %v4979
      %v5112 = vpack.c.b16 %v4982, %v4980
      %v5113 = vpack.c.b16 %v4985, %v4983
      %v5114 = vpack.c.b16 %v4986, %v4984
      %v5115 = vpack.c.b16 %v4989, %v4987
      %v5116 = vpack.c.b16 %v4990, %v4988
      %v5117 = vpack.c.b16 %v4993, %v4991
      %v5118 = vpack.c.b16 %v4994, %v4992
      %v5119 = vpack.c.b16 %v4997, %v4995
      %v5120 = vpack.c.b16 %v4998, %v4996
      %v5121 = vpack.c.b16 %v5001, %v4999
      %v5122 = vpack.c.b16 %v5002, %v5000
      %v5123 = vpack.c.b16 %v5005, %v5003
      %v5124 = vpack.c.b16 %v5006, %v5004
      %v5125 = vpack.c.b16 %v5009, %v5007
      %v5126 = vpack.c.b16 %v5010, %v5008
      %v5127 = vpack.c.b16 %v5013, %v5011
      %v5128 = vpack.c.b16 %v5014, %v5012
      %v5129 = vpack.c.b16 %v5017, %v5015
      %v5130 = vpack.c.b16 %v5018, %v5016
      %v5131 = vpack.c.b16 %v5021, %v5019
      %v5132 = vpack.c.b16 %v5022, %v5020
      %v5133 = vpack.c.b16 %v5025, %v5023
      %v5134 = vpack.c.b16 %v5026, %v5024
      %v5135 = vpack.c.b16 %v5029, %v5027
      %v5136 = vpack.c.b16 %v5030, %v5028
      %v5137 = vpack.c.b16 %v5033, %v5031
      %v5138 = vpack.c.b16 %v5034, %v5032
      %v5139 = vpack.c.b16 %v5037, %v5035
      %v5140 = vpack.c.b16 %v5038, %v5036
      %v5141 = vpack.c.b16 %v5041, %v5039
      %v5142 = vpack.c.b16 %v5042, %v5040
      %v5143 = vpack.c.b16 %v5045, %v5043
      %v5144 = vpack.c.b16 %v5046, %v5044
      %v5145 = vpack.c.b16 %v5049, %v5047
      %v5146 = vpack.c.b16 %v5050, %v5048
      %v5147 = vpack.c.b16 %v5053, %v5051
      %v5148 = vpack.c.b16 %v5054, %v5052
      %v5149 = vpack.c.b16 %v5057, %v5055
      %v5150 = vpack.c.b16 %v5058, %v5056
      %v5151 = vpack.c.b16 %v5061, %v5059
      %v5152 = vpack.c.b16 %v5062, %v5060
      %v5153 = vpack.c.b16 %v5065, %v5063
      %v5154 = vpack.c.b16 %v5066, %v5064
      %v5155 = vpack.c.b16 %v5069, %v5067
      %v5156 = vpack.c.b16 %v5070, %v5068
      %v5157 = vpack.c.b16 %v5073, %v5071
      %v5158 = vpack.c.b16 %v5074, %v5072
      %v5159 = vpack.c.b16 %v5077, %v5075
      %v5160 = vpack.c.b16 %v5078, %v5076
      %v5161 = vpack.c.b16 %v5081, %v5079
      %v5162 = vpack.c.b16 %v5082, %v5080
      %v5163 = vpack.c.b16 %v5085, %v5083
      %v5164 = vpack.c.b16 %v5086, %v5084
      %v5165 = vpack.c.b16 %v5089, %v5087
      %v5166 = vpack.c.b16 %v5090, %v5088
      %v5167 = vpack.c.b16 %v5093, %v5091
      %v5168 = vpack.c.b16 %v5094, %v5092
      %v5169 = vpack.c.b16 %v5097, %v5095
      %v5170 = vpack.c.b16 %v5098, %v5096
      %v5244 = vsel %vm1655, %v2357, 0
      %v5247 = vsel %vm1655, %v2362, 0
      %5249 = vmatprep.subr.bf16.mxu0 %v5100
      %5250 = vmatpush1.bf16.msra.mxu0 %v5099
      %5251 = vmatprep.subr.bf16.mxu0 %v5102
      %5252 = vmatpush1.bf16.msra.mxu0 %v5101
      %5253 = vmatprep.subr.bf16.mxu0 %v5104
      %5254 = vmatpush1.bf16.msra.mxu0 %v5103
      %5255 = vmatprep.subr.bf16.mxu0 %v5106
      %5256 = vmatpush1.bf16.msra.mxu0 %v5105
      %5257 = vmatprep.subr.bf16.mxu0 %v5108
      %5258 = vmatpush1.bf16.msra.mxu0 %v5107
      %5259 = vmatprep.subr.bf16.mxu0 %v5110
      %5260 = vmatpush1.bf16.msra.mxu0 %v5109
      %5261 = vmatprep.subr.bf16.mxu0 %v5112
      %5262 = vmatpush1.bf16.msra.mxu0 %v5111
      %5263 = vmatprep.subr.bf16.mxu0 %v5114
      %5264 = vmatpush1.bf16.msra.mxu0 %v5113
      %5265 = vmatprep.subr.bf16.mxu0 %v5116
      %5266 = vmatpush1.bf16.msra.mxu0 %v5115
      %5267 = vmatprep.subr.bf16.mxu0 %v5118
      %5268 = vmatpush1.bf16.msra.mxu0 %v5117
      %5269 = vmatprep.subr.bf16.mxu0 %v5120
      %5270 = vmatpush1.bf16.msra.mxu0 %v5119
      %5271 = vmatprep.subr.bf16.mxu0 %v5122
      %5272 = vmatpush1.bf16.msra.mxu0 %v5121
      %5273 = vmatprep.subr.bf16.mxu0 %v5124
      %5274 = vmatpush1.bf16.msra.mxu0 %v5123
      %5275 = vmatprep.subr.bf16.mxu0 %v5126
      %5276 = vmatpush1.bf16.msra.mxu0 %v5125
      %5277 = vmatprep.subr.bf16.mxu0 %v5128
      %5278 = vmatpush1.bf16.msra.mxu0 %v5127
      %5279 = vmatprep.subr.bf16.mxu0 %v5130
      %5280 = vmatpush1.bf16.msra.mxu0 %v5129
      %5281 = vmatprep.mubr.bf16.mxu0 %v2354
      %5282 = vmatmul.mubr.bf16.gmra.mrb[0].mxu0 %v2353
      %v5283 = vpop.f32.mrb[0].mxu0
      %v5284 = vadd.f32 0.0, %v5283
      %v5285 = vpop.f32.mrb[0].mxu0
      %v5286 = vadd.f32 0.0, %v5285
      %v5287 = vpop.f32.mrb[0].mxu0
      %v5288 = vadd.f32 0.0, %v5287
      %v5289 = vpop.f32.mrb[0].mxu0
      %v5290 = vadd.f32 0.0, %v5289
      %5291 = vmatprep.mubr.bf16.mxu0 %v2359
      %5292 = vmatmul.mubr.bf16.gmra.mrb[0].mxu0 %v2358
      %v5293 = vpop.f32.mrb[0].mxu0
      %v5294 = vadd.f32 0.0, %v5293
      %v5295 = vpop.f32.mrb[0].mxu0
      %v5296 = vadd.f32 0.0, %v5295
      %v5297 = vpop.f32.mrb[0].mxu0
      %v5298 = vadd.f32 0.0, %v5297
      %v5299 = vpop.f32.mrb[0].mxu0
      %v5300 = vadd.f32 0.0, %v5299
      %5301 = vdwg.mxu0
      %5302 = vmatprep.subr.bf16.mxu0 %v5132
      %5303 = vmatpush1.bf16.msra.mxu0 %v5131
      %5304 = vmatprep.subr.bf16.mxu0 %v5134
      %5305 = vmatpush1.bf16.msra.mxu0 %v5133
      %5306 = vmatprep.subr.bf16.mxu0 %v5136
      %5307 = vmatpush1.bf16.msra.mxu0 %v5135
      %5308 = vmatprep.subr.bf16.mxu0 %v5138
      %5309 = vmatpush1.bf16.msra.mxu0 %v5137
      %5310 = vmatprep.subr.bf16.mxu0 %v5140
      %5311 = vmatpush1.bf16.msra.mxu0 %v5139
      %5312 = vmatprep.subr.bf16.mxu0 %v5142
      %5313 = vmatpush1.bf16.msra.mxu0 %v5141
      %5314 = vmatprep.subr.bf16.mxu0 %v5144
      %5315 = vmatpush1.bf16.msra.mxu0 %v5143
      %5316 = vmatprep.subr.bf16.mxu0 %v5146
      %5317 = vmatpush1.bf16.msra.mxu0 %v5145
      %5318 = vmatprep.subr.bf16.mxu0 %v5148
      %5319 = vmatpush1.bf16.msra.mxu0 %v5147
      %5320 = vmatprep.subr.bf16.mxu0 %v5150
      %5321 = vmatpush1.bf16.msra.mxu0 %v5149
      %5322 = vmatprep.subr.bf16.mxu0 %v5152
      %5323 = vmatpush1.bf16.msra.mxu0 %v5151
      %5324 = vmatprep.subr.bf16.mxu0 %v5154
      %5325 = vmatpush1.bf16.msra.mxu0 %v5153
      %5326 = vmatprep.subr.bf16.mxu0 %v5156
      %5327 = vmatpush1.bf16.msra.mxu0 %v5155
      %5328 = vmatprep.subr.bf16.mxu0 %v5158
      %5329 = vmatpush1.bf16.msra.mxu0 %v5157
      %5330 = vmatprep.subr.bf16.mxu0 %v5160
      %5331 = vmatpush1.bf16.msra.mxu0 %v5159
      %5332 = vmatprep.subr.bf16.mxu0 %v5162
      %5333 = vmatpush1.bf16.msra.mxu0 %v5161
      %5334 = vmatprep.mubr.bf16.mxu0 %v2356
      %5335 = vmatmul.mubr.bf16.gmra.mrb[0].mxu0 %v2355
      %v5336 = vpop.f32.mrb[0].mxu0
      %v5337 = vadd.f32 %v5284, %v5336
      %v5338 = vpop.f32.mrb[0].mxu0
      %v5339 = vadd.f32 %v5286, %v5338
      %v5340 = vpop.f32.mrb[0].mxu0
      %v5341 = vadd.f32 %v5288, %v5340
      %v5342 = vpop.f32.mrb[0].mxu0
      %v5343 = vadd.f32 %v5290, %v5342
      %5344 = vmatprep.mubr.bf16.mxu0 %v2361
      %5345 = vmatmul.mubr.bf16.gmra.mrb[0].mxu0 %v2360
      %v5346 = vpop.f32.mrb[0].mxu0
      %v5347 = vadd.f32 %v5294, %v5346
      %v5348 = vpop.f32.mrb[0].mxu0
      %v5349 = vadd.f32 %v5296, %v5348
      %v5350 = vpop.f32.mrb[0].mxu0
      %v5351 = vadd.f32 %v5298, %v5350
      %v5352 = vpop.f32.mrb[0].mxu0
      %v5353 = vadd.f32 %v5300, %v5352
      %5354 = vdwg.mxu0
      %5355 = vmatprep.subr.bf16.mxu0 %v5164
      %5356 = vmatpush1.bf16.msra.mxu0 %v5163
      %5357 = vmatprep.subr.bf16.mxu0 %v5166
      %5358 = vmatpush1.bf16.msra.mxu0 %v5165
      %5359 = vmatprep.subr.bf16.mxu0 %v5168
      %5360 = vmatpush1.bf16.msra.mxu0 %v5167
      %5361 = vmatprep.subr.bf16.mxu0 %v5170
      %5362 = vmatpush1.bf16.msra.mxu0 %v5169
      %5363 = vmatprep.subr.bf16.mxu0 0
      %5364 = vmatpush1.bf16.msra.mxu0 0
      %5365 = vmatprep.subr.bf16.mxu0 0
      %5366 = vmatpush1.bf16.msra.mxu0 0
      %5367 = vmatprep.subr.bf16.mxu0 0
      %5368 = vmatpush1.bf16.msra.mxu0 0
      %5369 = vmatprep.subr.bf16.mxu0 0
      %5370 = vmatpush1.bf16.msra.mxu0 0
      %5371 = vmatprep.subr.bf16.mxu0 0
      %5372 = vmatpush1.bf16.msra.mxu0 0
      %5373 = vmatprep.subr.bf16.mxu0 0
      %5374 = vmatpush1.bf16.msra.mxu0 0
      %5375 = vmatprep.subr.bf16.mxu0 0
      %5376 = vmatpush1.bf16.msra.mxu0 0
      %5377 = vmatprep.subr.bf16.mxu0 0
      %5378 = vmatpush1.bf16.msra.mxu0 0
      %5379 = vmatprep.subr.bf16.mxu0 0
      %5380 = vmatpush1.bf16.msra.mxu0 0
      %5381 = vmatprep.subr.bf16.mxu0 0
      %5382 = vmatpush1.bf16.msra.mxu0 0
      %5383 = vmatprep.subr.bf16.mxu0 0
      %5384 = vmatpush1.bf16.msra.mxu0 0
      %5385 = vmatprep.subr.bf16.mxu0 0
      %5386 = vmatpush1.bf16.msra.mxu0 0
      %5387 = vmatprep.mubr.bf16.mxu0 0
      %5388 = vmatmul.mubr.bf16.gmra.mrb[0].mxu0 %v5244
      %v5389 = vpop.f32.mrb[0].mxu0
      %v5390 = vadd.f32 %v5337, %v5389
      %v5391 = vpop.f32.mrb[0].mxu0
      %v5392 = vadd.f32 %v5339, %v5391
      %v5393 = vpop.f32.mrb[0].mxu0
      %v5394 = vadd.f32 %v5341, %v5393
      %v5395 = vpop.f32.mrb[0].mxu0
      %v5396 = vadd.f32 %v5343, %v5395
      %5397 = vmatprep.mubr.bf16.mxu0 0
      %5398 = vmatmul.mubr.bf16.gmra.mrb[0].mxu0 %v5247
      %v5399 = vpop.f32.mrb[0].mxu0
      %v5400 = vadd.f32 %v5347, %v5399
      %v5401 = vpop.f32.mrb[0].mxu0
      %v5402 = vadd.f32 %v5349, %v5401
      %v5403 = vpop.f32.mrb[0].mxu0
      %v5404 = vadd.f32 %v5351, %v5403
      %v5405 = vpop.f32.mrb[0].mxu0
      %v5406 = vadd.f32 %v5353, %v5405
      %5407 = vdwg.mxu0
      %v5408 = vadd.f32 %v4802, %v5390
      %v5409 = vadd.f32 %v4803, %v5392
      %v5410 = vadd.f32 %v4804, %v5394
      %v5411 = vadd.f32 %v4805, %v5396
      %v5412 = vadd.f32 %v4806, %v5400
      %v5413 = vadd.f32 %v4807, %v5402
      %v5414 = vadd.f32 %v4808, %v5404
      %v5415 = vadd.f32 %v4809, %v5406
      %s5416 = scalar_lea.vmem %s5, 2880
      %v5417 = vld [vmem:[%s5416] sm:$0xff]
      %v5418 = vld [vmem:[%s5416 + $0x8] sm:$0xff]
      %v5419 = vld [vmem:[%s5416 + $0x10] sm:$0xff]
      %v5420 = vld [vmem:[%s5416 + $0x18] sm:$0xff]
      %v5421 = vld [vmem:[%s5416 + $0x20] sm:$0xff]
      %v5422 = vld [vmem:[%s5416 + $0x28] sm:$0xff]
      %v5423 = vld [vmem:[%s5416 + $0x30] sm:$0xff]
      %v5424 = vld [vmem:[%s5416 + $0x38] sm:$0xff]
      %v5425 = vld [vmem:[%s5416 + $0x40] sm:$0xff]
      %v5426 = vld [vmem:[%s5416 + $0x48] sm:$0xff]
      %v5427 = vld [vmem:[%s5416 + $0x50] sm:$0xff]
      %v5428 = vld [vmem:[%s5416 + $0x58] sm:$0xff]
      %v5429 = vld [vmem:[%s5416 + $0x60] sm:$0xff]
      %v5430 = vld [vmem:[%s5416 + $0x68] sm:$0xff]
      %v5431 = vld [vmem:[%s5416 + $0x70] sm:$0xff]
      %v5432 = vld [vmem:[%s5416 + $0x78] sm:$0xff]
      %v5433 = vld [vmem:[%s5416 + $0x80] sm:$0xff]
      %v5434 = vld [vmem:[%s5416 + $0x88] sm:$0xff]
      %v5435 = vld [vmem:[%s5416 + $0x90] sm:$0xff]
      %v5436 = vld [vmem:[%s5416 + $0x98] sm:$0xff]
      %v5437 = vld [vmem:[%s5416 + $0xa0] sm:$0xff]
      %v5438 = vld [vmem:[%s5416 + $0xa8] sm:$0xff]
      %v5439 = vld [vmem:[%s5416 + $0xb0] sm:$0xff]
      %v5440 = vld [vmem:[%s5416 + $0xb8] sm:$0xff]
      %v5441 = vld [vmem:[%s5416 + $0xc0] sm:$0xff]
      %v5442 = vld [vmem:[%s5416 + $0xc8] sm:$0xff]
      %v5443 = vld [vmem:[%s5416 + $0xd0] sm:$0xff]
      %v5444 = vld [vmem:[%s5416 + $0xd8] sm:$0xff]
      %v5445 = vld [vmem:[%s5416 + $0xe0] sm:$0xff]
      %v5446 = vld [vmem:[%s5416 + $0xe8] sm:$0xff]
      %v5447 = vld [vmem:[%s5416 + $0xf0] sm:$0xff]
      %v5448 = vld [vmem:[%s5416 + $0xf8] sm:$0xff]
      %v5449 = vld [vmem:[%s5416 + $0x100] sm:$0xff]
      %v5450 = vld [vmem:[%s5416 + $0x108] sm:$0xff]
      %v5451 = vld [vmem:[%s5416 + $0x110] sm:$0xff]
      %v5452 = vld [vmem:[%s5416 + $0x118] sm:$0xff]
      %v5453 = vld [vmem:[%s5416 + $0x120] sm:$0xff]
      %v5454 = vld [vmem:[%s5416 + $0x128] sm:$0xff]
      %v5455 = vld [vmem:[%s5416 + $0x130] sm:$0xff]
      %v5456 = vld [vmem:[%s5416 + $0x138] sm:$0xff]
      %v5457 = vld [vmem:[%s5416 + $0x140] sm:$0xff]
      %v5458 = vld [vmem:[%s5416 + $0x148] sm:$0xff]
      %v5459 = vld [vmem:[%s5416 + $0x150] sm:$0xff]
      %v5460 = vld [vmem:[%s5416 + $0x158] sm:$0xff]
      %v5461 = vld [vmem:[%s5416 + $0x160] sm:$0xff]
      %v5462 = vld [vmem:[%s5416 + $0x168] sm:$0xff]
      %v5463 = vld [vmem:[%s5416 + $0x170] sm:$0xff]
      %v5464 = vld [vmem:[%s5416 + $0x178] sm:$0xff]
      %v5465 = vld [vmem:[%s5416 + $0x180] sm:$0xff]
      %v5466 = vld [vmem:[%s5416 + $0x188] sm:$0xff]
      %v5467 = vld [vmem:[%s5416 + $0x190] sm:$0xff]
      %v5468 = vld [vmem:[%s5416 + $0x198] sm:$0xff]
      %v5469 = vld [vmem:[%s5416 + $0x1a0] sm:$0xff]
      %v5470 = vld [vmem:[%s5416 + $0x1a8] sm:$0xff]
      %v5471 = vld [vmem:[%s5416 + $0x1b0] sm:$0xff]
      %v5472 = vld [vmem:[%s5416 + $0x1b8] sm:$0xff]
      %v5473 = vld [vmem:[%s5416 + $0x1c0] sm:$0xff]
      %v5474 = vld [vmem:[%s5416 + $0x1c8] sm:$0xff]
      %v5475 = vld [vmem:[%s5416 + $0x1d0] sm:$0xff]
      %v5476 = vld [vmem:[%s5416 + $0x1d8] sm:$0xff]
      %v5477 = vld [vmem:[%s5416 + $0x1e0] sm:$0xff]
      %v5478 = vld [vmem:[%s5416 + $0x1e8] sm:$0xff]
      %v5479 = vld [vmem:[%s5416 + $0x1f0] sm:$0xff]
      %v5480 = vld [vmem:[%s5416 + $0x1f8] sm:$0xff]
      %v5481 = vld [vmem:[%s5416 + $0x200] sm:$0xff]
      %v5482 = vld [vmem:[%s5416 + $0x208] sm:$0xff]
      %v5483 = vld [vmem:[%s5416 + $0x210] sm:$0xff]
      %v5484 = vld [vmem:[%s5416 + $0x218] sm:$0xff]
      %v5485 = vld [vmem:[%s5416 + $0x220] sm:$0xff]
      %v5486 = vld [vmem:[%s5416 + $0x228] sm:$0xff]
      %v5487 = vld [vmem:[%s5416 + $0x230] sm:$0xff]
      %v5488 = vld [vmem:[%s5416 + $0x238] sm:$0xff]
      %v5561 = vunpack.c.l.b16 %v5417
      %v5562 = vunpack.c.h.b16 %v5417
      %v5563 = vunpack.c.l.b16 %v5418
      %v5564 = vunpack.c.h.b16 %v5418
      %v5565 = vunpack.c.l.b16 %v5419
      %v5566 = vunpack.c.h.b16 %v5419
      %v5567 = vunpack.c.l.b16 %v5420
      %v5568 = vunpack.c.h.b16 %v5420
      %v5569 = vunpack.c.l.b16 %v5421
      %v5570 = vunpack.c.h.b16 %v5421
      %v5571 = vunpack.c.l.b16 %v5422
      %v5572 = vunpack.c.h.b16 %v5422
      %v5573 = vunpack.c.l.b16 %v5423
      %v5574 = vunpack.c.h.b16 %v5423
      %v5575 = vunpack.c.l.b16 %v5424
      %v5576 = vunpack.c.h.b16 %v5424
      %v5577 = vunpack.c.l.b16 %v5425
      %v5578 = vunpack.c.h.b16 %v5425
      %v5579 = vunpack.c.l.b16 %v5426
      %v5580 = vunpack.c.h.b16 %v5426
      %v5581 = vunpack.c.l.b16 %v5427
      %v5582 = vunpack.c.h.b16 %v5427
      %v5583 = vunpack.c.l.b16 %v5428
      %v5584 = vunpack.c.h.b16 %v5428
      %v5585 = vunpack.c.l.b16 %v5429
      %v5586 = vunpack.c.h.b16 %v5429
      %v5587 = vunpack.c.l.b16 %v5430
      %v5588 = vunpack.c.h.b16 %v5430
      %v5589 = vunpack.c.l.b16 %v5431
      %v5590 = vunpack.c.h.b16 %v5431
      %v5591 = vunpack.c.l.b16 %v5432
      %v5592 = vunpack.c.h.b16 %v5432
      %v5593 = vunpack.c.l.b16 %v5433
      %v5594 = vunpack.c.h.b16 %v5433
      %v5595 = vunpack.c.l.b16 %v5434
      %v5596 = vunpack.c.h.b16 %v5434
      %v5597 = vunpack.c.l.b16 %v5435
      %v5598 = vunpack.c.h.b16 %v5435
      %v5599 = vunpack.c.l.b16 %v5436
      %v5600 = vunpack.c.h.b16 %v5436
      %v5601 = vunpack.c.l.b16 %v5437
      %v5602 = vunpack.c.h.b16 %v5437
      %v5603 = vunpack.c.l.b16 %v5438
      %v5604 = vunpack.c.h.b16 %v5438
      %v5605 = vunpack.c.l.b16 %v5439
      %v5606 = vunpack.c.h.b16 %v5439
      %v5607 = vunpack.c.l.b16 %v5440
      %v5608 = vunpack.c.h.b16 %v5440
      %v5609 = vunpack.c.l.b16 %v5441
      %v5610 = vunpack.c.h.b16 %v5441
      %v5611 = vunpack.c.l.b16 %v5442
      %v5612 = vunpack.c.h.b16 %v5442
      %v5613 = vunpack.c.l.b16 %v5443
      %v5614 = vunpack.c.h.b16 %v5443
      %v5615 = vunpack.c.l.b16 %v5444
      %v5616 = vunpack.c.h.b16 %v5444
      %v5617 = vunpack.c.l.b16 %v5445
      %v5618 = vunpack.c.h.b16 %v5445
      %v5619 = vunpack.c.l.b16 %v5446
      %v5620 = vunpack.c.h.b16 %v5446
      %v5621 = vunpack.c.l.b16 %v5447
      %v5622 = vunpack.c.h.b16 %v5447
      %v5623 = vunpack.c.l.b16 %v5448
      %v5624 = vunpack.c.h.b16 %v5448
      %v5625 = vunpack.c.l.b16 %v5449
      %v5626 = vunpack.c.h.b16 %v5449
      %v5627 = vunpack.c.l.b16 %v5450
      %v5628 = vunpack.c.h.b16 %v5450
      %v5629 = vunpack.c.l.b16 %v5451
      %v5630 = vunpack.c.h.b16 %v5451
      %v5631 = vunpack.c.l.b16 %v5452
      %v5632 = vunpack.c.h.b16 %v5452
      %v5633 = vunpack.c.l.b16 %v5453
      %v5634 = vunpack.c.h.b16 %v5453
      %v5635 = vunpack.c.l.b16 %v5454
      %v5636 = vunpack.c.h.b16 %v5454
      %v5637 = vunpack.c.l.b16 %v5455
      %v5638 = vunpack.c.h.b16 %v5455
      %v5639 = vunpack.c.l.b16 %v5456
      %v5640 = vunpack.c.h.b16 %v5456
      %v5641 = vunpack.c.l.b16 %v5457
      %v5642 = vunpack.c.h.b16 %v5457
      %v5643 = vunpack.c.l.b16 %v5458
      %v5644 = vunpack.c.h.b16 %v5458
      %v5645 = vunpack.c.l.b16 %v5459
      %v5646 = vunpack.c.h.b16 %v5459
      %v5647 = vunpack.c.l.b16 %v5460
      %v5648 = vunpack.c.h.b16 %v5460
      %v5649 = vunpack.c.l.b16 %v5461
      %v5650 = vunpack.c.h.b16 %v5461
      %v5651 = vunpack.c.l.b16 %v5462
      %v5652 = vunpack.c.h.b16 %v5462
      %v5653 = vunpack.c.l.b16 %v5463
      %v5654 = vunpack.c.h.b16 %v5463
      %v5655 = vunpack.c.l.b16 %v5464
      %v5656 = vunpack.c.h.b16 %v5464
      %v5657 = vunpack.c.l.b16 %v5465
      %v5658 = vunpack.c.h.b16 %v5465
      %v5659 = vunpack.c.l.b16 %v5466
      %v5660 = vunpack.c.h.b16 %v5466
      %v5661 = vunpack.c.l.b16 %v5467
      %v5662 = vunpack.c.h.b16 %v5467
      %v5663 = vunpack.c.l.b16 %v5468
      %v5664 = vunpack.c.h.b16 %v5468
      %v5665 = vunpack.c.l.b16 %v5469
      %v5666 = vunpack.c.h.b16 %v5469
      %v5667 = vunpack.c.l.b16 %v5470
      %v5668 = vunpack.c.h.b16 %v5470
      %v5669 = vunpack.c.l.b16 %v5471
      %v5670 = vunpack.c.h.b16 %v5471
      %v5671 = vunpack.c.l.b16 %v5472
      %v5672 = vunpack.c.h.b16 %v5472
      %v5673 = vunpack.c.l.b16 %v5473
      %v5674 = vunpack.c.h.b16 %v5473
      %v5675 = vunpack.c.l.b16 %v5474
      %v5676 = vunpack.c.h.b16 %v5474
      %v5677 = vunpack.c.l.b16 %v5475
      %v5678 = vunpack.c.h.b16 %v5475
      %v5679 = vunpack.c.l.b16 %v5476
      %v5680 = vunpack.c.h.b16 %v5476
      %v5681 = vunpack.c.l.b16 %v5477
      %v5682 = vunpack.c.h.b16 %v5477
      %v5683 = vunpack.c.l.b16 %v5478
      %v5684 = vunpack.c.h.b16 %v5478
      %v5685 = vunpack.c.l.b16 %v5479
      %v5686 = vunpack.c.h.b16 %v5479
      %v5687 = vunpack.c.l.b16 %v5480
      %v5688 = vunpack.c.h.b16 %v5480
      %v5689 = vunpack.c.l.b16 %v5481
      %v5690 = vunpack.c.h.b16 %v5481
      %v5691 = vunpack.c.l.b16 %v5482
      %v5692 = vunpack.c.h.b16 %v5482
      %v5693 = vunpack.c.l.b16 %v5483
      %v5694 = vunpack.c.h.b16 %v5483
      %v5695 = vunpack.c.l.b16 %v5484
      %v5696 = vunpack.c.h.b16 %v5484
      %v5697 = vunpack.c.l.b16 %v5485
      %v5698 = vunpack.c.h.b16 %v5485
      %v5699 = vunpack.c.l.b16 %v5486
      %v5700 = vunpack.c.h.b16 %v5486
      %v5701 = vunpack.c.l.b16 %v5487
      %v5702 = vunpack.c.h.b16 %v5487
      %v5703 = vunpack.c.l.b16 %v5488
      %v5704 = vunpack.c.h.b16 %v5488
      %v5705 = vpack.c.b16 %v5563, %v5561
      %v5706 = vpack.c.b16 %v5564, %v5562
      %v5707 = vpack.c.b16 %v5567, %v5565
      %v5708 = vpack.c.b16 %v5568, %v5566
      %v5709 = vpack.c.b16 %v5571, %v5569
      %v5710 = vpack.c.b16 %v5572, %v5570
      %v5711 = vpack.c.b16 %v5575, %v5573
      %v5712 = vpack.c.b16 %v5576, %v5574
      %v5713 = vpack.c.b16 %v5579, %v5577
      %v5714 = vpack.c.b16 %v5580, %v5578
      %v5715 = vpack.c.b16 %v5583, %v5581
      %v5716 = vpack.c.b16 %v5584, %v5582
      %v5717 = vpack.c.b16 %v5587, %v5585
      %v5718 = vpack.c.b16 %v5588, %v5586
      %v5719 = vpack.c.b16 %v5591, %v5589
      %v5720 = vpack.c.b16 %v5592, %v5590
      %v5721 = vpack.c.b16 %v5595, %v5593
      %v5722 = vpack.c.b16 %v5596, %v5594
      %v5723 = vpack.c.b16 %v5599, %v5597
      %v5724 = vpack.c.b16 %v5600, %v5598
      %v5725 = vpack.c.b16 %v5603, %v5601
      %v5726 = vpack.c.b16 %v5604, %v5602
      %v5727 = vpack.c.b16 %v5607, %v5605
      %v5728 = vpack.c.b16 %v5608, %v5606
      %v5729 = vpack.c.b16 %v5611, %v5609
      %v5730 = vpack.c.b16 %v5612, %v5610
      %v5731 = vpack.c.b16 %v5615, %v5613
      %v5732 = vpack.c.b16 %v5616, %v5614
      %v5733 = vpack.c.b16 %v5619, %v5617
      %v5734 = vpack.c.b16 %v5620, %v5618
      %v5735 = vpack.c.b16 %v5623, %v5621
      %v5736 = vpack.c.b16 %v5624, %v5622
      %v5737 = vpack.c.b16 %v5627, %v5625
      %v5738 = vpack.c.b16 %v5628, %v5626
      %v5739 = vpack.c.b16 %v5631, %v5629
      %v5740 = vpack.c.b16 %v5632, %v5630
      %v5741 = vpack.c.b16 %v5635, %v5633
      %v5742 = vpack.c.b16 %v5636, %v5634
      %v5743 = vpack.c.b16 %v5639, %v5637
      %v5744 = vpack.c.b16 %v5640, %v5638
      %v5745 = vpack.c.b16 %v5643, %v5641
      %v5746 = vpack.c.b16 %v5644, %v5642
      %v5747 = vpack.c.b16 %v5647, %v5645
      %v5748 = vpack.c.b16 %v5648, %v5646
      %v5749 = vpack.c.b16 %v5651, %v5649
      %v5750 = vpack.c.b16 %v5652, %v5650
      %v5751 = vpack.c.b16 %v5655, %v5653
      %v5752 = vpack.c.b16 %v5656, %v5654
      %v5753 = vpack.c.b16 %v5659, %v5657
      %v5754 = vpack.c.b16 %v5660, %v5658
      %v5755 = vpack.c.b16 %v5663, %v5661
      %v5756 = vpack.c.b16 %v5664, %v5662
      %v5757 = vpack.c.b16 %v5667, %v5665
      %v5758 = vpack.c.b16 %v5668, %v5666
      %v5759 = vpack.c.b16 %v5671, %v5669
      %v5760 = vpack.c.b16 %v5672, %v5670
      %v5761 = vpack.c.b16 %v5675, %v5673
      %v5762 = vpack.c.b16 %v5676, %v5674
      %v5763 = vpack.c.b16 %v5679, %v5677
      %v5764 = vpack.c.b16 %v5680, %v5678
      %v5765 = vpack.c.b16 %v5683, %v5681
      %v5766 = vpack.c.b16 %v5684, %v5682
      %v5767 = vpack.c.b16 %v5687, %v5685
      %v5768 = vpack.c.b16 %v5688, %v5686
      %v5769 = vpack.c.b16 %v5691, %v5689
      %v5770 = vpack.c.b16 %v5692, %v5690
      %v5771 = vpack.c.b16 %v5695, %v5693
      %v5772 = vpack.c.b16 %v5696, %v5694
      %v5773 = vpack.c.b16 %v5699, %v5697
      %v5774 = vpack.c.b16 %v5700, %v5698
      %v5775 = vpack.c.b16 %v5703, %v5701
      %v5776 = vpack.c.b16 %v5704, %v5702
      %v5850 = vsel %vm1655, %v2367, 0
      %v5853 = vsel %vm1655, %v2372, 0
      %5855 = vmatprep.subr.bf16.mxu0 %v5706
      %5856 = vmatpush1.bf16.msra.mxu0 %v5705
      %5857 = vmatprep.subr.bf16.mxu0 %v5708
      %5858 = vmatpush1.bf16.msra.mxu0 %v5707
      %5859 = vmatprep.subr.bf16.mxu0 %v5710
      %5860 = vmatpush1.bf16.msra.mxu0 %v5709
      %5861 = vmatprep.subr.bf16.mxu0 %v5712
      %5862 = vmatpush1.bf16.msra.mxu0 %v5711
      %5863 = vmatprep.subr.bf16.mxu0 %v5714
      %5864 = vmatpush1.bf16.msra.mxu0 %v5713
      %5865 = vmatprep.subr.bf16.mxu0 %v5716
      %5866 = vmatpush1.bf16.msra.mxu0 %v5715
      %5867 = vmatprep.subr.bf16.mxu0 %v5718
      %5868 = vmatpush1.bf16.msra.mxu0 %v5717
      %5869 = vmatprep.subr.bf16.mxu0 %v5720
      %5870 = vmatpush1.bf16.msra.mxu0 %v5719
      %5871 = vmatprep.subr.bf16.mxu0 %v5722
      %5872 = vmatpush1.bf16.msra.mxu0 %v5721
      %5873 = vmatprep.subr.bf16.mxu0 %v5724
      %5874 = vmatpush1.bf16.msra.mxu0 %v5723
      %5875 = vmatprep.subr.bf16.mxu0 %v5726
      %5876 = vmatpush1.bf16.msra.mxu0 %v5725
      %5877 = vmatprep.subr.bf16.mxu0 %v5728
      %5878 = vmatpush1.bf16.msra.mxu0 %v5727
      %5879 = vmatprep.subr.bf16.mxu0 %v5730
      %5880 = vmatpush1.bf16.msra.mxu0 %v5729
      %5881 = vmatprep.subr.bf16.mxu0 %v5732
      %5882 = vmatpush1.bf16.msra.mxu0 %v5731
      %5883 = vmatprep.subr.bf16.mxu0 %v5734
      %5884 = vmatpush1.bf16.msra.mxu0 %v5733
      %5885 = vmatprep.subr.bf16.mxu0 %v5736
      %5886 = vmatpush1.bf16.msra.mxu0 %v5735
      %5887 = vmatprep.mubr.bf16.mxu0 %v2364
      %5888 = vmatmul.mubr.bf16.gmra.mrb[0].mxu0 %v2363
      %v5889 = vpop.f32.mrb[0].mxu0
      %v5890 = vadd.f32 0.0, %v5889
      %v5891 = vpop.f32.mrb[0].mxu0
      %v5892 = vadd.f32 0.0, %v5891
      %v5893 = vpop.f32.mrb[0].mxu0
      %v5894 = vadd.f32 0.0, %v5893
      %v5895 = vpop.f32.mrb[0].mxu0
      %v5896 = vadd.f32 0.0, %v5895
      %5897 = vmatprep.mubr.bf16.mxu0 %v2369
      %5898 = vmatmul.mubr.bf16.gmra.mrb[0].mxu0 %v2368
      %v5899 = vpop.f32.mrb[0].mxu0
      %v5900 = vadd.f32 0.0, %v5899
      %v5901 = vpop.f32.mrb[0].mxu0
      %v5902 = vadd.f32 0.0, %v5901
      %v5903 = vpop.f32.mrb[0].mxu0
      %v5904 = vadd.f32 0.0, %v5903
      %v5905 = vpop.f32.mrb[0].mxu0
      %v5906 = vadd.f32 0.0, %v5905
      %5907 = vdwg.mxu0
      %5908 = vmatprep.subr.bf16.mxu0 %v5738
      %5909 = vmatpush1.bf16.msra.mxu0 %v5737
      %5910 = vmatprep.subr.bf16.mxu0 %v5740
      %5911 = vmatpush1.bf16.msra.mxu0 %v5739
      %5912 = vmatprep.subr.bf16.mxu0 %v5742
      %5913 = vmatpush1.bf16.msra.mxu0 %v5741
      %5914 = vmatprep.subr.bf16.mxu0 %v5744
      %5915 = vmatpush1.bf16.msra.mxu0 %v5743
      %5916 = vmatprep.subr.bf16.mxu0 %v5746
      %5917 = vmatpush1.bf16.msra.mxu0 %v5745
      %5918 = vmatprep.subr.bf16.mxu0 %v5748
      %5919 = vmatpush1.bf16.msra.mxu0 %v5747
      %5920 = vmatprep.subr.bf16.mxu0 %v5750
      %5921 = vmatpush1.bf16.msra.mxu0 %v5749
      %5922 = vmatprep.subr.bf16.mxu0 %v5752
      %5923 = vmatpush1.bf16.msra.mxu0 %v5751
      %5924 = vmatprep.subr.bf16.mxu0 %v5754
      %5925 = vmatpush1.bf16.msra.mxu0 %v5753
      %5926 = vmatprep.subr.bf16.mxu0 %v5756
      %5927 = vmatpush1.bf16.msra.mxu0 %v5755
      %5928 = vmatprep.subr.bf16.mxu0 %v5758
      %5929 = vmatpush1.bf16.msra.mxu0 %v5757
      %5930 = vmatprep.subr.bf16.mxu0 %v5760
      %5931 = vmatpush1.bf16.msra.mxu0 %v5759
      %5932 = vmatprep.subr.bf16.mxu0 %v5762
      %5933 = vmatpush1.bf16.msra.mxu0 %v5761
      %5934 = vmatprep.subr.bf16.mxu0 %v5764
      %5935 = vmatpush1.bf16.msra.mxu0 %v5763
      %5936 = vmatprep.subr.bf16.mxu0 %v5766
      %5937 = vmatpush1.bf16.msra.mxu0 %v5765
      %5938 = vmatprep.subr.bf16.mxu0 %v5768
      %5939 = vmatpush1.bf16.msra.mxu0 %v5767
      %5940 = vmatprep.mubr.bf16.mxu0 %v2366
      %5941 = vmatmul.mubr.bf16.gmra.mrb[0].mxu0 %v2365
      %v5942 = vpop.f32.mrb[0].mxu0
      %v5943 = vadd.f32 %v5890, %v5942
      %v5944 = vpop.f32.mrb[0].mxu0
      %v5945 = vadd.f32 %v5892, %v5944
      %v5946 = vpop.f32.mrb[0].mxu0
      %v5947 = vadd.f32 %v5894, %v5946
      %v5948 = vpop.f32.mrb[0].mxu0
      %v5949 = vadd.f32 %v5896, %v5948
      %5950 = vmatprep.mubr.bf16.mxu0 %v2371
      %5951 = vmatmul.mubr.bf16.gmra.mrb[0].mxu0 %v2370
      %v5952 = vpop.f32.mrb[0].mxu0
      %v5953 = vadd.f32 %v5900, %v5952
      %v5954 = vpop.f32.mrb[0].mxu0
      %v5955 = vadd.f32 %v5902, %v5954
      %v5956 = vpop.f32.mrb[0].mxu0
      %v5957 = vadd.f32 %v5904, %v5956
      %v5958 = vpop.f32.mrb[0].mxu0
      %v5959 = vadd.f32 %v5906, %v5958
      %5960 = vdwg.mxu0
      %5961 = vmatprep.subr.bf16.mxu0 %v5770
      %5962 = vmatpush1.bf16.msra.mxu0 %v5769
      %5963 = vmatprep.subr.bf16.mxu0 %v5772
      %5964 = vmatpush1.bf16.msra.mxu0 %v5771
      %5965 = vmatprep.subr.bf16.mxu0 %v5774
      %5966 = vmatpush1.bf16.msra.mxu0 %v5773
      %5967 = vmatprep.subr.bf16.mxu0 %v5776
      %5968 = vmatpush1.bf16.msra.mxu0 %v5775
      %5969 = vmatprep.subr.bf16.mxu0 0
      %5970 = vmatpush1.bf16.msra.mxu0 0
      %5971 = vmatprep.subr.bf16.mxu0 0
      %5972 = vmatpush1.bf16.msra.mxu0 0
      %5973 = vmatprep.subr.bf16.mxu0 0
      %5974 = vmatpush1.bf16.msra.mxu0 0
      %5975 = vmatprep.subr.bf16.mxu0 0
      %5976 = vmatpush1.bf16.msra.mxu0 0
      %5977 = vmatprep.subr.bf16.mxu0 0
      %5978 = vmatpush1.bf16.msra.mxu0 0
      %5979 = vmatprep.subr.bf16.mxu0 0
      %5980 = vmatpush1.bf16.msra.mxu0 0
      %5981 = vmatprep.subr.bf16.mxu0 0
      %5982 = vmatpush1.bf16.msra.mxu0 0
      %5983 = vmatprep.subr.bf16.mxu0 0
      %5984 = vmatpush1.bf16.msra.mxu0 0
      %5985 = vmatprep.subr.bf16.mxu0 0
      %5986 = vmatpush1.bf16.msra.mxu0 0
      %5987 = vmatprep.subr.bf16.mxu0 0
      %5988 = vmatpush1.bf16.msra.mxu0 0
      %5989 = vmatprep.subr.bf16.mxu0 0
      %5990 = vmatpush1.bf16.msra.mxu0 0
      %5991 = vmatprep.subr.bf16.mxu0 0
      %5992 = vmatpush1.bf16.msra.mxu0 0
      %5993 = vmatprep.mubr.bf16.mxu0 0
      %5994 = vmatmul.mubr.bf16.gmra.mrb[0].mxu0 %v5850
      %v5995 = vpop.f32.mrb[0].mxu0
      %v5996 = vadd.f32 %v5943, %v5995
      %v5997 = vpop.f32.mrb[0].mxu0
      %v5998 = vadd.f32 %v5945, %v5997
      %v5999 = vpop.f32.mrb[0].mxu0
      %v6000 = vadd.f32 %v5947, %v5999
      %v6001 = vpop.f32.mrb[0].mxu0
      %v6002 = vadd.f32 %v5949, %v6001
      %6003 = vmatprep.mubr.bf16.mxu0 0
      %6004 = vmatmul.mubr.bf16.gmra.mrb[0].mxu0 %v5853
      %v6005 = vpop.f32.mrb[0].mxu0
      %v6006 = vadd.f32 %v5953, %v6005
      %v6007 = vpop.f32.mrb[0].mxu0
      %v6008 = vadd.f32 %v5955, %v6007
      %v6009 = vpop.f32.mrb[0].mxu0
      %v6010 = vadd.f32 %v5957, %v6009
      %v6011 = vpop.f32.mrb[0].mxu0
      %v6012 = vadd.f32 %v5959, %v6011
      %6013 = vdwg.mxu0
      %v6014 = vadd.f32 %v5408, %v5996
      %v6015 = vadd.f32 %v5409, %v5998
      %v6016 = vadd.f32 %v5410, %v6000
      %v6017 = vadd.f32 %v5411, %v6002
      %v6018 = vadd.f32 %v5412, %v6006
      %v6019 = vadd.f32 %v5413, %v6008
      %v6020 = vadd.f32 %v5414, %v6010
      %v6021 = vadd.f32 %v5415, %v6012
      %s6022 = scalar_lea.vmem %s5, 3456
      %v6023 = vld [vmem:[%s6022] sm:$0xff]
      %v6024 = vld [vmem:[%s6022 + $0x8] sm:$0xff]
      %v6025 = vld [vmem:[%s6022 + $0x10] sm:$0xff]
      %v6026 = vld [vmem:[%s6022 + $0x18] sm:$0xff]
      %v6027 = vld [vmem:[%s6022 + $0x20] sm:$0xff]
      %v6028 = vld [vmem:[%s6022 + $0x28] sm:$0xff]
      %v6029 = vld [vmem:[%s6022 + $0x30] sm:$0xff]
      %v6030 = vld [vmem:[%s6022 + $0x38] sm:$0xff]
      %v6031 = vld [vmem:[%s6022 + $0x40] sm:$0xff]
      %v6032 = vld [vmem:[%s6022 + $0x48] sm:$0xff]
      %v6033 = vld [vmem:[%s6022 + $0x50] sm:$0xff]
      %v6034 = vld [vmem:[%s6022 + $0x58] sm:$0xff]
      %v6035 = vld [vmem:[%s6022 + $0x60] sm:$0xff]
      %v6036 = vld [vmem:[%s6022 + $0x68] sm:$0xff]
      %v6037 = vld [vmem:[%s6022 + $0x70] sm:$0xff]
      %v6038 = vld [vmem:[%s6022 + $0x78] sm:$0xff]
      %v6039 = vld [vmem:[%s6022 + $0x80] sm:$0xff]
      %v6040 = vld [vmem:[%s6022 + $0x88] sm:$0xff]
      %v6041 = vld [vmem:[%s6022 + $0x90] sm:$0xff]
      %v6042 = vld [vmem:[%s6022 + $0x98] sm:$0xff]
      %v6043 = vld [vmem:[%s6022 + $0xa0] sm:$0xff]
      %v6044 = vld [vmem:[%s6022 + $0xa8] sm:$0xff]
      %v6045 = vld [vmem:[%s6022 + $0xb0] sm:$0xff]
      %v6046 = vld [vmem:[%s6022 + $0xb8] sm:$0xff]
      %v6047 = vld [vmem:[%s6022 + $0xc0] sm:$0xff]
      %v6048 = vld [vmem:[%s6022 + $0xc8] sm:$0xff]
      %v6049 = vld [vmem:[%s6022 + $0xd0] sm:$0xff]
      %v6050 = vld [vmem:[%s6022 + $0xd8] sm:$0xff]
      %v6051 = vld [vmem:[%s6022 + $0xe0] sm:$0xff]
      %v6052 = vld [vmem:[%s6022 + $0xe8] sm:$0xff]
      %v6053 = vld [vmem:[%s6022 + $0xf0] sm:$0xff]
      %v6054 = vld [vmem:[%s6022 + $0xf8] sm:$0xff]
      %v6055 = vld [vmem:[%s6022 + $0x100] sm:$0xff]
      %v6056 = vld [vmem:[%s6022 + $0x108] sm:$0xff]
      %v6057 = vld [vmem:[%s6022 + $0x110] sm:$0xff]
      %v6058 = vld [vmem:[%s6022 + $0x118] sm:$0xff]
      %v6059 = vld [vmem:[%s6022 + $0x120] sm:$0xff]
      %v6060 = vld [vmem:[%s6022 + $0x128] sm:$0xff]
      %v6061 = vld [vmem:[%s6022 + $0x130] sm:$0xff]
      %v6062 = vld [vmem:[%s6022 + $0x138] sm:$0xff]
      %v6063 = vld [vmem:[%s6022 + $0x140] sm:$0xff]
      %v6064 = vld [vmem:[%s6022 + $0x148] sm:$0xff]
      %v6065 = vld [vmem:[%s6022 + $0x150] sm:$0xff]
      %v6066 = vld [vmem:[%s6022 + $0x158] sm:$0xff]
      %v6067 = vld [vmem:[%s6022 + $0x160] sm:$0xff]
      %v6068 = vld [vmem:[%s6022 + $0x168] sm:$0xff]
      %v6069 = vld [vmem:[%s6022 + $0x170] sm:$0xff]
      %v6070 = vld [vmem:[%s6022 + $0x178] sm:$0xff]
      %v6071 = vld [vmem:[%s6022 + $0x180] sm:$0xff]
      %v6072 = vld [vmem:[%s6022 + $0x188] sm:$0xff]
      %v6073 = vld [vmem:[%s6022 + $0x190] sm:$0xff]
      %v6074 = vld [vmem:[%s6022 + $0x198] sm:$0xff]
      %v6075 = vld [vmem:[%s6022 + $0x1a0] sm:$0xff]
      %v6076 = vld [vmem:[%s6022 + $0x1a8] sm:$0xff]
      %v6077 = vld [vmem:[%s6022 + $0x1b0] sm:$0xff]
      %v6078 = vld [vmem:[%s6022 + $0x1b8] sm:$0xff]
      %v6079 = vld [vmem:[%s6022 + $0x1c0] sm:$0xff]
      %v6080 = vld [vmem:[%s6022 + $0x1c8] sm:$0xff]
      %v6081 = vld [vmem:[%s6022 + $0x1d0] sm:$0xff]
      %v6082 = vld [vmem:[%s6022 + $0x1d8] sm:$0xff]
      %v6083 = vld [vmem:[%s6022 + $0x1e0] sm:$0xff]
      %v6084 = vld [vmem:[%s6022 + $0x1e8] sm:$0xff]
      %v6085 = vld [vmem:[%s6022 + $0x1f0] sm:$0xff]
      %v6086 = vld [vmem:[%s6022 + $0x1f8] sm:$0xff]
      %v6087 = vld [vmem:[%s6022 + $0x200] sm:$0xff]
      %v6088 = vld [vmem:[%s6022 + $0x208] sm:$0xff]
      %v6089 = vld [vmem:[%s6022 + $0x210] sm:$0xff]
      %v6090 = vld [vmem:[%s6022 + $0x218] sm:$0xff]
      %v6091 = vld [vmem:[%s6022 + $0x220] sm:$0xff]
      %v6092 = vld [vmem:[%s6022 + $0x228] sm:$0xff]
      %v6093 = vld [vmem:[%s6022 + $0x230] sm:$0xff]
      %v6094 = vld [vmem:[%s6022 + $0x238] sm:$0xff]
      %v6167 = vunpack.c.l.b16 %v6023
      %v6168 = vunpack.c.h.b16 %v6023
      %v6169 = vunpack.c.l.b16 %v6024
      %v6170 = vunpack.c.h.b16 %v6024
      %v6171 = vunpack.c.l.b16 %v6025
      %v6172 = vunpack.c.h.b16 %v6025
      %v6173 = vunpack.c.l.b16 %v6026
      %v6174 = vunpack.c.h.b16 %v6026
      %v6175 = vunpack.c.l.b16 %v6027
      %v6176 = vunpack.c.h.b16 %v6027
      %v6177 = vunpack.c.l.b16 %v6028
      %v6178 = vunpack.c.h.b16 %v6028
      %v6179 = vunpack.c.l.b16 %v6029
      %v6180 = vunpack.c.h.b16 %v6029
      %v6181 = vunpack.c.l.b16 %v6030
      %v6182 = vunpack.c.h.b16 %v6030
      %v6183 = vunpack.c.l.b16 %v6031
      %v6184 = vunpack.c.h.b16 %v6031
      %v6185 = vunpack.c.l.b16 %v6032
      %v6186 = vunpack.c.h.b16 %v6032
      %v6187 = vunpack.c.l.b16 %v6033
      %v6188 = vunpack.c.h.b16 %v6033
      %v6189 = vunpack.c.l.b16 %v6034
      %v6190 = vunpack.c.h.b16 %v6034
      %v6191 = vunpack.c.l.b16 %v6035
      %v6192 = vunpack.c.h.b16 %v6035
      %v6193 = vunpack.c.l.b16 %v6036
      %v6194 = vunpack.c.h.b16 %v6036
      %v6195 = vunpack.c.l.b16 %v6037
      %v6196 = vunpack.c.h.b16 %v6037
      %v6197 = vunpack.c.l.b16 %v6038
      %v6198 = vunpack.c.h.b16 %v6038
      %v6199 = vunpack.c.l.b16 %v6039
      %v6200 = vunpack.c.h.b16 %v6039
      %v6201 = vunpack.c.l.b16 %v6040
      %v6202 = vunpack.c.h.b16 %v6040
      %v6203 = vunpack.c.l.b16 %v6041
      %v6204 = vunpack.c.h.b16 %v6041
      %v6205 = vunpack.c.l.b16 %v6042
      %v6206 = vunpack.c.h.b16 %v6042
      %v6207 = vunpack.c.l.b16 %v6043
      %v6208 = vunpack.c.h.b16 %v6043
      %v6209 = vunpack.c.l.b16 %v6044
      %v6210 = vunpack.c.h.b16 %v6044
      %v6211 = vunpack.c.l.b16 %v6045
      %v6212 = vunpack.c.h.b16 %v6045
      %v6213 = vunpack.c.l.b16 %v6046
      %v6214 = vunpack.c.h.b16 %v6046
      %v6215 = vunpack.c.l.b16 %v6047
      %v6216 = vunpack.c.h.b16 %v6047
      %v6217 = vunpack.c.l.b16 %v6048
      %v6218 = vunpack.c.h.b16 %v6048
      %v6219 = vunpack.c.l.b16 %v6049
      %v6220 = vunpack.c.h.b16 %v6049
      %v6221 = vunpack.c.l.b16 %v6050
      %v6222 = vunpack.c.h.b16 %v6050
      %v6223 = vunpack.c.l.b16 %v6051
      %v6224 = vunpack.c.h.b16 %v6051
      %v6225 = vunpack.c.l.b16 %v6052
      %v6226 = vunpack.c.h.b16 %v6052
      %v6227 = vunpack.c.l.b16 %v6053
      %v6228 = vunpack.c.h.b16 %v6053
      %v6229 = vunpack.c.l.b16 %v6054
      %v6230 = vunpack.c.h.b16 %v6054
      %v6231 = vunpack.c.l.b16 %v6055
      %v6232 = vunpack.c.h.b16 %v6055
      %v6233 = vunpack.c.l.b16 %v6056
      %v6234 = vunpack.c.h.b16 %v6056
      %v6235 = vunpack.c.l.b16 %v6057
      %v6236 = vunpack.c.h.b16 %v6057
      %v6237 = vunpack.c.l.b16 %v6058
      %v6238 = vunpack.c.h.b16 %v6058
      %v6239 = vunpack.c.l.b16 %v6059
      %v6240 = vunpack.c.h.b16 %v6059
      %v6241 = vunpack.c.l.b16 %v6060
      %v6242 = vunpack.c.h.b16 %v6060
      %v6243 = vunpack.c.l.b16 %v6061
      %v6244 = vunpack.c.h.b16 %v6061
      %v6245 = vunpack.c.l.b16 %v6062
      %v6246 = vunpack.c.h.b16 %v6062
      %v6247 = vunpack.c.l.b16 %v6063
      %v6248 = vunpack.c.h.b16 %v6063
      %v6249 = vunpack.c.l.b16 %v6064
      %v6250 = vunpack.c.h.b16 %v6064
      %v6251 = vunpack.c.l.b16 %v6065
      %v6252 = vunpack.c.h.b16 %v6065
      %v6253 = vunpack.c.l.b16 %v6066
      %v6254 = vunpack.c.h.b16 %v6066
      %v6255 = vunpack.c.l.b16 %v6067
      %v6256 = vunpack.c.h.b16 %v6067
      %v6257 = vunpack.c.l.b16 %v6068
      %v6258 = vunpack.c.h.b16 %v6068
      %v6259 = vunpack.c.l.b16 %v6069
      %v6260 = vunpack.c.h.b16 %v6069
      %v6261 = vunpack.c.l.b16 %v6070
      %v6262 = vunpack.c.h.b16 %v6070
      %v6263 = vunpack.c.l.b16 %v6071
      %v6264 = vunpack.c.h.b16 %v6071
      %v6265 = vunpack.c.l.b16 %v6072
      %v6266 = vunpack.c.h.b16 %v6072
      %v6267 = vunpack.c.l.b16 %v6073
      %v6268 = vunpack.c.h.b16 %v6073
      %v6269 = vunpack.c.l.b16 %v6074
      %v6270 = vunpack.c.h.b16 %v6074
      %v6271 = vunpack.c.l.b16 %v6075
      %v6272 = vunpack.c.h.b16 %v6075
      %v6273 = vunpack.c.l.b16 %v6076
      %v6274 = vunpack.c.h.b16 %v6076
      %v6275 = vunpack.c.l.b16 %v6077
      %v6276 = vunpack.c.h.b16 %v6077
      %v6277 = vunpack.c.l.b16 %v6078
      %v6278 = vunpack.c.h.b16 %v6078
      %v6279 = vunpack.c.l.b16 %v6079
      %v6280 = vunpack.c.h.b16 %v6079
      %v6281 = vunpack.c.l.b16 %v6080
      %v6282 = vunpack.c.h.b16 %v6080
      %v6283 = vunpack.c.l.b16 %v6081
      %v6284 = vunpack.c.h.b16 %v6081
      %v6285 = vunpack.c.l.b16 %v6082
      %v6286 = vunpack.c.h.b16 %v6082
      %v6287 = vunpack.c.l.b16 %v6083
      %v6288 = vunpack.c.h.b16 %v6083
      %v6289 = vunpack.c.l.b16 %v6084
      %v6290 = vunpack.c.h.b16 %v6084
      %v6291 = vunpack.c.l.b16 %v6085
      %v6292 = vunpack.c.h.b16 %v6085
      %v6293 = vunpack.c.l.b16 %v6086
      %v6294 = vunpack.c.h.b16 %v6086
      %v6295 = vunpack.c.l.b16 %v6087
      %v6296 = vunpack.c.h.b16 %v6087
      %v6297 = vunpack.c.l.b16 %v6088
      %v6298 = vunpack.c.h.b16 %v6088
      %v6299 = vunpack.c.l.b16 %v6089
      %v6300 = vunpack.c.h.b16 %v6089
      %v6301 = vunpack.c.l.b16 %v6090
      %v6302 = vunpack.c.h.b16 %v6090
      %v6303 = vunpack.c.l.b16 %v6091
      %v6304 = vunpack.c.h.b16 %v6091
      %v6305 = vunpack.c.l.b16 %v6092
      %v6306 = vunpack.c.h.b16 %v6092
      %v6307 = vunpack.c.l.b16 %v6093
      %v6308 = vunpack.c.h.b16 %v6093
      %v6309 = vunpack.c.l.b16 %v6094
      %v6310 = vunpack.c.h.b16 %v6094
      %v6311 = vpack.c.b16 %v6169, %v6167
      %v6312 = vpack.c.b16 %v6170, %v6168
      %v6313 = vpack.c.b16 %v6173, %v6171
      %v6314 = vpack.c.b16 %v6174, %v6172
      %v6315 = vpack.c.b16 %v6177, %v6175
      %v6316 = vpack.c.b16 %v6178, %v6176
      %v6317 = vpack.c.b16 %v6181, %v6179
      %v6318 = vpack.c.b16 %v6182, %v6180
      %v6319 = vpack.c.b16 %v6185, %v6183
      %v6320 = vpack.c.b16 %v6186, %v6184
      %v6321 = vpack.c.b16 %v6189, %v6187
      %v6322 = vpack.c.b16 %v6190, %v6188
      %v6323 = vpack.c.b16 %v6193, %v6191
      %v6324 = vpack.c.b16 %v6194, %v6192
      %v6325 = vpack.c.b16 %v6197, %v6195
      %v6326 = vpack.c.b16 %v6198, %v6196
      %v6327 = vpack.c.b16 %v6201, %v6199
      %v6328 = vpack.c.b16 %v6202, %v6200
      %v6329 = vpack.c.b16 %v6205, %v6203
      %v6330 = vpack.c.b16 %v6206, %v6204
      %v6331 = vpack.c.b16 %v6209, %v6207
      %v6332 = vpack.c.b16 %v6210, %v6208
      %v6333 = vpack.c.b16 %v6213, %v6211
      %v6334 = vpack.c.b16 %v6214, %v6212
      %v6335 = vpack.c.b16 %v6217, %v6215
      %v6336 = vpack.c.b16 %v6218, %v6216
      %v6337 = vpack.c.b16 %v6221, %v6219
      %v6338 = vpack.c.b16 %v6222, %v6220
      %v6339 = vpack.c.b16 %v6225, %v6223
      %v6340 = vpack.c.b16 %v6226, %v6224
      %v6341 = vpack.c.b16 %v6229, %v6227
      %v6342 = vpack.c.b16 %v6230, %v6228
      %v6343 = vpack.c.b16 %v6233, %v6231
      %v6344 = vpack.c.b16 %v6234, %v6232
      %v6345 = vpack.c.b16 %v6237, %v6235
      %v6346 = vpack.c.b16 %v6238, %v6236
      %v6347 = vpack.c.b16 %v6241, %v6239
      %v6348 = vpack.c.b16 %v6242, %v6240
      %v6349 = vpack.c.b16 %v6245, %v6243
      %v6350 = vpack.c.b16 %v6246, %v6244
      %v6351 = vpack.c.b16 %v6249, %v6247
      %v6352 = vpack.c.b16 %v6250, %v6248
      %v6353 = vpack.c.b16 %v6253, %v6251
      %v6354 = vpack.c.b16 %v6254, %v6252
      %v6355 = vpack.c.b16 %v6257, %v6255
      %v6356 = vpack.c.b16 %v6258, %v6256
      %v6357 = vpack.c.b16 %v6261, %v6259
      %v6358 = vpack.c.b16 %v6262, %v6260
      %v6359 = vpack.c.b16 %v6265, %v6263
      %v6360 = vpack.c.b16 %v6266, %v6264
      %v6361 = vpack.c.b16 %v6269, %v6267
      %v6362 = vpack.c.b16 %v6270, %v6268
      %v6363 = vpack.c.b16 %v6273, %v6271
      %v6364 = vpack.c.b16 %v6274, %v6272
      %v6365 = vpack.c.b16 %v6277, %v6275
      %v6366 = vpack.c.b16 %v6278, %v6276
      %v6367 = vpack.c.b16 %v6281, %v6279
      %v6368 = vpack.c.b16 %v6282, %v6280
      %v6369 = vpack.c.b16 %v6285, %v6283
      %v6370 = vpack.c.b16 %v6286, %v6284
      %v6371 = vpack.c.b16 %v6289, %v6287
      %v6372 = vpack.c.b16 %v6290, %v6288
      %v6373 = vpack.c.b16 %v6293, %v6291
      %v6374 = vpack.c.b16 %v6294, %v6292
      %v6375 = vpack.c.b16 %v6297, %v6295
      %v6376 = vpack.c.b16 %v6298, %v6296
      %v6377 = vpack.c.b16 %v6301, %v6299
      %v6378 = vpack.c.b16 %v6302, %v6300
      %v6379 = vpack.c.b16 %v6305, %v6303
      %v6380 = vpack.c.b16 %v6306, %v6304
      %v6381 = vpack.c.b16 %v6309, %v6307
      %v6382 = vpack.c.b16 %v6310, %v6308
      %v6456 = vsel %vm1655, %v2377, 0
      %v6459 = vsel %vm1655, %v2382, 0
      %6461 = vmatprep.subr.bf16.mxu0 %v6312
      %6462 = vmatpush1.bf16.msra.mxu0 %v6311
      %6463 = vmatprep.subr.bf16.mxu0 %v6314
      %6464 = vmatpush1.bf16.msra.mxu0 %v6313
      %6465 = vmatprep.subr.bf16.mxu0 %v6316
      %6466 = vmatpush1.bf16.msra.mxu0 %v6315
      %6467 = vmatprep.subr.bf16.mxu0 %v6318
      %6468 = vmatpush1.bf16.msra.mxu0 %v6317
      %6469 = vmatprep.subr.bf16.mxu0 %v6320
      %6470 = vmatpush1.bf16.msra.mxu0 %v6319
      %6471 = vmatprep.subr.bf16.mxu0 %v6322
      %6472 = vmatpush1.bf16.msra.mxu0 %v6321
      %6473 = vmatprep.subr.bf16.mxu0 %v6324
      %6474 = vmatpush1.bf16.msra.mxu0 %v6323
      %6475 = vmatprep.subr.bf16.mxu0 %v6326
      %6476 = vmatpush1.bf16.msra.mxu0 %v6325
      %6477 = vmatprep.subr.bf16.mxu0 %v6328
      %6478 = vmatpush1.bf16.msra.mxu0 %v6327
      %6479 = vmatprep.subr.bf16.mxu0 %v6330
      %6480 = vmatpush1.bf16.msra.mxu0 %v6329
      %6481 = vmatprep.subr.bf16.mxu0 %v6332
      %6482 = vmatpush1.bf16.msra.mxu0 %v6331
      %6483 = vmatprep.subr.bf16.mxu0 %v6334
      %6484 = vmatpush1.bf16.msra.mxu0 %v6333
      %6485 = vmatprep.subr.bf16.mxu0 %v6336
      %6486 = vmatpush1.bf16.msra.mxu0 %v6335
      %6487 = vmatprep.subr.bf16.mxu0 %v6338
      %6488 = vmatpush1.bf16.msra.mxu0 %v6337
      %6489 = vmatprep.subr.bf16.mxu0 %v6340
      %6490 = vmatpush1.bf16.msra.mxu0 %v6339
      %6491 = vmatprep.subr.bf16.mxu0 %v6342
      %6492 = vmatpush1.bf16.msra.mxu0 %v6341
      %6493 = vmatprep.mubr.bf16.mxu0 %v2374
      %6494 = vmatmul.mubr.bf16.gmra.mrb[0].mxu0 %v2373
      %v6495 = vpop.f32.mrb[0].mxu0
      %v6496 = vadd.f32 0.0, %v6495
      %v6497 = vpop.f32.mrb[0].mxu0
      %v6498 = vadd.f32 0.0, %v6497
      %v6499 = vpop.f32.mrb[0].mxu0
      %v6500 = vadd.f32 0.0, %v6499
      %v6501 = vpop.f32.mrb[0].mxu0
      %v6502 = vadd.f32 0.0, %v6501
      %6503 = vmatprep.mubr.bf16.mxu0 %v2379
      %6504 = vmatmul.mubr.bf16.gmra.mrb[0].mxu0 %v2378
      %v6505 = vpop.f32.mrb[0].mxu0
      %v6506 = vadd.f32 0.0, %v6505
      %v6507 = vpop.f32.mrb[0].mxu0
      %v6508 = vadd.f32 0.0, %v6507
      %v6509 = vpop.f32.mrb[0].mxu0
      %v6510 = vadd.f32 0.0, %v6509
      %v6511 = vpop.f32.mrb[0].mxu0
      %v6512 = vadd.f32 0.0, %v6511
      %6513 = vdwg.mxu0
      %6514 = vmatprep.subr.bf16.mxu0 %v6344
      %6515 = vmatpush1.bf16.msra.mxu0 %v6343
      %6516 = vmatprep.subr.bf16.mxu0 %v6346
      %6517 = vmatpush1.bf16.msra.mxu0 %v6345
      %6518 = vmatprep.subr.bf16.mxu0 %v6348
      %6519 = vmatpush1.bf16.msra.mxu0 %v6347
      %6520 = vmatprep.subr.bf16.mxu0 %v6350
      %6521 = vmatpush1.bf16.msra.mxu0 %v6349
      %6522 = vmatprep.subr.bf16.mxu0 %v6352
      %6523 = vmatpush1.bf16.msra.mxu0 %v6351
      %6524 = vmatprep.subr.bf16.mxu0 %v6354
      %6525 = vmatpush1.bf16.msra.mxu0 %v6353
      %6526 = vmatprep.subr.bf16.mxu0 %v6356
      %6527 = vmatpush1.bf16.msra.mxu0 %v6355
      %6528 = vmatprep.subr.bf16.mxu0 %v6358
      %6529 = vmatpush1.bf16.msra.mxu0 %v6357
      %6530 = vmatprep.subr.bf16.mxu0 %v6360
      %6531 = vmatpush1.bf16.msra.mxu0 %v6359
      %6532 = vmatprep.subr.bf16.mxu0 %v6362
      %6533 = vmatpush1.bf16.msra.mxu0 %v6361
      %6534 = vmatprep.subr.bf16.mxu0 %v6364
      %6535 = vmatpush1.bf16.msra.mxu0 %v6363
      %6536 = vmatprep.subr.bf16.mxu0 %v6366
      %6537 = vmatpush1.bf16.msra.mxu0 %v6365
      %6538 = vmatprep.subr.bf16.mxu0 %v6368
      %6539 = vmatpush1.bf16.msra.mxu0 %v6367
      %6540 = vmatprep.subr.bf16.mxu0 %v6370
      %6541 = vmatpush1.bf16.msra.mxu0 %v6369
      %6542 = vmatprep.subr.bf16.mxu0 %v6372
      %6543 = vmatpush1.bf16.msra.mxu0 %v6371
      %6544 = vmatprep.subr.bf16.mxu0 %v6374
      %6545 = vmatpush1.bf16.msra.mxu0 %v6373
      %6546 = vmatprep.mubr.bf16.mxu0 %v2376
      %6547 = vmatmul.mubr.bf16.gmra.mrb[0].mxu0 %v2375
      %v6548 = vpop.f32.mrb[0].mxu0
      %v6549 = vadd.f32 %v6496, %v6548
      %v6550 = vpop.f32.mrb[0].mxu0
      %v6551 = vadd.f32 %v6498, %v6550
      %v6552 = vpop.f32.mrb[0].mxu0
      %v6553 = vadd.f32 %v6500, %v6552
      %v6554 = vpop.f32.mrb[0].mxu0
      %v6555 = vadd.f32 %v6502, %v6554
      %6556 = vmatprep.mubr.bf16.mxu0 %v2381
      %6557 = vmatmul.mubr.bf16.gmra.mrb[0].mxu0 %v2380
      %v6558 = vpop.f32.mrb[0].mxu0
      %v6559 = vadd.f32 %v6506, %v6558
      %v6560 = vpop.f32.mrb[0].mxu0
      %v6561 = vadd.f32 %v6508, %v6560
      %v6562 = vpop.f32.mrb[0].mxu0
      %v6563 = vadd.f32 %v6510, %v6562
      %v6564 = vpop.f32.mrb[0].mxu0
      %v6565 = vadd.f32 %v6512, %v6564
      %6566 = vdwg.mxu0
      %6567 = vmatprep.subr.bf16.mxu0 %v6376
      %6568 = vmatpush1.bf16.msra.mxu0 %v6375
      %6569 = vmatprep.subr.bf16.mxu0 %v6378
      %6570 = vmatpush1.bf16.msra.mxu0 %v6377
      %6571 = vmatprep.subr.bf16.mxu0 %v6380
      %6572 = vmatpush1.bf16.msra.mxu0 %v6379
      %6573 = vmatprep.subr.bf16.mxu0 %v6382
      %6574 = vmatpush1.bf16.msra.mxu0 %v6381
      %6575 = vmatprep.subr.bf16.mxu0 0
      %6576 = vmatpush1.bf16.msra.mxu0 0
      %6577 = vmatprep.subr.bf16.mxu0 0
      %6578 = vmatpush1.bf16.msra.mxu0 0
      %6579 = vmatprep.subr.bf16.mxu0 0
      %6580 = vmatpush1.bf16.msra.mxu0 0
      %6581 = vmatprep.subr.bf16.mxu0 0
      %6582 = vmatpush1.bf16.msra.mxu0 0
      %6583 = vmatprep.subr.bf16.mxu0 0
      %6584 = vmatpush1.bf16.msra.mxu0 0
      %6585 = vmatprep.subr.bf16.mxu0 0
      %6586 = vmatpush1.bf16.msra.mxu0 0
      %6587 = vmatprep.subr.bf16.mxu0 0
      %6588 = vmatpush1.bf16.msra.mxu0 0
      %6589 = vmatprep.subr.bf16.mxu0 0
      %6590 = vmatpush1.bf16.msra.mxu0 0
      %6591 = vmatprep.subr.bf16.mxu0 0
      %6592 = vmatpush1.bf16.msra.mxu0 0
      %6593 = vmatprep.subr.bf16.mxu0 0
      %6594 = vmatpush1.bf16.msra.mxu0 0
      %6595 = vmatprep.subr.bf16.mxu0 0
      %6596 = vmatpush1.bf16.msra.mxu0 0
      %6597 = vmatprep.subr.bf16.mxu0 0
      %6598 = vmatpush1.bf16.msra.mxu0 0
      %6599 = vmatprep.mubr.bf16.mxu0 0
      %6600 = vmatmul.mubr.bf16.gmra.mrb[0].mxu0 %v6456
      %v6601 = vpop.f32.mrb[0].mxu0
      %v6602 = vadd.f32 %v6549, %v6601
      %v6603 = vpop.f32.mrb[0].mxu0
      %v6604 = vadd.f32 %v6551, %v6603
      %v6605 = vpop.f32.mrb[0].mxu0
      %v6606 = vadd.f32 %v6553, %v6605
      %v6607 = vpop.f32.mrb[0].mxu0
      %v6608 = vadd.f32 %v6555, %v6607
      %6609 = vmatprep.mubr.bf16.mxu0 0
      %6610 = vmatmul.mubr.bf16.gmra.mrb[0].mxu0 %v6459
      %v6611 = vpop.f32.mrb[0].mxu0
      %v6612 = vadd.f32 %v6559, %v6611
      %v6613 = vpop.f32.mrb[0].mxu0
      %v6614 = vadd.f32 %v6561, %v6613
      %v6615 = vpop.f32.mrb[0].mxu0
      %v6616 = vadd.f32 %v6563, %v6615
      %v6617 = vpop.f32.mrb[0].mxu0
      %v6618 = vadd.f32 %v6565, %v6617
      %6619 = vdwg.mxu0
      %v6620 = vadd.f32 %v6014, %v6602
      %v6621 = vadd.f32 %v6015, %v6604
      %v6622 = vadd.f32 %v6016, %v6606
      %v6623 = vadd.f32 %v6017, %v6608
      %v6624 = vadd.f32 %v6018, %v6612
      %v6625 = vadd.f32 %v6019, %v6614
      %v6626 = vadd.f32 %v6020, %v6616
      %v6627 = vadd.f32 %v6021, %v6618
      %s6628 = scalar_lea.vmem %s5, 4032
      %v6629 = vld [vmem:[%s6628] sm:$0xff]
      %v6630 = vld [vmem:[%s6628 + $0x8] sm:$0xff]
      %v6631 = vld [vmem:[%s6628 + $0x10] sm:$0xff]
      %v6632 = vld [vmem:[%s6628 + $0x18] sm:$0xff]
      %v6633 = vld [vmem:[%s6628 + $0x20] sm:$0xff]
      %v6634 = vld [vmem:[%s6628 + $0x28] sm:$0xff]
      %v6635 = vld [vmem:[%s6628 + $0x30] sm:$0xff]
      %v6636 = vld [vmem:[%s6628 + $0x38] sm:$0xff]
      %v6637 = vld [vmem:[%s6628 + $0x40] sm:$0xff]
      %v6638 = vld [vmem:[%s6628 + $0x48] sm:$0xff]
      %v6639 = vld [vmem:[%s6628 + $0x50] sm:$0xff]
      %v6640 = vld [vmem:[%s6628 + $0x58] sm:$0xff]
      %v6641 = vld [vmem:[%s6628 + $0x60] sm:$0xff]
      %v6642 = vld [vmem:[%s6628 + $0x68] sm:$0xff]
      %v6643 = vld [vmem:[%s6628 + $0x70] sm:$0xff]
      %v6644 = vld [vmem:[%s6628 + $0x78] sm:$0xff]
      %v6645 = vld [vmem:[%s6628 + $0x80] sm:$0xff]
      %v6646 = vld [vmem:[%s6628 + $0x88] sm:$0xff]
      %v6647 = vld [vmem:[%s6628 + $0x90] sm:$0xff]
      %v6648 = vld [vmem:[%s6628 + $0x98] sm:$0xff]
      %v6649 = vld [vmem:[%s6628 + $0xa0] sm:$0xff]
      %v6650 = vld [vmem:[%s6628 + $0xa8] sm:$0xff]
      %v6651 = vld [vmem:[%s6628 + $0xb0] sm:$0xff]
      %v6652 = vld [vmem:[%s6628 + $0xb8] sm:$0xff]
      %v6653 = vld [vmem:[%s6628 + $0xc0] sm:$0xff]
      %v6654 = vld [vmem:[%s6628 + $0xc8] sm:$0xff]
      %v6655 = vld [vmem:[%s6628 + $0xd0] sm:$0xff]
      %v6656 = vld [vmem:[%s6628 + $0xd8] sm:$0xff]
      %v6657 = vld [vmem:[%s6628 + $0xe0] sm:$0xff]
      %v6658 = vld [vmem:[%s6628 + $0xe8] sm:$0xff]
      %v6659 = vld [vmem:[%s6628 + $0xf0] sm:$0xff]
      %v6660 = vld [vmem:[%s6628 + $0xf8] sm:$0xff]
      %v6661 = vld [vmem:[%s6628 + $0x100] sm:$0xff]
      %v6662 = vld [vmem:[%s6628 + $0x108] sm:$0xff]
      %v6663 = vld [vmem:[%s6628 + $0x110] sm:$0xff]
      %v6664 = vld [vmem:[%s6628 + $0x118] sm:$0xff]
      %v6665 = vld [vmem:[%s6628 + $0x120] sm:$0xff]
      %v6666 = vld [vmem:[%s6628 + $0x128] sm:$0xff]
      %v6667 = vld [vmem:[%s6628 + $0x130] sm:$0xff]
      %v6668 = vld [vmem:[%s6628 + $0x138] sm:$0xff]
      %v6669 = vld [vmem:[%s6628 + $0x140] sm:$0xff]
      %v6670 = vld [vmem:[%s6628 + $0x148] sm:$0xff]
      %v6671 = vld [vmem:[%s6628 + $0x150] sm:$0xff]
      %v6672 = vld [vmem:[%s6628 + $0x158] sm:$0xff]
      %v6673 = vld [vmem:[%s6628 + $0x160] sm:$0xff]
      %v6674 = vld [vmem:[%s6628 + $0x168] sm:$0xff]
      %v6675 = vld [vmem:[%s6628 + $0x170] sm:$0xff]
      %v6676 = vld [vmem:[%s6628 + $0x178] sm:$0xff]
      %v6677 = vld [vmem:[%s6628 + $0x180] sm:$0xff]
      %v6678 = vld [vmem:[%s6628 + $0x188] sm:$0xff]
      %v6679 = vld [vmem:[%s6628 + $0x190] sm:$0xff]
      %v6680 = vld [vmem:[%s6628 + $0x198] sm:$0xff]
      %v6681 = vld [vmem:[%s6628 + $0x1a0] sm:$0xff]
      %v6682 = vld [vmem:[%s6628 + $0x1a8] sm:$0xff]
      %v6683 = vld [vmem:[%s6628 + $0x1b0] sm:$0xff]
      %v6684 = vld [vmem:[%s6628 + $0x1b8] sm:$0xff]
      %v6685 = vld [vmem:[%s6628 + $0x1c0] sm:$0xff]
      %v6686 = vld [vmem:[%s6628 + $0x1c8] sm:$0xff]
      %v6687 = vld [vmem:[%s6628 + $0x1d0] sm:$0xff]
      %v6688 = vld [vmem:[%s6628 + $0x1d8] sm:$0xff]
      %v6689 = vld [vmem:[%s6628 + $0x1e0] sm:$0xff]
      %v6690 = vld [vmem:[%s6628 + $0x1e8] sm:$0xff]
      %v6691 = vld [vmem:[%s6628 + $0x1f0] sm:$0xff]
      %v6692 = vld [vmem:[%s6628 + $0x1f8] sm:$0xff]
      %v6693 = vld [vmem:[%s6628 + $0x200] sm:$0xff]
      %v6694 = vld [vmem:[%s6628 + $0x208] sm:$0xff]
      %v6695 = vld [vmem:[%s6628 + $0x210] sm:$0xff]
      %v6696 = vld [vmem:[%s6628 + $0x218] sm:$0xff]
      %v6697 = vld [vmem:[%s6628 + $0x220] sm:$0xff]
      %v6698 = vld [vmem:[%s6628 + $0x228] sm:$0xff]
      %v6699 = vld [vmem:[%s6628 + $0x230] sm:$0xff]
      %v6700 = vld [vmem:[%s6628 + $0x238] sm:$0xff]
      %v6773 = vunpack.c.l.b16 %v6629
      %v6774 = vunpack.c.h.b16 %v6629
      %v6775 = vunpack.c.l.b16 %v6630
      %v6776 = vunpack.c.h.b16 %v6630
      %v6777 = vunpack.c.l.b16 %v6631
      %v6778 = vunpack.c.h.b16 %v6631
      %v6779 = vunpack.c.l.b16 %v6632
      %v6780 = vunpack.c.h.b16 %v6632
      %v6781 = vunpack.c.l.b16 %v6633
      %v6782 = vunpack.c.h.b16 %v6633
      %v6783 = vunpack.c.l.b16 %v6634
      %v6784 = vunpack.c.h.b16 %v6634
      %v6785 = vunpack.c.l.b16 %v6635
      %v6786 = vunpack.c.h.b16 %v6635
      %v6787 = vunpack.c.l.b16 %v6636
      %v6788 = vunpack.c.h.b16 %v6636
      %v6789 = vunpack.c.l.b16 %v6637
      %v6790 = vunpack.c.h.b16 %v6637
      %v6791 = vunpack.c.l.b16 %v6638
      %v6792 = vunpack.c.h.b16 %v6638
      %v6793 = vunpack.c.l.b16 %v6639
      %v6794 = vunpack.c.h.b16 %v6639
      %v6795 = vunpack.c.l.b16 %v6640
      %v6796 = vunpack.c.h.b16 %v6640
      %v6797 = vunpack.c.l.b16 %v6641
      %v6798 = vunpack.c.h.b16 %v6641
      %v6799 = vunpack.c.l.b16 %v6642
      %v6800 = vunpack.c.h.b16 %v6642
      %v6801 = vunpack.c.l.b16 %v6643
      %v6802 = vunpack.c.h.b16 %v6643
      %v6803 = vunpack.c.l.b16 %v6644
      %v6804 = vunpack.c.h.b16 %v6644
      %v6805 = vunpack.c.l.b16 %v6645
      %v6806 = vunpack.c.h.b16 %v6645
      %v6807 = vunpack.c.l.b16 %v6646
      %v6808 = vunpack.c.h.b16 %v6646
      %v6809 = vunpack.c.l.b16 %v6647
      %v6810 = vunpack.c.h.b16 %v6647
      %v6811 = vunpack.c.l.b16 %v6648
      %v6812 = vunpack.c.h.b16 %v6648
      %v6813 = vunpack.c.l.b16 %v6649
      %v6814 = vunpack.c.h.b16 %v6649
      %v6815 = vunpack.c.l.b16 %v6650
      %v6816 = vunpack.c.h.b16 %v6650
      %v6817 = vunpack.c.l.b16 %v6651
      %v6818 = vunpack.c.h.b16 %v6651
      %v6819 = vunpack.c.l.b16 %v6652
      %v6820 = vunpack.c.h.b16 %v6652
      %v6821 = vunpack.c.l.b16 %v6653
      %v6822 = vunpack.c.h.b16 %v6653
      %v6823 = vunpack.c.l.b16 %v6654
      %v6824 = vunpack.c.h.b16 %v6654
      %v6825 = vunpack.c.l.b16 %v6655
      %v6826 = vunpack.c.h.b16 %v6655
      %v6827 = vunpack.c.l.b16 %v6656
      %v6828 = vunpack.c.h.b16 %v6656
      %v6829 = vunpack.c.l.b16 %v6657
      %v6830 = vunpack.c.h.b16 %v6657
      %v6831 = vunpack.c.l.b16 %v6658
      %v6832 = vunpack.c.h.b16 %v6658
      %v6833 = vunpack.c.l.b16 %v6659
      %v6834 = vunpack.c.h.b16 %v6659
      %v6835 = vunpack.c.l.b16 %v6660
      %v6836 = vunpack.c.h.b16 %v6660
      %v6837 = vunpack.c.l.b16 %v6661
      %v6838 = vunpack.c.h.b16 %v6661
      %v6839 = vunpack.c.l.b16 %v6662
      %v6840 = vunpack.c.h.b16 %v6662
      %v6841 = vunpack.c.l.b16 %v6663
      %v6842 = vunpack.c.h.b16 %v6663
      %v6843 = vunpack.c.l.b16 %v6664
      %v6844 = vunpack.c.h.b16 %v6664
      %v6845 = vunpack.c.l.b16 %v6665
      %v6846 = vunpack.c.h.b16 %v6665
      %v6847 = vunpack.c.l.b16 %v6666
      %v6848 = vunpack.c.h.b16 %v6666
      %v6849 = vunpack.c.l.b16 %v6667
      %v6850 = vunpack.c.h.b16 %v6667
      %v6851 = vunpack.c.l.b16 %v6668
      %v6852 = vunpack.c.h.b16 %v6668
      %v6853 = vunpack.c.l.b16 %v6669
      %v6854 = vunpack.c.h.b16 %v6669
      %v6855 = vunpack.c.l.b16 %v6670
      %v6856 = vunpack.c.h.b16 %v6670
      %v6857 = vunpack.c.l.b16 %v6671
      %v6858 = vunpack.c.h.b16 %v6671
      %v6859 = vunpack.c.l.b16 %v6672
      %v6860 = vunpack.c.h.b16 %v6672
      %v6861 = vunpack.c.l.b16 %v6673
      %v6862 = vunpack.c.h.b16 %v6673
      %v6863 = vunpack.c.l.b16 %v6674
      %v6864 = vunpack.c.h.b16 %v6674
      %v6865 = vunpack.c.l.b16 %v6675
      %v6866 = vunpack.c.h.b16 %v6675
      %v6867 = vunpack.c.l.b16 %v6676
      %v6868 = vunpack.c.h.b16 %v6676
      %v6869 = vunpack.c.l.b16 %v6677
      %v6870 = vunpack.c.h.b16 %v6677
      %v6871 = vunpack.c.l.b16 %v6678
      %v6872 = vunpack.c.h.b16 %v6678
      %v6873 = vunpack.c.l.b16 %v6679
      %v6874 = vunpack.c.h.b16 %v6679
      %v6875 = vunpack.c.l.b16 %v6680
      %v6876 = vunpack.c.h.b16 %v6680
      %v6877 = vunpack.c.l.b16 %v6681
      %v6878 = vunpack.c.h.b16 %v6681
      %v6879 = vunpack.c.l.b16 %v6682
      %v6880 = vunpack.c.h.b16 %v6682
      %v6881 = vunpack.c.l.b16 %v6683
      %v6882 = vunpack.c.h.b16 %v6683
      %v6883 = vunpack.c.l.b16 %v6684
      %v6884 = vunpack.c.h.b16 %v6684
      %v6885 = vunpack.c.l.b16 %v6685
      %v6886 = vunpack.c.h.b16 %v6685
      %v6887 = vunpack.c.l.b16 %v6686
      %v6888 = vunpack.c.h.b16 %v6686
      %v6889 = vunpack.c.l.b16 %v6687
      %v6890 = vunpack.c.h.b16 %v6687
      %v6891 = vunpack.c.l.b16 %v6688
      %v6892 = vunpack.c.h.b16 %v6688
      %v6893 = vunpack.c.l.b16 %v6689
      %v6894 = vunpack.c.h.b16 %v6689
      %v6895 = vunpack.c.l.b16 %v6690
      %v6896 = vunpack.c.h.b16 %v6690
      %v6897 = vunpack.c.l.b16 %v6691
      %v6898 = vunpack.c.h.b16 %v6691
      %v6899 = vunpack.c.l.b16 %v6692
      %v6900 = vunpack.c.h.b16 %v6692
      %v6901 = vunpack.c.l.b16 %v6693
      %v6902 = vunpack.c.h.b16 %v6693
      %v6903 = vunpack.c.l.b16 %v6694
      %v6904 = vunpack.c.h.b16 %v6694
      %v6905 = vunpack.c.l.b16 %v6695
      %v6906 = vunpack.c.h.b16 %v6695
      %v6907 = vunpack.c.l.b16 %v6696
      %v6908 = vunpack.c.h.b16 %v6696
      %v6909 = vunpack.c.l.b16 %v6697
      %v6910 = vunpack.c.h.b16 %v6697
      %v6911 = vunpack.c.l.b16 %v6698
      %v6912 = vunpack.c.h.b16 %v6698
      %v6913 = vunpack.c.l.b16 %v6699
      %v6914 = vunpack.c.h.b16 %v6699
      %v6915 = vunpack.c.l.b16 %v6700
      %v6916 = vunpack.c.h.b16 %v6700
      %v6917 = vpack.c.b16 %v6775, %v6773
      %v6918 = vpack.c.b16 %v6776, %v6774
      %v6919 = vpack.c.b16 %v6779, %v6777
      %v6920 = vpack.c.b16 %v6780, %v6778
      %v6921 = vpack.c.b16 %v6783, %v6781
      %v6922 = vpack.c.b16 %v6784, %v6782
      %v6923 = vpack.c.b16 %v6787, %v6785
      %v6924 = vpack.c.b16 %v6788, %v6786
      %v6925 = vpack.c.b16 %v6791, %v6789
      %v6926 = vpack.c.b16 %v6792, %v6790
      %v6927 = vpack.c.b16 %v6795, %v6793
      %v6928 = vpack.c.b16 %v6796, %v6794
      %v6929 = vpack.c.b16 %v6799, %v6797
      %v6930 = vpack.c.b16 %v6800, %v6798
      %v6931 = vpack.c.b16 %v6803, %v6801
      %v6932 = vpack.c.b16 %v6804, %v6802
      %v6933 = vpack.c.b16 %v6807, %v6805
      %v6934 = vpack.c.b16 %v6808, %v6806
      %v6935 = vpack.c.b16 %v6811, %v6809
      %v6936 = vpack.c.b16 %v6812, %v6810
      %v6937 = vpack.c.b16 %v6815, %v6813
      %v6938 = vpack.c.b16 %v6816, %v6814
      %v6939 = vpack.c.b16 %v6819, %v6817
      %v6940 = vpack.c.b16 %v6820, %v6818
      %v6941 = vpack.c.b16 %v6823, %v6821
      %v6942 = vpack.c.b16 %v6824, %v6822
      %v6943 = vpack.c.b16 %v6827, %v6825
      %v6944 = vpack.c.b16 %v6828, %v6826
      %v6945 = vpack.c.b16 %v6831, %v6829
      %v6946 = vpack.c.b16 %v6832, %v6830
      %v6947 = vpack.c.b16 %v6835, %v6833
      %v6948 = vpack.c.b16 %v6836, %v6834
      %v6949 = vpack.c.b16 %v6839, %v6837
      %v6950 = vpack.c.b16 %v6840, %v6838
      %v6951 = vpack.c.b16 %v6843, %v6841
      %v6952 = vpack.c.b16 %v6844, %v6842
      %v6953 = vpack.c.b16 %v6847, %v6845
      %v6954 = vpack.c.b16 %v6848, %v6846
      %v6955 = vpack.c.b16 %v6851, %v6849
      %v6956 = vpack.c.b16 %v6852, %v6850
      %v6957 = vpack.c.b16 %v6855, %v6853
      %v6958 = vpack.c.b16 %v6856, %v6854
      %v6959 = vpack.c.b16 %v6859, %v6857
      %v6960 = vpack.c.b16 %v6860, %v6858
      %v6961 = vpack.c.b16 %v6863, %v6861
      %v6962 = vpack.c.b16 %v6864, %v6862
      %v6963 = vpack.c.b16 %v6867, %v6865
      %v6964 = vpack.c.b16 %v6868, %v6866
      %v6965 = vpack.c.b16 %v6871, %v6869
      %v6966 = vpack.c.b16 %v6872, %v6870
      %v6967 = vpack.c.b16 %v6875, %v6873
      %v6968 = vpack.c.b16 %v6876, %v6874
      %v6969 = vpack.c.b16 %v6879, %v6877
      %v6970 = vpack.c.b16 %v6880, %v6878
      %v6971 = vpack.c.b16 %v6883, %v6881
      %v6972 = vpack.c.b16 %v6884, %v6882
      %v6973 = vpack.c.b16 %v6887, %v6885
      %v6974 = vpack.c.b16 %v6888, %v6886
      %v6975 = vpack.c.b16 %v6891, %v6889
      %v6976 = vpack.c.b16 %v6892, %v6890
      %v6977 = vpack.c.b16 %v6895, %v6893
      %v6978 = vpack.c.b16 %v6896, %v6894
      %v6979 = vpack.c.b16 %v6899, %v6897
      %v6980 = vpack.c.b16 %v6900, %v6898
      %v6981 = vpack.c.b16 %v6903, %v6901
      %v6982 = vpack.c.b16 %v6904, %v6902
      %v6983 = vpack.c.b16 %v6907, %v6905
      %v6984 = vpack.c.b16 %v6908, %v6906
      %v6985 = vpack.c.b16 %v6911, %v6909
      %v6986 = vpack.c.b16 %v6912, %v6910
      %v6987 = vpack.c.b16 %v6915, %v6913
      %v6988 = vpack.c.b16 %v6916, %v6914
      %v7062 = vsel %vm1655, %v2387, 0
      %v7065 = vsel %vm1655, %v2392, 0
      %7067 = vmatprep.subr.bf16.mxu0 %v6918
      %7068 = vmatpush1.bf16.msra.mxu0 %v6917
      %7069 = vmatprep.subr.bf16.mxu0 %v6920
      %7070 = vmatpush1.bf16.msra.mxu0 %v6919
      %7071 = vmatprep.subr.bf16.mxu0 %v6922
      %7072 = vmatpush1.bf16.msra.mxu0 %v6921
      %7073 = vmatprep.subr.bf16.mxu0 %v6924
      %7074 = vmatpush1.bf16.msra.mxu0 %v6923
      %7075 = vmatprep.subr.bf16.mxu0 %v6926
      %7076 = vmatpush1.bf16.msra.mxu0 %v6925
      %7077 = vmatprep.subr.bf16.mxu0 %v6928
      %7078 = vmatpush1.bf16.msra.mxu0 %v6927
      %7079 = vmatprep.subr.bf16.mxu0 %v6930
      %7080 = vmatpush1.bf16.msra.mxu0 %v6929
      %7081 = vmatprep.subr.bf16.mxu0 %v6932
      %7082 = vmatpush1.bf16.msra.mxu0 %v6931
      %7083 = vmatprep.subr.bf16.mxu0 %v6934
      %7084 = vmatpush1.bf16.msra.mxu0 %v6933
      %7085 = vmatprep.subr.bf16.mxu0 %v6936
      %7086 = vmatpush1.bf16.msra.mxu0 %v6935
      %7087 = vmatprep.subr.bf16.mxu0 %v6938
      %7088 = vmatpush1.bf16.msra.mxu0 %v6937
      %7089 = vmatprep.subr.bf16.mxu0 %v6940
      %7090 = vmatpush1.bf16.msra.mxu0 %v6939
      %7091 = vmatprep.subr.bf16.mxu0 %v6942
      %7092 = vmatpush1.bf16.msra.mxu0 %v6941
      %7093 = vmatprep.subr.bf16.mxu0 %v6944
      %7094 = vmatpush1.bf16.msra.mxu0 %v6943
      %7095 = vmatprep.subr.bf16.mxu0 %v6946
      %7096 = vmatpush1.bf16.msra.mxu0 %v6945
      %7097 = vmatprep.subr.bf16.mxu0 %v6948
      %7098 = vmatpush1.bf16.msra.mxu0 %v6947
      %7099 = vmatprep.mubr.bf16.mxu0 %v2384
      %7100 = vmatmul.mubr.bf16.gmra.mrb[0].mxu0 %v2383
      %v7101 = vpop.f32.mrb[0].mxu0
      %v7102 = vadd.f32 0.0, %v7101
      %v7103 = vpop.f32.mrb[0].mxu0
      %v7104 = vadd.f32 0.0, %v7103
      %v7105 = vpop.f32.mrb[0].mxu0
      %v7106 = vadd.f32 0.0, %v7105
      %v7107 = vpop.f32.mrb[0].mxu0
      %v7108 = vadd.f32 0.0, %v7107
      %7109 = vmatprep.mubr.bf16.mxu0 %v2389
      %7110 = vmatmul.mubr.bf16.gmra.mrb[0].mxu0 %v2388
      %v7111 = vpop.f32.mrb[0].mxu0
      %v7112 = vadd.f32 0.0, %v7111
      %v7113 = vpop.f32.mrb[0].mxu0
      %v7114 = vadd.f32 0.0, %v7113
      %v7115 = vpop.f32.mrb[0].mxu0
      %v7116 = vadd.f32 0.0, %v7115
      %v7117 = vpop.f32.mrb[0].mxu0
      %v7118 = vadd.f32 0.0, %v7117
      %7119 = vdwg.mxu0
      %7120 = vmatprep.subr.bf16.mxu0 %v6950
      %7121 = vmatpush1.bf16.msra.mxu0 %v6949
      %7122 = vmatprep.subr.bf16.mxu0 %v6952
      %7123 = vmatpush1.bf16.msra.mxu0 %v6951
      %7124 = vmatprep.subr.bf16.mxu0 %v6954
      %7125 = vmatpush1.bf16.msra.mxu0 %v6953
      %7126 = vmatprep.subr.bf16.mxu0 %v6956
      %7127 = vmatpush1.bf16.msra.mxu0 %v6955
      %7128 = vmatprep.subr.bf16.mxu0 %v6958
      %7129 = vmatpush1.bf16.msra.mxu0 %v6957
      %7130 = vmatprep.subr.bf16.mxu0 %v6960
      %7131 = vmatpush1.bf16.msra.mxu0 %v6959
      %7132 = vmatprep.subr.bf16.mxu0 %v6962
      %7133 = vmatpush1.bf16.msra.mxu0 %v6961
      %7134 = vmatprep.subr.bf16.mxu0 %v6964
      %7135 = vmatpush1.bf16.msra.mxu0 %v6963
      %7136 = vmatprep.subr.bf16.mxu0 %v6966
      %7137 = vmatpush1.bf16.msra.mxu0 %v6965
      %7138 = vmatprep.subr.bf16.mxu0 %v6968
      %7139 = vmatpush1.bf16.msra.mxu0 %v6967
      %7140 = vmatprep.subr.bf16.mxu0 %v6970
      %7141 = vmatpush1.bf16.msra.mxu0 %v6969
      %7142 = vmatprep.subr.bf16.mxu0 %v6972
      %7143 = vmatpush1.bf16.msra.mxu0 %v6971
      %7144 = vmatprep.subr.bf16.mxu0 %v6974
      %7145 = vmatpush1.bf16.msra.mxu0 %v6973
      %7146 = vmatprep.subr.bf16.mxu0 %v6976
      %7147 = vmatpush1.bf16.msra.mxu0 %v6975
      %7148 = vmatprep.subr.bf16.mxu0 %v6978
      %7149 = vmatpush1.bf16.msra.mxu0 %v6977
      %7150 = vmatprep.subr.bf16.mxu0 %v6980
      %7151 = vmatpush1.bf16.msra.mxu0 %v6979
      %7152 = vmatprep.mubr.bf16.mxu0 %v2386
      %7153 = vmatmul.mubr.bf16.gmra.mrb[0].mxu0 %v2385
      %v7154 = vpop.f32.mrb[0].mxu0
      %v7155 = vadd.f32 %v7102, %v7154
      %v7156 = vpop.f32.mrb[0].mxu0
      %v7157 = vadd.f32 %v7104, %v7156
      %v7158 = vpop.f32.mrb[0].mxu0
      %v7159 = vadd.f32 %v7106, %v7158
      %v7160 = vpop.f32.mrb[0].mxu0
      %v7161 = vadd.f32 %v7108, %v7160
      %7162 = vmatprep.mubr.bf16.mxu0 %v2391
      %7163 = vmatmul.mubr.bf16.gmra.mrb[0].mxu0 %v2390
      %v7164 = vpop.f32.mrb[0].mxu0
      %v7165 = vadd.f32 %v7112, %v7164
      %v7166 = vpop.f32.mrb[0].mxu0
      %v7167 = vadd.f32 %v7114, %v7166
      %v7168 = vpop.f32.mrb[0].mxu0
      %v7169 = vadd.f32 %v7116, %v7168
      %v7170 = vpop.f32.mrb[0].mxu0
      %v7171 = vadd.f32 %v7118, %v7170
      %7172 = vdwg.mxu0
      %7173 = vmatprep.subr.bf16.mxu0 %v6982
      %7174 = vmatpush1.bf16.msra.mxu0 %v6981
      %7175 = vmatprep.subr.bf16.mxu0 %v6984
      %7176 = vmatpush1.bf16.msra.mxu0 %v6983
      %7177 = vmatprep.subr.bf16.mxu0 %v6986
      %7178 = vmatpush1.bf16.msra.mxu0 %v6985
      %7179 = vmatprep.subr.bf16.mxu0 %v6988
      %7180 = vmatpush1.bf16.msra.mxu0 %v6987
      %7181 = vmatprep.subr.bf16.mxu0 0
      %7182 = vmatpush1.bf16.msra.mxu0 0
      %7183 = vmatprep.subr.bf16.mxu0 0
      %7184 = vmatpush1.bf16.msra.mxu0 0
      %7185 = vmatprep.subr.bf16.mxu0 0
      %7186 = vmatpush1.bf16.msra.mxu0 0
      %7187 = vmatprep.subr.bf16.mxu0 0
      %7188 = vmatpush1.bf16.msra.mxu0 0
      %7189 = vmatprep.subr.bf16.mxu0 0
      %7190 = vmatpush1.bf16.msra.mxu0 0
      %7191 = vmatprep.subr.bf16.mxu0 0
      %7192 = vmatpush1.bf16.msra.mxu0 0
      %7193 = vmatprep.subr.bf16.mxu0 0
      %7194 = vmatpush1.bf16.msra.mxu0 0
      %7195 = vmatprep.subr.bf16.mxu0 0
      %7196 = vmatpush1.bf16.msra.mxu0 0
      %7197 = vmatprep.subr.bf16.mxu0 0
      %7198 = vmatpush1.bf16.msra.mxu0 0
      %7199 = vmatprep.subr.bf16.mxu0 0
      %7200 = vmatpush1.bf16.msra.mxu0 0
      %7201 = vmatprep.subr.bf16.mxu0 0
      %7202 = vmatpush1.bf16.msra.mxu0 0
      %7203 = vmatprep.subr.bf16.mxu0 0
      %7204 = vmatpush1.bf16.msra.mxu0 0
      %7205 = vmatprep.mubr.bf16.mxu0 0
      %7206 = vmatmul.mubr.bf16.gmra.mrb[0].mxu0 %v7062
      %v7207 = vpop.f32.mrb[0].mxu0
      %v7208 = vadd.f32 %v7155, %v7207
      %v7209 = vpop.f32.mrb[0].mxu0
      %v7210 = vadd.f32 %v7157, %v7209
      %v7211 = vpop.f32.mrb[0].mxu0
      %v7212 = vadd.f32 %v7159, %v7211
      %v7213 = vpop.f32.mrb[0].mxu0
      %v7214 = vadd.f32 %v7161, %v7213
      %7215 = vmatprep.mubr.bf16.mxu0 0
      %7216 = vmatmul.mubr.bf16.gmra.mrb[0].mxu0 %v7065
      %v7217 = vpop.f32.mrb[0].mxu0
      %v7218 = vadd.f32 %v7165, %v7217
      %v7219 = vpop.f32.mrb[0].mxu0
      %v7220 = vadd.f32 %v7167, %v7219
      %v7221 = vpop.f32.mrb[0].mxu0
      %v7222 = vadd.f32 %v7169, %v7221
      %v7223 = vpop.f32.mrb[0].mxu0
      %v7224 = vadd.f32 %v7171, %v7223
      %7225 = vdwg.mxu0
      %v7226 = vadd.f32 %v6620, %v7208
      %v7227 = vadd.f32 %v6621, %v7210
      %v7228 = vadd.f32 %v6622, %v7212
      %v7229 = vadd.f32 %v6623, %v7214
      %v7230 = vadd.f32 %v6624, %v7218
      %v7231 = vadd.f32 %v6625, %v7220
      %v7232 = vadd.f32 %v6626, %v7222
      %v7233 = vadd.f32 %v6627, %v7224
      %s7234 = scalar_lea.vmem %s5, 4608
      %v7235 = vld [vmem:[%s7234] sm:$0xff]
      %v7236 = vld [vmem:[%s7234 + $0x8] sm:$0xff]
      %v7237 = vld [vmem:[%s7234 + $0x10] sm:$0xff]
      %v7238 = vld [vmem:[%s7234 + $0x18] sm:$0xff]
      %v7239 = vld [vmem:[%s7234 + $0x20] sm:$0xff]
      %v7240 = vld [vmem:[%s7234 + $0x28] sm:$0xff]
      %v7241 = vld [vmem:[%s7234 + $0x30] sm:$0xff]
      %v7242 = vld [vmem:[%s7234 + $0x38] sm:$0xff]
      %v7243 = vld [vmem:[%s7234 + $0x40] sm:$0xff]
      %v7244 = vld [vmem:[%s7234 + $0x48] sm:$0xff]
      %v7245 = vld [vmem:[%s7234 + $0x50] sm:$0xff]
      %v7246 = vld [vmem:[%s7234 + $0x58] sm:$0xff]
      %v7247 = vld [vmem:[%s7234 + $0x60] sm:$0xff]
      %v7248 = vld [vmem:[%s7234 + $0x68] sm:$0xff]
      %v7249 = vld [vmem:[%s7234 + $0x70] sm:$0xff]
      %v7250 = vld [vmem:[%s7234 + $0x78] sm:$0xff]
      %v7251 = vld [vmem:[%s7234 + $0x80] sm:$0xff]
      %v7252 = vld [vmem:[%s7234 + $0x88] sm:$0xff]
      %v7253 = vld [vmem:[%s7234 + $0x90] sm:$0xff]
      %v7254 = vld [vmem:[%s7234 + $0x98] sm:$0xff]
      %v7255 = vld [vmem:[%s7234 + $0xa0] sm:$0xff]
      %v7256 = vld [vmem:[%s7234 + $0xa8] sm:$0xff]
      %v7257 = vld [vmem:[%s7234 + $0xb0] sm:$0xff]
      %v7258 = vld [vmem:[%s7234 + $0xb8] sm:$0xff]
      %v7259 = vld [vmem:[%s7234 + $0xc0] sm:$0xff]
      %v7260 = vld [vmem:[%s7234 + $0xc8] sm:$0xff]
      %v7261 = vld [vmem:[%s7234 + $0xd0] sm:$0xff]
      %v7262 = vld [vmem:[%s7234 + $0xd8] sm:$0xff]
      %v7263 = vld [vmem:[%s7234 + $0xe0] sm:$0xff]
      %v7264 = vld [vmem:[%s7234 + $0xe8] sm:$0xff]
      %v7265 = vld [vmem:[%s7234 + $0xf0] sm:$0xff]
      %v7266 = vld [vmem:[%s7234 + $0xf8] sm:$0xff]
      %v7267 = vld [vmem:[%s7234 + $0x100] sm:$0xff]
      %v7268 = vld [vmem:[%s7234 + $0x108] sm:$0xff]
      %v7269 = vld [vmem:[%s7234 + $0x110] sm:$0xff]
      %v7270 = vld [vmem:[%s7234 + $0x118] sm:$0xff]
      %v7271 = vld [vmem:[%s7234 + $0x120] sm:$0xff]
      %v7272 = vld [vmem:[%s7234 + $0x128] sm:$0xff]
      %v7273 = vld [vmem:[%s7234 + $0x130] sm:$0xff]
      %v7274 = vld [vmem:[%s7234 + $0x138] sm:$0xff]
      %v7275 = vld [vmem:[%s7234 + $0x140] sm:$0xff]
      %v7276 = vld [vmem:[%s7234 + $0x148] sm:$0xff]
      %v7277 = vld [vmem:[%s7234 + $0x150] sm:$0xff]
      %v7278 = vld [vmem:[%s7234 + $0x158] sm:$0xff]
      %v7279 = vld [vmem:[%s7234 + $0x160] sm:$0xff]
      %v7280 = vld [vmem:[%s7234 + $0x168] sm:$0xff]
      %v7281 = vld [vmem:[%s7234 + $0x170] sm:$0xff]
      %v7282 = vld [vmem:[%s7234 + $0x178] sm:$0xff]
      %v7283 = vld [vmem:[%s7234 + $0x180] sm:$0xff]
      %v7284 = vld [vmem:[%s7234 + $0x188] sm:$0xff]
      %v7285 = vld [vmem:[%s7234 + $0x190] sm:$0xff]
      %v7286 = vld [vmem:[%s7234 + $0x198] sm:$0xff]
      %v7287 = vld [vmem:[%s7234 + $0x1a0] sm:$0xff]
      %v7288 = vld [vmem:[%s7234 + $0x1a8] sm:$0xff]
      %v7289 = vld [vmem:[%s7234 + $0x1b0] sm:$0xff]
      %v7290 = vld [vmem:[%s7234 + $0x1b8] sm:$0xff]
      %v7291 = vld [vmem:[%s7234 + $0x1c0] sm:$0xff]
      %v7292 = vld [vmem:[%s7234 + $0x1c8] sm:$0xff]
      %v7293 = vld [vmem:[%s7234 + $0x1d0] sm:$0xff]
      %v7294 = vld [vmem:[%s7234 + $0x1d8] sm:$0xff]
      %v7295 = vld [vmem:[%s7234 + $0x1e0] sm:$0xff]
      %v7296 = vld [vmem:[%s7234 + $0x1e8] sm:$0xff]
      %v7297 = vld [vmem:[%s7234 + $0x1f0] sm:$0xff]
      %v7298 = vld [vmem:[%s7234 + $0x1f8] sm:$0xff]
      %v7299 = vld [vmem:[%s7234 + $0x200] sm:$0xff]
      %v7300 = vld [vmem:[%s7234 + $0x208] sm:$0xff]
      %v7301 = vld [vmem:[%s7234 + $0x210] sm:$0xff]
      %v7302 = vld [vmem:[%s7234 + $0x218] sm:$0xff]
      %v7303 = vld [vmem:[%s7234 + $0x220] sm:$0xff]
      %v7304 = vld [vmem:[%s7234 + $0x228] sm:$0xff]
      %v7305 = vld [vmem:[%s7234 + $0x230] sm:$0xff]
      %v7306 = vld [vmem:[%s7234 + $0x238] sm:$0xff]
      %v7379 = vunpack.c.l.b16 %v7235
      %v7380 = vunpack.c.h.b16 %v7235
      %v7381 = vunpack.c.l.b16 %v7236
      %v7382 = vunpack.c.h.b16 %v7236
      %v7383 = vunpack.c.l.b16 %v7237
      %v7384 = vunpack.c.h.b16 %v7237
      %v7385 = vunpack.c.l.b16 %v7238
      %v7386 = vunpack.c.h.b16 %v7238
      %v7387 = vunpack.c.l.b16 %v7239
      %v7388 = vunpack.c.h.b16 %v7239
      %v7389 = vunpack.c.l.b16 %v7240
      %v7390 = vunpack.c.h.b16 %v7240
      %v7391 = vunpack.c.l.b16 %v7241
      %v7392 = vunpack.c.h.b16 %v7241
      %v7393 = vunpack.c.l.b16 %v7242
      %v7394 = vunpack.c.h.b16 %v7242
      %v7395 = vunpack.c.l.b16 %v7243
      %v7396 = vunpack.c.h.b16 %v7243
      %v7397 = vunpack.c.l.b16 %v7244
      %v7398 = vunpack.c.h.b16 %v7244
      %v7399 = vunpack.c.l.b16 %v7245
      %v7400 = vunpack.c.h.b16 %v7245
      %v7401 = vunpack.c.l.b16 %v7246
      %v7402 = vunpack.c.h.b16 %v7246
      %v7403 = vunpack.c.l.b16 %v7247
      %v7404 = vunpack.c.h.b16 %v7247
      %v7405 = vunpack.c.l.b16 %v7248
      %v7406 = vunpack.c.h.b16 %v7248
      %v7407 = vunpack.c.l.b16 %v7249
      %v7408 = vunpack.c.h.b16 %v7249
      %v7409 = vunpack.c.l.b16 %v7250
      %v7410 = vunpack.c.h.b16 %v7250
      %v7411 = vunpack.c.l.b16 %v7251
      %v7412 = vunpack.c.h.b16 %v7251
      %v7413 = vunpack.c.l.b16 %v7252
      %v7414 = vunpack.c.h.b16 %v7252
      %v7415 = vunpack.c.l.b16 %v7253
      %v7416 = vunpack.c.h.b16 %v7253
      %v7417 = vunpack.c.l.b16 %v7254
      %v7418 = vunpack.c.h.b16 %v7254
      %v7419 = vunpack.c.l.b16 %v7255
      %v7420 = vunpack.c.h.b16 %v7255
      %v7421 = vunpack.c.l.b16 %v7256
      %v7422 = vunpack.c.h.b16 %v7256
      %v7423 = vunpack.c.l.b16 %v7257
      %v7424 = vunpack.c.h.b16 %v7257
      %v7425 = vunpack.c.l.b16 %v7258
      %v7426 = vunpack.c.h.b16 %v7258
      %v7427 = vunpack.c.l.b16 %v7259
      %v7428 = vunpack.c.h.b16 %v7259
      %v7429 = vunpack.c.l.b16 %v7260
      %v7430 = vunpack.c.h.b16 %v7260
      %v7431 = vunpack.c.l.b16 %v7261
      %v7432 = vunpack.c.h.b16 %v7261
      %v7433 = vunpack.c.l.b16 %v7262
      %v7434 = vunpack.c.h.b16 %v7262
      %v7435 = vunpack.c.l.b16 %v7263
      %v7436 = vunpack.c.h.b16 %v7263
      %v7437 = vunpack.c.l.b16 %v7264
      %v7438 = vunpack.c.h.b16 %v7264
      %v7439 = vunpack.c.l.b16 %v7265
      %v7440 = vunpack.c.h.b16 %v7265
      %v7441 = vunpack.c.l.b16 %v7266
      %v7442 = vunpack.c.h.b16 %v7266
      %v7443 = vunpack.c.l.b16 %v7267
      %v7444 = vunpack.c.h.b16 %v7267
      %v7445 = vunpack.c.l.b16 %v7268
      %v7446 = vunpack.c.h.b16 %v7268
      %v7447 = vunpack.c.l.b16 %v7269
      %v7448 = vunpack.c.h.b16 %v7269
      %v7449 = vunpack.c.l.b16 %v7270
      %v7450 = vunpack.c.h.b16 %v7270
      %v7451 = vunpack.c.l.b16 %v7271
      %v7452 = vunpack.c.h.b16 %v7271
      %v7453 = vunpack.c.l.b16 %v7272
      %v7454 = vunpack.c.h.b16 %v7272
      %v7455 = vunpack.c.l.b16 %v7273
      %v7456 = vunpack.c.h.b16 %v7273
      %v7457 = vunpack.c.l.b16 %v7274
      %v7458 = vunpack.c.h.b16 %v7274
      %v7459 = vunpack.c.l.b16 %v7275
      %v7460 = vunpack.c.h.b16 %v7275
      %v7461 = vunpack.c.l.b16 %v7276
      %v7462 = vunpack.c.h.b16 %v7276
      %v7463 = vunpack.c.l.b16 %v7277
      %v7464 = vunpack.c.h.b16 %v7277
      %v7465 = vunpack.c.l.b16 %v7278
      %v7466 = vunpack.c.h.b16 %v7278
      %v7467 = vunpack.c.l.b16 %v7279
      %v7468 = vunpack.c.h.b16 %v7279
      %v7469 = vunpack.c.l.b16 %v7280
      %v7470 = vunpack.c.h.b16 %v7280
      %v7471 = vunpack.c.l.b16 %v7281
      %v7472 = vunpack.c.h.b16 %v7281
      %v7473 = vunpack.c.l.b16 %v7282
      %v7474 = vunpack.c.h.b16 %v7282
      %v7475 = vunpack.c.l.b16 %v7283
      %v7476 = vunpack.c.h.b16 %v7283
      %v7477 = vunpack.c.l.b16 %v7284
      %v7478 = vunpack.c.h.b16 %v7284
      %v7479 = vunpack.c.l.b16 %v7285
      %v7480 = vunpack.c.h.b16 %v7285
      %v7481 = vunpack.c.l.b16 %v7286
      %v7482 = vunpack.c.h.b16 %v7286
      %v7483 = vunpack.c.l.b16 %v7287
      %v7484 = vunpack.c.h.b16 %v7287
      %v7485 = vunpack.c.l.b16 %v7288
      %v7486 = vunpack.c.h.b16 %v7288
      %v7487 = vunpack.c.l.b16 %v7289
      %v7488 = vunpack.c.h.b16 %v7289
      %v7489 = vunpack.c.l.b16 %v7290
      %v7490 = vunpack.c.h.b16 %v7290
      %v7491 = vunpack.c.l.b16 %v7291
      %v7492 = vunpack.c.h.b16 %v7291
      %v7493 = vunpack.c.l.b16 %v7292
      %v7494 = vunpack.c.h.b16 %v7292
      %v7495 = vunpack.c.l.b16 %v7293
      %v7496 = vunpack.c.h.b16 %v7293
      %v7497 = vunpack.c.l.b16 %v7294
      %v7498 = vunpack.c.h.b16 %v7294
      %v7499 = vunpack.c.l.b16 %v7295
      %v7500 = vunpack.c.h.b16 %v7295
      %v7501 = vunpack.c.l.b16 %v7296
      %v7502 = vunpack.c.h.b16 %v7296
      %v7503 = vunpack.c.l.b16 %v7297
      %v7504 = vunpack.c.h.b16 %v7297
      %v7505 = vunpack.c.l.b16 %v7298
      %v7506 = vunpack.c.h.b16 %v7298
      %v7507 = vunpack.c.l.b16 %v7299
      %v7508 = vunpack.c.h.b16 %v7299
      %v7509 = vunpack.c.l.b16 %v7300
      %v7510 = vunpack.c.h.b16 %v7300
      %v7511 = vunpack.c.l.b16 %v7301
      %v7512 = vunpack.c.h.b16 %v7301
      %v7513 = vunpack.c.l.b16 %v7302
      %v7514 = vunpack.c.h.b16 %v7302
      %v7515 = vunpack.c.l.b16 %v7303
      %v7516 = vunpack.c.h.b16 %v7303
      %v7517 = vunpack.c.l.b16 %v7304
      %v7518 = vunpack.c.h.b16 %v7304
      %v7519 = vunpack.c.l.b16 %v7305
      %v7520 = vunpack.c.h.b16 %v7305
      %v7521 = vunpack.c.l.b16 %v7306
      %v7522 = vunpack.c.h.b16 %v7306
      %v7523 = vpack.c.b16 %v7381, %v7379
      %v7524 = vpack.c.b16 %v7382, %v7380
      %v7525 = vpack.c.b16 %v7385, %v7383
      %v7526 = vpack.c.b16 %v7386, %v7384
      %v7527 = vpack.c.b16 %v7389, %v7387
      %v7528 = vpack.c.b16 %v7390, %v7388
      %v7529 = vpack.c.b16 %v7393, %v7391
      %v7530 = vpack.c.b16 %v7394, %v7392
      %v7531 = vpack.c.b16 %v7397, %v7395
      %v7532 = vpack.c.b16 %v7398, %v7396
      %v7533 = vpack.c.b16 %v7401, %v7399
      %v7534 = vpack.c.b16 %v7402, %v7400
      %v7535 = vpack.c.b16 %v7405, %v7403
      %v7536 = vpack.c.b16 %v7406, %v7404
      %v7537 = vpack.c.b16 %v7409, %v7407
      %v7538 = vpack.c.b16 %v7410, %v7408
      %v7539 = vpack.c.b16 %v7413, %v7411
      %v7540 = vpack.c.b16 %v7414, %v7412
      %v7541 = vpack.c.b16 %v7417, %v7415
      %v7542 = vpack.c.b16 %v7418, %v7416
      %v7543 = vpack.c.b16 %v7421, %v7419
      %v7544 = vpack.c.b16 %v7422, %v7420
      %v7545 = vpack.c.b16 %v7425, %v7423
      %v7546 = vpack.c.b16 %v7426, %v7424
      %v7547 = vpack.c.b16 %v7429, %v7427
      %v7548 = vpack.c.b16 %v7430, %v7428
      %v7549 = vpack.c.b16 %v7433, %v7431
      %v7550 = vpack.c.b16 %v7434, %v7432
      %v7551 = vpack.c.b16 %v7437, %v7435
      %v7552 = vpack.c.b16 %v7438, %v7436
      %v7553 = vpack.c.b16 %v7441, %v7439
      %v7554 = vpack.c.b16 %v7442, %v7440
      %v7555 = vpack.c.b16 %v7445, %v7443
      %v7556 = vpack.c.b16 %v7446, %v7444
      %v7557 = vpack.c.b16 %v7449, %v7447
      %v7558 = vpack.c.b16 %v7450, %v7448
      %v7559 = vpack.c.b16 %v7453, %v7451
      %v7560 = vpack.c.b16 %v7454, %v7452
      %v7561 = vpack.c.b16 %v7457, %v7455
      %v7562 = vpack.c.b16 %v7458, %v7456
      %v7563 = vpack.c.b16 %v7461, %v7459
      %v7564 = vpack.c.b16 %v7462, %v7460
      %v7565 = vpack.c.b16 %v7465, %v7463
      %v7566 = vpack.c.b16 %v7466, %v7464
      %v7567 = vpack.c.b16 %v7469, %v7467
      %v7568 = vpack.c.b16 %v7470, %v7468
      %v7569 = vpack.c.b16 %v7473, %v7471
      %v7570 = vpack.c.b16 %v7474, %v7472
      %v7571 = vpack.c.b16 %v7477, %v7475
      %v7572 = vpack.c.b16 %v7478, %v7476
      %v7573 = vpack.c.b16 %v7481, %v7479
      %v7574 = vpack.c.b16 %v7482, %v7480
      %v7575 = vpack.c.b16 %v7485, %v7483
      %v7576 = vpack.c.b16 %v7486, %v7484
      %v7577 = vpack.c.b16 %v7489, %v7487
      %v7578 = vpack.c.b16 %v7490, %v7488
      %v7579 = vpack.c.b16 %v7493, %v7491
      %v7580 = vpack.c.b16 %v7494, %v7492
      %v7581 = vpack.c.b16 %v7497, %v7495
      %v7582 = vpack.c.b16 %v7498, %v7496
      %v7583 = vpack.c.b16 %v7501, %v7499
      %v7584 = vpack.c.b16 %v7502, %v7500
      %v7585 = vpack.c.b16 %v7505, %v7503
      %v7586 = vpack.c.b16 %v7506, %v7504
      %v7587 = vpack.c.b16 %v7509, %v7507
      %v7588 = vpack.c.b16 %v7510, %v7508
      %v7589 = vpack.c.b16 %v7513, %v7511
      %v7590 = vpack.c.b16 %v7514, %v7512
      %v7591 = vpack.c.b16 %v7517, %v7515
      %v7592 = vpack.c.b16 %v7518, %v7516
      %v7593 = vpack.c.b16 %v7521, %v7519
      %v7594 = vpack.c.b16 %v7522, %v7520
      %v7668 = vsel %vm1655, %v2397, 0
      %v7671 = vsel %vm1655, %v2402, 0
      %7673 = vmatprep.subr.bf16.mxu0 %v7524
      %7674 = vmatpush1.bf16.msra.mxu0 %v7523
      %7675 = vmatprep.subr.bf16.mxu0 %v7526
      %7676 = vmatpush1.bf16.msra.mxu0 %v7525
      %7677 = vmatprep.subr.bf16.mxu0 %v7528
      %7678 = vmatpush1.bf16.msra.mxu0 %v7527
      %7679 = vmatprep.subr.bf16.mxu0 %v7530
      %7680 = vmatpush1.bf16.msra.mxu0 %v7529
      %7681 = vmatprep.subr.bf16.mxu0 %v7532
      %7682 = vmatpush1.bf16.msra.mxu0 %v7531
      %7683 = vmatprep.subr.bf16.mxu0 %v7534
      %7684 = vmatpush1.bf16.msra.mxu0 %v7533
      %7685 = vmatprep.subr.bf16.mxu0 %v7536
      %7686 = vmatpush1.bf16.msra.mxu0 %v7535
      %7687 = vmatprep.subr.bf16.mxu0 %v7538
      %7688 = vmatpush1.bf16.msra.mxu0 %v7537
      %7689 = vmatprep.subr.bf16.mxu0 %v7540
      %7690 = vmatpush1.bf16.msra.mxu0 %v7539
      %7691 = vmatprep.subr.bf16.mxu0 %v7542
      %7692 = vmatpush1.bf16.msra.mxu0 %v7541
      %7693 = vmatprep.subr.bf16.mxu0 %v7544
      %7694 = vmatpush1.bf16.msra.mxu0 %v7543
      %7695 = vmatprep.subr.bf16.mxu0 %v7546
      %7696 = vmatpush1.bf16.msra.mxu0 %v7545
      %7697 = vmatprep.subr.bf16.mxu0 %v7548
      %7698 = vmatpush1.bf16.msra.mxu0 %v7547
      %7699 = vmatprep.subr.bf16.mxu0 %v7550
      %7700 = vmatpush1.bf16.msra.mxu0 %v7549
      %7701 = vmatprep.subr.bf16.mxu0 %v7552
      %7702 = vmatpush1.bf16.msra.mxu0 %v7551
      %7703 = vmatprep.subr.bf16.mxu0 %v7554
      %7704 = vmatpush1.bf16.msra.mxu0 %v7553
      %7705 = vmatprep.mubr.bf16.mxu0 %v2394
      %7706 = vmatmul.mubr.bf16.gmra.mrb[0].mxu0 %v2393
      %v7707 = vpop.f32.mrb[0].mxu0
      %v7708 = vadd.f32 0.0, %v7707
      %v7709 = vpop.f32.mrb[0].mxu0
      %v7710 = vadd.f32 0.0, %v7709
      %v7711 = vpop.f32.mrb[0].mxu0
      %v7712 = vadd.f32 0.0, %v7711
      %v7713 = vpop.f32.mrb[0].mxu0
      %v7714 = vadd.f32 0.0, %v7713
      %7715 = vmatprep.mubr.bf16.mxu0 %v2399
      %7716 = vmatmul.mubr.bf16.gmra.mrb[0].mxu0 %v2398
      %v7717 = vpop.f32.mrb[0].mxu0
      %v7718 = vadd.f32 0.0, %v7717
      %v7719 = vpop.f32.mrb[0].mxu0
      %v7720 = vadd.f32 0.0, %v7719
      %v7721 = vpop.f32.mrb[0].mxu0
      %v7722 = vadd.f32 0.0, %v7721
      %v7723 = vpop.f32.mrb[0].mxu0
      %v7724 = vadd.f32 0.0, %v7723
      %7725 = vdwg.mxu0
      %7726 = vmatprep.subr.bf16.mxu0 %v7556
      %7727 = vmatpush1.bf16.msra.mxu0 %v7555
      %7728 = vmatprep.subr.bf16.mxu0 %v7558
      %7729 = vmatpush1.bf16.msra.mxu0 %v7557
      %7730 = vmatprep.subr.bf16.mxu0 %v7560
      %7731 = vmatpush1.bf16.msra.mxu0 %v7559
      %7732 = vmatprep.subr.bf16.mxu0 %v7562
      %7733 = vmatpush1.bf16.msra.mxu0 %v7561
      %7734 = vmatprep.subr.bf16.mxu0 %v7564
      %7735 = vmatpush1.bf16.msra.mxu0 %v7563
      %7736 = vmatprep.subr.bf16.mxu0 %v7566
      %7737 = vmatpush1.bf16.msra.mxu0 %v7565
      %7738 = vmatprep.subr.bf16.mxu0 %v7568
      %7739 = vmatpush1.bf16.msra.mxu0 %v7567
      %7740 = vmatprep.subr.bf16.mxu0 %v7570
      %7741 = vmatpush1.bf16.msra.mxu0 %v7569
      %7742 = vmatprep.subr.bf16.mxu0 %v7572
      %7743 = vmatpush1.bf16.msra.mxu0 %v7571
      %7744 = vmatprep.subr.bf16.mxu0 %v7574
      %7745 = vmatpush1.bf16.msra.mxu0 %v7573
      %7746 = vmatprep.subr.bf16.mxu0 %v7576
      %7747 = vmatpush1.bf16.msra.mxu0 %v7575
      %7748 = vmatprep.subr.bf16.mxu0 %v7578
      %7749 = vmatpush1.bf16.msra.mxu0 %v7577
      %7750 = vmatprep.subr.bf16.mxu0 %v7580
      %7751 = vmatpush1.bf16.msra.mxu0 %v7579
      %7752 = vmatprep.subr.bf16.mxu0 %v7582
      %7753 = vmatpush1.bf16.msra.mxu0 %v7581
      %7754 = vmatprep.subr.bf16.mxu0 %v7584
      %7755 = vmatpush1.bf16.msra.mxu0 %v7583
      %7756 = vmatprep.subr.bf16.mxu0 %v7586
      %7757 = vmatpush1.bf16.msra.mxu0 %v7585
      %7758 = vmatprep.mubr.bf16.mxu0 %v2396
      %7759 = vmatmul.mubr.bf16.gmra.mrb[0].mxu0 %v2395
      %v7760 = vpop.f32.mrb[0].mxu0
      %v7761 = vadd.f32 %v7708, %v7760
      %v7762 = vpop.f32.mrb[0].mxu0
      %v7763 = vadd.f32 %v7710, %v7762
      %v7764 = vpop.f32.mrb[0].mxu0
      %v7765 = vadd.f32 %v7712, %v7764
      %v7766 = vpop.f32.mrb[0].mxu0
      %v7767 = vadd.f32 %v7714, %v7766
      %7768 = vmatprep.mubr.bf16.mxu0 %v2401
      %7769 = vmatmul.mubr.bf16.gmra.mrb[0].mxu0 %v2400
      %v7770 = vpop.f32.mrb[0].mxu0
      %v7771 = vadd.f32 %v7718, %v7770
      %v7772 = vpop.f32.mrb[0].mxu0
      %v7773 = vadd.f32 %v7720, %v7772
      %v7774 = vpop.f32.mrb[0].mxu0
      %v7775 = vadd.f32 %v7722, %v7774
      %v7776 = vpop.f32.mrb[0].mxu0
      %v7777 = vadd.f32 %v7724, %v7776
      %7778 = vdwg.mxu0
      %7779 = vmatprep.subr.bf16.mxu0 %v7588
      %7780 = vmatpush1.bf16.msra.mxu0 %v7587
      %7781 = vmatprep.subr.bf16.mxu0 %v7590
      %7782 = vmatpush1.bf16.msra.mxu0 %v7589
      %7783 = vmatprep.subr.bf16.mxu0 %v7592
      %7784 = vmatpush1.bf16.msra.mxu0 %v7591
      %7785 = vmatprep.subr.bf16.mxu0 %v7594
      %7786 = vmatpush1.bf16.msra.mxu0 %v7593
      %7787 = vmatprep.subr.bf16.mxu0 0
      %7788 = vmatpush1.bf16.msra.mxu0 0
      %7789 = vmatprep.subr.bf16.mxu0 0
      %7790 = vmatpush1.bf16.msra.mxu0 0
      %7791 = vmatprep.subr.bf16.mxu0 0
      %7792 = vmatpush1.bf16.msra.mxu0 0
      %7793 = vmatprep.subr.bf16.mxu0 0
      %7794 = vmatpush1.bf16.msra.mxu0 0
      %7795 = vmatprep.subr.bf16.mxu0 0
      %7796 = vmatpush1.bf16.msra.mxu0 0
      %7797 = vmatprep.subr.bf16.mxu0 0
      %7798 = vmatpush1.bf16.msra.mxu0 0
      %7799 = vmatprep.subr.bf16.mxu0 0
      %7800 = vmatpush1.bf16.msra.mxu0 0
      %7801 = vmatprep.subr.bf16.mxu0 0
      %7802 = vmatpush1.bf16.msra.mxu0 0
      %7803 = vmatprep.subr.bf16.mxu0 0
      %7804 = vmatpush1.bf16.msra.mxu0 0
      %7805 = vmatprep.subr.bf16.mxu0 0
      %7806 = vmatpush1.bf16.msra.mxu0 0
      %7807 = vmatprep.subr.bf16.mxu0 0
      %7808 = vmatpush1.bf16.msra.mxu0 0
      %7809 = vmatprep.subr.bf16.mxu0 0
      %7810 = vmatpush1.bf16.msra.mxu0 0
      %7811 = vmatprep.mubr.bf16.mxu0 0
      %7812 = vmatmul.mubr.bf16.gmra.mrb[0].mxu0 %v7668
      %v7813 = vpop.f32.mrb[0].mxu0
      %v7814 = vadd.f32 %v7761, %v7813
      %v7815 = vpop.f32.mrb[0].mxu0
      %v7816 = vadd.f32 %v7763, %v7815
      %v7817 = vpop.f32.mrb[0].mxu0
      %v7818 = vadd.f32 %v7765, %v7817
      %v7819 = vpop.f32.mrb[0].mxu0
      %v7820 = vadd.f32 %v7767, %v7819
      %7821 = vmatprep.mubr.bf16.mxu0 0
      %7822 = vmatmul.mubr.bf16.gmra.mrb[0].mxu0 %v7671
      %v7823 = vpop.f32.mrb[0].mxu0
      %v7824 = vadd.f32 %v7771, %v7823
      %v7825 = vpop.f32.mrb[0].mxu0
      %v7826 = vadd.f32 %v7773, %v7825
      %v7827 = vpop.f32.mrb[0].mxu0
      %v7828 = vadd.f32 %v7775, %v7827
      %v7829 = vpop.f32.mrb[0].mxu0
      %v7830 = vadd.f32 %v7777, %v7829
      %7831 = vdwg.mxu0
      %v7832 = vadd.f32 %v7226, %v7814
      %v7833 = vadd.f32 %v7227, %v7816
      %v7834 = vadd.f32 %v7228, %v7818
      %v7835 = vadd.f32 %v7229, %v7820
      %v7836 = vadd.f32 %v7230, %v7824
      %v7837 = vadd.f32 %v7231, %v7826
      %v7838 = vadd.f32 %v7232, %v7828
      %v7839 = vadd.f32 %v7233, %v7830
      %v7840 = vld [vmem:[%s4] sm:$0xff]
      %v7841 = vld [vmem:[%s4 + $0x8] sm:$0xff]
      %v7842 = vld [vmem:[%s4 + $0x10] sm:$0xff]
      %v7843 = vld [vmem:[%s4 + $0x18] sm:$0xff]
      %7845 = vset.pattern.permute.xlu0 0
      %7846 = vperm.xlu0 %7845, %v7840
      %v7847 = vpop.permute.xlu0 %7846
      %7850 = vset.pattern.permute.xlu0 0
      %7851 = vperm.xlu0 %7850, %v7841
      %v7852 = vpop.permute.xlu0 %7851
      %7855 = vset.pattern.permute.xlu0 0
      %7856 = vperm.xlu0 %7855, %v7842
      %v7857 = vpop.permute.xlu0 %7856
      %7860 = vset.pattern.permute.xlu0 0
      %7861 = vperm.xlu0 %7860, %v7843
      %v7862 = vpop.permute.xlu0 %7861
      %v7864 = vadd.f32 %v7832, %v7847
      %v7865 = vadd.f32 %v7833, %v7847
      %v7866 = vadd.f32 %v7834, %v7852
      %v7867 = vadd.f32 %v7835, %v7852
      %v7868 = vadd.f32 %v7836, %v7857
      %v7869 = vadd.f32 %v7837, %v7857
      %v7870 = vadd.f32 %v7838, %v7862
      %v7871 = vadd.f32 %v7839, %v7862
      %v7872 = vmax.f32 %v7864, 0.0
      %v7873 = vmax.f32 %v7865, 0.0
      %v7874 = vmax.f32 %v7866, 0.0
      %v7875 = vmax.f32 %v7867, 0.0
      %v7876 = vmax.f32 %v7868, 0.0
      %v7877 = vmax.f32 %v7869, 0.0
      %v7878 = vmax.f32 %v7870, 0.0
      %v7879 = vmax.f32 %v7871, 0.0
      %v7880 = vpack.c.bf16 %v7874, %v7872
      %v7881 = vpack.c.bf16 %v7875, %v7873
      %v7882 = vpack.c.bf16 %v7878, %v7876
      %v7883 = vpack.c.bf16 %v7879, %v7877
      %v7884 = vld [vmem:[%s6] sm:$0xf]
      %v7885 = vld [vmem:[%s6 + $0x4] sm:$0xf]
      %v7886 = vld [vmem:[%s6 + $0x8] sm:$0xf]
      %v7887 = vld [vmem:[%s6 + $0xc] sm:$0xf]
      %v7888 = vld [vmem:[%s6 + $0x10] sm:$0xf]
      %v7889 = vld [vmem:[%s6 + $0x14] sm:$0xf]
      %v7890 = vld [vmem:[%s6 + $0x18] sm:$0xf]
      %v7891 = vld [vmem:[%s6 + $0x1c] sm:$0xf]
      %v7892 = vld [vmem:[%s6 + $0x20] sm:$0xf]
      %v7893 = vld [vmem:[%s6 + $0x24] sm:$0xf]
      %v7894 = vld [vmem:[%s6 + $0x28] sm:$0xf]
      %v7895 = vld [vmem:[%s6 + $0x2c] sm:$0xf]
      %v7896 = vld [vmem:[%s6 + $0x30] sm:$0xf]
      %v7897 = vld [vmem:[%s6 + $0x34] sm:$0xf]
      %v7898 = vld [vmem:[%s6 + $0x38] sm:$0xf]
      %v7899 = vld [vmem:[%s6 + $0x3c] sm:$0xf]
      %v7900 = vld [vmem:[%s6 + $0x40] sm:$0xf]
      %v7901 = vld [vmem:[%s6 + $0x44] sm:$0xf]
      %v7920 = vunpack.c.l.b16 %v7884
      %v7921 = vunpack.c.l.b16 %v7885
      %v7922 = vunpack.c.l.b16 %v7886
      %v7923 = vunpack.c.l.b16 %v7887
      %v7924 = vunpack.c.l.b16 %v7888
      %v7925 = vunpack.c.l.b16 %v7889
      %v7926 = vunpack.c.l.b16 %v7890
      %v7927 = vunpack.c.l.b16 %v7891
      %v7928 = vunpack.c.l.b16 %v7892
      %v7929 = vunpack.c.l.b16 %v7893
      %v7930 = vunpack.c.l.b16 %v7894
      %v7931 = vunpack.c.l.b16 %v7895
      %v7932 = vunpack.c.l.b16 %v7896
      %v7933 = vunpack.c.l.b16 %v7897
      %v7934 = vunpack.c.l.b16 %v7898
      %v7935 = vunpack.c.l.b16 %v7899
      %v7936 = vunpack.c.l.b16 %v7900
      %v7937 = vunpack.c.l.b16 %v7901
      %v7938 = vpack.c.b16 %v7921, %v7920
      %v7939 = vpack.c.b16 %v7923, %v7922
      %v7940 = vpack.c.b16 %v7925, %v7924
      %v7941 = vpack.c.b16 %v7927, %v7926
      %v7942 = vpack.c.b16 %v7929, %v7928
      %v7943 = vpack.c.b16 %v7931, %v7930
      %v7944 = vpack.c.b16 %v7933, %v7932
      %v7945 = vpack.c.b16 %v7935, %v7934
      %v7946 = vpack.c.b16 %v7937, %v7936
      %v7948 = vsel %vm1034, %v7938, 0
      %v7951 = vsel %vm1034, %v7939, 0
      %v7954 = vsel %vm1034, %v7940, 0
      %v7957 = vsel %vm1034, %v7941, 0
      %v7960 = vsel %vm1034, %v7942, 0
      %v7963 = vsel %vm1034, %v7943, 0
      %v7966 = vsel %vm1034, %v7944, 0
      %v7969 = vsel %vm1034, %v7945, 0
      %v7972 = vsel %vm1034, %v7946, 0
      %7974 = vmatprep.subr.bf16.mxu0 %v7881
      %7975 = vmatpush1.bf16.msra.mxu0 %v7880
      %7976 = vmatprep.subr.bf16.mxu0 %v7883
      %7977 = vmatpush1.bf16.msra.mxu0 %v7882
      %7978 = vmatprep.subr.bf16.mxu0 0
      %7979 = vmatpush1.bf16.msra.mxu0 0
      %7980 = vmatprep.subr.bf16.mxu0 0
      %7981 = vmatpush1.bf16.msra.mxu0 0
      %7982 = vmatprep.subr.bf16.mxu0 0
      %7983 = vmatpush1.bf16.msra.mxu0 0
      %7984 = vmatprep.subr.bf16.mxu0 0
      %7985 = vmatpush1.bf16.msra.mxu0 0
      %7986 = vmatprep.subr.bf16.mxu0 0
      %7987 = vmatpush1.bf16.msra.mxu0 0
      %7988 = vmatprep.subr.bf16.mxu0 0
      %7989 = vmatpush1.bf16.msra.mxu0 0
      %7990 = vmatprep.subr.bf16.mxu0 0
      %7991 = vmatpush1.bf16.msra.mxu0 0
      %7992 = vmatprep.subr.bf16.mxu0 0
      %7993 = vmatpush1.bf16.msra.mxu0 0
      %7994 = vmatprep.subr.bf16.mxu0 0
      %7995 = vmatpush1.bf16.msra.mxu0 0
      %7996 = vmatprep.subr.bf16.mxu0 0
      %7997 = vmatpush1.bf16.msra.mxu0 0
      %7998 = vmatprep.subr.bf16.mxu0 0
      %7999 = vmatpush1.bf16.msra.mxu0 0
      %8000 = vmatprep.subr.bf16.mxu0 0
      %8001 = vmatpush1.bf16.msra.mxu0 0
      %8002 = vmatprep.subr.bf16.mxu0 0
      %8003 = vmatpush1.bf16.msra.mxu0 0
      %8004 = vmatprep.subr.bf16.mxu0 0
      %8005 = vmatpush1.bf16.msra.mxu0 0
      %8006 = vmatprep.mubr.bf16.mxu0 0
      %8007 = vmatmul.mubr.bf16.gmra.mrb[0].mxu0 %v7948
      %v8008 = vpop.f32.mrb[0].mxu0
      %v8009 = vadd.f32 0.0, %v8008
      %v8010 = vpop.f32.mrb[0].mxu0
      %v8011 = vadd.f32 0.0, %v8010
      %v8012 = vpop.f32.mrb[0].mxu0
      %v8013 = vadd.f32 0.0, %v8012
      %v8014 = vpop.f32.mrb[0].mxu0
      %v8015 = vadd.f32 0.0, %v8014
      %8016 = vmatprep.mubr.bf16.mxu0 0
      %8017 = vmatmul.mubr.bf16.gmra.mrb[0].mxu0 %v7951
      %v8018 = vpop.f32.mrb[0].mxu0
      %v8019 = vadd.f32 0.0, %v8018
      %v8020 = vpop.f32.mrb[0].mxu0
      %v8021 = vadd.f32 0.0, %v8020
      %v8022 = vpop.f32.mrb[0].mxu0
      %v8023 = vadd.f32 0.0, %v8022
      %v8024 = vpop.f32.mrb[0].mxu0
      %v8025 = vadd.f32 0.0, %v8024
      %8026 = vmatprep.mubr.bf16.mxu0 0
      %8027 = vmatmul.mubr.bf16.gmra.mrb[0].mxu0 %v7954
      %v8028 = vpop.f32.mrb[0].mxu0
      %v8029 = vadd.f32 0.0, %v8028
      %v8030 = vpop.f32.mrb[0].mxu0
      %v8031 = vadd.f32 0.0, %v8030
      %v8032 = vpop.f32.mrb[0].mxu0
      %v8033 = vadd.f32 0.0, %v8032
      %v8034 = vpop.f32.mrb[0].mxu0
      %v8035 = vadd.f32 0.0, %v8034
      %8036 = vmatprep.mubr.bf16.mxu0 0
      %8037 = vmatmul.mubr.bf16.gmra.mrb[0].mxu0 %v7957
      %v8038 = vpop.f32.mrb[0].mxu0
      %v8039 = vadd.f32 0.0, %v8038
      %v8040 = vpop.f32.mrb[0].mxu0
      %v8041 = vadd.f32 0.0, %v8040
      %v8042 = vpop.f32.mrb[0].mxu0
      %v8043 = vadd.f32 0.0, %v8042
      %v8044 = vpop.f32.mrb[0].mxu0
      %v8045 = vadd.f32 0.0, %v8044
      %8046 = vmatprep.mubr.bf16.mxu0 0
      %8047 = vmatmul.mubr.bf16.gmra.mrb[0].mxu0 %v7960
      %v8048 = vpop.f32.mrb[0].mxu0
      %v8049 = vadd.f32 0.0, %v8048
      %v8050 = vpop.f32.mrb[0].mxu0
      %v8051 = vadd.f32 0.0, %v8050
      %v8052 = vpop.f32.mrb[0].mxu0
      %v8053 = vadd.f32 0.0, %v8052
      %v8054 = vpop.f32.mrb[0].mxu0
      %v8055 = vadd.f32 0.0, %v8054
      %8056 = vmatprep.mubr.bf16.mxu0 0
      %8057 = vmatmul.mubr.bf16.gmra.mrb[0].mxu0 %v7963
      %v8058 = vpop.f32.mrb[0].mxu0
      %v8059 = vadd.f32 0.0, %v8058
      %v8060 = vpop.f32.mrb[0].mxu0
      %v8061 = vadd.f32 0.0, %v8060
      %v8062 = vpop.f32.mrb[0].mxu0
      %v8063 = vadd.f32 0.0, %v8062
      %v8064 = vpop.f32.mrb[0].mxu0
      %v8065 = vadd.f32 0.0, %v8064
      %8066 = vmatprep.mubr.bf16.mxu0 0
      %8067 = vmatmul.mubr.bf16.gmra.mrb[0].mxu0 %v7966
      %v8068 = vpop.f32.mrb[0].mxu0
      %v8069 = vadd.f32 0.0, %v8068
      %v8070 = vpop.f32.mrb[0].mxu0
      %v8071 = vadd.f32 0.0, %v8070
      %v8072 = vpop.f32.mrb[0].mxu0
      %v8073 = vadd.f32 0.0, %v8072
      %v8074 = vpop.f32.mrb[0].mxu0
      %v8075 = vadd.f32 0.0, %v8074
      %8076 = vmatprep.mubr.bf16.mxu0 0
      %8077 = vmatmul.mubr.bf16.gmra.mrb[0].mxu0 %v7969
      %v8078 = vpop.f32.mrb[0].mxu0
      %v8079 = vadd.f32 0.0, %v8078
      %v8080 = vpop.f32.mrb[0].mxu0
      %v8081 = vadd.f32 0.0, %v8080
      %v8082 = vpop.f32.mrb[0].mxu0
      %v8083 = vadd.f32 0.0, %v8082
      %v8084 = vpop.f32.mrb[0].mxu0
      %v8085 = vadd.f32 0.0, %v8084
      %8086 = vmatprep.mubr.bf16.mxu0 0
      %8087 = vmatmul.mubr.bf16.gmra.mrb[0].mxu0 %v7972
      %v8088 = vpop.f32.mrb[0].mxu0
      %v8089 = vadd.f32 0.0, %v8088
      %v8090 = vpop.f32.mrb[0].mxu0
      %v8091 = vadd.f32 0.0, %v8090
      %v8092 = vpop.f32.mrb[0].mxu0
      %v8093 = vadd.f32 0.0, %v8092
      %v8094 = vpop.f32.mrb[0].mxu0
      %v8095 = vadd.f32 0.0, %v8094
      %8096 = vdwg.mxu0
      %v8097 = vpack.c.bf16 %v8013, %v8009
      %v8098 = vpack.c.bf16 %v8015, %v8011
      %v8099 = vpack.c.bf16 %v8023, %v8019
      %v8100 = vpack.c.bf16 %v8025, %v8021
      %v8101 = vpack.c.bf16 %v8033, %v8029
      %v8102 = vpack.c.bf16 %v8035, %v8031
      %v8103 = vpack.c.bf16 %v8043, %v8039
      %v8104 = vpack.c.bf16 %v8045, %v8041
      %v8105 = vpack.c.bf16 %v8053, %v8049
      %v8106 = vpack.c.bf16 %v8055, %v8051
      %v8107 = vpack.c.bf16 %v8063, %v8059
      %v8108 = vpack.c.bf16 %v8065, %v8061
      %v8109 = vpack.c.bf16 %v8073, %v8069
      %v8110 = vpack.c.bf16 %v8075, %v8071
      %v8111 = vpack.c.bf16 %v8083, %v8079
      %v8112 = vpack.c.bf16 %v8085, %v8081
      %v8113 = vpack.c.bf16 %v8093, %v8089
      %v8114 = vpack.c.bf16 %v8095, %v8091
      %v8115 = vld [vmem:[%s8] sm:$0xf]
      %v8116 = vld [vmem:[%s8 + $0x4] sm:$0xf]
      %v8117 = vld [vmem:[%s8 + $0x8] sm:$0xf]
      %v8118 = vld [vmem:[%s8 + $0xc] sm:$0xf]
      %v8119 = vld [vmem:[%s8 + $0x10] sm:$0xf]
      %v8120 = vld [vmem:[%s8 + $0x14] sm:$0xf]
      %v8121 = vld [vmem:[%s8 + $0x18] sm:$0xf]
      %v8122 = vld [vmem:[%s8 + $0x1c] sm:$0xf]
      %v8123 = vld [vmem:[%s8 + $0x20] sm:$0xf]
      %v8124 = vld [vmem:[%s8 + $0x24] sm:$0xf]
      %v8125 = vld [vmem:[%s8 + $0x28] sm:$0xf]
      %v8126 = vld [vmem:[%s8 + $0x2c] sm:$0xf]
      %v8127 = vld [vmem:[%s8 + $0x30] sm:$0xf]
      %v8128 = vld [vmem:[%s8 + $0x34] sm:$0xf]
      %v8129 = vld [vmem:[%s8 + $0x38] sm:$0xf]
      %v8130 = vld [vmem:[%s8 + $0x3c] sm:$0xf]
      %v8131 = vld [vmem:[%s8 + $0x40] sm:$0xf]
      %v8132 = vld [vmem:[%s8 + $0x44] sm:$0xf]
      %s8133 = scalar_lea.vmem %s8, 72
      %v8134 = vld [vmem:[%s8133] sm:$0xf]
      %v8135 = vld [vmem:[%s8133 + $0x4] sm:$0xf]
      %v8136 = vld [vmem:[%s8133 + $0x8] sm:$0xf]
      %v8137 = vld [vmem:[%s8133 + $0xc] sm:$0xf]
      %v8138 = vld [vmem:[%s8133 + $0x10] sm:$0xf]
      %v8139 = vld [vmem:[%s8133 + $0x14] sm:$0xf]
      %v8140 = vld [vmem:[%s8133 + $0x18] sm:$0xf]
      %v8141 = vld [vmem:[%s8133 + $0x1c] sm:$0xf]
      %v8142 = vld [vmem:[%s8133 + $0x20] sm:$0xf]
      %v8143 = vld [vmem:[%s8133 + $0x24] sm:$0xf]
      %v8144 = vld [vmem:[%s8133 + $0x28] sm:$0xf]
      %v8145 = vld [vmem:[%s8133 + $0x2c] sm:$0xf]
      %v8146 = vld [vmem:[%s8133 + $0x30] sm:$0xf]
      %v8147 = vld [vmem:[%s8133 + $0x34] sm:$0xf]
      %v8148 = vld [vmem:[%s8133 + $0x38] sm:$0xf]
      %v8149 = vld [vmem:[%s8133 + $0x3c] sm:$0xf]
      %v8150 = vld [vmem:[%s8133 + $0x40] sm:$0xf]
      %v8151 = vld [vmem:[%s8133 + $0x44] sm:$0xf]
      %v8170 = vunpack.c.l.b16 %v8134
      %v8171 = vunpack.c.l.b16 %v8135
      %v8172 = vunpack.c.l.b16 %v8136
      %v8173 = vunpack.c.l.b16 %v8137
      %v8174 = vunpack.c.l.b16 %v8138
      %v8175 = vunpack.c.l.b16 %v8139
      %v8176 = vunpack.c.l.b16 %v8140
      %v8177 = vunpack.c.l.b16 %v8141
      %v8178 = vunpack.c.l.b16 %v8142
      %v8179 = vunpack.c.l.b16 %v8143
      %v8180 = vunpack.c.l.b16 %v8144
      %v8181 = vunpack.c.l.b16 %v8145
      %v8182 = vunpack.c.l.b16 %v8146
      %v8183 = vunpack.c.l.b16 %v8147
      %v8184 = vunpack.c.l.b16 %v8148
      %v8185 = vunpack.c.l.b16 %v8149
      %v8186 = vunpack.c.l.b16 %v8150
      %v8187 = vunpack.c.l.b16 %v8151
      %v8188 = vpack.c.b16 %v8171, %v8170
      %v8189 = vpack.c.b16 %v8173, %v8172
      %v8190 = vpack.c.b16 %v8175, %v8174
      %v8191 = vpack.c.b16 %v8177, %v8176
      %v8192 = vpack.c.b16 %v8179, %v8178
      %v8193 = vpack.c.b16 %v8181, %v8180
      %v8194 = vpack.c.b16 %v8183, %v8182
      %v8195 = vpack.c.b16 %v8185, %v8184
      %v8196 = vpack.c.b16 %v8187, %v8186
      %vm8206 = vcmask 130048
      %v8208 = vsel %vm8206, %v8100, 0
      %8210 = vmatprep.subr.bf16.mxu0 0
      %8211 = vmatpush1.bf16.msra.mxu0 %v8188
      %8212 = vmatprep.subr.bf16.mxu0 0
      %8213 = vmatpush1.bf16.msra.mxu0 %v8189
      %8214 = vmatprep.subr.bf16.mxu0 0
      %8215 = vmatpush1.bf16.msra.mxu0 %v8190
      %8216 = vmatprep.subr.bf16.mxu0 0
      %8217 = vmatpush1.bf16.msra.mxu0 %v8191
      %8218 = vmatprep.subr.bf16.mxu0 0
      %8219 = vmatpush1.bf16.msra.mxu0 %v8192
      %8220 = vmatprep.subr.bf16.mxu0 0
      %8221 = vmatpush1.bf16.msra.mxu0 %v8193
      %8222 = vmatprep.subr.bf16.mxu0 0
      %8223 = vmatpush1.bf16.msra.mxu0 %v8194
      %8224 = vmatprep.subr.bf16.mxu0 0
      %8225 = vmatpush1.bf16.msra.mxu0 %v8195
      %8226 = vmatprep.subr.bf16.mxu0 0
      %8227 = vmatpush1.bf16.msra.mxu0 %v8196
      %8228 = vmatprep.subr.bf16.mxu0 0
      %8229 = vmatpush1.bf16.msra.mxu0 0
      %8230 = vmatprep.subr.bf16.mxu0 0
      %8231 = vmatpush1.bf16.msra.mxu0 0
      %8232 = vmatprep.subr.bf16.mxu0 0
      %8233 = vmatpush1.bf16.msra.mxu0 0
      %8234 = vmatprep.subr.bf16.mxu0 0
      %8235 = vmatpush1.bf16.msra.mxu0 0
      %8236 = vmatprep.subr.bf16.mxu0 0
      %8237 = vmatpush1.bf16.msra.mxu0 0
      %8238 = vmatprep.subr.bf16.mxu0 0
      %8239 = vmatpush1.bf16.msra.mxu0 0
      %8240 = vmatprep.subr.bf16.mxu0 0
      %8241 = vmatpush1.bf16.msra.mxu0 0
      %8242 = vmatprep.mubr.bf16.mxu0 %v8208
      %8243 = vmatmul.mubr.bf16.gmra.mrb[0].mxu0 %v8099
      %v8244 = vpop.f32.mrb[0].mxu0
      %v8245 = vadd.f32 0.0, %v8244
      %v8246 = vpop.f32.mrb[0].mxu0
      %v8247 = vpop.f32.mrb[0].mxu0
      %v8248 = vadd.f32 0.0, %v8247
      %v8249 = vpop.f32.mrb[0].mxu0
      %8250 = vdwg.mxu0
      %v8269 = vunpack.c.l.b16 %v8115
      %v8270 = vunpack.c.l.b16 %v8116
      %v8271 = vunpack.c.l.b16 %v8117
      %v8272 = vunpack.c.l.b16 %v8118
      %v8273 = vunpack.c.l.b16 %v8119
      %v8274 = vunpack.c.l.b16 %v8120
      %v8275 = vunpack.c.l.b16 %v8121
      %v8276 = vunpack.c.l.b16 %v8122
      %v8277 = vunpack.c.l.b16 %v8123
      %v8278 = vunpack.c.l.b16 %v8124
      %v8279 = vunpack.c.l.b16 %v8125
      %v8280 = vunpack.c.l.b16 %v8126
      %v8281 = vunpack.c.l.b16 %v8127
      %v8282 = vunpack.c.l.b16 %v8128
      %v8283 = vunpack.c.l.b16 %v8129
      %v8284 = vunpack.c.l.b16 %v8130
      %v8285 = vunpack.c.l.b16 %v8131
      %v8286 = vunpack.c.l.b16 %v8132
      %v8287 = vpack.c.b16 %v8270, %v8269
      %v8288 = vpack.c.b16 %v8272, %v8271
      %v8289 = vpack.c.b16 %v8274, %v8273
      %v8290 = vpack.c.b16 %v8276, %v8275
      %v8291 = vpack.c.b16 %v8278, %v8277
      %v8292 = vpack.c.b16 %v8280, %v8279
      %v8293 = vpack.c.b16 %v8282, %v8281
      %v8294 = vpack.c.b16 %v8284, %v8283
      %v8295 = vpack.c.b16 %v8286, %v8285
      %v8306 = vsel %vm8206, %v8098, 0
      %8308 = vmatprep.subr.bf16.mxu0 0
      %8309 = vmatpush1.bf16.msra.mxu0 %v8287
      %8310 = vmatprep.subr.bf16.mxu0 0
      %8311 = vmatpush1.bf16.msra.mxu0 %v8288
      %8312 = vmatprep.subr.bf16.mxu0 0
      %8313 = vmatpush1.bf16.msra.mxu0 %v8289
      %8314 = vmatprep.subr.bf16.mxu0 0
      %8315 = vmatpush1.bf16.msra.mxu0 %v8290
      %8316 = vmatprep.subr.bf16.mxu0 0
      %8317 = vmatpush1.bf16.msra.mxu0 %v8291
      %8318 = vmatprep.subr.bf16.mxu0 0
      %8319 = vmatpush1.bf16.msra.mxu0 %v8292
      %8320 = vmatprep.subr.bf16.mxu0 0
      %8321 = vmatpush1.bf16.msra.mxu0 %v8293
      %8322 = vmatprep.subr.bf16.mxu0 0
      %8323 = vmatpush1.bf16.msra.mxu0 %v8294
      %8324 = vmatprep.subr.bf16.mxu0 0
      %8325 = vmatpush1.bf16.msra.mxu0 %v8295
      %8326 = vmatprep.subr.bf16.mxu0 0
      %8327 = vmatpush1.bf16.msra.mxu0 0
      %8328 = vmatprep.subr.bf16.mxu0 0
      %8329 = vmatpush1.bf16.msra.mxu0 0
      %8330 = vmatprep.subr.bf16.mxu0 0
      %8331 = vmatpush1.bf16.msra.mxu0 0
      %8332 = vmatprep.subr.bf16.mxu0 0
      %8333 = vmatpush1.bf16.msra.mxu0 0
      %8334 = vmatprep.subr.bf16.mxu0 0
      %8335 = vmatpush1.bf16.msra.mxu0 0
      %8336 = vmatprep.subr.bf16.mxu0 0
      %8337 = vmatpush1.bf16.msra.mxu0 0
      %8338 = vmatprep.subr.bf16.mxu0 0
      %8339 = vmatpush1.bf16.msra.mxu0 0
      %8340 = vmatprep.mubr.bf16.mxu0 %v8306
      %8341 = vmatmul.mubr.bf16.gmra.mrb[0].mxu0 %v8097
      %v8342 = vpop.f32.mrb[0].mxu0
      %v8343 = vadd.f32 %v8245, %v8342
      %v8344 = vpop.f32.mrb[0].mxu0
      %v8345 = vpop.f32.mrb[0].mxu0
      %v8346 = vadd.f32 %v8248, %v8345
      %v8347 = vpop.f32.mrb[0].mxu0
      %8348 = vdwg.mxu0
      %s8349 = scalar_lea.vmem %s8, 144
      %v8350 = vld [vmem:[%s8349] sm:$0xf]
      %v8351 = vld [vmem:[%s8349 + $0x4] sm:$0xf]
      %v8352 = vld [vmem:[%s8349 + $0x8] sm:$0xf]
      %v8353 = vld [vmem:[%s8349 + $0xc] sm:$0xf]
      %v8354 = vld [vmem:[%s8349 + $0x10] sm:$0xf]
      %v8355 = vld [vmem:[%s8349 + $0x14] sm:$0xf]
      %v8356 = vld [vmem:[%s8349 + $0x18] sm:$0xf]
      %v8357 = vld [vmem:[%s8349 + $0x1c] sm:$0xf]
      %v8358 = vld [vmem:[%s8349 + $0x20] sm:$0xf]
      %v8359 = vld [vmem:[%s8349 + $0x24] sm:$0xf]
      %v8360 = vld [vmem:[%s8349 + $0x28] sm:$0xf]
      %v8361 = vld [vmem:[%s8349 + $0x2c] sm:$0xf]
      %v8362 = vld [vmem:[%s8349 + $0x30] sm:$0xf]
      %v8363 = vld [vmem:[%s8349 + $0x34] sm:$0xf]
      %v8364 = vld [vmem:[%s8349 + $0x38] sm:$0xf]
      %v8365 = vld [vmem:[%s8349 + $0x3c] sm:$0xf]
      %v8366 = vld [vmem:[%s8349 + $0x40] sm:$0xf]
      %v8367 = vld [vmem:[%s8349 + $0x44] sm:$0xf]
      %v8386 = vunpack.c.l.b16 %v8350
      %v8387 = vunpack.c.l.b16 %v8351
      %v8388 = vunpack.c.l.b16 %v8352
      %v8389 = vunpack.c.l.b16 %v8353
      %v8390 = vunpack.c.l.b16 %v8354
      %v8391 = vunpack.c.l.b16 %v8355
      %v8392 = vunpack.c.l.b16 %v8356
      %v8393 = vunpack.c.l.b16 %v8357
      %v8394 = vunpack.c.l.b16 %v8358
      %v8395 = vunpack.c.l.b16 %v8359
      %v8396 = vunpack.c.l.b16 %v8360
      %v8397 = vunpack.c.l.b16 %v8361
      %v8398 = vunpack.c.l.b16 %v8362
      %v8399 = vunpack.c.l.b16 %v8363
      %v8400 = vunpack.c.l.b16 %v8364
      %v8401 = vunpack.c.l.b16 %v8365
      %v8402 = vunpack.c.l.b16 %v8366
      %v8403 = vunpack.c.l.b16 %v8367
      %v8404 = vpack.c.b16 %v8387, %v8386
      %v8405 = vpack.c.b16 %v8389, %v8388
      %v8406 = vpack.c.b16 %v8391, %v8390
      %v8407 = vpack.c.b16 %v8393, %v8392
      %v8408 = vpack.c.b16 %v8395, %v8394
      %v8409 = vpack.c.b16 %v8397, %v8396
      %v8410 = vpack.c.b16 %v8399, %v8398
      %v8411 = vpack.c.b16 %v8401, %v8400
      %v8412 = vpack.c.b16 %v8403, %v8402
      %v8423 = vsel %vm8206, %v8102, 0
      %8425 = vmatprep.subr.bf16.mxu0 0
      %8426 = vmatpush1.bf16.msra.mxu0 %v8404
      %8427 = vmatprep.subr.bf16.mxu0 0
      %8428 = vmatpush1.bf16.msra.mxu0 %v8405
      %8429 = vmatprep.subr.bf16.mxu0 0
      %8430 = vmatpush1.bf16.msra.mxu0 %v8406
      %8431 = vmatprep.subr.bf16.mxu0 0
      %8432 = vmatpush1.bf16.msra.mxu0 %v8407
      %8433 = vmatprep.subr.bf16.mxu0 0
      %8434 = vmatpush1.bf16.msra.mxu0 %v8408
      %8435 = vmatprep.subr.bf16.mxu0 0
      %8436 = vmatpush1.bf16.msra.mxu0 %v8409
      %8437 = vmatprep.subr.bf16.mxu0 0
      %8438 = vmatpush1.bf16.msra.mxu0 %v8410
      %8439 = vmatprep.subr.bf16.mxu0 0
      %8440 = vmatpush1.bf16.msra.mxu0 %v8411
      %8441 = vmatprep.subr.bf16.mxu0 0
      %8442 = vmatpush1.bf16.msra.mxu0 %v8412
      %8443 = vmatprep.subr.bf16.mxu0 0
      %8444 = vmatpush1.bf16.msra.mxu0 0
      %8445 = vmatprep.subr.bf16.mxu0 0
      %8446 = vmatpush1.bf16.msra.mxu0 0
      %8447 = vmatprep.subr.bf16.mxu0 0
      %8448 = vmatpush1.bf16.msra.mxu0 0
      %8449 = vmatprep.subr.bf16.mxu0 0
      %8450 = vmatpush1.bf16.msra.mxu0 0
      %8451 = vmatprep.subr.bf16.mxu0 0
      %8452 = vmatpush1.bf16.msra.mxu0 0
      %8453 = vmatprep.subr.bf16.mxu0 0
      %8454 = vmatpush1.bf16.msra.mxu0 0
      %8455 = vmatprep.subr.bf16.mxu0 0
      %8456 = vmatpush1.bf16.msra.mxu0 0
      %8457 = vmatprep.mubr.bf16.mxu0 %v8423
      %8458 = vmatmul.mubr.bf16.gmra.mrb[0].mxu0 %v8101
      %v8459 = vpop.f32.mrb[0].mxu0
      %v8460 = vadd.f32 0.0, %v8459
      %v8461 = vpop.f32.mrb[0].mxu0
      %v8462 = vpop.f32.mrb[0].mxu0
      %v8463 = vadd.f32 0.0, %v8462
      %v8464 = vpop.f32.mrb[0].mxu0
      %8465 = vdwg.mxu0
      %v8466 = vadd.f32 %v8343, %v8460
      %v8467 = vadd.f32 %v8346, %v8463
      %s8468 = scalar_lea.vmem %s8, 216
      %v8469 = vld [vmem:[%s8468] sm:$0xf]
      %v8470 = vld [vmem:[%s8468 + $0x4] sm:$0xf]
      %v8471 = vld [vmem:[%s8468 + $0x8] sm:$0xf]
      %v8472 = vld [vmem:[%s8468 + $0xc] sm:$0xf]
      %v8473 = vld [vmem:[%s8468 + $0x10] sm:$0xf]
      %v8474 = vld [vmem:[%s8468 + $0x14] sm:$0xf]
      %v8475 = vld [vmem:[%s8468 + $0x18] sm:$0xf]
      %v8476 = vld [vmem:[%s8468 + $0x1c] sm:$0xf]
      %v8477 = vld [vmem:[%s8468 + $0x20] sm:$0xf]
      %v8478 = vld [vmem:[%s8468 + $0x24] sm:$0xf]
      %v8479 = vld [vmem:[%s8468 + $0x28] sm:$0xf]
      %v8480 = vld [vmem:[%s8468 + $0x2c] sm:$0xf]
      %v8481 = vld [vmem:[%s8468 + $0x30] sm:$0xf]
      %v8482 = vld [vmem:[%s8468 + $0x34] sm:$0xf]
      %v8483 = vld [vmem:[%s8468 + $0x38] sm:$0xf]
      %v8484 = vld [vmem:[%s8468 + $0x3c] sm:$0xf]
      %v8485 = vld [vmem:[%s8468 + $0x40] sm:$0xf]
      %v8486 = vld [vmem:[%s8468 + $0x44] sm:$0xf]
      %v8505 = vunpack.c.l.b16 %v8469
      %v8506 = vunpack.c.l.b16 %v8470
      %v8507 = vunpack.c.l.b16 %v8471
      %v8508 = vunpack.c.l.b16 %v8472
      %v8509 = vunpack.c.l.b16 %v8473
      %v8510 = vunpack.c.l.b16 %v8474
      %v8511 = vunpack.c.l.b16 %v8475
      %v8512 = vunpack.c.l.b16 %v8476
      %v8513 = vunpack.c.l.b16 %v8477
      %v8514 = vunpack.c.l.b16 %v8478
      %v8515 = vunpack.c.l.b16 %v8479
      %v8516 = vunpack.c.l.b16 %v8480
      %v8517 = vunpack.c.l.b16 %v8481
      %v8518 = vunpack.c.l.b16 %v8482
      %v8519 = vunpack.c.l.b16 %v8483
      %v8520 = vunpack.c.l.b16 %v8484
      %v8521 = vunpack.c.l.b16 %v8485
      %v8522 = vunpack.c.l.b16 %v8486
      %v8523 = vpack.c.b16 %v8506, %v8505
      %v8524 = vpack.c.b16 %v8508, %v8507
      %v8525 = vpack.c.b16 %v8510, %v8509
      %v8526 = vpack.c.b16 %v8512, %v8511
      %v8527 = vpack.c.b16 %v8514, %v8513
      %v8528 = vpack.c.b16 %v8516, %v8515
      %v8529 = vpack.c.b16 %v8518, %v8517
      %v8530 = vpack.c.b16 %v8520, %v8519
      %v8531 = vpack.c.b16 %v8522, %v8521
      %v8542 = vsel %vm8206, %v8104, 0
      %8544 = vmatprep.subr.bf16.mxu0 0
      %8545 = vmatpush1.bf16.msra.mxu0 %v8523
      %8546 = vmatprep.subr.bf16.mxu0 0
      %8547 = vmatpush1.bf16.msra.mxu0 %v8524
      %8548 = vmatprep.subr.bf16.mxu0 0
      %8549 = vmatpush1.bf16.msra.mxu0 %v8525
      %8550 = vmatprep.subr.bf16.mxu0 0
      %8551 = vmatpush1.bf16.msra.mxu0 %v8526
      %8552 = vmatprep.subr.bf16.mxu0 0
      %8553 = vmatpush1.bf16.msra.mxu0 %v8527
      %8554 = vmatprep.subr.bf16.mxu0 0
      %8555 = vmatpush1.bf16.msra.mxu0 %v8528
      %8556 = vmatprep.subr.bf16.mxu0 0
      %8557 = vmatpush1.bf16.msra.mxu0 %v8529
      %8558 = vmatprep.subr.bf16.mxu0 0
      %8559 = vmatpush1.bf16.msra.mxu0 %v8530
      %8560 = vmatprep.subr.bf16.mxu0 0
      %8561 = vmatpush1.bf16.msra.mxu0 %v8531
      %8562 = vmatprep.subr.bf16.mxu0 0
      %8563 = vmatpush1.bf16.msra.mxu0 0
      %8564 = vmatprep.subr.bf16.mxu0 0
      %8565 = vmatpush1.bf16.msra.mxu0 0
      %8566 = vmatprep.subr.bf16.mxu0 0
      %8567 = vmatpush1.bf16.msra.mxu0 0
      %8568 = vmatprep.subr.bf16.mxu0 0
      %8569 = vmatpush1.bf16.msra.mxu0 0
      %8570 = vmatprep.subr.bf16.mxu0 0
      %8571 = vmatpush1.bf16.msra.mxu0 0
      %8572 = vmatprep.subr.bf16.mxu0 0
      %8573 = vmatpush1.bf16.msra.mxu0 0
      %8574 = vmatprep.subr.bf16.mxu0 0
      %8575 = vmatpush1.bf16.msra.mxu0 0
      %8576 = vmatprep.mubr.bf16.mxu0 %v8542
      %8577 = vmatmul.mubr.bf16.gmra.mrb[0].mxu0 %v8103
      %v8578 = vpop.f32.mrb[0].mxu0
      %v8579 = vadd.f32 0.0, %v8578
      %v8580 = vpop.f32.mrb[0].mxu0
      %v8581 = vpop.f32.mrb[0].mxu0
      %v8582 = vadd.f32 0.0, %v8581
      %v8583 = vpop.f32.mrb[0].mxu0
      %8584 = vdwg.mxu0
      %v8585 = vadd.f32 %v8466, %v8579
      %v8586 = vadd.f32 %v8467, %v8582
      %s8587 = scalar_lea.vmem %s8, 288
      %v8588 = vld [vmem:[%s8587] sm:$0xf]
      %v8589 = vld [vmem:[%s8587 + $0x4] sm:$0xf]
      %v8590 = vld [vmem:[%s8587 + $0x8] sm:$0xf]
      %v8591 = vld [vmem:[%s8587 + $0xc] sm:$0xf]
      %v8592 = vld [vmem:[%s8587 + $0x10] sm:$0xf]
      %v8593 = vld [vmem:[%s8587 + $0x14] sm:$0xf]
      %v8594 = vld [vmem:[%s8587 + $0x18] sm:$0xf]
      %v8595 = vld [vmem:[%s8587 + $0x1c] sm:$0xf]
      %v8596 = vld [vmem:[%s8587 + $0x20] sm:$0xf]
      %v8597 = vld [vmem:[%s8587 + $0x24] sm:$0xf]
      %v8598 = vld [vmem:[%s8587 + $0x28] sm:$0xf]
      %v8599 = vld [vmem:[%s8587 + $0x2c] sm:$0xf]
      %v8600 = vld [vmem:[%s8587 + $0x30] sm:$0xf]
      %v8601 = vld [vmem:[%s8587 + $0x34] sm:$0xf]
      %v8602 = vld [vmem:[%s8587 + $0x38] sm:$0xf]
      %v8603 = vld [vmem:[%s8587 + $0x3c] sm:$0xf]
      %v8604 = vld [vmem:[%s8587 + $0x40] sm:$0xf]
      %v8605 = vld [vmem:[%s8587 + $0x44] sm:$0xf]
      %v8624 = vunpack.c.l.b16 %v8588
      %v8625 = vunpack.c.l.b16 %v8589
      %v8626 = vunpack.c.l.b16 %v8590
      %v8627 = vunpack.c.l.b16 %v8591
      %v8628 = vunpack.c.l.b16 %v8592
      %v8629 = vunpack.c.l.b16 %v8593
      %v8630 = vunpack.c.l.b16 %v8594
      %v8631 = vunpack.c.l.b16 %v8595
      %v8632 = vunpack.c.l.b16 %v8596
      %v8633 = vunpack.c.l.b16 %v8597
      %v8634 = vunpack.c.l.b16 %v8598
      %v8635 = vunpack.c.l.b16 %v8599
      %v8636 = vunpack.c.l.b16 %v8600
      %v8637 = vunpack.c.l.b16 %v8601
      %v8638 = vunpack.c.l.b16 %v8602
      %v8639 = vunpack.c.l.b16 %v8603
      %v8640 = vunpack.c.l.b16 %v8604
      %v8641 = vunpack.c.l.b16 %v8605
      %v8642 = vpack.c.b16 %v8625, %v8624
      %v8643 = vpack.c.b16 %v8627, %v8626
      %v8644 = vpack.c.b16 %v8629, %v8628
      %v8645 = vpack.c.b16 %v8631, %v8630
      %v8646 = vpack.c.b16 %v8633, %v8632
      %v8647 = vpack.c.b16 %v8635, %v8634
      %v8648 = vpack.c.b16 %v8637, %v8636
      %v8649 = vpack.c.b16 %v8639, %v8638
      %v8650 = vpack.c.b16 %v8641, %v8640
      %v8661 = vsel %vm8206, %v8106, 0
      %8663 = vmatprep.subr.bf16.mxu0 0
      %8664 = vmatpush1.bf16.msra.mxu0 %v8642
      %8665 = vmatprep.subr.bf16.mxu0 0
      %8666 = vmatpush1.bf16.msra.mxu0 %v8643
      %8667 = vmatprep.subr.bf16.mxu0 0
      %8668 = vmatpush1.bf16.msra.mxu0 %v8644
      %8669 = vmatprep.subr.bf16.mxu0 0
      %8670 = vmatpush1.bf16.msra.mxu0 %v8645
      %8671 = vmatprep.subr.bf16.mxu0 0
      %8672 = vmatpush1.bf16.msra.mxu0 %v8646
      %8673 = vmatprep.subr.bf16.mxu0 0
      %8674 = vmatpush1.bf16.msra.mxu0 %v8647
      %8675 = vmatprep.subr.bf16.mxu0 0
      %8676 = vmatpush1.bf16.msra.mxu0 %v8648
      %8677 = vmatprep.subr.bf16.mxu0 0
      %8678 = vmatpush1.bf16.msra.mxu0 %v8649
      %8679 = vmatprep.subr.bf16.mxu0 0
      %8680 = vmatpush1.bf16.msra.mxu0 %v8650
      %8681 = vmatprep.subr.bf16.mxu0 0
      %8682 = vmatpush1.bf16.msra.mxu0 0
      %8683 = vmatprep.subr.bf16.mxu0 0
      %8684 = vmatpush1.bf16.msra.mxu0 0
      %8685 = vmatprep.subr.bf16.mxu0 0
      %8686 = vmatpush1.bf16.msra.mxu0 0
      %8687 = vmatprep.subr.bf16.mxu0 0
      %8688 = vmatpush1.bf16.msra.mxu0 0
      %8689 = vmatprep.subr.bf16.mxu0 0
      %8690 = vmatpush1.bf16.msra.mxu0 0
      %8691 = vmatprep.subr.bf16.mxu0 0
      %8692 = vmatpush1.bf16.msra.mxu0 0
      %8693 = vmatprep.subr.bf16.mxu0 0
      %8694 = vmatpush1.bf16.msra.mxu0 0
      %8695 = vmatprep.mubr.bf16.mxu0 %v8661
      %8696 = vmatmul.mubr.bf16.gmra.mrb[0].mxu0 %v8105
      %v8697 = vpop.f32.mrb[0].mxu0
      %v8698 = vadd.f32 0.0, %v8697
      %v8699 = vpop.f32.mrb[0].mxu0
      %v8700 = vpop.f32.mrb[0].mxu0
      %v8701 = vadd.f32 0.0, %v8700
      %v8702 = vpop.f32.mrb[0].mxu0
      %8703 = vdwg.mxu0
      %v8704 = vadd.f32 %v8585, %v8698
      %v8705 = vadd.f32 %v8586, %v8701
      %s8706 = scalar_lea.vmem %s8, 360
      %v8707 = vld [vmem:[%s8706] sm:$0xf]
      %v8708 = vld [vmem:[%s8706 + $0x4] sm:$0xf]
      %v8709 = vld [vmem:[%s8706 + $0x8] sm:$0xf]
      %v8710 = vld [vmem:[%s8706 + $0xc] sm:$0xf]
      %v8711 = vld [vmem:[%s8706 + $0x10] sm:$0xf]
      %v8712 = vld [vmem:[%s8706 + $0x14] sm:$0xf]
      %v8713 = vld [vmem:[%s8706 + $0x18] sm:$0xf]
      %v8714 = vld [vmem:[%s8706 + $0x1c] sm:$0xf]
      %v8715 = vld [vmem:[%s8706 + $0x20] sm:$0xf]
      %v8716 = vld [vmem:[%s8706 + $0x24] sm:$0xf]
      %v8717 = vld [vmem:[%s8706 + $0x28] sm:$0xf]
      %v8718 = vld [vmem:[%s8706 + $0x2c] sm:$0xf]
      %v8719 = vld [vmem:[%s8706 + $0x30] sm:$0xf]
      %v8720 = vld [vmem:[%s8706 + $0x34] sm:$0xf]
      %v8721 = vld [vmem:[%s8706 + $0x38] sm:$0xf]
      %v8722 = vld [vmem:[%s8706 + $0x3c] sm:$0xf]
      %v8723 = vld [vmem:[%s8706 + $0x40] sm:$0xf]
      %v8724 = vld [vmem:[%s8706 + $0x44] sm:$0xf]
      %v8743 = vunpack.c.l.b16 %v8707
      %v8744 = vunpack.c.l.b16 %v8708
      %v8745 = vunpack.c.l.b16 %v8709
      %v8746 = vunpack.c.l.b16 %v8710
      %v8747 = vunpack.c.l.b16 %v8711
      %v8748 = vunpack.c.l.b16 %v8712
      %v8749 = vunpack.c.l.b16 %v8713
      %v8750 = vunpack.c.l.b16 %v8714
      %v8751 = vunpack.c.l.b16 %v8715
      %v8752 = vunpack.c.l.b16 %v8716
      %v8753 = vunpack.c.l.b16 %v8717
      %v8754 = vunpack.c.l.b16 %v8718
      %v8755 = vunpack.c.l.b16 %v8719
      %v8756 = vunpack.c.l.b16 %v8720
      %v8757 = vunpack.c.l.b16 %v8721
      %v8758 = vunpack.c.l.b16 %v8722
      %v8759 = vunpack.c.l.b16 %v8723
      %v8760 = vunpack.c.l.b16 %v8724
      %v8761 = vpack.c.b16 %v8744, %v8743
      %v8762 = vpack.c.b16 %v8746, %v8745
      %v8763 = vpack.c.b16 %v8748, %v8747
      %v8764 = vpack.c.b16 %v8750, %v8749
      %v8765 = vpack.c.b16 %v8752, %v8751
      %v8766 = vpack.c.b16 %v8754, %v8753
      %v8767 = vpack.c.b16 %v8756, %v8755
      %v8768 = vpack.c.b16 %v8758, %v8757
      %v8769 = vpack.c.b16 %v8760, %v8759
      %v8780 = vsel %vm8206, %v8108, 0
      %8782 = vmatprep.subr.bf16.mxu0 0
      %8783 = vmatpush1.bf16.msra.mxu0 %v8761
      %8784 = vmatprep.subr.bf16.mxu0 0
      %8785 = vmatpush1.bf16.msra.mxu0 %v8762
      %8786 = vmatprep.subr.bf16.mxu0 0
      %8787 = vmatpush1.bf16.msra.mxu0 %v8763
      %8788 = vmatprep.subr.bf16.mxu0 0
      %8789 = vmatpush1.bf16.msra.mxu0 %v8764
      %8790 = vmatprep.subr.bf16.mxu0 0
      %8791 = vmatpush1.bf16.msra.mxu0 %v8765
      %8792 = vmatprep.subr.bf16.mxu0 0
      %8793 = vmatpush1.bf16.msra.mxu0 %v8766
      %8794 = vmatprep.subr.bf16.mxu0 0
      %8795 = vmatpush1.bf16.msra.mxu0 %v8767
      %8796 = vmatprep.subr.bf16.mxu0 0
      %8797 = vmatpush1.bf16.msra.mxu0 %v8768
      %8798 = vmatprep.subr.bf16.mxu0 0
      %8799 = vmatpush1.bf16.msra.mxu0 %v8769
      %8800 = vmatprep.subr.bf16.mxu0 0
      %8801 = vmatpush1.bf16.msra.mxu0 0
      %8802 = vmatprep.subr.bf16.mxu0 0
      %8803 = vmatpush1.bf16.msra.mxu0 0
      %8804 = vmatprep.subr.bf16.mxu0 0
      %8805 = vmatpush1.bf16.msra.mxu0 0
      %8806 = vmatprep.subr.bf16.mxu0 0
      %8807 = vmatpush1.bf16.msra.mxu0 0
      %8808 = vmatprep.subr.bf16.mxu0 0
      %8809 = vmatpush1.bf16.msra.mxu0 0
      %8810 = vmatprep.subr.bf16.mxu0 0
      %8811 = vmatpush1.bf16.msra.mxu0 0
      %8812 = vmatprep.subr.bf16.mxu0 0
      %8813 = vmatpush1.bf16.msra.mxu0 0
      %8814 = vmatprep.mubr.bf16.mxu0 %v8780
      %8815 = vmatmul.mubr.bf16.gmra.mrb[0].mxu0 %v8107
      %v8816 = vpop.f32.mrb[0].mxu0
      %v8817 = vadd.f32 0.0, %v8816
      %v8818 = vpop.f32.mrb[0].mxu0
      %v8819 = vpop.f32.mrb[0].mxu0
      %v8820 = vadd.f32 0.0, %v8819
      %v8821 = vpop.f32.mrb[0].mxu0
      %8822 = vdwg.mxu0
      %v8823 = vadd.f32 %v8704, %v8817
      %v8824 = vadd.f32 %v8705, %v8820
      %s8825 = scalar_lea.vmem %s8, 432
      %v8826 = vld [vmem:[%s8825] sm:$0xf]
      %v8827 = vld [vmem:[%s8825 + $0x4] sm:$0xf]
      %v8828 = vld [vmem:[%s8825 + $0x8] sm:$0xf]
      %v8829 = vld [vmem:[%s8825 + $0xc] sm:$0xf]
      %v8830 = vld [vmem:[%s8825 + $0x10] sm:$0xf]
      %v8831 = vld [vmem:[%s8825 + $0x14] sm:$0xf]
      %v8832 = vld [vmem:[%s8825 + $0x18] sm:$0xf]
      %v8833 = vld [vmem:[%s8825 + $0x1c] sm:$0xf]
      %v8834 = vld [vmem:[%s8825 + $0x20] sm:$0xf]
      %v8835 = vld [vmem:[%s8825 + $0x24] sm:$0xf]
      %v8836 = vld [vmem:[%s8825 + $0x28] sm:$0xf]
      %v8837 = vld [vmem:[%s8825 + $0x2c] sm:$0xf]
      %v8838 = vld [vmem:[%s8825 + $0x30] sm:$0xf]
      %v8839 = vld [vmem:[%s8825 + $0x34] sm:$0xf]
      %v8840 = vld [vmem:[%s8825 + $0x38] sm:$0xf]
      %v8841 = vld [vmem:[%s8825 + $0x3c] sm:$0xf]
      %v8842 = vld [vmem:[%s8825 + $0x40] sm:$0xf]
      %v8843 = vld [vmem:[%s8825 + $0x44] sm:$0xf]
      %v8862 = vunpack.c.l.b16 %v8826
      %v8863 = vunpack.c.l.b16 %v8827
      %v8864 = vunpack.c.l.b16 %v8828
      %v8865 = vunpack.c.l.b16 %v8829
      %v8866 = vunpack.c.l.b16 %v8830
      %v8867 = vunpack.c.l.b16 %v8831
      %v8868 = vunpack.c.l.b16 %v8832
      %v8869 = vunpack.c.l.b16 %v8833
      %v8870 = vunpack.c.l.b16 %v8834
      %v8871 = vunpack.c.l.b16 %v8835
      %v8872 = vunpack.c.l.b16 %v8836
      %v8873 = vunpack.c.l.b16 %v8837
      %v8874 = vunpack.c.l.b16 %v8838
      %v8875 = vunpack.c.l.b16 %v8839
      %v8876 = vunpack.c.l.b16 %v8840
      %v8877 = vunpack.c.l.b16 %v8841
      %v8878 = vunpack.c.l.b16 %v8842
      %v8879 = vunpack.c.l.b16 %v8843
      %v8880 = vpack.c.b16 %v8863, %v8862
      %v8881 = vpack.c.b16 %v8865, %v8864
      %v8882 = vpack.c.b16 %v8867, %v8866
      %v8883 = vpack.c.b16 %v8869, %v8868
      %v8884 = vpack.c.b16 %v8871, %v8870
      %v8885 = vpack.c.b16 %v8873, %v8872
      %v8886 = vpack.c.b16 %v8875, %v8874
      %v8887 = vpack.c.b16 %v8877, %v8876
      %v8888 = vpack.c.b16 %v8879, %v8878
      %v8899 = vsel %vm8206, %v8110, 0
      %8901 = vmatprep.subr.bf16.mxu0 0
      %8902 = vmatpush1.bf16.msra.mxu0 %v8880
      %8903 = vmatprep.subr.bf16.mxu0 0
      %8904 = vmatpush1.bf16.msra.mxu0 %v8881
      %8905 = vmatprep.subr.bf16.mxu0 0
      %8906 = vmatpush1.bf16.msra.mxu0 %v8882
      %8907 = vmatprep.subr.bf16.mxu0 0
      %8908 = vmatpush1.bf16.msra.mxu0 %v8883
      %8909 = vmatprep.subr.bf16.mxu0 0
      %8910 = vmatpush1.bf16.msra.mxu0 %v8884
      %8911 = vmatprep.subr.bf16.mxu0 0
      %8912 = vmatpush1.bf16.msra.mxu0 %v8885
      %8913 = vmatprep.subr.bf16.mxu0 0
      %8914 = vmatpush1.bf16.msra.mxu0 %v8886
      %8915 = vmatprep.subr.bf16.mxu0 0
      %8916 = vmatpush1.bf16.msra.mxu0 %v8887
      %8917 = vmatprep.subr.bf16.mxu0 0
      %8918 = vmatpush1.bf16.msra.mxu0 %v8888
      %8919 = vmatprep.subr.bf16.mxu0 0
      %8920 = vmatpush1.bf16.msra.mxu0 0
      %8921 = vmatprep.subr.bf16.mxu0 0
      %8922 = vmatpush1.bf16.msra.mxu0 0
      %8923 = vmatprep.subr.bf16.mxu0 0
      %8924 = vmatpush1.bf16.msra.mxu0 0
      %8925 = vmatprep.subr.bf16.mxu0 0
      %8926 = vmatpush1.bf16.msra.mxu0 0
      %8927 = vmatprep.subr.bf16.mxu0 0
      %8928 = vmatpush1.bf16.msra.mxu0 0
      %8929 = vmatprep.subr.bf16.mxu0 0
      %8930 = vmatpush1.bf16.msra.mxu0 0
      %8931 = vmatprep.subr.bf16.mxu0 0
      %8932 = vmatpush1.bf16.msra.mxu0 0
      %8933 = vmatprep.mubr.bf16.mxu0 %v8899
      %8934 = vmatmul.mubr.bf16.gmra.mrb[0].mxu0 %v8109
      %v8935 = vpop.f32.mrb[0].mxu0
      %v8936 = vadd.f32 0.0, %v8935
      %v8937 = vpop.f32.mrb[0].mxu0
      %v8938 = vpop.f32.mrb[0].mxu0
      %v8939 = vadd.f32 0.0, %v8938
      %v8940 = vpop.f32.mrb[0].mxu0
      %8941 = vdwg.mxu0
      %v8942 = vadd.f32 %v8823, %v8936
      %v8943 = vadd.f32 %v8824, %v8939
      %s8944 = scalar_lea.vmem %s8, 504
      %v8945 = vld [vmem:[%s8944] sm:$0xf]
      %v8946 = vld [vmem:[%s8944 + $0x4] sm:$0xf]
      %v8947 = vld [vmem:[%s8944 + $0x8] sm:$0xf]
      %v8948 = vld [vmem:[%s8944 + $0xc] sm:$0xf]
      %v8949 = vld [vmem:[%s8944 + $0x10] sm:$0xf]
      %v8950 = vld [vmem:[%s8944 + $0x14] sm:$0xf]
      %v8951 = vld [vmem:[%s8944 + $0x18] sm:$0xf]
      %v8952 = vld [vmem:[%s8944 + $0x1c] sm:$0xf]
      %v8953 = vld [vmem:[%s8944 + $0x20] sm:$0xf]
      %v8954 = vld [vmem:[%s8944 + $0x24] sm:$0xf]
      %v8955 = vld [vmem:[%s8944 + $0x28] sm:$0xf]
      %v8956 = vld [vmem:[%s8944 + $0x2c] sm:$0xf]
      %v8957 = vld [vmem:[%s8944 + $0x30] sm:$0xf]
      %v8958 = vld [vmem:[%s8944 + $0x34] sm:$0xf]
      %v8959 = vld [vmem:[%s8944 + $0x38] sm:$0xf]
      %v8960 = vld [vmem:[%s8944 + $0x3c] sm:$0xf]
      %v8961 = vld [vmem:[%s8944 + $0x40] sm:$0xf]
      %v8962 = vld [vmem:[%s8944 + $0x44] sm:$0xf]
      %v8981 = vunpack.c.l.b16 %v8945
      %v8982 = vunpack.c.l.b16 %v8946
      %v8983 = vunpack.c.l.b16 %v8947
      %v8984 = vunpack.c.l.b16 %v8948
      %v8985 = vunpack.c.l.b16 %v8949
      %v8986 = vunpack.c.l.b16 %v8950
      %v8987 = vunpack.c.l.b16 %v8951
      %v8988 = vunpack.c.l.b16 %v8952
      %v8989 = vunpack.c.l.b16 %v8953
      %v8990 = vunpack.c.l.b16 %v8954
      %v8991 = vunpack.c.l.b16 %v8955
      %v8992 = vunpack.c.l.b16 %v8956
      %v8993 = vunpack.c.l.b16 %v8957
      %v8994 = vunpack.c.l.b16 %v8958
      %v8995 = vunpack.c.l.b16 %v8959
      %v8996 = vunpack.c.l.b16 %v8960
      %v8997 = vunpack.c.l.b16 %v8961
      %v8998 = vunpack.c.l.b16 %v8962
      %v8999 = vpack.c.b16 %v8982, %v8981
      %v9000 = vpack.c.b16 %v8984, %v8983
      %v9001 = vpack.c.b16 %v8986, %v8985
      %v9002 = vpack.c.b16 %v8988, %v8987
      %v9003 = vpack.c.b16 %v8990, %v8989
      %v9004 = vpack.c.b16 %v8992, %v8991
      %v9005 = vpack.c.b16 %v8994, %v8993
      %v9006 = vpack.c.b16 %v8996, %v8995
      %v9007 = vpack.c.b16 %v8998, %v8997
      %v9018 = vsel %vm8206, %v8112, 0
      %9020 = vmatprep.subr.bf16.mxu0 0
      %9021 = vmatpush1.bf16.msra.mxu0 %v8999
      %9022 = vmatprep.subr.bf16.mxu0 0
      %9023 = vmatpush1.bf16.msra.mxu0 %v9000
      %9024 = vmatprep.subr.bf16.mxu0 0
      %9025 = vmatpush1.bf16.msra.mxu0 %v9001
      %9026 = vmatprep.subr.bf16.mxu0 0
      %9027 = vmatpush1.bf16.msra.mxu0 %v9002
      %9028 = vmatprep.subr.bf16.mxu0 0
      %9029 = vmatpush1.bf16.msra.mxu0 %v9003
      %9030 = vmatprep.subr.bf16.mxu0 0
      %9031 = vmatpush1.bf16.msra.mxu0 %v9004
      %9032 = vmatprep.subr.bf16.mxu0 0
      %9033 = vmatpush1.bf16.msra.mxu0 %v9005
      %9034 = vmatprep.subr.bf16.mxu0 0
      %9035 = vmatpush1.bf16.msra.mxu0 %v9006
      %9036 = vmatprep.subr.bf16.mxu0 0
      %9037 = vmatpush1.bf16.msra.mxu0 %v9007
      %9038 = vmatprep.subr.bf16.mxu0 0
      %9039 = vmatpush1.bf16.msra.mxu0 0
      %9040 = vmatprep.subr.bf16.mxu0 0
      %9041 = vmatpush1.bf16.msra.mxu0 0
      %9042 = vmatprep.subr.bf16.mxu0 0
      %9043 = vmatpush1.bf16.msra.mxu0 0
      %9044 = vmatprep.subr.bf16.mxu0 0
      %9045 = vmatpush1.bf16.msra.mxu0 0
      %9046 = vmatprep.subr.bf16.mxu0 0
      %9047 = vmatpush1.bf16.msra.mxu0 0
      %9048 = vmatprep.subr.bf16.mxu0 0
      %9049 = vmatpush1.bf16.msra.mxu0 0
      %9050 = vmatprep.subr.bf16.mxu0 0
      %9051 = vmatpush1.bf16.msra.mxu0 0
      %9052 = vmatprep.mubr.bf16.mxu0 %v9018
      %9053 = vmatmul.mubr.bf16.gmra.mrb[0].mxu0 %v8111
      %v9054 = vpop.f32.mrb[0].mxu0
      %v9055 = vadd.f32 0.0, %v9054
      %v9056 = vpop.f32.mrb[0].mxu0
      %v9057 = vpop.f32.mrb[0].mxu0
      %v9058 = vadd.f32 0.0, %v9057
      %v9059 = vpop.f32.mrb[0].mxu0
      %9060 = vdwg.mxu0
      %v9061 = vadd.f32 %v8942, %v9055
      %v9062 = vadd.f32 %v8943, %v9058
      %s9063 = scalar_lea.vmem %s8, 576
      %v9064 = vld [vmem:[%s9063] sm:$0xf]
      %v9065 = vld [vmem:[%s9063 + $0x4] sm:$0xf]
      %v9066 = vld [vmem:[%s9063 + $0x8] sm:$0xf]
      %v9067 = vld [vmem:[%s9063 + $0xc] sm:$0xf]
      %v9068 = vld [vmem:[%s9063 + $0x10] sm:$0xf]
      %v9069 = vld [vmem:[%s9063 + $0x14] sm:$0xf]
      %v9070 = vld [vmem:[%s9063 + $0x18] sm:$0xf]
      %v9071 = vld [vmem:[%s9063 + $0x1c] sm:$0xf]
      %v9072 = vld [vmem:[%s9063 + $0x20] sm:$0xf]
      %v9073 = vld [vmem:[%s9063 + $0x24] sm:$0xf]
      %v9074 = vld [vmem:[%s9063 + $0x28] sm:$0xf]
      %v9075 = vld [vmem:[%s9063 + $0x2c] sm:$0xf]
      %v9076 = vld [vmem:[%s9063 + $0x30] sm:$0xf]
      %v9077 = vld [vmem:[%s9063 + $0x34] sm:$0xf]
      %v9078 = vld [vmem:[%s9063 + $0x38] sm:$0xf]
      %v9079 = vld [vmem:[%s9063 + $0x3c] sm:$0xf]
      %v9080 = vld [vmem:[%s9063 + $0x40] sm:$0xf]
      %v9081 = vld [vmem:[%s9063 + $0x44] sm:$0xf]
      %v9100 = vunpack.c.l.b16 %v9064
      %v9101 = vunpack.c.l.b16 %v9065
      %v9102 = vunpack.c.l.b16 %v9066
      %v9103 = vunpack.c.l.b16 %v9067
      %v9104 = vunpack.c.l.b16 %v9068
      %v9105 = vunpack.c.l.b16 %v9069
      %v9106 = vunpack.c.l.b16 %v9070
      %v9107 = vunpack.c.l.b16 %v9071
      %v9108 = vunpack.c.l.b16 %v9072
      %v9109 = vunpack.c.l.b16 %v9073
      %v9110 = vunpack.c.l.b16 %v9074
      %v9111 = vunpack.c.l.b16 %v9075
      %v9112 = vunpack.c.l.b16 %v9076
      %v9113 = vunpack.c.l.b16 %v9077
      %v9114 = vunpack.c.l.b16 %v9078
      %v9115 = vunpack.c.l.b16 %v9079
      %v9116 = vunpack.c.l.b16 %v9080
      %v9117 = vunpack.c.l.b16 %v9081
      %v9118 = vpack.c.b16 %v9101, %v9100
      %v9119 = vpack.c.b16 %v9103, %v9102
      %v9120 = vpack.c.b16 %v9105, %v9104
      %v9121 = vpack.c.b16 %v9107, %v9106
      %v9122 = vpack.c.b16 %v9109, %v9108
      %v9123 = vpack.c.b16 %v9111, %v9110
      %v9124 = vpack.c.b16 %v9113, %v9112
      %v9125 = vpack.c.b16 %v9115, %v9114
      %v9126 = vpack.c.b16 %v9117, %v9116
      %v9137 = vsel %vm8206, %v8114, 0
      %9139 = vmatprep.subr.bf16.mxu0 0
      %9140 = vmatpush1.bf16.msra.mxu0 %v9118
      %9141 = vmatprep.subr.bf16.mxu0 0
      %9142 = vmatpush1.bf16.msra.mxu0 %v9119
      %9143 = vmatprep.subr.bf16.mxu0 0
      %9144 = vmatpush1.bf16.msra.mxu0 %v9120
      %9145 = vmatprep.subr.bf16.mxu0 0
      %9146 = vmatpush1.bf16.msra.mxu0 %v9121
      %9147 = vmatprep.subr.bf16.mxu0 0
      %9148 = vmatpush1.bf16.msra.mxu0 %v9122
      %9149 = vmatprep.subr.bf16.mxu0 0
      %9150 = vmatpush1.bf16.msra.mxu0 %v9123
      %9151 = vmatprep.subr.bf16.mxu0 0
      %9152 = vmatpush1.bf16.msra.mxu0 %v9124
      %9153 = vmatprep.subr.bf16.mxu0 0
      %9154 = vmatpush1.bf16.msra.mxu0 %v9125
      %9155 = vmatprep.subr.bf16.mxu0 0
      %9156 = vmatpush1.bf16.msra.mxu0 %v9126
      %9157 = vmatprep.subr.bf16.mxu0 0
      %9158 = vmatpush1.bf16.msra.mxu0 0
      %9159 = vmatprep.subr.bf16.mxu0 0
      %9160 = vmatpush1.bf16.msra.mxu0 0
      %9161 = vmatprep.subr.bf16.mxu0 0
      %9162 = vmatpush1.bf16.msra.mxu0 0
      %9163 = vmatprep.subr.bf16.mxu0 0
      %9164 = vmatpush1.bf16.msra.mxu0 0
      %9165 = vmatprep.subr.bf16.mxu0 0
      %9166 = vmatpush1.bf16.msra.mxu0 0
      %9167 = vmatprep.subr.bf16.mxu0 0
      %9168 = vmatpush1.bf16.msra.mxu0 0
      %9169 = vmatprep.subr.bf16.mxu0 0
      %9170 = vmatpush1.bf16.msra.mxu0 0
      %9171 = vmatprep.mubr.bf16.mxu0 %v9137
      %9172 = vmatmul.mubr.bf16.gmra.mrb[0].mxu0 %v8113
      %v9173 = vpop.f32.mrb[0].mxu0
      %v9174 = vadd.f32 0.0, %v9173
      %v9175 = vpop.f32.mrb[0].mxu0
      %v9176 = vpop.f32.mrb[0].mxu0
      %v9177 = vadd.f32 0.0, %v9176
      %v9178 = vpop.f32.mrb[0].mxu0
      %9179 = vdwg.mxu0
      %v9180 = vadd.f32 %v9061, %v9174
      %v9181 = vadd.f32 %v9062, %v9177
      %v9182 = vld [vmem:[%s7] sm:$0xff]
      %v9183 = vld [vmem:[%s7 + $0x8] sm:$0xff]
      %9185 = vset.pattern.permute.xlu0 0
      %9186 = vperm.xlu0 %9185, %v9182
      %v9187 = vpop.permute.xlu0 %9186
      %9190 = vset.pattern.permute.xlu0 0
      %9191 = vperm.xlu0 %9190, %v9183
      %v9192 = vpop.permute.xlu0 %9191
      %v9194 = vadd.f32 %v9180, %v9187
      %v9195 = vadd.f32 %v9181, %v9192
      %v9196 = vmax.f32 %v9194, 0.0
      %v9197 = vmax.f32 %v9195, 0.0
      %v9198 = vpack.c.bf16 %v9197, %v9196
      %v9200 = vunpack.c.l.b16 %v9198
      %v9201 = vunpack.c.h.b16 %v9198
      %v9202 = vpack.c.b16 %v9200, %v9200
      %v9203 = vpack.c.b16 %v9201, %v9201
      %vm9206 = vcmask 289792
      %9207 = vst.msk [vmem:[%s332] sm:$0xf] %vm9206, %v9202
      %9208 = vst.msk [vmem:[%s332 + $0x4] sm:$0xf] %vm9206, %v9203
      %p9209 = scmp.lt.s32.totalorder %s20, 1
      %s9210 = scalar_select %p9209, %s20, 1
      %s9211 = smul.addr %s9210, 2
      %s9212 = smul.addr %s9211, 4
      %s9213 = scalar_lea.vmem %s9, %s9212
      // Predicated region
      $region57: #{actor_forward.4} parent=55 // pred_check
        %p9214 = pneg %p232
      $region58: #{actor_forward.4} parent=55 // pred_check_branch
        %9216 = sbr.rel (%p9214) target = $region60
      $region59: #{actor_forward.4} parent=55 // pred_region
        _
      $region60: #{actor_forward.4} parent=55 // pred_fallthru
        _
    $region56: #{actor_forward.4} parent=5 // pred_fallthru
      _
    %p9217 = scmp.le.s32.totalorder 2, %s15
    // Predicated region
    $region61: #{actor_forward.4} parent=5 // pred_check
      %p9218 = pneg %p9217
    $region62: #{actor_forward.4} parent=5 // pred_check_branch
      %9220 = sbr.rel (%p9218) target = $region64
    $region63: #{actor_forward.4} parent=5 // pred_region
      %s9221 = ssub.s32 %s15, 2
      // Predicated region
      $region65: #{actor_forward.4} parent=63 // pred_check
        %p9222 = pneg %p238
      $region66: #{actor_forward.4} parent=63 // pred_check_branch
        %9224 = sbr.rel (%p9222) target = $region68
      $region67: #{actor_forward.4} parent=63 // pred_region
        %p9225 = scmp.lt.s32.totalorder %s21, 1
        %s9226 = scalar_select %p9225, %s21, 1
        %s9227 = smul.addr %s9226, 2
        %s9228 = smul.addr %s9227, 4
        %s9229 = scalar_lea.vmem %s9, %s9228
      $region68: #{actor_forward.4} parent=63 // pred_fallthru
        _
    $region64: #{actor_forward.4} parent=5 // pred_fallthru
      _
  $region6: #{actor_forward.4} parent=0 // loop_footer
    %s19 = sadd.s32 1, %s15
  $region7: #{actor_forward.4} parent=0 // loop_footer_branch
    %14 = sbr.rel target = $region3
  $region8: #{actor_forward.4} parent=0 // loop_exit
    _

</llo_original>
